<compile_context>
chip_gen: v7x
topology: tpu7x:2x2x1
jax: 0.10.0
libtpu: 0.0.40
codegen_flags: <defaults>
</compile_context>

<pallas_src>
import functools

import jax
import jax.numpy as jnp
from jax.experimental import pallas as pl
from jax.experimental.pallas import tpu as pltpu

# ---------------- configuration (scaled-down, structure-preserving) ---------
B           = 2        # batch
NUM_FRAMES  = 2        # num_frames            (4 in original)
IMG         = 64       # image size            (256 in original)
PATCH       = 32       # backbone stride       (resnet50 /32 in original)
FEAT        = 128      # backbone feature dim  (2048 in original)
EMB         = 128      # emb_dim               (768 in original)
NH          = 4        # num_heads             (12 in original)
HD          = EMB // NH
MLP         = 256      # mlp_dim               (3072 in original)
NLAYERS     = 2        # num_layers            (12 in original)
GH = GW     = IMG // PATCH
NUM_PATCHES = GH * GW * NUM_FRAMES
SEQ         = NUM_PATCHES + 1
# decoder (channels / base spatial scaled down, same block structure)
DEC_C0, DEC_S0          = 32, 4     # (256, 16) in original
DEC_C1, DEC_C2, DEC_NC  = 16, 8, 4  # (128, 64, 32) in original
BN_EPS = 1e-5
LN_EPS = 1e-5


def _round_up(x, m):
    return (x + m - 1) // m * m


def _m_tiles(M, block_m):
    if M <= block_m:
        tm = _round_up(M, 8)
        return tm, tm
    return block_m, _round_up(M, block_m)


def _bf16(v):
    return v.astype(jnp.bfloat16)


def _act_f32(y, act):
    if act == "relu":
        return jnp.maximum(y, 0.0)
    if act == "gelu":
        # TODO(synk): PyTorch nn.GELU() is exact erf-GELU; tanh approximation used here.
        return 0.5 * y * (1.0 + jnp.tanh(0.7978845608028654 * (y + 0.044715 * y * y * y)))
    if act == "elu":
        return jnp.where(y > 0, y, jnp.exp(jnp.minimum(y, 0.0)) - 1.0)
    if act == "tanh":
        return jnp.tanh(y)
    return y


def _layernorm_f32(x, g, b):
    mu = jnp.mean(x, axis=-1, keepdims=True)
    var = jnp.mean((x - mu) ** 2, axis=-1, keepdims=True)
    return (x - mu) * jax.lax.rsqrt(var + LN_EPS) * g + b


# ---------------------------- Pallas kernels --------------------------------
def _mm_bias_act_kernel(a_ref, w_ref, b_ref, o_ref, *, act):
    y = jnp.dot(_bf16(a_ref[...]), _bf16(w_ref[...]),
                preferred_element_type=jnp.float32) + b_ref[...]
    o_ref[...] = _act_f32(y, act)


def pallas_linear(a, w, b=None, act="none", block_m=512):
    """y = act(a @ w + b); bf16 MXU operands, f32 accumulation; pads only if needed."""
    a = a.astype(jnp.float32)
    w = w.astype(jnp.float32)
    M, K = a.shape
    K2, N = w.shape
    assert K == K2
    if b is None:
        b = jnp.zeros((N,), jnp.float32)
    Kp = K if K % 128 == 0 else _round_up(K, 128)
    Np = N if N % 128 == 0 else _round_up(N, 128)
    tm, Mp = _m_tiles(M, block_m)
    a_p = a if (Mp == M and Kp == K) else jnp.pad(a, ((0, Mp - M), (0, Kp - K)))
    w_p = w if (Kp == K and Np == N) else jnp.pad(w, ((0, Kp - K), (0, Np - N)))
    b_p = b.astype(jnp.float32).reshape(1, N)
    if Np != N:
        b_p = jnp.pad(b_p, ((0, 0), (0, Np - N)))
    out = pl.pallas_call(
        functools.partial(_mm_bias_act_kernel, act=act),
        out_shape=jax.ShapeDtypeStruct((Mp, Np), jnp.float32),
        grid=(Mp // tm,),
        in_specs=[
            pl.BlockSpec((tm, Kp), lambda i: (i, 0)),
            pl.BlockSpec((Kp, Np), lambda i: (0, 0)),
            pl.BlockSpec((1, Np), lambda i: (0, 0)),
        ],
        out_specs=pl.BlockSpec((tm, Np), lambda i: (i, 0)),
        compiler_params=pltpu.CompilerParams(dimension_semantics=("parallel",)),
    )(a_p, w_p, b_p)
    if Mp == M and Np == N:
        return out
    return out[:M, :N]


def _ln_mm_kernel(x_ref, g_ref, bln_ref, w_ref, b_ref, o_ref, *, act):
    xn = _layernorm_f32(x_ref[...], g_ref[...], bln_ref[...])
    y = jnp.dot(_bf16(xn), _bf16(w_ref[...]),
                preferred_element_type=jnp.float32) + b_ref[...]
    o_ref[...] = _act_f32(y, act)


def pallas_ln_linear(x, gamma, beta, w, b, act="none", block_m=512):
    """y = act(LayerNorm(x) @ w + b) fused in one kernel (LN prologue on the tile)."""
    x = x.astype(jnp.float32)
    w = w.astype(jnp.float32)
    M, K = x.shape
    K2, N = w.shape
    assert K == K2 and K % 128 == 0
    Np = N if N % 128 == 0 else _round_up(N, 128)
    tm, Mp = _m_tiles(M, block_m)
    x_p = x if Mp == M else jnp.pad(x, ((0, Mp - M), (0, 0)))
    w_p = w if Np == N else jnp.pad(w, ((0, 0), (0, Np - N)))
    b_p = b.astype(jnp.float32).reshape(1, N)
    if Np != N:
        b_p = jnp.pad(b_p, ((0, 0), (0, Np - N)))
    out = pl.pallas_call(
        functools.partial(_ln_mm_kernel, act=act),
        out_shape=jax.ShapeDtypeStruct((Mp, Np), jnp.float32),
        grid=(Mp // tm,),
        in_specs=[
            pl.BlockSpec((tm, K), lambda i: (i, 0)),
            pl.BlockSpec((1, K), lambda i: (0, 0)),
            pl.BlockSpec((1, K), lambda i: (0, 0)),
            pl.BlockSpec((K, Np), lambda i: (0, 0)),
            pl.BlockSpec((1, Np), lambda i: (0, 0)),
        ],
        out_specs=pl.BlockSpec((tm, Np), lambda i: (i, 0)),
        compiler_params=pltpu.CompilerParams(dimension_semantics=("parallel",)),
    )(x_p, gamma.reshape(1, K).astype(jnp.float32),
      beta.reshape(1, K).astype(jnp.float32), w_p, b_p)
    if Mp == M and Np == N:
        return out
    return out[:M, :N]


def _mlp_kernel(x_ref, g_ref, bln_ref, w1_ref, b1_ref, w2_ref, b2_ref, o_ref):
    x = x_ref[...]
    xn = _layernorm_f32(x, g_ref[...], bln_ref[...])
    t = jnp.dot(_bf16(xn), _bf16(w1_ref[...]),
                preferred_element_type=jnp.float32) + b1_ref[...]
    t = _act_f32(t, "gelu")
    y = jnp.dot(_bf16(t), _bf16(w2_ref[...]),
                preferred_element_type=jnp.float32) + b2_ref[...]
    o_ref[...] = y + x        # residual add fused into the epilogue


def pallas_mlp(x, gamma, beta, w1, b1, w2, b2, block_m=512):
    """out = x + fc2(GELU(fc1(LayerNorm(x)))) — one kernel, intermediate stays on-chip."""
    x = x.astype(jnp.float32)
    M, K = x.shape
    H = w1.shape[1]
    assert K % 128 == 0 and H % 128 == 0 and w2.shape[1] == K
    tm, Mp = _m_tiles(M, block_m)
    x_p = x if Mp == M else jnp.pad(x, ((0, Mp - M), (0, 0)))
    out = pl.pallas_call(
        _mlp_kernel,
        out_shape=jax.ShapeDtypeStruct((Mp, K), jnp.float32),
        grid=(Mp // tm,),
        in_specs=[
            pl.BlockSpec((tm, K), lambda i: (i, 0)),
            pl.BlockSpec((1, K), lambda i: (0, 0)),
            pl.BlockSpec((1, K), lambda i: (0, 0)),
            pl.BlockSpec((K, H), lambda i: (0, 0)),
            pl.BlockSpec((1, H), lambda i: (0, 0)),
            pl.BlockSpec((H, K), lambda i: (0, 0)),
            pl.BlockSpec((1, K), lambda i: (0, 0)),
        ],
        out_specs=pl.BlockSpec((tm, K), lambda i: (i, 0)),
        compiler_params=pltpu.CompilerParams(dimension_semantics=("parallel",)),
    )(x_p, gamma.reshape(1, K).astype(jnp.float32),
      beta.reshape(1, K).astype(jnp.float32),
      w1.astype(jnp.float32), b1.reshape(1, H).astype(jnp.float32),
      w2.astype(jnp.float32), b2.reshape(1, K).astype(jnp.float32))
    return out[:M] if Mp != M else out


def _attn_kernel(qkv_ref, x_ref, wo_ref, bo_ref, o_ref, *, nh, hd, inv_scale):
    e = nh * hd
    qkv = qkv_ref[0]                                   # (n, 3*E)
    heads = []
    for h in range(nh):                                # all heads in one grid step
        qh = _bf16(qkv[:, h * hd:(h + 1) * hd])
        kh = _bf16(qkv[:, e + h * hd:e + (h + 1) * hd])
        vh = _bf16(qkv[:, 2 * e + h * hd:2 * e + (h + 1) * hd])
        s = jax.lax.dot_general(qh, kh, (((1,), (1,)), ((), ())),
                                preferred_element_type=jnp.float32) * inv_scale
        s = s - jnp.max(s, axis=-1, keepdims=True)
        p = jnp.exp(s)
        p = p * pl.reciprocal(jnp.sum(p, axis=-1, keepdims=True), approx=True)
        heads.append(jnp.dot(_bf16(p), vh, preferred_element_type=jnp.float32))
    o = jnp.concatenate(heads, axis=-1)                # (n, E) lane-dense slab
    y = jnp.dot(_bf16(o), _bf16(wo_ref[...]), preferred_element_type=jnp.float32)
    o_ref[0] = y + bo_ref[...] + x_ref[0]              # out-proj + bias + residual fused


def pallas_attention(qkv, x_res, wo, bo):
    # qkv: (B, N, 3*EMB); x_res: (B, N, EMB) residual; output: (B, N, EMB)
    b, n, e3 = qkv.shape
    e = x_res.shape[-1]
    return pl.pallas_call(
        functools.partial(_attn_kernel, nh=NH, hd=HD, inv_scale=1.0 / float(HD) ** 0.5),
        out_shape=jax.ShapeDtypeStruct((b, n, e), jnp.float32),
        grid=(b,),
        in_specs=[
            pl.BlockSpec((1, n, e3), lambda i: (i, 0, 0)),
            pl.BlockSpec((1, n, e), lambda i: (i, 0, 0)),
            pl.BlockSpec((e, e), lambda i: (0, 0)),
            pl.BlockSpec((1, e), lambda i: (0, 0)),
        ],
        out_specs=pl.BlockSpec((1, n, e), lambda i: (i, 0, 0)),
        compiler_params=pltpu.CompilerParams(dimension_semantics=("parallel",)),
    )(qkv.astype(jnp.float32), x_res.astype(jnp.float32),
      wo.astype(jnp.float32), bo.reshape(1, e).astype(jnp.float32))


# --------------------------- conv via im2col + matmul ------------------------
def _im2col(xp, kh, kw, stride, Ho, Wo):
    # xp: (B, C, Hp, Wp) already padded
    cols = []
    for dh in range(kh):
        for dw in range(kw):
            cols.append(xp[:, :, dh:dh + stride * Ho:stride, dw:dw + stride * Wo:stride])
    col = jnp.stack(cols, axis=2)                   # (B, C, kh*kw, Ho, Wo)
    col = col.transpose(0, 3, 4, 1, 2)              # (B, Ho, Wo, C, kh*kw)
    Bn = col.shape[0]
    return col.reshape(Bn * Ho * Wo, -1)            # rows: (b, h, w); cols: (c, kh, kw)


def _conv_core(xp, w_conv, b, stride, act, bn):
    Bn, Cin, Hp, Wp = xp.shape
    Cout, _, kh, kw = w_conv.shape
    Ho = (Hp - kh) // stride + 1
    Wo = (Wp - kw) // stride + 1
    col = _im2col(xp, kh, kw, stride, Ho, Wo)
    wmat = w_conv.reshape(Cout, Cin * kh * kw).T
    bias = b.astype(jnp.float32)
    if bn is not None:  # fold inference BatchNorm into the matmul
        scale = bn["gamma"] * jax.lax.rsqrt(bn["var"] + BN_EPS)
        shift = bn["beta"] - bn["mean"] * scale
        wmat = wmat * scale[None, :]
        bias = bias * scale + shift
    y = pallas_linear(col, wmat, bias, act=act, block_m=512)   # (B*Ho*Wo, Cout)
    return y.reshape(Bn, Ho, Wo, Cout).transpose(0, 3, 1, 2)


def conv2d(x, w, b, stride=1, padding=1, act="none", bn=None):
    xp = jnp.pad(x, ((0, 0), (0, 0), (padding, padding), (padding, padding)))
    return _conv_core(xp, w, b, stride, act, bn)


def conv_transpose2d(x, w_t, b, stride, padding, output_padding, act="none", bn=None):
    # w_t: PyTorch ConvTranspose2d layout (Cin, Cout, kh, kw)
    Bn, C, H, W = x.shape
    kh = w_t.shape[2]
    Hd, Wd = (H - 1) * stride + 1, (W - 1) * stride + 1
    xd = jnp.zeros((Bn, C, Hd, Wd), x.dtype).at[:, :, ::stride, ::stride].set(x)
    p0 = kh - 1 - padding
    p1 = kh - 1 - padding + output_padding
    xp = jnp.pad(xd, ((0, 0), (0, 0), (p0, p1), (p0, p1)))
    w_conv = jnp.flip(w_t, axis=(2, 3)).transpose(1, 0, 2, 3)  # (Cout, Cin, kh, kw)
    return _conv_core(xp, w_conv, b, 1, act, bn)


# ------------------------------- model parts ---------------------------------
def encoder_block(p, x):
    b, n, d = x.shape
    x2 = x.reshape(b * n, d)
    # LN1 + fused QKV projection (one pallas_call)
    qkv = pallas_ln_linear(x2, p["ln1_g"], p["ln1_b"], p["wqkv"], p["bqkv"])
    qkv = qkv.reshape(b, n, 3 * d)
    # all-heads attention + output projection + residual (one pallas_call per batch elem)
    h = pallas_attention(qkv, x, p["wo"], p["bo"])
    # LN2 + fc1 + GELU + fc2 + residual (one pallas_call)
    out = pallas_mlp(h.reshape(b * n, d), p["ln2_g"], p["ln2_b"],
                     p["fc1_w"], p["fc1_b"], p["fc2_w"], p["fc2_b"])
    return out.reshape(b, n, d)


def decoder_forward(d, z):
    # z: (B, DEC_C0*DEC_S0*DEC_S0) — already LN'd, densed and ELU'd
    b = z.shape[0]
    h = z.reshape(b, DEC_C0, DEC_S0, DEC_S0)
    # Basic(C0, C1)
    h = conv2d(h, d["b1c1"]["w"], d["b1c1"]["b"], bn=d["b1n1"], act="relu")
    h = conv2d(h, d["b1c2"]["w"], d["b1c2"]["b"], bn=d["b1n2"], act="relu")
    # Upsample(C1, C1): ConvT(k3, s2, p1, op1) + BN + ReLU
    h = conv_transpose2d(h, d["u1"]["w"], d["u1"]["b"], 2, 1, 1, bn=d["u1n"], act="relu")
    # Basic(C1, C2)
    h = conv2d(h, d["b2c1"]["w"], d["b2c1"]["b"], bn=d["b2n1"], act="relu")
    h = conv2d(h, d["b2c2"]["w"], d["b2c2"]["b"], bn=d["b2n2"], act="relu")
    # Upsample(C2, C2)
    h = conv_transpose2d(h, d["u2"]["w"], d["u2"]["b"], 2, 1, 1, bn=d["u2n"], act="relu")
    # Upsample2(C2, C2): ConvT(k4, s4, p1, op2) + BN + ReLU
    h = conv_transpose2d(h, d["u3"]["w"], d["u3"]["b"], 4, 1, 2, bn=d["u3n"], act="relu")
    # Gen(C2, 3, NC)
    # TODO(synk): small Cout (<=4) still pads the matmul N dim to 128; launch count kept minimal instead.
    h = conv2d(h, d["g1"]["w"], d["g1"]["b"], bn=d["g1n"], act="relu")
    h = conv2d(h, d["g2"]["w"], d["g2"]["b"], bn=d["g2n"], act="relu")
    h = conv2d(h, d["g3"]["w"], d["g3"]["b"], bn=None, act="tanh")
    return h


def vision_transformer_forward(params, x):
    x = x.astype(jnp.float32)
    b = x.shape[0]
    # TODO(synk): timm resnet50 (pretrained backbone) has no in-script equivalent;
    # replaced by a deterministic stride-32 patchify linear projection.
    # All frames processed in a single matmul; frame order restored by flip to match
    # the original loop which prepends later frames: [f_{F-1}, ..., f_0].
    cols = x.reshape(b, NUM_FRAMES, 3, GH, PATCH, GW, PATCH)
    cols = cols.transpose(0, 1, 3, 5, 2, 4, 6)
    cols = cols.reshape(b * NUM_FRAMES * GH * GW, 3 * PATCH * PATCH)
    emb = pallas_linear(cols, params["backbone_w"], params["backbone_b"])
    emb = emb.reshape(b, NUM_FRAMES, GH * GW, FEAT)
    all_emb = jnp.flip(emb, axis=1).reshape(b, NUM_FRAMES * GH * GW, FEAT)

    n = all_emb.shape[1]
    proj = pallas_linear(all_emb.reshape(b * n, FEAT), params["proj_w"], params["proj_b"])
    proj = proj.reshape(b, n, EMB)
    cls = jnp.broadcast_to(params["cls_token"], (b, 1, EMB))
    emb = jnp.concatenate([cls, proj], axis=1)                        # (B, SEQ, EMB)

    # transformer encoder (dropout = inference identity)
    h = emb + params["pos_emb"]
    for lp in params["layers"]:
        h = encoder_block(lp, h)

    # Final encoder LayerNorm is row-wise, so LN(h)[:,0] == LN(h[:,0]); only the cls
    # row feeds the decoder → fuse final LN + de_dense + ELU into one kernel.
    cls_feat = h[:, 0, :]                                             # (B, EMB)
    z = pallas_ln_linear(cls_feat, params["ln_f_g"], params["ln_f_b"],
                         params["decoder"]["dd_w"], params["decoder"]["dd_b"], act="elu")
    return decoder_forward(params["decoder"], z)


# ------------------------------ parameter init -------------------------------
class _Init:
    def __init__(self, key):
        self._key = key

    def normal(self, shape, std=0.05):
        self._key, sub = jax.random.split(self._key)
        return std * jax.random.normal(sub, shape, dtype=jnp.float32)

    def zeros(self, shape):
        return jnp.zeros(shape, jnp.float32)

    def bn(self, c):
        return dict(gamma=1.0 + self.normal((c,), 0.02),
                    beta=self.normal((c,), 0.02),
                    mean=self.normal((c,), 0.02),
                    var=jnp.ones((c,), jnp.float32))


def init_params(key):
    it = _Init(key)
    p = {
        "backbone_w": it.normal((3 * PATCH * PATCH, FEAT), 0.02),
        "backbone_b": it.zeros((FEAT,)),
        "proj_w": it.normal((FEAT, EMB)),
        "proj_b": it.zeros((EMB,)),
        "cls_token": it.zeros((1, 1, EMB)),
        "pos_emb": it.normal((1, SEQ, EMB)),
        "ln_f_g": jnp.ones((EMB,), jnp.float32),
        "ln_f_b": jnp.zeros((EMB,), jnp.float32),
    }
    layers = []
    for _ in range(NLAYERS):
        wq = it.normal((EMB, NH * HD))
        wk = it.normal((EMB, NH * HD))
        wv = it.normal((EMB, NH * HD))
        layers.append(dict(
            ln1_g=jnp.ones((EMB,), jnp.float32), ln1_b=jnp.zeros((EMB,), jnp.float32),
            wqkv=jnp.concatenate([wq, wk, wv], axis=1),          # fused QKV weight
            bqkv=it.zeros((3 * NH * HD,)),
            wo=it.normal((NH * HD, EMB)), bo=it.zeros((EMB,)),
            ln2_g=jnp.ones((EMB,), jnp.float32), ln2_b=jnp.zeros((EMB,), jnp.float32),
            fc1_w=it.normal((EMB, MLP)), fc1_b=it.zeros((MLP,)),
            fc2_w=it.normal((MLP, EMB)), fc2_b=it.zeros((EMB,)),
        ))
    p["layers"] = layers

    def conv(co, ci, k):
        return dict(w=it.normal((co, ci, k, k)), b=it.zeros((co,)))

    def convT(ci, co, k):
        return dict(w=it.normal((ci, co, k, k)), b=it.zeros((co,)))

    d = {
        "dd_w": it.normal((EMB, DEC_C0 * DEC_S0 * DEC_S0)),
        "dd_b": it.zeros((DEC_C0 * DEC_S0 * DEC_S0,)),
        "b1c1": conv(DEC_C1, DEC_C0, 3), "b1n1": it.bn(DEC_C1),
        "b1c2": conv(DEC_C1, DEC_C1, 3), "b1n2": it.bn(DEC_C1),
        "u1": convT(DEC_C1, DEC_C1, 3), "u1n": it.bn(DEC_C1),
        "b2c1": conv(DEC_C2, DEC_C1, 3), "b2n1": it.bn(DEC_C2),
        "b2c2": conv(DEC_C2, DEC_C2, 3), "b2n2": it.bn(DEC_C2),
        "u2": convT(DEC_C2, DEC_C2, 3), "u2n": it.bn(DEC_C2),
        "u3": convT(DEC_C2, DEC_C2, 4), "u3n": it.bn(DEC_C2),
        "g1": conv(DEC_NC, DEC_C2, 3), "g1n": it.bn(DEC_NC),
        "g2": conv(DEC_NC, DEC_NC, 3), "g2n": it.bn(DEC_NC),
        "g3": conv(3, DEC_NC, 3),
    }
    p["decoder"] = d
    return p


# ---------------------------------- main --------------------------------------
if __name__ == "__main__":
    key = jax.random.PRNGKey(0)
    params = init_params(key)
    x = jax.random.normal(jax.random.fold_in(key, 12345),
                          (B, NUM_FRAMES, 3, IMG, IMG), jnp.float32)
    fwd = jax.jit(vision_transformer_forward)
    out = jax.block_until_ready(fwd(params, x))
    assert out.shape == (B, 3, DEC_S0 * 16, DEC_S0 * 16), out.shape
    assert bool(jnp.all(jnp.isfinite(out)))
    print("KERNEL_OK")
</pallas_src>

<mosaic_0001>
module attributes {stable_mosaic.version = 11 : i64} {
  func.func @_mm_bias_act_kernel(%arg0: i32, %arg1: memref<16x3072xf32, #tpu.memory_space<vmem>>, %arg2: memref<3072x128xf32, #tpu.memory_space<vmem>>, %arg3: memref<1x128xf32, #tpu.memory_space<vmem>>, %arg4: memref<16x128xf32, #tpu.memory_space<vmem>>) attributes {dimension_semantics = [#tpu.dimension_semantics<parallel>], iteration_bounds = array<i64: 1>, scalar_prefetch = 0 : i64, scratch_operands = 0 : i64, tpu.core_type = #tpu.core_type<tc>, window_params = [{transform_indices = @transform_0, window_bounds = array<i64: 16, 3072>}, {pipeline_mode = #tpu.pipeline_mode<synchronous>, transform_indices = @transform_1, window_bounds = array<i64: 3072, 128>}, {pipeline_mode = #tpu.pipeline_mode<synchronous>, transform_indices = @transform_2, window_bounds = array<i64: 1, 128>}, {transform_indices = @transform_3, window_bounds = array<i64: 16, 128>}]} {
    %c0 = arith.constant 0 : index
    %c0_0 = arith.constant 0 : index
    %0 = vector.load %arg1[%c0, %c0_0] : memref<16x3072xf32, #tpu.memory_space<vmem>>, vector<16x3072xf32>
    %1 = arith.truncf %0 : vector<16x3072xf32> to vector<16x3072xbf16>
    %c0_1 = arith.constant 0 : index
    %c0_2 = arith.constant 0 : index
    %2 = vector.load %arg2[%c0_1, %c0_2] : memref<3072x128xf32, #tpu.memory_space<vmem>>, vector<3072x128xf32>
    %3 = arith.truncf %2 : vector<3072x128xf32> to vector<3072x128xbf16>
    %cst = arith.constant dense<0.000000e+00> : vector<16x128xf32>
    %4 = tpu.matmul %1, %3, %cst {dimension_numbers = #tpu.dot_dimension_numbers<[1], [0], [0], [1], [0, 0, 1, 1], [], []>} : vector<16x3072xbf16>, vector<3072x128xbf16>, vector<16x128xf32> -> vector<16x128xf32>
    %c0_3 = arith.constant 0 : index
    %c0_4 = arith.constant 0 : index
    %5 = vector.load %arg3[%c0_3, %c0_4] : memref<1x128xf32, #tpu.memory_space<vmem>>, vector<1x128xf32>
    %6 = vector.broadcast %5 : vector<1x128xf32> to vector<16x128xf32>
    %7 = arith.addf %4, %6 : vector<16x128xf32>
    %c0_5 = arith.constant 0 : index
    %c0_6 = arith.constant 0 : index
    %8 = vector.load %arg4[%c0_5, %c0_6] : memref<16x128xf32, #tpu.memory_space<vmem>>, vector<16x128xf32>
    tpu.vector_store %arg4[%c0_5, %c0_6], %7 {strides = array<i32>} : memref<16x128xf32, #tpu.memory_space<vmem>>, vector<16x128xf32>,
    return
  }
  func.func @transform_0(%arg0: i32) -> (i32, i32) {
    %c0_i32 = arith.constant 0 : i32
    %c0_i32_0 = arith.constant 0 : i32
    return %arg0, %c0_i32 : i32, i32
  }
  func.func @transform_1(%arg0: i32) -> (i32, i32) {
    %c0_i32 = arith.constant 0 : i32
    %c0_i32_0 = arith.constant 0 : i32
    %c0_i32_1 = arith.constant 0 : i32
    return %c0_i32, %c0_i32_0 : i32, i32
  }
  func.func @transform_2(%arg0: i32) -> (i32, i32) {
    %c0_i32 = arith.constant 0 : i32
    %c0_i32_0 = arith.constant 0 : i32
    %c0_i32_1 = arith.constant 0 : i32
    return %c0_i32, %c0_i32_0 : i32, i32
  }
  func.func @transform_3(%arg0: i32) -> (i32, i32) {
    %c0_i32 = arith.constant 0 : i32
    %c0_i32_0 = arith.constant 0 : i32
    return %arg0, %c0_i32 : i32, i32
  }
}

module attributes {stable_mosaic.version = 11 : i64} {
  func.func @_mm_bias_act_kernel(%arg0: i32, %arg1: memref<16x128xf32, #tpu.memory_space<vmem>>, %arg2: memref<128x128xf32, #tpu.memory_space<vmem>>, %arg3: memref<1x128xf32, #tpu.memory_space<vmem>>, %arg4: memref<16x128xf32, #tpu.memory_space<vmem>>) attributes {dimension_semantics = [#tpu.dimension_semantics<parallel>], iteration_bounds = array<i64: 1>, scalar_prefetch = 0 : i64, scratch_operands = 0 : i64, tpu.core_type = #tpu.core_type<tc>, window_params = [{transform_indices = @transform_0, window_bounds = array<i64: 16, 128>}, {pipeline_mode = #tpu.pipeline_mode<synchronous>, transform_indices = @transform_1, window_bounds = array<i64: 128, 128>}, {pipeline_mode = #tpu.pipeline_mode<synchronous>, transform_indices = @transform_2, window_bounds = array<i64: 1, 128>}, {transform_indices = @transform_3, window_bounds = array<i64: 16, 128>}]} {
    %c0 = arith.constant 0 : index
    %c0_0 = arith.constant 0 : index
    %0 = vector.load %arg1[%c0, %c0_0] : memref<16x128xf32, #tpu.memory_space<vmem>>, vector<16x128xf32>
    %1 = arith.truncf %0 : vector<16x128xf32> to vector<16x128xbf16>
    %c0_1 = arith.constant 0 : index
    %c0_2 = arith.constant 0 : index
    %2 = vector.load %arg2[%c0_1, %c0_2] : memref<128x128xf32, #tpu.memory_space<vmem>>, vector<128x128xf32>
    %3 = arith.truncf %2 : vector<128x128xf32> to vector<128x128xbf16>
    %cst = arith.constant dense<0.000000e+00> : vector<16x128xf32>
    %4 = tpu.matmul %1, %3, %cst {dimension_numbers = #tpu.dot_dimension_numbers<[1], [0], [0], [1], [0, 0, 1, 1], [], []>} : vector<16x128xbf16>, vector<128x128xbf16>, vector<16x128xf32> -> vector<16x128xf32>
    %c0_3 = arith.constant 0 : index
    %c0_4 = arith.constant 0 : index
    %5 = vector.load %arg3[%c0_3, %c0_4] : memref<1x128xf32, #tpu.memory_space<vmem>>, vector<1x128xf32>
    %6 = vector.broadcast %5 : vector<1x128xf32> to vector<16x128xf32>
    %7 = arith.addf %4, %6 : vector<16x128xf32>
    %c0_5 = arith.constant 0 : index
    %c0_6 = arith.constant 0 : index
    %8 = vector.load %arg4[%c0_5, %c0_6] : memref<16x128xf32, #tpu.memory_space<vmem>>, vector<16x128xf32>
    tpu.vector_store %arg4[%c0_5, %c0_6], %7 {strides = array<i32>} : memref<16x128xf32, #tpu.memory_space<vmem>>, vector<16x128xf32>,
    return
  }
  func.func @transform_0(%arg0: i32) -> (i32, i32) {
    %c0_i32 = arith.constant 0 : i32
    %c0_i32_0 = arith.constant 0 : i32
    return %arg0, %c0_i32 : i32, i32
  }
  func.func @transform_1(%arg0: i32) -> (i32, i32) {
    %c0_i32 = arith.constant 0 : i32
    %c0_i32_0 = arith.constant 0 : i32
    %c0_i32_1 = arith.constant 0 : i32
    return %c0_i32, %c0_i32_0 : i32, i32
  }
  func.func @transform_2(%arg0: i32) -> (i32, i32) {
    %c0_i32 = arith.constant 0 : i32
    %c0_i32_0 = arith.constant 0 : i32
    %c0_i32_1 = arith.constant 0 : i32
    return %c0_i32, %c0_i32_0 : i32, i32
  }
  func.func @transform_3(%arg0: i32) -> (i32, i32) {
    %c0_i32 = arith.constant 0 : i32
    %c0_i32_0 = arith.constant 0 : i32
    return %arg0, %c0_i32 : i32, i32
  }
}

module attributes {stable_mosaic.version = 11 : i64} {
  func.func @_ln_mm_kernel(%arg0: i32, %arg1: memref<24x128xf32, #tpu.memory_space<vmem>>, %arg2: memref<1x128xf32, #tpu.memory_space<vmem>>, %arg3: memref<1x128xf32, #tpu.memory_space<vmem>>, %arg4: memref<128x384xf32, #tpu.memory_space<vmem>>, %arg5: memref<1x384xf32, #tpu.memory_space<vmem>>, %arg6: memref<24x384xf32, #tpu.memory_space<vmem>>) attributes {dimension_semantics = [#tpu.dimension_semantics<parallel>], iteration_bounds = array<i64: 1>, scalar_prefetch = 0 : i64, scratch_operands = 0 : i64, tpu.core_type = #tpu.core_type<tc>, window_params = [{transform_indices = @transform_0, window_bounds = array<i64: 24, 128>}, {pipeline_mode = #tpu.pipeline_mode<synchronous>, transform_indices = @transform_1, window_bounds = array<i64: 1, 128>}, {pipeline_mode = #tpu.pipeline_mode<synchronous>, transform_indices = @transform_2, window_bounds = array<i64: 1, 128>}, {pipeline_mode = #tpu.pipeline_mode<synchronous>, transform_indices = @transform_3, window_bounds = array<i64: 128, 384>}, {pipeline_mode = #tpu.pipeline_mode<synchronous>, transform_indices = @transform_4, window_bounds = array<i64: 1, 384>}, {transform_indices = @transform_5, window_bounds = array<i64: 24, 384>}]} {
    %c0 = arith.constant 0 : index
    %c0_0 = arith.constant 0 : index
    %0 = vector.load %arg1[%c0, %c0_0] : memref<24x128xf32, #tpu.memory_space<vmem>>, vector<24x128xf32>
    %c0_1 = arith.constant 0 : index
    %c0_2 = arith.constant 0 : index
    %1 = vector.load %arg2[%c0_1, %c0_2] : memref<1x128xf32, #tpu.memory_space<vmem>>, vector<1x128xf32>
    %c0_3 = arith.constant 0 : index
    %c0_4 = arith.constant 0 : index
    %2 = vector.load %arg3[%c0_3, %c0_4] : memref<1x128xf32, #tpu.memory_space<vmem>>, vector<1x128xf32>
    %cst = arith.constant dense<0.000000e+00> : vector<24xf32>
    %3 = vector.multi_reduction <add>, %0, %cst [1] : vector<24x128xf32> to vector<24xf32>
    %4 = vector.shape_cast %3 : vector<24xf32> to vector<24x1xf32>
    %cst_5 = arith.constant 1.280000e+02 : f32
    %5 = vector.broadcast %cst_5 : f32 to vector<24x1xf32>
    %6 = arith.divf %4, %5 : vector<24x1xf32>
    %7 = vector.broadcast %6 : vector<24x1xf32> to vector<24x128xf32>
    %8 = arith.subf %0, %7 : vector<24x128xf32>
    %9 = arith.mulf %8, %8 : vector<24x128xf32>
    %cst_6 = arith.constant dense<0.000000e+00> : vector<24xf32>
    %10 = vector.multi_reduction <add>, %9, %cst_6 [1] : vector<24x128xf32> to vector<24xf32>
    %11 = vector.shape_cast %10 : vector<24xf32> to vector<24x1xf32>
    %cst_7 = arith.constant 1.280000e+02 : f32
    %12 = vector.broadcast %cst_7 : f32 to vector<24x1xf32>
    %13 = arith.divf %11, %12 : vector<24x1xf32>
    %14 = vector.broadcast %6 : vector<24x1xf32> to vector<24x128xf32>
    %15 = arith.subf %0, %14 : vector<24x128xf32>
    %cst_8 = arith.constant 9.99999974E-6 : f32
    %16 = vector.broadcast %cst_8 : f32 to vector<24x1xf32>
    %17 = arith.addf %13, %16 : vector<24x1xf32>
    %18 = math.rsqrt %17 : vector<24x1xf32>
    %19 = vector.broadcast %18 : vector<24x1xf32> to vector<24x128xf32>
    %20 = arith.mulf %15, %19 : vector<24x128xf32>
    %21 = vector.broadcast %1 : vector<1x128xf32> to vector<24x128xf32>
    %22 = arith.mulf %20, %21 : vector<24x128xf32>
    %23 = vector.broadcast %2 : vector<1x128xf32> to vector<24x128xf32>
    %24 = arith.addf %22, %23 : vector<24x128xf32>
    %25 = arith.truncf %24 : vector<24x128xf32> to vector<24x128xbf16>
    %c0_9 = arith.constant 0 : index
    %c0_10 = arith.constant 0 : index
    %26 = vector.load %arg4[%c0_9, %c0_10] : memref<128x384xf32, #tpu.memory_space<vmem>>, vector<128x384xf32>
    %27 = arith.truncf %26 : vector<128x384xf32> to vector<128x384xbf16>
    %cst_11 = arith.constant dense<0.000000e+00> : vector<24x384xf32>
    %28 = tpu.matmul %25, %27, %cst_11 {dimension_numbers = #tpu.dot_dimension_numbers<[1], [0], [0], [1], [0, 0, 1, 1], [], []>} : vector<24x128xbf16>, vector<128x384xbf16>, vector<24x384xf32> -> vector<24x384xf32>
    %c0_12 = arith.constant 0 : index
    %c0_13 = arith.constant 0 : index
    %29 = vector.load %arg5[%c0_12, %c0_13] : memref<1x384xf32, #tpu.memory_space<vmem>>, vector<1x384xf32>
    %30 = vector.broadcast %29 : vector<1x384xf32> to vector<24x384xf32>
    %31 = arith.addf %28, %30 : vector<24x384xf32>
    %c0_14 = arith.constant 0 : index
    %c0_15 = arith.constant 0 : index
    %32 = vector.load %arg6[%c0_14, %c0_15] : memref<24x384xf32, #tpu.memory_space<vmem>>, vector<24x384xf32>
    tpu.vector_store %arg6[%c0_14, %c0_15], %31 {strides = array<i32>} : memref<24x384xf32, #tpu.memory_space<vmem>>, vector<24x384xf32>,
    return
  }
  func.func @transform_0(%arg0: i32) -> (i32, i32) {
    %c0_i32 = arith.constant 0 : i32
    %c0_i32_0 = arith.constant 0 : i32
    return %arg0, %c0_i32 : i32, i32
  }
  func.func @transform_1(%arg0: i32) -> (i32, i32) {
    %c0_i32 = arith.constant 0 : i32
    %c0_i32_0 = arith.constant 0 : i32
    %c0_i32_1 = arith.constant 0 : i32
    return %c0_i32, %c0_i32_0 : i32, i32
  }
  func.func @transform_2(%arg0: i32) -> (i32, i32) {
    %c0_i32 = arith.constant 0 : i32
    %c0_i32_0 = arith.constant 0 : i32
    %c0_i32_1 = arith.constant 0 : i32
    return %c0_i32, %c0_i32_0 : i32, i32
  }
  func.func @transform_3(%arg0: i32) -> (i32, i32) {
    %c0_i32 = arith.constant 0 : i32
    %c0_i32_0 = arith.constant 0 : i32
    %c0_i32_1 = arith.constant 0 : i32
    return %c0_i32, %c0_i32_0 : i32, i32
  }
  func.func @transform_4(%arg0: i32) -> (i32, i32) {
    %c0_i32 = arith.constant 0 : i32
    %c0_i32_0 = arith.constant 0 : i32
    %c0_i32_1 = arith.constant 0 : i32
    return %c0_i32, %c0_i32_0 : i32, i32
  }
  func.func @transform_5(%arg0: i32) -> (i32, i32) {
    %c0_i32 = arith.constant 0 : i32
    %c0_i32_0 = arith.constant 0 : i32
    return %arg0, %c0_i32 : i32, i32
  }
}

module attributes {stable_mosaic.version = 11 : i64} {
  func.func @_attn_kernel(%arg0: i32, %arg1: memref<1x9x384xf32, #tpu.memory_space<vmem>>, %arg2: memref<1x9x128xf32, #tpu.memory_space<vmem>>, %arg3: memref<128x128xf32, #tpu.memory_space<vmem>>, %arg4: memref<1x128xf32, #tpu.memory_space<vmem>>, %arg5: memref<1x9x128xf32, #tpu.memory_space<vmem>>) attributes {dimension_semantics = [#tpu.dimension_semantics<parallel>], iteration_bounds = array<i64: 2>, scalar_prefetch = 0 : i64, scratch_operands = 0 : i64, tpu.core_type = #tpu.core_type<tc>, window_params = [{transform_indices = @transform_0, window_bounds = array<i64: 1, 9, 384>}, {transform_indices = @transform_1, window_bounds = array<i64: 1, 9, 128>}, {pipeline_mode = #tpu.pipeline_mode<synchronous>, transform_indices = @transform_2, window_bounds = array<i64: 128, 128>}, {pipeline_mode = #tpu.pipeline_mode<synchronous>, transform_indices = @transform_3, window_bounds = array<i64: 1, 128>}, {transform_indices = @transform_4, window_bounds = array<i64: 1, 9, 128>}]} {
    %c0 = arith.constant 0 : index
    %c0_0 = arith.constant 0 : index
    %c0_1 = arith.constant 0 : index
    %0 = vector.load %arg1[%c0, %c0_0, %c0_1] : memref<1x9x384xf32, #tpu.memory_space<vmem>>, vector<1x9x384xf32>
    %1 = vector.shape_cast %0 : vector<1x9x384xf32> to vector<9x384xf32>
    %2 = vector.extract_strided_slice %1 {offsets = [0, 0], sizes = [9, 32], strides = [1, 1]} : vector<9x384xf32> to vector<9x32xf32>
    %3 = arith.truncf %2 : vector<9x32xf32> to vector<9x32xbf16>
    %4 = vector.extract_strided_slice %1 {offsets = [0, 128], sizes = [9, 32], strides = [1, 1]} : vector<9x384xf32> to vector<9x32xf32>
    %5 = arith.truncf %4 : vector<9x32xf32> to vector<9x32xbf16>
    %6 = vector.extract_strided_slice %1 {offsets = [0, 256], sizes = [9, 32], strides = [1, 1]} : vector<9x384xf32> to vector<9x32xf32>
    %7 = arith.truncf %6 : vector<9x32xf32> to vector<9x32xbf16>
    %cst = arith.constant dense<0.000000e+00> : vector<9x9xf32>
    %8 = tpu.matmul %3, %5, %cst {dimension_numbers = #tpu.dot_dimension_numbers<[1], [1], [0], [0], [0, 0, 1, 0], [], []>} : vector<9x32xbf16>, vector<9x32xbf16>, vector<9x9xf32> -> vector<9x9xf32>
    %cst_2 = arith.constant 0.176776692 : f32
    %9 = vector.broadcast %cst_2 : f32 to vector<9x9xf32>
    %10 = arith.mulf %8, %9 : vector<9x9xf32>
    %cst_3 = arith.constant dense<0xFF800000> : vector<9xf32>
    %11 = vector.multi_reduction <maximumf>, %10, %cst_3 [1] : vector<9x9xf32> to vector<9xf32>
    %12 = vector.shape_cast %11 : vector<9xf32> to vector<9x1xf32>
    %13 = vector.broadcast %12 : vector<9x1xf32> to vector<9x9xf32>
    %14 = arith.subf %10, %13 : vector<9x9xf32>
    %15 = math.exp %14 : vector<9x9xf32>
    %cst_4 = arith.constant dense<0.000000e+00> : vector<9xf32>
    %16 = vector.multi_reduction <add>, %15, %cst_4 [1] : vector<9x9xf32> to vector<9xf32>
    %17 = vector.shape_cast %16 : vector<9xf32> to vector<9x1xf32>
    %18 = tpu.reciprocal %17 {approx = true} : vector<9x1xf32> -> vector<9x1xf32>
    %19 = vector.broadcast %18 : vector<9x1xf32> to vector<9x9xf32>
    %20 = arith.mulf %15, %19 : vector<9x9xf32>
    %21 = arith.truncf %20 : vector<9x9xf32> to vector<9x9xbf16>
    %cst_5 = arith.constant dense<0.000000e+00> : vector<9x32xf32>
    %22 = tpu.matmul %21, %7, %cst_5 {dimension_numbers = #tpu.dot_dimension_numbers<[1], [0], [0], [1], [0, 0, 1, 1], [], []>} : vector<9x9xbf16>, vector<9x32xbf16>, vector<9x32xf32> -> vector<9x32xf32>
    %23 = vector.extract_strided_slice %1 {offsets = [0, 32], sizes = [9, 32], strides = [1, 1]} : vector<9x384xf32> to vector<9x32xf32>
    %24 = arith.truncf %23 : vector<9x32xf32> to vector<9x32xbf16>
    %25 = vector.extract_strided_slice %1 {offsets = [0, 160], sizes = [9, 32], strides = [1, 1]} : vector<9x384xf32> to vector<9x32xf32>
    %26 = arith.truncf %25 : vector<9x32xf32> to vector<9x32xbf16>
    %27 = vector.extract_strided_slice %1 {offsets = [0, 288], sizes = [9, 32], strides = [1, 1]} : vector<9x384xf32> to vector<9x32xf32>
    %28 = arith.truncf %27 : vector<9x32xf32> to vector<9x32xbf16>
    %cst_6 = arith.constant dense<0.000000e+00> : vector<9x9xf32>
    %29 = tpu.matmul %24, %26, %cst_6 {dimension_numbers = #tpu.dot_dimension_numbers<[1], [1], [0], [0], [0, 0, 1, 0], [], []>} : vector<9x32xbf16>, vector<9x32xbf16>, vector<9x9xf32> -> vector<9x9xf32>
    %cst_7 = arith.constant 0.176776692 : f32
    %30 = vector.broadcast %cst_7 : f32 to vector<9x9xf32>
    %31 = arith.mulf %29, %30 : vector<9x9xf32>
    %cst_8 = arith.constant dense<0xFF800000> : vector<9xf32>
    %32 = vector.multi_reduction <maximumf>, %31, %cst_8 [1] : vector<9x9xf32> to vector<9xf32>
    %33 = vector.shape_cast %32 : vector<9xf32> to vector<9x1xf32>
    %34 = vector.broadcast %33 : vector<9x1xf32> to vector<9x9xf32>
    %35 = arith.subf %31, %34 : vector<9x9xf32>
    %36 = math.exp %35 : vector<9x9xf32>
    %cst_9 = arith.constant dense<0.000000e+00> : vector<9xf32>
    %37 = vector.multi_reduction <add>, %36, %cst_9 [1] : vector<9x9xf32> to vector<9xf32>
    %38 = vector.shape_cast %37 : vector<9xf32> to vector<9x1xf32>
    %39 = tpu.reciprocal %38 {approx = true} : vector<9x1xf32> -> vector<9x1xf32>
    %40 = vector.broadcast %39 : vector<9x1xf32> to vector<9x9xf32>
    %41 = arith.mulf %36, %40 : vector<9x9xf32>
    %42 = arith.truncf %41 : vector<9x9xf32> to vector<9x9xbf16>
    %cst_10 = arith.constant dense<0.000000e+00> : vector<9x32xf32>
    %43 = tpu.matmul %42, %28, %cst_10 {dimension_numbers = #tpu.dot_dimension_numbers<[1], [0], [0], [1], [0, 0, 1, 1], [], []>} : vector<9x9xbf16>, vector<9x32xbf16>, vector<9x32xf32> -> vector<9x32xf32>
    %44 = vector.extract_strided_slice %1 {offsets = [0, 64], sizes = [9, 32], strides = [1, 1]} : vector<9x384xf32> to vector<9x32xf32>
    %45 = arith.truncf %44 : vector<9x32xf32> to vector<9x32xbf16>
    %46 = vector.extract_strided_slice %1 {offsets = [0, 192], sizes = [9, 32], strides = [1, 1]} : vector<9x384xf32> to vector<9x32xf32>
    %47 = arith.truncf %46 : vector<9x32xf32> to vector<9x32xbf16>
    %48 = vector.extract_strided_slice %1 {offsets = [0, 320], sizes = [9, 32], strides = [1, 1]} : vector<9x384xf32> to vector<9x32xf32>
    %49 = arith.truncf %48 : vector<9x32xf32> to vector<9x32xbf16>
    %cst_11 = arith.constant dense<0.000000e+00> : vector<9x9xf32>
    %50 = tpu.matmul %45, %47, %cst_11 {dimension_numbers = #tpu.dot_dimension_numbers<[1], [1], [0], [0], [0, 0, 1, 0], [], []>} : vector<9x32xbf16>, vector<9x32xbf16>, vector<9x9xf32> -> vector<9x9xf32>
    %cst_12 = arith.constant 0.176776692 : f32
    %51 = vector.broadcast %cst_12 : f32 to vector<9x9xf32>
    %52 = arith.mulf %50, %51 : vector<9x9xf32>
    %cst_13 = arith.constant dense<0xFF800000> : vector<9xf32>
    %53 = vector.multi_reduction <maximumf>, %52, %cst_13 [1] : vector<9x9xf32> to vector<9xf32>
    %54 = vector.shape_cast %53 : vector<9xf32> to vector<9x1xf32>
    %55 = vector.broadcast %54 : vector<9x1xf32> to vector<9x9xf32>
    %56 = arith.subf %52, %55 : vector<9x9xf32>
    %57 = math.exp %56 : vector<9x9xf32>
    %cst_14 = arith.constant dense<0.000000e+00> : vector<9xf32>
    %58 = vector.multi_reduction <add>, %57, %cst_14 [1] : vector<9x9xf32> to vector<9xf32>
    %59 = vector.shape_cast %58 : vector<9xf32> to vector<9x1xf32>
    %60 = tpu.reciprocal %59 {approx = true} : vector<9x1xf32> -> vector<9x1xf32>
    %61 = vector.broadcast %60 : vector<9x1xf32> to vector<9x9xf32>
    %62 = arith.mulf %57, %61 : vector<9x9xf32>
    %63 = arith.truncf %62 : vector<9x9xf32> to vector<9x9xbf16>
    %cst_15 = arith.constant dense<0.000000e+00> : vector<9x32xf32>
    %64 = tpu.matmul %63, %49, %cst_15 {dimension_numbers = #tpu.dot_dimension_numbers<[1], [0], [0], [1], [0, 0, 1, 1], [], []>} : vector<9x9xbf16>, vector<9x32xbf16>, vector<9x32xf32> -> vector<9x32xf32>
    %65 = vector.extract_strided_slice %1 {offsets = [0, 96], sizes = [9, 32], strides = [1, 1]} : vector<9x384xf32> to vector<9x32xf32>
    %66 = arith.truncf %65 : vector<9x32xf32> to vector<9x32xbf16>
    %67 = vector.extract_strided_slice %1 {offsets = [0, 224], sizes = [9, 32], strides = [1, 1]} : vector<9x384xf32> to vector<9x32xf32>
    %68 = arith.truncf %67 : vector<9x32xf32> to vector<9x32xbf16>
    %69 = vector.extract_strided_slice %1 {offsets = [0, 352], sizes = [9, 32], strides = [1, 1]} : vector<9x384xf32> to vector<9x32xf32>
    %70 = arith.truncf %69 : vector<9x32xf32> to vector<9x32xbf16>
    %cst_16 = arith.constant dense<0.000000e+00> : vector<9x9xf32>
    %71 = tpu.matmul %66, %68, %cst_16 {dimension_numbers = #tpu.dot_dimension_numbers<[1], [1], [0], [0], [0, 0, 1, 0], [], []>} : vector<9x32xbf16>, vector<9x32xbf16>, vector<9x9xf32> -> vector<9x9xf32>
    %cst_17 = arith.constant 0.176776692 : f32
    %72 = vector.broadcast %cst_17 : f32 to vector<9x9xf32>
    %73 = arith.mulf %71, %72 : vector<9x9xf32>
    %cst_18 = arith.constant dense<0xFF800000> : vector<9xf32>
    %74 = vector.multi_reduction <maximumf>, %73, %cst_18 [1] : vector<9x9xf32> to vector<9xf32>
    %75 = vector.shape_cast %74 : vector<9xf32> to vector<9x1xf32>
    %76 = vector.broadcast %75 : vector<9x1xf32> to vector<9x9xf32>
    %77 = arith.subf %73, %76 : vector<9x9xf32>
    %78 = math.exp %77 : vector<9x9xf32>
    %cst_19 = arith.constant dense<0.000000e+00> : vector<9xf32>
    %79 = vector.multi_reduction <add>, %78, %cst_19 [1] : vector<9x9xf32> to vector<9xf32>
    %80 = vector.shape_cast %79 : vector<9xf32> to vector<9x1xf32>
    %81 = tpu.reciprocal %80 {approx = true} : vector<9x1xf32> -> vector<9x1xf32>
    %82 = vector.broadcast %81 : vector<9x1xf32> to vector<9x9xf32>
    %83 = arith.mulf %78, %82 : vector<9x9xf32>
    %84 = arith.truncf %83 : vector<9x9xf32> to vector<9x9xbf16>
    %cst_20 = arith.constant dense<0.000000e+00> : vector<9x32xf32>
    %85 = tpu.matmul %84, %70, %cst_20 {dimension_numbers = #tpu.dot_dimension_numbers<[1], [0], [0], [1], [0, 0, 1, 1], [], []>} : vector<9x9xbf16>, vector<9x32xbf16>, vector<9x32xf32> -> vector<9x32xf32>
    %86 = tpu.concatenate %22, %43, %64, %85 in 1 : vector<9x32xf32>, vector<9x32xf32>, vector<9x32xf32>, vector<9x32xf32> -> vector<9x128xf32>
    %87 = arith.truncf %86 : vector<9x128xf32> to vector<9x128xbf16>
    %c0_21 = arith.constant 0 : index
    %c0_22 = arith.constant 0 : index
    %88 = vector.load %arg3[%c0_21, %c0_22] : memref<128x128xf32, #tpu.memory_space<vmem>>, vector<128x128xf32>
    %89 = arith.truncf %88 : vector<128x128xf32> to vector<128x128xbf16>
    %cst_23 = arith.constant dense<0.000000e+00> : vector<9x128xf32>
    %90 = tpu.matmul %87, %89, %cst_23 {dimension_numbers = #tpu.dot_dimension_numbers<[1], [0], [0], [1], [0, 0, 1, 1], [], []>} : vector<9x128xbf16>, vector<128x128xbf16>, vector<9x128xf32> -> vector<9x128xf32>
    %c0_24 = arith.constant 0 : index
    %c0_25 = arith.constant 0 : index
    %91 = vector.load %arg4[%c0_24, %c0_25] : memref<1x128xf32, #tpu.memory_space<vmem>>, vector<1x128xf32>
    %92 = vector.broadcast %91 : vector<1x128xf32> to vector<9x128xf32>
    %93 = arith.addf %90, %92 : vector<9x128xf32>
    %c0_26 = arith.constant 0 : index
    %c0_27 = arith.constant 0 : index
    %c0_28 = arith.constant 0 : index
    %94 = vector.load %arg2[%c0_26, %c0_27, %c0_28] : memref<1x9x128xf32, #tpu.memory_space<vmem>>, vector<1x9x128xf32>
    %95 = vector.shape_cast %94 : vector<1x9x128xf32> to vector<9x128xf32>
    %96 = arith.addf %93, %95 : vector<9x128xf32>
    %c0_29 = arith.constant 0 : index
    %c0_30 = arith.constant 0 : index
    %c0_31 = arith.constant 0 : index
    %97 = vector.load %arg5[%c0_29, %c0_30, %c0_31] : memref<1x9x128xf32, #tpu.memory_space<vmem>>, vector<1x9x128xf32>
    %98 = vector.shape_cast %97 : vector<1x9x128xf32> to vector<9x128xf32>
    %99 = vector.shape_cast %96 : vector<9x128xf32> to vector<1x9x128xf32>
    tpu.vector_store %arg5[%c0_29, %c0_30, %c0_31], %99 {strides = array<i32>} : memref<1x9x128xf32, #tpu.memory_space<vmem>>, vector<1x9x128xf32>,
    return
  }
  func.func @transform_0(%arg0: i32) -> (i32, i32, i32) {
    %c0_i32 = arith.constant 0 : i32
    %c0_i32_0 = arith.constant 0 : i32
    %c0_i32_1 = arith.constant 0 : i32
    return %arg0, %c0_i32, %c0_i32_0 : i32, i32, i32
  }
  func.func @transform_1(%arg0: i32) -> (i32, i32, i32) {
    %c0_i32 = arith.constant 0 : i32
    %c0_i32_0 = arith.constant 0 : i32
    %c0_i32_1 = arith.constant 0 : i32
    return %arg0, %c0_i32, %c0_i32_0 : i32, i32, i32
  }
  func.func @transform_2(%arg0: i32) -> (i32, i32) {
    %c0_i32 = arith.constant 0 : i32
    %c0_i32_0 = arith.constant 0 : i32
    %c0_i32_1 = arith.constant 0 : i32
    return %c0_i32, %c0_i32_0 : i32, i32
  }
  func.func @transform_3(%arg0: i32) -> (i32, i32) {
    %c0_i32 = arith.constant 0 : i32
    %c0_i32_0 = arith.constant 0 : i32
    %c0_i32_1 = arith.constant 0 : i32
    return %c0_i32, %c0_i32_0 : i32, i32
  }
  func.func @transform_4(%arg0: i32) -> (i32, i32, i32) {
    %c0_i32 = arith.constant 0 : i32
    %c0_i32_0 = arith.constant 0 : i32
    %c0_i32_1 = arith.constant 0 : i32
    return %arg0, %c0_i32, %c0_i32_0 : i32, i32, i32
  }
}

module attributes {stable_mosaic.version = 11 : i64} {
  func.func @_mlp_kernel(%arg0: i32, %arg1: memref<24x128xf32, #tpu.memory_space<vmem>>, %arg2: memref<1x128xf32, #tpu.memory_space<vmem>>, %arg3: memref<1x128xf32, #tpu.memory_space<vmem>>, %arg4: memref<128x256xf32, #tpu.memory_space<vmem>>, %arg5: memref<1x256xf32, #tpu.memory_space<vmem>>, %arg6: memref<256x128xf32, #tpu.memory_space<vmem>>, %arg7: memref<1x128xf32, #tpu.memory_space<vmem>>, %arg8: memref<24x128xf32, #tpu.memory_space<vmem>>) attributes {dimension_semantics = [#tpu.dimension_semantics<parallel>], iteration_bounds = array<i64: 1>, scalar_prefetch = 0 : i64, scratch_operands = 0 : i64, tpu.core_type = #tpu.core_type<tc>, window_params = [{transform_indices = @transform_0, window_bounds = array<i64: 24, 128>}, {pipeline_mode = #tpu.pipeline_mode<synchronous>, transform_indices = @transform_1, window_bounds = array<i64: 1, 128>}, {pipeline_mode = #tpu.pipeline_mode<synchronous>, transform_indices = @transform_2, window_bounds = array<i64: 1, 128>}, {pipeline_mode = #tpu.pipeline_mode<synchronous>, transform_indices = @transform_3, window_bounds = array<i64: 128, 256>}, {pipeline_mode = #tpu.pipeline_mode<synchronous>, transform_indices = @transform_4, window_bounds = array<i64: 1, 256>}, {pipeline_mode = #tpu.pipeline_mode<synchronous>, transform_indices = @transform_5, window_bounds = array<i64: 256, 128>}, {pipeline_mode = #tpu.pipeline_mode<synchronous>, transform_indices = @transform_6, window_bounds = array<i64: 1, 128>}, {transform_indices = @transform_7, window_bounds = array<i64: 24, 128>}]} {
    %c0 = arith.constant 0 : index
    %c0_0 = arith.constant 0 : index
    %0 = vector.load %arg1[%c0, %c0_0] : memref<24x128xf32, #tpu.memory_space<vmem>>, vector<24x128xf32>
    %c0_1 = arith.constant 0 : index
    %c0_2 = arith.constant 0 : index
    %1 = vector.load %arg2[%c0_1, %c0_2] : memref<1x128xf32, #tpu.memory_space<vmem>>, vector<1x128xf32>
    %c0_3 = arith.constant 0 : index
    %c0_4 = arith.constant 0 : index
    %2 = vector.load %arg3[%c0_3, %c0_4] : memref<1x128xf32, #tpu.memory_space<vmem>>, vector<1x128xf32>
    %cst = arith.constant dense<0.000000e+00> : vector<24xf32>
    %3 = vector.multi_reduction <add>, %0, %cst [1] : vector<24x128xf32> to vector<24xf32>
    %4 = vector.shape_cast %3 : vector<24xf32> to vector<24x1xf32>
    %cst_5 = arith.constant 1.280000e+02 : f32
    %5 = vector.broadcast %cst_5 : f32 to vector<24x1xf32>
    %6 = arith.divf %4, %5 : vector<24x1xf32>
    %7 = vector.broadcast %6 : vector<24x1xf32> to vector<24x128xf32>
    %8 = arith.subf %0, %7 : vector<24x128xf32>
    %9 = arith.mulf %8, %8 : vector<24x128xf32>
    %cst_6 = arith.constant dense<0.000000e+00> : vector<24xf32>
    %10 = vector.multi_reduction <add>, %9, %cst_6 [1] : vector<24x128xf32> to vector<24xf32>
    %11 = vector.shape_cast %10 : vector<24xf32> to vector<24x1xf32>
    %cst_7 = arith.constant 1.280000e+02 : f32
    %12 = vector.broadcast %cst_7 : f32 to vector<24x1xf32>
    %13 = arith.divf %11, %12 : vector<24x1xf32>
    %14 = vector.broadcast %6 : vector<24x1xf32> to vector<24x128xf32>
    %15 = arith.subf %0, %14 : vector<24x128xf32>
    %cst_8 = arith.constant 9.99999974E-6 : f32
    %16 = vector.broadcast %cst_8 : f32 to vector<24x1xf32>
    %17 = arith.addf %13, %16 : vector<24x1xf32>
    %18 = math.rsqrt %17 : vector<24x1xf32>
    %19 = vector.broadcast %18 : vector<24x1xf32> to vector<24x128xf32>
    %20 = arith.mulf %15, %19 : vector<24x128xf32>
    %21 = vector.broadcast %1 : vector<1x128xf32> to vector<24x128xf32>
    %22 = arith.mulf %20, %21 : vector<24x128xf32>
    %23 = vector.broadcast %2 : vector<1x128xf32> to vector<24x128xf32>
    %24 = arith.addf %22, %23 : vector<24x128xf32>
    %25 = arith.truncf %24 : vector<24x128xf32> to vector<24x128xbf16>
    %c0_9 = arith.constant 0 : index
    %c0_10 = arith.constant 0 : index
    %26 = vector.load %arg4[%c0_9, %c0_10] : memref<128x256xf32, #tpu.memory_space<vmem>>, vector<128x256xf32>
    %27 = arith.truncf %26 : vector<128x256xf32> to vector<128x256xbf16>
    %cst_11 = arith.constant dense<0.000000e+00> : vector<24x256xf32>
    %28 = tpu.matmul %25, %27, %cst_11 {dimension_numbers = #tpu.dot_dimension_numbers<[1], [0], [0], [1], [0, 0, 1, 1], [], []>} : vector<24x128xbf16>, vector<128x256xbf16>, vector<24x256xf32> -> vector<24x256xf32>
    %c0_12 = arith.constant 0 : index
    %c0_13 = arith.constant 0 : index
    %29 = vector.load %arg5[%c0_12, %c0_13] : memref<1x256xf32, #tpu.memory_space<vmem>>, vector<1x256xf32>
    %30 = vector.broadcast %29 : vector<1x256xf32> to vector<24x256xf32>
    %31 = arith.addf %28, %30 : vector<24x256xf32>
    %cst_14 = arith.constant 5.000000e-01 : f32
    %32 = vector.broadcast %cst_14 : f32 to vector<24x256xf32>
    %33 = arith.mulf %32, %31 : vector<24x256xf32>
    %cst_15 = arith.constant 4.471500e-02 : f32
    %34 = vector.broadcast %cst_15 : f32 to vector<24x256xf32>
    %35 = arith.mulf %34, %31 : vector<24x256xf32>
    %36 = arith.mulf %35, %31 : vector<24x256xf32>
    %37 = arith.mulf %36, %31 : vector<24x256xf32>
    %38 = arith.addf %31, %37 : vector<24x256xf32>
    %cst_16 = arith.constant 0.797884583 : f32
    %39 = vector.broadcast %cst_16 : f32 to vector<24x256xf32>
    %40 = arith.mulf %39, %38 : vector<24x256xf32>
    %41 = math.tanh %40 : vector<24x256xf32>
    %cst_17 = arith.constant 1.000000e+00 : f32
    %42 = vector.broadcast %cst_17 : f32 to vector<24x256xf32>
    %43 = arith.addf %42, %41 : vector<24x256xf32>
    %44 = arith.mulf %33, %43 : vector<24x256xf32>
    %45 = arith.truncf %44 : vector<24x256xf32> to vector<24x256xbf16>
    %c0_18 = arith.constant 0 : index
    %c0_19 = arith.constant 0 : index
    %46 = vector.load %arg6[%c0_18, %c0_19] : memref<256x128xf32, #tpu.memory_space<vmem>>, vector<256x128xf32>
    %47 = arith.truncf %46 : vector<256x128xf32> to vector<256x128xbf16>
    %cst_20 = arith.constant dense<0.000000e+00> : vector<24x128xf32>
    %48 = tpu.matmul %45, %47, %cst_20 {dimension_numbers = #tpu.dot_dimension_numbers<[1], [0], [0], [1], [0, 0, 1, 1], [], []>} : vector<24x256xbf16>, vector<256x128xbf16>, vector<24x128xf32> -> vector<24x128xf32>
    %c0_21 = arith.constant 0 : index
    %c0_22 = arith.constant 0 : index
    %49 = vector.load %arg7[%c0_21, %c0_22] : memref<1x128xf32, #tpu.memory_space<vmem>>, vector<1x128xf32>
    %50 = vector.broadcast %49 : vector<1x128xf32> to vector<24x128xf32>
    %51 = arith.addf %48, %50 : vector<24x128xf32>
    %52 = arith.addf %51, %0 : vector<24x128xf32>
    %c0_23 = arith.constant 0 : index
    %c0_24 = arith.constant 0 : index
    %53 = vector.load %arg8[%c0_23, %c0_24] : memref<24x128xf32, #tpu.memory_space<vmem>>, vector<24x128xf32>
    tpu.vector_store %arg8[%c0_23, %c0_24], %52 {strides = array<i32>} : memref<24x128xf32, #tpu.memory_space<vmem>>, vector<24x128xf32>,
    return
  }
  func.func @transform_0(%arg0: i32) -> (i32, i32) {
    %c0_i32 = arith.constant 0 : i32
    %c0_i32_0 = arith.constant 0 : i32
    return %arg0, %c0_i32 : i32, i32
  }
  func.func @transform_1(%arg0: i32) -> (i32, i32) {
    %c0_i32 = arith.constant 0 : i32
    %c0_i32_0 = arith.constant 0 : i32
    %c0_i32_1 = arith.constant 0 : i32
    return %c0_i32, %c0_i32_0 : i32, i32
  }
  func.func @transform_2(%arg0: i32) -> (i32, i32) {
    %c0_i32 = arith.constant 0 : i32
    %c0_i32_0 = arith.constant 0 : i32
    %c0_i32_1 = arith.constant 0 : i32
    return %c0_i32, %c0_i32_0 : i32, i32
  }
  func.func @transform_3(%arg0: i32) -> (i32, i32) {
    %c0_i32 = arith.constant 0 : i32
    %c0_i32_0 = arith.constant 0 : i32
    %c0_i32_1 = arith.constant 0 : i32
    return %c0_i32, %c0_i32_0 : i32, i32
  }
  func.func @transform_4(%arg0: i32) -> (i32, i32) {
    %c0_i32 = arith.constant 0 : i32
    %c0_i32_0 = arith.constant 0 : i32
    %c0_i32_1 = arith.constant 0 : i32
    return %c0_i32, %c0_i32_0 : i32, i32
  }
  func.func @transform_5(%arg0: i32) -> (i32, i32) {
    %c0_i32 = arith.constant 0 : i32
    %c0_i32_0 = arith.constant 0 : i32
    %c0_i32_1 = arith.constant 0 : i32
    return %c0_i32, %c0_i32_0 : i32, i32
  }
  func.func @transform_6(%arg0: i32) -> (i32, i32) {
    %c0_i32 = arith.constant 0 : i32
    %c0_i32_0 = arith.constant 0 : i32
    %c0_i32_1 = arith.constant 0 : i32
    return %c0_i32, %c0_i32_0 : i32, i32
  }
  func.func @transform_7(%arg0: i32) -> (i32, i32) {
    %c0_i32 = arith.constant 0 : i32
    %c0_i32_0 = arith.constant 0 : i32
    return %arg0, %c0_i32 : i32, i32
  }
}

module attributes {stable_mosaic.version = 11 : i64} {
  func.func @_ln_mm_kernel(%arg0: i32, %arg1: memref<8x128xf32, #tpu.memory_space<vmem>>, %arg2: memref<1x128xf32, #tpu.memory_space<vmem>>, %arg3: memref<1x128xf32, #tpu.memory_space<vmem>>, %arg4: memref<128x512xf32, #tpu.memory_space<vmem>>, %arg5: memref<1x512xf32, #tpu.memory_space<vmem>>, %arg6: memref<8x512xf32, #tpu.memory_space<vmem>>) attributes {dimension_semantics = [#tpu.dimension_semantics<parallel>], iteration_bounds = array<i64: 1>, scalar_prefetch = 0 : i64, scratch_operands = 0 : i64, tpu.core_type = #tpu.core_type<tc>, window_params = [{transform_indices = @transform_0, window_bounds = array<i64: 8, 128>}, {pipeline_mode = #tpu.pipeline_mode<synchronous>, transform_indices = @transform_1, window_bounds = array<i64: 1, 128>}, {pipeline_mode = #tpu.pipeline_mode<synchronous>, transform_indices = @transform_2, window_bounds = array<i64: 1, 128>}, {pipeline_mode = #tpu.pipeline_mode<synchronous>, transform_indices = @transform_3, window_bounds = array<i64: 128, 512>}, {pipeline_mode = #tpu.pipeline_mode<synchronous>, transform_indices = @transform_4, window_bounds = array<i64: 1, 512>}, {transform_indices = @transform_5, window_bounds = array<i64: 8, 512>}]} {
    %c0 = arith.constant 0 : index
    %c0_0 = arith.constant 0 : index
    %0 = vector.load %arg1[%c0, %c0_0] : memref<8x128xf32, #tpu.memory_space<vmem>>, vector<8x128xf32>
    %c0_1 = arith.constant 0 : index
    %c0_2 = arith.constant 0 : index
    %1 = vector.load %arg2[%c0_1, %c0_2] : memref<1x128xf32, #tpu.memory_space<vmem>>, vector<1x128xf32>
    %c0_3 = arith.constant 0 : index
    %c0_4 = arith.constant 0 : index
    %2 = vector.load %arg3[%c0_3, %c0_4] : memref<1x128xf32, #tpu.memory_space<vmem>>, vector<1x128xf32>
    %cst = arith.constant dense<0.000000e+00> : vector<8xf32>
    %3 = vector.multi_reduction <add>, %0, %cst [1] : vector<8x128xf32> to vector<8xf32>
    %4 = vector.shape_cast %3 : vector<8xf32> to vector<8x1xf32>
    %cst_5 = arith.constant 1.280000e+02 : f32
    %5 = vector.broadcast %cst_5 : f32 to vector<8x1xf32>
    %6 = arith.divf %4, %5 : vector<8x1xf32>
    %7 = vector.broadcast %6 : vector<8x1xf32> to vector<8x128xf32>
    %8 = arith.subf %0, %7 : vector<8x128xf32>
    %9 = arith.mulf %8, %8 : vector<8x128xf32>
    %cst_6 = arith.constant dense<0.000000e+00> : vector<8xf32>
    %10 = vector.multi_reduction <add>, %9, %cst_6 [1] : vector<8x128xf32> to vector<8xf32>
    %11 = vector.shape_cast %10 : vector<8xf32> to vector<8x1xf32>
    %cst_7 = arith.constant 1.280000e+02 : f32
    %12 = vector.broadcast %cst_7 : f32 to vector<8x1xf32>
    %13 = arith.divf %11, %12 : vector<8x1xf32>
    %14 = vector.broadcast %6 : vector<8x1xf32> to vector<8x128xf32>
    %15 = arith.subf %0, %14 : vector<8x128xf32>
    %cst_8 = arith.constant 9.99999974E-6 : f32
    %16 = vector.broadcast %cst_8 : f32 to vector<8x1xf32>
    %17 = arith.addf %13, %16 : vector<8x1xf32>
    %18 = math.rsqrt %17 : vector<8x1xf32>
    %19 = vector.broadcast %18 : vector<8x1xf32> to vector<8x128xf32>
    %20 = arith.mulf %15, %19 : vector<8x128xf32>
    %21 = vector.broadcast %1 : vector<1x128xf32> to vector<8x128xf32>
    %22 = arith.mulf %20, %21 : vector<8x128xf32>
    %23 = vector.broadcast %2 : vector<1x128xf32> to vector<8x128xf32>
    %24 = arith.addf %22, %23 : vector<8x128xf32>
    %25 = arith.truncf %24 : vector<8x128xf32> to vector<8x128xbf16>
    %c0_9 = arith.constant 0 : index
    %c0_10 = arith.constant 0 : index
    %26 = vector.load %arg4[%c0_9, %c0_10] : memref<128x512xf32, #tpu.memory_space<vmem>>, vector<128x512xf32>
    %27 = arith.truncf %26 : vector<128x512xf32> to vector<128x512xbf16>
    %cst_11 = arith.constant dense<0.000000e+00> : vector<8x512xf32>
    %28 = tpu.matmul %25, %27, %cst_11 {dimension_numbers = #tpu.dot_dimension_numbers<[1], [0], [0], [1], [0, 0, 1, 1], [], []>} : vector<8x128xbf16>, vector<128x512xbf16>, vector<8x512xf32> -> vector<8x512xf32>
    %c0_12 = arith.constant 0 : index
    %c0_13 = arith.constant 0 : index
    %29 = vector.load %arg5[%c0_12, %c0_13] : memref<1x512xf32, #tpu.memory_space<vmem>>, vector<1x512xf32>
    %30 = vector.broadcast %29 : vector<1x512xf32> to vector<8x512xf32>
    %31 = arith.addf %28, %30 : vector<8x512xf32>
    %cst_14 = arith.constant 0.000000e+00 : f32
    %32 = vector.broadcast %cst_14 : f32 to vector<8x512xf32>
    %33 = arith.cmpf ogt, %31, %32 : vector<8x512xf32>
    %cst_15 = arith.constant 0.000000e+00 : f32
    %34 = vector.broadcast %cst_15 : f32 to vector<8x512xf32>
    %35 = arith.minimumf %31, %34 : vector<8x512xf32>
    %36 = math.exp %35 : vector<8x512xf32>
    %cst_16 = arith.constant 1.000000e+00 : f32
    %37 = vector.broadcast %cst_16 : f32 to vector<8x512xf32>
    %38 = arith.subf %36, %37 : vector<8x512xf32>
    %39 = arith.select %33, %31, %38 : vector<8x512xi1>, vector<8x512xf32>
    %c0_17 = arith.constant 0 : index
    %c0_18 = arith.constant 0 : index
    %40 = vector.load %arg6[%c0_17, %c0_18] : memref<8x512xf32, #tpu.memory_space<vmem>>, vector<8x512xf32>
    tpu.vector_store %arg6[%c0_17, %c0_18], %39 {strides = array<i32>} : memref<8x512xf32, #tpu.memory_space<vmem>>, vector<8x512xf32>,
    return
  }
  func.func @transform_0(%arg0: i32) -> (i32, i32) {
    %c0_i32 = arith.constant 0 : i32
    %c0_i32_0 = arith.constant 0 : i32
    return %arg0, %c0_i32 : i32, i32
  }
  func.func @transform_1(%arg0: i32) -> (i32, i32) {
    %c0_i32 = arith.constant 0 : i32
    %c0_i32_0 = arith.constant 0 : i32
    %c0_i32_1 = arith.constant 0 : i32
    return %c0_i32, %c0_i32_0 : i32, i32
  }
  func.func @transform_2(%arg0: i32) -> (i32, i32) {
    %c0_i32 = arith.constant 0 : i32
    %c0_i32_0 = arith.constant 0 : i32
    %c0_i32_1 = arith.constant 0 : i32
    return %c0_i32, %c0_i32_0 : i32, i32
  }
  func.func @transform_3(%arg0: i32) -> (i32, i32) {
    %c0_i32 = arith.constant 0 : i32
    %c0_i32_0 = arith.constant 0 : i32
    %c0_i32_1 = arith.constant 0 : i32
    return %c0_i32, %c0_i32_0 : i32, i32
  }
  func.func @transform_4(%arg0: i32) -> (i32, i32) {
    %c0_i32 = arith.constant 0 : i32
    %c0_i32_0 = arith.constant 0 : i32
    %c0_i32_1 = arith.constant 0 : i32
    return %c0_i32, %c0_i32_0 : i32, i32
  }
  func.func @transform_5(%arg0: i32) -> (i32, i32) {
    %c0_i32 = arith.constant 0 : i32
    %c0_i32_0 = arith.constant 0 : i32
    return %arg0, %c0_i32 : i32, i32
  }
}

module attributes {stable_mosaic.version = 11 : i64} {
  func.func @_mm_bias_act_kernel(%arg0: i32, %arg1: memref<32x384xf32, #tpu.memory_space<vmem>>, %arg2: memref<384x128xf32, #tpu.memory_space<vmem>>, %arg3: memref<1x128xf32, #tpu.memory_space<vmem>>, %arg4: memref<32x128xf32, #tpu.memory_space<vmem>>) attributes {dimension_semantics = [#tpu.dimension_semantics<parallel>], iteration_bounds = array<i64: 1>, scalar_prefetch = 0 : i64, scratch_operands = 0 : i64, tpu.core_type = #tpu.core_type<tc>, window_params = [{transform_indices = @transform_0, window_bounds = array<i64: 32, 384>}, {pipeline_mode = #tpu.pipeline_mode<synchronous>, transform_indices = @transform_1, window_bounds = array<i64: 384, 128>}, {pipeline_mode = #tpu.pipeline_mode<synchronous>, transform_indices = @transform_2, window_bounds = array<i64: 1, 128>}, {transform_indices = @transform_3, window_bounds = array<i64: 32, 128>}]} {
    %c0 = arith.constant 0 : index
    %c0_0 = arith.constant 0 : index
    %0 = vector.load %arg1[%c0, %c0_0] : memref<32x384xf32, #tpu.memory_space<vmem>>, vector<32x384xf32>
    %1 = arith.truncf %0 : vector<32x384xf32> to vector<32x384xbf16>
    %c0_1 = arith.constant 0 : index
    %c0_2 = arith.constant 0 : index
    %2 = vector.load %arg2[%c0_1, %c0_2] : memref<384x128xf32, #tpu.memory_space<vmem>>, vector<384x128xf32>
    %3 = arith.truncf %2 : vector<384x128xf32> to vector<384x128xbf16>
    %cst = arith.constant dense<0.000000e+00> : vector<32x128xf32>
    %4 = tpu.matmul %1, %3, %cst {dimension_numbers = #tpu.dot_dimension_numbers<[1], [0], [0], [1], [0, 0, 1, 1], [], []>} : vector<32x384xbf16>, vector<384x128xbf16>, vector<32x128xf32> -> vector<32x128xf32>
    %c0_3 = arith.constant 0 : index
    %c0_4 = arith.constant 0 : index
    %5 = vector.load %arg3[%c0_3, %c0_4] : memref<1x128xf32, #tpu.memory_space<vmem>>, vector<1x128xf32>
    %6 = vector.broadcast %5 : vector<1x128xf32> to vector<32x128xf32>
    %7 = arith.addf %4, %6 : vector<32x128xf32>
    %cst_5 = arith.constant 0.000000e+00 : f32
    %8 = vector.broadcast %cst_5 : f32 to vector<32x128xf32>
    %9 = arith.maximumf %7, %8 : vector<32x128xf32>
    %c0_6 = arith.constant 0 : index
    %c0_7 = arith.constant 0 : index
    %10 = vector.load %arg4[%c0_6, %c0_7] : memref<32x128xf32, #tpu.memory_space<vmem>>, vector<32x128xf32>
    tpu.vector_store %arg4[%c0_6, %c0_7], %9 {strides = array<i32>} : memref<32x128xf32, #tpu.memory_space<vmem>>, vector<32x128xf32>,
    return
  }
  func.func @transform_0(%arg0: i32) -> (i32, i32) {
    %c0_i32 = arith.constant 0 : i32
    %c0_i32_0 = arith.constant 0 : i32
    return %arg0, %c0_i32 : i32, i32
  }
  func.func @transform_1(%arg0: i32) -> (i32, i32) {
    %c0_i32 = arith.constant 0 : i32
    %c0_i32_0 = arith.constant 0 : i32
    %c0_i32_1 = arith.constant 0 : i32
    return %c0_i32, %c0_i32_0 : i32, i32
  }
  func.func @transform_2(%arg0: i32) -> (i32, i32) {
    %c0_i32 = arith.constant 0 : i32
    %c0_i32_0 = arith.constant 0 : i32
    %c0_i32_1 = arith.constant 0 : i32
    return %c0_i32, %c0_i32_0 : i32, i32
  }
  func.func @transform_3(%arg0: i32) -> (i32, i32) {
    %c0_i32 = arith.constant 0 : i32
    %c0_i32_0 = arith.constant 0 : i32
    return %arg0, %c0_i32 : i32, i32
  }
}

module attributes {stable_mosaic.version = 11 : i64} {
  func.func @_mm_bias_act_kernel(%arg0: i32, %arg1: memref<32x256xf32, #tpu.memory_space<vmem>>, %arg2: memref<256x128xf32, #tpu.memory_space<vmem>>, %arg3: memref<1x128xf32, #tpu.memory_space<vmem>>, %arg4: memref<32x128xf32, #tpu.memory_space<vmem>>) attributes {dimension_semantics = [#tpu.dimension_semantics<parallel>], iteration_bounds = array<i64: 1>, scalar_prefetch = 0 : i64, scratch_operands = 0 : i64, tpu.core_type = #tpu.core_type<tc>, window_params = [{transform_indices = @transform_0, window_bounds = array<i64: 32, 256>}, {pipeline_mode = #tpu.pipeline_mode<synchronous>, transform_indices = @transform_1, window_bounds = array<i64: 256, 128>}, {pipeline_mode = #tpu.pipeline_mode<synchronous>, transform_indices = @transform_2, window_bounds = array<i64: 1, 128>}, {transform_indices = @transform_3, window_bounds = array<i64: 32, 128>}]} {
    %c0 = arith.constant 0 : index
    %c0_0 = arith.constant 0 : index
    %0 = vector.load %arg1[%c0, %c0_0] : memref<32x256xf32, #tpu.memory_space<vmem>>, vector<32x256xf32>
    %1 = arith.truncf %0 : vector<32x256xf32> to vector<32x256xbf16>
    %c0_1 = arith.constant 0 : index
    %c0_2 = arith.constant 0 : index
    %2 = vector.load %arg2[%c0_1, %c0_2] : memref<256x128xf32, #tpu.memory_space<vmem>>, vector<256x128xf32>
    %3 = arith.truncf %2 : vector<256x128xf32> to vector<256x128xbf16>
    %cst = arith.constant dense<0.000000e+00> : vector<32x128xf32>
    %4 = tpu.matmul %1, %3, %cst {dimension_numbers = #tpu.dot_dimension_numbers<[1], [0], [0], [1], [0, 0, 1, 1], [], []>} : vector<32x256xbf16>, vector<256x128xbf16>, vector<32x128xf32> -> vector<32x128xf32>
    %c0_3 = arith.constant 0 : index
    %c0_4 = arith.constant 0 : index
    %5 = vector.load %arg3[%c0_3, %c0_4] : memref<1x128xf32, #tpu.memory_space<vmem>>, vector<1x128xf32>
    %6 = vector.broadcast %5 : vector<1x128xf32> to vector<32x128xf32>
    %7 = arith.addf %4, %6 : vector<32x128xf32>
    %cst_5 = arith.constant 0.000000e+00 : f32
    %8 = vector.broadcast %cst_5 : f32 to vector<32x128xf32>
    %9 = arith.maximumf %7, %8 : vector<32x128xf32>
    %c0_6 = arith.constant 0 : index
    %c0_7 = arith.constant 0 : index
    %10 = vector.load %arg4[%c0_6, %c0_7] : memref<32x128xf32, #tpu.memory_space<vmem>>, vector<32x128xf32>
    tpu.vector_store %arg4[%c0_6, %c0_7], %9 {strides = array<i32>} : memref<32x128xf32, #tpu.memory_space<vmem>>, vector<32x128xf32>,
    return
  }
  func.func @transform_0(%arg0: i32) -> (i32, i32) {
    %c0_i32 = arith.constant 0 : i32
    %c0_i32_0 = arith.constant 0 : i32
    return %arg0, %c0_i32 : i32, i32
  }
  func.func @transform_1(%arg0: i32) -> (i32, i32) {
    %c0_i32 = arith.constant 0 : i32
    %c0_i32_0 = arith.constant 0 : i32
    %c0_i32_1 = arith.constant 0 : i32
    return %c0_i32, %c0_i32_0 : i32, i32
  }
  func.func @transform_2(%arg0: i32) -> (i32, i32) {
    %c0_i32 = arith.constant 0 : i32
    %c0_i32_0 = arith.constant 0 : i32
    %c0_i32_1 = arith.constant 0 : i32
    return %c0_i32, %c0_i32_0 : i32, i32
  }
  func.func @transform_3(%arg0: i32) -> (i32, i32) {
    %c0_i32 = arith.constant 0 : i32
    %c0_i32_0 = arith.constant 0 : i32
    return %arg0, %c0_i32 : i32, i32
  }
}

module attributes {stable_mosaic.version = 11 : i64} {
  func.func @_mm_bias_act_kernel(%arg0: i32, %arg1: memref<128x256xf32, #tpu.memory_space<vmem>>, %arg2: memref<256x128xf32, #tpu.memory_space<vmem>>, %arg3: memref<1x128xf32, #tpu.memory_space<vmem>>, %arg4: memref<128x128xf32, #tpu.memory_space<vmem>>) attributes {dimension_semantics = [#tpu.dimension_semantics<parallel>], iteration_bounds = array<i64: 1>, scalar_prefetch = 0 : i64, scratch_operands = 0 : i64, tpu.core_type = #tpu.core_type<tc>, window_params = [{transform_indices = @transform_0, window_bounds = array<i64: 128, 256>}, {pipeline_mode = #tpu.pipeline_mode<synchronous>, transform_indices = @transform_1, window_bounds = array<i64: 256, 128>}, {pipeline_mode = #tpu.pipeline_mode<synchronous>, transform_indices = @transform_2, window_bounds = array<i64: 1, 128>}, {transform_indices = @transform_3, window_bounds = array<i64: 128, 128>}]} {
    %c0 = arith.constant 0 : index
    %c0_0 = arith.constant 0 : index
    %0 = vector.load %arg1[%c0, %c0_0] : memref<128x256xf32, #tpu.memory_space<vmem>>, vector<128x256xf32>
    %1 = arith.truncf %0 : vector<128x256xf32> to vector<128x256xbf16>
    %c0_1 = arith.constant 0 : index
    %c0_2 = arith.constant 0 : index
    %2 = vector.load %arg2[%c0_1, %c0_2] : memref<256x128xf32, #tpu.memory_space<vmem>>, vector<256x128xf32>
    %3 = arith.truncf %2 : vector<256x128xf32> to vector<256x128xbf16>
    %cst = arith.constant dense<0.000000e+00> : vector<128x128xf32>
    %4 = tpu.matmul %1, %3, %cst {dimension_numbers = #tpu.dot_dimension_numbers<[1], [0], [0], [1], [0, 0, 1, 1], [], []>} : vector<128x256xbf16>, vector<256x128xbf16>, vector<128x128xf32> -> vector<128x128xf32>
    %c0_3 = arith.constant 0 : index
    %c0_4 = arith.constant 0 : index
    %5 = vector.load %arg3[%c0_3, %c0_4] : memref<1x128xf32, #tpu.memory_space<vmem>>, vector<1x128xf32>
    %6 = vector.broadcast %5 : vector<1x128xf32> to vector<128x128xf32>
    %7 = arith.addf %4, %6 : vector<128x128xf32>
    %cst_5 = arith.constant 0.000000e+00 : f32
    %8 = vector.broadcast %cst_5 : f32 to vector<128x128xf32>
    %9 = arith.maximumf %7, %8 : vector<128x128xf32>
    %c0_6 = arith.constant 0 : index
    %c0_7 = arith.constant 0 : index
    %10 = vector.load %arg4[%c0_6, %c0_7] : memref<128x128xf32, #tpu.memory_space<vmem>>, vector<128x128xf32>
    tpu.vector_store %arg4[%c0_6, %c0_7], %9 {strides = array<i32>} : memref<128x128xf32, #tpu.memory_space<vmem>>, vector<128x128xf32>,
    return
  }
  func.func @transform_0(%arg0: i32) -> (i32, i32) {
    %c0_i32 = arith.constant 0 : i32
    %c0_i32_0 = arith.constant 0 : i32
    return %arg0, %c0_i32 : i32, i32
  }
  func.func @transform_1(%arg0: i32) -> (i32, i32) {
    %c0_i32 = arith.constant 0 : i32
    %c0_i32_0 = arith.constant 0 : i32
    %c0_i32_1 = arith.constant 0 : i32
    return %c0_i32, %c0_i32_0 : i32, i32
  }
  func.func @transform_2(%arg0: i32) -> (i32, i32) {
    %c0_i32 = arith.constant 0 : i32
    %c0_i32_0 = arith.constant 0 : i32
    %c0_i32_1 = arith.constant 0 : i32
    return %c0_i32, %c0_i32_0 : i32, i32
  }
  func.func @transform_3(%arg0: i32) -> (i32, i32) {
    %c0_i32 = arith.constant 0 : i32
    %c0_i32_0 = arith.constant 0 : i32
    return %arg0, %c0_i32 : i32, i32
  }
}

module attributes {stable_mosaic.version = 11 : i64} {
  func.func @_mm_bias_act_kernel(%arg0: i32, %arg1: memref<128x128xf32, #tpu.memory_space<vmem>>, %arg2: memref<128x128xf32, #tpu.memory_space<vmem>>, %arg3: memref<1x128xf32, #tpu.memory_space<vmem>>, %arg4: memref<128x128xf32, #tpu.memory_space<vmem>>) attributes {dimension_semantics = [#tpu.dimension_semantics<parallel>], iteration_bounds = array<i64: 1>, scalar_prefetch = 0 : i64, scratch_operands = 0 : i64, tpu.core_type = #tpu.core_type<tc>, window_params = [{transform_indices = @transform_0, window_bounds = array<i64: 128, 128>}, {pipeline_mode = #tpu.pipeline_mode<synchronous>, transform_indices = @transform_1, window_bounds = array<i64: 128, 128>}, {pipeline_mode = #tpu.pipeline_mode<synchronous>, transform_indices = @transform_2, window_bounds = array<i64: 1, 128>}, {transform_indices = @transform_3, window_bounds = array<i64: 128, 128>}]} {
    %c0 = arith.constant 0 : index
    %c0_0 = arith.constant 0 : index
    %0 = vector.load %arg1[%c0, %c0_0] : memref<128x128xf32, #tpu.memory_space<vmem>>, vector<128x128xf32>
    %1 = arith.truncf %0 : vector<128x128xf32> to vector<128x128xbf16>
    %c0_1 = arith.constant 0 : index
    %c0_2 = arith.constant 0 : index
    %2 = vector.load %arg2[%c0_1, %c0_2] : memref<128x128xf32, #tpu.memory_space<vmem>>, vector<128x128xf32>
    %3 = arith.truncf %2 : vector<128x128xf32> to vector<128x128xbf16>
    %cst = arith.constant dense<0.000000e+00> : vector<128x128xf32>
    %4 = tpu.matmul %1, %3, %cst {dimension_numbers = #tpu.dot_dimension_numbers<[1], [0], [0], [1], [0, 0, 1, 1], [], []>} : vector<128x128xbf16>, vector<128x128xbf16>, vector<128x128xf32> -> vector<128x128xf32>
    %c0_3 = arith.constant 0 : index
    %c0_4 = arith.constant 0 : index
    %5 = vector.load %arg3[%c0_3, %c0_4] : memref<1x128xf32, #tpu.memory_space<vmem>>, vector<1x128xf32>
    %6 = vector.broadcast %5 : vector<1x128xf32> to vector<128x128xf32>
    %7 = arith.addf %4, %6 : vector<128x128xf32>
    %cst_5 = arith.constant 0.000000e+00 : f32
    %8 = vector.broadcast %cst_5 : f32 to vector<128x128xf32>
    %9 = arith.maximumf %7, %8 : vector<128x128xf32>
    %c0_6 = arith.constant 0 : index
    %c0_7 = arith.constant 0 : index
    %10 = vector.load %arg4[%c0_6, %c0_7] : memref<128x128xf32, #tpu.memory_space<vmem>>, vector<128x128xf32>
    tpu.vector_store %arg4[%c0_6, %c0_7], %9 {strides = array<i32>} : memref<128x128xf32, #tpu.memory_space<vmem>>, vector<128x128xf32>,
    return
  }
  func.func @transform_0(%arg0: i32) -> (i32, i32) {
    %c0_i32 = arith.constant 0 : i32
    %c0_i32_0 = arith.constant 0 : i32
    return %arg0, %c0_i32 : i32, i32
  }
  func.func @transform_1(%arg0: i32) -> (i32, i32) {
    %c0_i32 = arith.constant 0 : i32
    %c0_i32_0 = arith.constant 0 : i32
    %c0_i32_1 = arith.constant 0 : i32
    return %c0_i32, %c0_i32_0 : i32, i32
  }
  func.func @transform_2(%arg0: i32) -> (i32, i32) {
    %c0_i32 = arith.constant 0 : i32
    %c0_i32_0 = arith.constant 0 : i32
    %c0_i32_1 = arith.constant 0 : i32
    return %c0_i32, %c0_i32_0 : i32, i32
  }
  func.func @transform_3(%arg0: i32) -> (i32, i32) {
    %c0_i32 = arith.constant 0 : i32
    %c0_i32_0 = arith.constant 0 : i32
    return %arg0, %c0_i32 : i32, i32
  }
}

module attributes {stable_mosaic.version = 11 : i64} {
  func.func @_mm_bias_act_kernel(%arg0: i32, %arg1: memref<512x128xf32, #tpu.memory_space<vmem>>, %arg2: memref<128x128xf32, #tpu.memory_space<vmem>>, %arg3: memref<1x128xf32, #tpu.memory_space<vmem>>, %arg4: memref<512x128xf32, #tpu.memory_space<vmem>>) attributes {dimension_semantics = [#tpu.dimension_semantics<parallel>], iteration_bounds = array<i64: 1>, scalar_prefetch = 0 : i64, scratch_operands = 0 : i64, tpu.core_type = #tpu.core_type<tc>, window_params = [{transform_indices = @transform_0, window_bounds = array<i64: 512, 128>}, {pipeline_mode = #tpu.pipeline_mode<synchronous>, transform_indices = @transform_1, window_bounds = array<i64: 128, 128>}, {pipeline_mode = #tpu.pipeline_mode<synchronous>, transform_indices = @transform_2, window_bounds = array<i64: 1, 128>}, {transform_indices = @transform_3, window_bounds = array<i64: 512, 128>}]} {
    %c0 = arith.constant 0 : index
    %c0_0 = arith.constant 0 : index
    %0 = vector.load %arg1[%c0, %c0_0] : memref<512x128xf32, #tpu.memory_space<vmem>>, vector<512x128xf32>
    %1 = arith.truncf %0 : vector<512x128xf32> to vector<512x128xbf16>
    %c0_1 = arith.constant 0 : index
    %c0_2 = arith.constant 0 : index
    %2 = vector.load %arg2[%c0_1, %c0_2] : memref<128x128xf32, #tpu.memory_space<vmem>>, vector<128x128xf32>
    %3 = arith.truncf %2 : vector<128x128xf32> to vector<128x128xbf16>
    %cst = arith.constant dense<0.000000e+00> : vector<512x128xf32>
    %4 = tpu.matmul %1, %3, %cst {dimension_numbers = #tpu.dot_dimension_numbers<[1], [0], [0], [1], [0, 0, 1, 1], [], []>} : vector<512x128xbf16>, vector<128x128xbf16>, vector<512x128xf32> -> vector<512x128xf32>
    %c0_3 = arith.constant 0 : index
    %c0_4 = arith.constant 0 : index
    %5 = vector.load %arg3[%c0_3, %c0_4] : memref<1x128xf32, #tpu.memory_space<vmem>>, vector<1x128xf32>
    %6 = vector.broadcast %5 : vector<1x128xf32> to vector<512x128xf32>
    %7 = arith.addf %4, %6 : vector<512x128xf32>
    %cst_5 = arith.constant 0.000000e+00 : f32
    %8 = vector.broadcast %cst_5 : f32 to vector<512x128xf32>
    %9 = arith.maximumf %7, %8 : vector<512x128xf32>
    %c0_6 = arith.constant 0 : index
    %c0_7 = arith.constant 0 : index
    %10 = vector.load %arg4[%c0_6, %c0_7] : memref<512x128xf32, #tpu.memory_space<vmem>>, vector<512x128xf32>
    tpu.vector_store %arg4[%c0_6, %c0_7], %9 {strides = array<i32>} : memref<512x128xf32, #tpu.memory_space<vmem>>, vector<512x128xf32>,
    return
  }
  func.func @transform_0(%arg0: i32) -> (i32, i32) {
    %c0_i32 = arith.constant 0 : i32
    %c0_i32_0 = arith.constant 0 : i32
    return %arg0, %c0_i32 : i32, i32
  }
  func.func @transform_1(%arg0: i32) -> (i32, i32) {
    %c0_i32 = arith.constant 0 : i32
    %c0_i32_0 = arith.constant 0 : i32
    %c0_i32_1 = arith.constant 0 : i32
    return %c0_i32, %c0_i32_0 : i32, i32
  }
  func.func @transform_2(%arg0: i32) -> (i32, i32) {
    %c0_i32 = arith.constant 0 : i32
    %c0_i32_0 = arith.constant 0 : i32
    %c0_i32_1 = arith.constant 0 : i32
    return %c0_i32, %c0_i32_0 : i32, i32
  }
  func.func @transform_3(%arg0: i32) -> (i32, i32) {
    %c0_i32 = arith.constant 0 : i32
    %c0_i32_0 = arith.constant 0 : i32
    return %arg0, %c0_i32 : i32, i32
  }
}

module attributes {stable_mosaic.version = 11 : i64} {
  func.func @_mm_bias_act_kernel(%arg0: i32, %arg1: memref<512x128xf32, #tpu.memory_space<vmem>>, %arg2: memref<128x128xf32, #tpu.memory_space<vmem>>, %arg3: memref<1x128xf32, #tpu.memory_space<vmem>>, %arg4: memref<512x128xf32, #tpu.memory_space<vmem>>) attributes {dimension_semantics = [#tpu.dimension_semantics<parallel>], iteration_bounds = array<i64: 16>, scalar_prefetch = 0 : i64, scratch_operands = 0 : i64, tpu.core_type = #tpu.core_type<tc>, window_params = [{transform_indices = @transform_0, window_bounds = array<i64: 512, 128>}, {pipeline_mode = #tpu.pipeline_mode<synchronous>, transform_indices = @transform_1, window_bounds = array<i64: 128, 128>}, {pipeline_mode = #tpu.pipeline_mode<synchronous>, transform_indices = @transform_2, window_bounds = array<i64: 1, 128>}, {transform_indices = @transform_3, window_bounds = array<i64: 512, 128>}]} {
    %c0 = arith.constant 0 : index
    %c0_0 = arith.constant 0 : index
    %0 = vector.load %arg1[%c0, %c0_0] : memref<512x128xf32, #tpu.memory_space<vmem>>, vector<512x128xf32>
    %1 = arith.truncf %0 : vector<512x128xf32> to vector<512x128xbf16>
    %c0_1 = arith.constant 0 : index
    %c0_2 = arith.constant 0 : index
    %2 = vector.load %arg2[%c0_1, %c0_2] : memref<128x128xf32, #tpu.memory_space<vmem>>, vector<128x128xf32>
    %3 = arith.truncf %2 : vector<128x128xf32> to vector<128x128xbf16>
    %cst = arith.constant dense<0.000000e+00> : vector<512x128xf32>
    %4 = tpu.matmul %1, %3, %cst {dimension_numbers = #tpu.dot_dimension_numbers<[1], [0], [0], [1], [0, 0, 1, 1], [], []>} : vector<512x128xbf16>, vector<128x128xbf16>, vector<512x128xf32> -> vector<512x128xf32>
    %c0_3 = arith.constant 0 : index
    %c0_4 = arith.constant 0 : index
    %5 = vector.load %arg3[%c0_3, %c0_4] : memref<1x128xf32, #tpu.memory_space<vmem>>, vector<1x128xf32>
    %6 = vector.broadcast %5 : vector<1x128xf32> to vector<512x128xf32>
    %7 = arith.addf %4, %6 : vector<512x128xf32>
    %cst_5 = arith.constant 0.000000e+00 : f32
    %8 = vector.broadcast %cst_5 : f32 to vector<512x128xf32>
    %9 = arith.maximumf %7, %8 : vector<512x128xf32>
    %c0_6 = arith.constant 0 : index
    %c0_7 = arith.constant 0 : index
    %10 = vector.load %arg4[%c0_6, %c0_7] : memref<512x128xf32, #tpu.memory_space<vmem>>, vector<512x128xf32>
    tpu.vector_store %arg4[%c0_6, %c0_7], %9 {strides = array<i32>} : memref<512x128xf32, #tpu.memory_space<vmem>>, vector<512x128xf32>,
    return
  }
  func.func @transform_0(%arg0: i32) -> (i32, i32) {
    %c0_i32 = arith.constant 0 : i32
    %c0_i32_0 = arith.constant 0 : i32
    return %arg0, %c0_i32 : i32, i32
  }
  func.func @transform_1(%arg0: i32) -> (i32, i32) {
    %c0_i32 = arith.constant 0 : i32
    %c0_i32_0 = arith.constant 0 : i32
    %c0_i32_1 = arith.constant 0 : i32
    return %c0_i32, %c0_i32_0 : i32, i32
  }
  func.func @transform_2(%arg0: i32) -> (i32, i32) {
    %c0_i32 = arith.constant 0 : i32
    %c0_i32_0 = arith.constant 0 : i32
    %c0_i32_1 = arith.constant 0 : i32
    return %c0_i32, %c0_i32_0 : i32, i32
  }
  func.func @transform_3(%arg0: i32) -> (i32, i32) {
    %c0_i32 = arith.constant 0 : i32
    %c0_i32_0 = arith.constant 0 : i32
    return %arg0, %c0_i32 : i32, i32
  }
}

module attributes {stable_mosaic.version = 11 : i64} {
  func.func @_mm_bias_act_kernel(%arg0: i32, %arg1: memref<512x128xf32, #tpu.memory_space<vmem>>, %arg2: memref<128x128xf32, #tpu.memory_space<vmem>>, %arg3: memref<1x128xf32, #tpu.memory_space<vmem>>, %arg4: memref<512x128xf32, #tpu.memory_space<vmem>>) attributes {dimension_semantics = [#tpu.dimension_semantics<parallel>], iteration_bounds = array<i64: 16>, scalar_prefetch = 0 : i64, scratch_operands = 0 : i64, tpu.core_type = #tpu.core_type<tc>, window_params = [{transform_indices = @transform_0, window_bounds = array<i64: 512, 128>}, {pipeline_mode = #tpu.pipeline_mode<synchronous>, transform_indices = @transform_1, window_bounds = array<i64: 128, 128>}, {pipeline_mode = #tpu.pipeline_mode<synchronous>, transform_indices = @transform_2, window_bounds = array<i64: 1, 128>}, {transform_indices = @transform_3, window_bounds = array<i64: 512, 128>}]} {
    %c0 = arith.constant 0 : index
    %c0_0 = arith.constant 0 : index
    %0 = vector.load %arg1[%c0, %c0_0] : memref<512x128xf32, #tpu.memory_space<vmem>>, vector<512x128xf32>
    %1 = arith.truncf %0 : vector<512x128xf32> to vector<512x128xbf16>
    %c0_1 = arith.constant 0 : index
    %c0_2 = arith.constant 0 : index
    %2 = vector.load %arg2[%c0_1, %c0_2] : memref<128x128xf32, #tpu.memory_space<vmem>>, vector<128x128xf32>
    %3 = arith.truncf %2 : vector<128x128xf32> to vector<128x128xbf16>
    %cst = arith.constant dense<0.000000e+00> : vector<512x128xf32>
    %4 = tpu.matmul %1, %3, %cst {dimension_numbers = #tpu.dot_dimension_numbers<[1], [0], [0], [1], [0, 0, 1, 1], [], []>} : vector<512x128xbf16>, vector<128x128xbf16>, vector<512x128xf32> -> vector<512x128xf32>
    %c0_3 = arith.constant 0 : index
    %c0_4 = arith.constant 0 : index
    %5 = vector.load %arg3[%c0_3, %c0_4] : memref<1x128xf32, #tpu.memory_space<vmem>>, vector<1x128xf32>
    %6 = vector.broadcast %5 : vector<1x128xf32> to vector<512x128xf32>
    %7 = arith.addf %4, %6 : vector<512x128xf32>
    %8 = math.tanh %7 : vector<512x128xf32>
    %c0_5 = arith.constant 0 : index
    %c0_6 = arith.constant 0 : index
    %9 = vector.load %arg4[%c0_5, %c0_6] : memref<512x128xf32, #tpu.memory_space<vmem>>, vector<512x128xf32>
    tpu.vector_store %arg4[%c0_5, %c0_6], %8 {strides = array<i32>} : memref<512x128xf32, #tpu.memory_space<vmem>>, vector<512x128xf32>,
    return
  }
  func.func @transform_0(%arg0: i32) -> (i32, i32) {
    %c0_i32 = arith.constant 0 : i32
    %c0_i32_0 = arith.constant 0 : i32
    return %arg0, %c0_i32 : i32, i32
  }
  func.func @transform_1(%arg0: i32) -> (i32, i32) {
    %c0_i32 = arith.constant 0 : i32
    %c0_i32_0 = arith.constant 0 : i32
    %c0_i32_1 = arith.constant 0 : i32
    return %c0_i32, %c0_i32_0 : i32, i32
  }
  func.func @transform_2(%arg0: i32) -> (i32, i32) {
    %c0_i32 = arith.constant 0 : i32
    %c0_i32_0 = arith.constant 0 : i32
    %c0_i32_1 = arith.constant 0 : i32
    return %c0_i32, %c0_i32_0 : i32, i32
  }
  func.func @transform_3(%arg0: i32) -> (i32, i32) {
    %c0_i32 = arith.constant 0 : i32
    %c0_i32_0 = arith.constant 0 : i32
    return %arg0, %c0_i32 : i32, i32
  }
}

</mosaic_0001>

<llo_original>
// kernel: vision_transformer_forward.20
$region0: #{vision_transformer_forward.20}
  #allocation0 [shape = 'u32[]', space=smem, size = 0x4, offset = 0x4, fixed_abs, tag = 'smem constant byte address 0x4 - core index']
  #allocation1 [shape = 'u32[144,128]{1,0:T(1,128)}', space=vmem, size = 0x12000, scoped, tag = 'internal scratch']
  %s0 = inlined_call_operand.vmem [shape: f32[16,128], index: 0, kind: input, shape index: {}]
  %s1 = inlined_call_operand.vmem [shape: f32[128,128], index: 1, kind: input, shape index: {}]
  %s2 = inlined_call_operand.vmem [shape: f32[1,128], index: 2, kind: input, shape index: {}]
  %s3 = inlined_call_operand.vmem [shape: f32[16,128], index: 3, kind: output, shape index: {}]
  %s4 = sld [smem:[#allocation0]]
  $region22: #{vision_transformer_forward.20} parent=0
    _
  %s6 = ssub.s32 1, %s4
  %s7 = scalar_select 0, %s6, %s4
  // Predicated region
  $region2: #{vision_transformer_forward.20} parent=0 // pred_check
    _
  $region3: #{vision_transformer_forward.20} parent=0 // pred_check_branch
    %9 = sbr.rel (0) target = $region5
  $region4: #{vision_transformer_forward.20} parent=0 // pred_region
    _
  $region5: #{vision_transformer_forward.20} parent=0 // pred_fallthru
    _
  // Predicated region
  $region6: #{vision_transformer_forward.20} parent=0 // pred_check
    _
  $region7: #{vision_transformer_forward.20} parent=0 // pred_check_branch
    %11 = sbr.rel (0) target = $region9
  $region8: #{vision_transformer_forward.20} parent=0 // pred_region
    _
  $region9: #{vision_transformer_forward.20} parent=0 // pred_fallthru
    _
  // Predicated region
  $region10: #{vision_transformer_forward.20} parent=0 // pred_check
    _
  $region11: #{vision_transformer_forward.20} parent=0 // pred_check_branch
    %13 = sbr.rel (0) target = $region13
  $region12: #{vision_transformer_forward.20} parent=0 // pred_region
    _
  $region13: #{vision_transformer_forward.20} parent=0 // pred_fallthru
    _
  %v15 = vld [vmem:[%s0] sm:$0xff]
  %v16 = vld [vmem:[%s0 + $0x8] sm:$0xff]
  %v17 = vpack.c.bf16 %v16, %v15
  %v18 = vld [vmem:[%s1] sm:$0xff]
  %v19 = vld [vmem:[%s1 + $0x8] sm:$0xff]
  %v20 = vld [vmem:[%s1 + $0x10] sm:$0xff]
  %v21 = vld [vmem:[%s1 + $0x18] sm:$0xff]
  %v22 = vld [vmem:[%s1 + $0x20] sm:$0xff]
  %v23 = vld [vmem:[%s1 + $0x28] sm:$0xff]
  %v24 = vld [vmem:[%s1 + $0x30] sm:$0xff]
  %v25 = vld [vmem:[%s1 + $0x38] sm:$0xff]
  %v26 = vld [vmem:[%s1 + $0x40] sm:$0xff]
  %v27 = vld [vmem:[%s1 + $0x48] sm:$0xff]
  %v28 = vld [vmem:[%s1 + $0x50] sm:$0xff]
  %v29 = vld [vmem:[%s1 + $0x58] sm:$0xff]
  %v30 = vld [vmem:[%s1 + $0x60] sm:$0xff]
  %v31 = vld [vmem:[%s1 + $0x68] sm:$0xff]
  %v32 = vld [vmem:[%s1 + $0x70] sm:$0xff]
  %v33 = vld [vmem:[%s1 + $0x78] sm:$0xff]
  %v34 = vpack.c.bf16 %v19, %v18
  %v35 = vpack.c.bf16 %v21, %v20
  %v36 = vpack.c.bf16 %v23, %v22
  %v37 = vpack.c.bf16 %v25, %v24
  %v38 = vpack.c.bf16 %v27, %v26
  %v39 = vpack.c.bf16 %v29, %v28
  %v40 = vpack.c.bf16 %v31, %v30
  %v41 = vpack.c.bf16 %v33, %v32
  %v42 = vld [vmem:[%s2] sm:$0x1]
  %v44 = vlaneseq
  %v45 = vshrl.u32 %v44, 7
  %v46 = vsub.s32 0, %v45
  %v47 = vrot.slane %v42, %v46
  %49 = vmatprep.subr.bf16.mxu0 0
  %50 = vmatpush1.bf16.msra.mxu0 %v34
  %51 = vmatprep.subr.bf16.mxu0 0
  %52 = vmatpush1.bf16.msra.mxu0 %v35
  %53 = vmatprep.subr.bf16.mxu0 0
  %54 = vmatpush1.bf16.msra.mxu0 %v36
  %55 = vmatprep.subr.bf16.mxu0 0
  %56 = vmatpush1.bf16.msra.mxu0 %v37
  %57 = vmatprep.subr.bf16.mxu0 0
  %58 = vmatpush1.bf16.msra.mxu0 %v38
  %59 = vmatprep.subr.bf16.mxu0 0
  %60 = vmatpush1.bf16.msra.mxu0 %v39
  %61 = vmatprep.subr.bf16.mxu0 0
  %62 = vmatpush1.bf16.msra.mxu0 %v40
  %63 = vmatprep.subr.bf16.mxu0 0
  %64 = vmatpush1.bf16.msra.mxu0 %v41
  %65 = vmatprep.subr.bf16.mxu0 0
  %66 = vmatpush1.bf16.msra.mxu0 0
  %67 = vmatprep.subr.bf16.mxu0 0
  %68 = vmatpush1.bf16.msra.mxu0 0
  %69 = vmatprep.subr.bf16.mxu0 0
  %70 = vmatpush1.bf16.msra.mxu0 0
  %71 = vmatprep.subr.bf16.mxu0 0
  %72 = vmatpush1.bf16.msra.mxu0 0
  %73 = vmatprep.subr.bf16.mxu0 0
  %74 = vmatpush1.bf16.msra.mxu0 0
  %75 = vmatprep.subr.bf16.mxu0 0
  %76 = vmatpush1.bf16.msra.mxu0 0
  %77 = vmatprep.subr.bf16.mxu0 0
  %78 = vmatpush1.bf16.msra.mxu0 0
  %79 = vmatprep.subr.bf16.mxu0 0
  %80 = vmatpush1.bf16.msra.mxu0 0
  %81 = vmatprep.mubr.bf16.mxu0 0
  %82 = vmatmul.mubr.bf16.gmra.mrb[0].mxu0 %v17
  %v83 = vpop.f32.mrb[0].mxu0
  %v84 = vadd.f32 %v47, %v83
  %v85 = vpop.f32.mrb[0].mxu0
  %v86 = vpop.f32.mrb[0].mxu0
  %v87 = vadd.f32 %v47, %v86
  %v88 = vpop.f32.mrb[0].mxu0
  %89 = vdwg.mxu0
  %90 = vst [vmem:[%s3] sm:$0xff] %v84
  %91 = vst [vmem:[%s3 + $0x8] sm:$0xff] %v87
  // Predicated region
  $region14: #{vision_transformer_forward.20} parent=0 // pred_check
    _
  $region15: #{vision_transformer_forward.20} parent=0 // pred_check_branch
    %93 = sbr.rel (0) target = $region17
  $region16: #{vision_transformer_forward.20} parent=0 // pred_region
    _
  $region17: #{vision_transformer_forward.20} parent=0 // pred_fallthru
    _
  // Predicated region
  $region18: #{vision_transformer_forward.20} parent=0 // pred_check
    _
  $region19: #{vision_transformer_forward.20} parent=0 // pred_check_branch
    %95 = sbr.rel (0) target = $region21
  $region20: #{vision_transformer_forward.20} parent=0 // pred_region
    _
  $region21: #{vision_transformer_forward.20} parent=0 // pred_fallthru
    _

// kernel: vision_transformer_forward.19
$region0: #{vision_transformer_forward.19}
  #allocation0 [shape = 'u32[]', space=smem, size = 0x4, offset = 0x4, fixed_abs, tag = 'smem constant byte address 0x4 - core index']
  #allocation1 [shape = 'u32[144,128]{1,0:T(1,128)}', space=vmem, size = 0x12000, scoped, tag = 'internal scratch']
  %s0 = inlined_call_operand.vmem [shape: f32[16,3072], index: 0, kind: input, shape index: {}]
  %s1 = inlined_call_operand.vmem [shape: f32[3072,128], index: 1, kind: input, shape index: {}]
  %s2 = inlined_call_operand.vmem [shape: f32[1,128], index: 2, kind: input, shape index: {}]
  %s3 = inlined_call_operand.vmem [shape: f32[16,128], index: 3, kind: output, shape index: {}]
  %s4 = sld [smem:[#allocation0]]
  $region22: #{vision_transformer_forward.19} parent=0
    _
  %s6 = ssub.s32 1, %s4
  %s7 = scalar_select 0, %s6, %s4
  // Predicated region
  $region2: #{vision_transformer_forward.19} parent=0 // pred_check
    _
  $region3: #{vision_transformer_forward.19} parent=0 // pred_check_branch
    %9 = sbr.rel (0) target = $region5
  $region4: #{vision_transformer_forward.19} parent=0 // pred_region
    _
  $region5: #{vision_transformer_forward.19} parent=0 // pred_fallthru
    _
  // Predicated region
  $region6: #{vision_transformer_forward.19} parent=0 // pred_check
    _
  $region7: #{vision_transformer_forward.19} parent=0 // pred_check_branch
    %11 = sbr.rel (0) target = $region9
  $region8: #{vision_transformer_forward.19} parent=0 // pred_region
    _
  $region9: #{vision_transformer_forward.19} parent=0 // pred_fallthru
    _
  // Predicated region
  $region10: #{vision_transformer_forward.19} parent=0 // pred_check
    _
  $region11: #{vision_transformer_forward.19} parent=0 // pred_check_branch
    %13 = sbr.rel (0) target = $region13
  $region12: #{vision_transformer_forward.19} parent=0 // pred_region
    _
  $region13: #{vision_transformer_forward.19} parent=0 // pred_fallthru
    _
  %v15 = vld [vmem:[%s0] sm:$0xff]
  %v16 = vld [vmem:[%s0 + $0x8] sm:$0xff]
  %v17 = vld [vmem:[%s0 + $0x10] sm:$0xff]
  %v18 = vld [vmem:[%s0 + $0x18] sm:$0xff]
  %v19 = vld [vmem:[%s0 + $0x20] sm:$0xff]
  %v20 = vld [vmem:[%s0 + $0x28] sm:$0xff]
  %v21 = vld [vmem:[%s0 + $0x30] sm:$0xff]
  %v22 = vld [vmem:[%s0 + $0x38] sm:$0xff]
  %v23 = vld [vmem:[%s0 + $0x40] sm:$0xff]
  %v24 = vld [vmem:[%s0 + $0x48] sm:$0xff]
  %v25 = vld [vmem:[%s0 + $0x50] sm:$0xff]
  %v26 = vld [vmem:[%s0 + $0x58] sm:$0xff]
  %v27 = vld [vmem:[%s0 + $0x60] sm:$0xff]
  %v28 = vld [vmem:[%s0 + $0x68] sm:$0xff]
  %v29 = vld [vmem:[%s0 + $0x70] sm:$0xff]
  %v30 = vld [vmem:[%s0 + $0x78] sm:$0xff]
  %v31 = vld [vmem:[%s0 + $0x80] sm:$0xff]
  %v32 = vld [vmem:[%s0 + $0x88] sm:$0xff]
  %v33 = vld [vmem:[%s0 + $0x90] sm:$0xff]
  %v34 = vld [vmem:[%s0 + $0x98] sm:$0xff]
  %v35 = vld [vmem:[%s0 + $0xa0] sm:$0xff]
  %v36 = vld [vmem:[%s0 + $0xa8] sm:$0xff]
  %v37 = vld [vmem:[%s0 + $0xb0] sm:$0xff]
  %v38 = vld [vmem:[%s0 + $0xb8] sm:$0xff]
  %v39 = vld [vmem:[%s0 + $0xc0] sm:$0xff]
  %v40 = vld [vmem:[%s0 + $0xc8] sm:$0xff]
  %v41 = vld [vmem:[%s0 + $0xd0] sm:$0xff]
  %v42 = vld [vmem:[%s0 + $0xd8] sm:$0xff]
  %v43 = vld [vmem:[%s0 + $0xe0] sm:$0xff]
  %v44 = vld [vmem:[%s0 + $0xe8] sm:$0xff]
  %v45 = vld [vmem:[%s0 + $0xf0] sm:$0xff]
  %v46 = vld [vmem:[%s0 + $0xf8] sm:$0xff]
  %v47 = vld [vmem:[%s0 + $0x100] sm:$0xff]
  %v48 = vld [vmem:[%s0 + $0x108] sm:$0xff]
  %v49 = vld [vmem:[%s0 + $0x110] sm:$0xff]
  %v50 = vld [vmem:[%s0 + $0x118] sm:$0xff]
  %v51 = vld [vmem:[%s0 + $0x120] sm:$0xff]
  %v52 = vld [vmem:[%s0 + $0x128] sm:$0xff]
  %v53 = vld [vmem:[%s0 + $0x130] sm:$0xff]
  %v54 = vld [vmem:[%s0 + $0x138] sm:$0xff]
  %v55 = vld [vmem:[%s0 + $0x140] sm:$0xff]
  %v56 = vld [vmem:[%s0 + $0x148] sm:$0xff]
  %v57 = vld [vmem:[%s0 + $0x150] sm:$0xff]
  %v58 = vld [vmem:[%s0 + $0x158] sm:$0xff]
  %v59 = vld [vmem:[%s0 + $0x160] sm:$0xff]
  %v60 = vld [vmem:[%s0 + $0x168] sm:$0xff]
  %v61 = vld [vmem:[%s0 + $0x170] sm:$0xff]
  %v62 = vld [vmem:[%s0 + $0x178] sm:$0xff]
  %v63 = vpack.c.bf16 %v39, %v15
  %v64 = vpack.c.bf16 %v40, %v16
  %v65 = vpack.c.bf16 %v41, %v17
  %v66 = vpack.c.bf16 %v42, %v18
  %v67 = vpack.c.bf16 %v43, %v19
  %v68 = vpack.c.bf16 %v44, %v20
  %v69 = vpack.c.bf16 %v45, %v21
  %v70 = vpack.c.bf16 %v46, %v22
  %v71 = vpack.c.bf16 %v47, %v23
  %v72 = vpack.c.bf16 %v48, %v24
  %v73 = vpack.c.bf16 %v49, %v25
  %v74 = vpack.c.bf16 %v50, %v26
  %v75 = vpack.c.bf16 %v51, %v27
  %v76 = vpack.c.bf16 %v52, %v28
  %v77 = vpack.c.bf16 %v53, %v29
  %v78 = vpack.c.bf16 %v54, %v30
  %v79 = vpack.c.bf16 %v55, %v31
  %v80 = vpack.c.bf16 %v56, %v32
  %v81 = vpack.c.bf16 %v57, %v33
  %v82 = vpack.c.bf16 %v58, %v34
  %v83 = vpack.c.bf16 %v59, %v35
  %v84 = vpack.c.bf16 %v60, %v36
  %v85 = vpack.c.bf16 %v61, %v37
  %v86 = vpack.c.bf16 %v62, %v38
  %v87 = vld [vmem:[%s1] sm:$0xff]
  %v88 = vld [vmem:[%s1 + $0x8] sm:$0xff]
  %v89 = vld [vmem:[%s1 + $0x10] sm:$0xff]
  %v90 = vld [vmem:[%s1 + $0x18] sm:$0xff]
  %v91 = vld [vmem:[%s1 + $0x20] sm:$0xff]
  %v92 = vld [vmem:[%s1 + $0x28] sm:$0xff]
  %v93 = vld [vmem:[%s1 + $0x30] sm:$0xff]
  %v94 = vld [vmem:[%s1 + $0x38] sm:$0xff]
  %v95 = vld [vmem:[%s1 + $0x40] sm:$0xff]
  %v96 = vld [vmem:[%s1 + $0x48] sm:$0xff]
  %v97 = vld [vmem:[%s1 + $0x50] sm:$0xff]
  %v98 = vld [vmem:[%s1 + $0x58] sm:$0xff]
  %v99 = vld [vmem:[%s1 + $0x60] sm:$0xff]
  %v100 = vld [vmem:[%s1 + $0x68] sm:$0xff]
  %v101 = vld [vmem:[%s1 + $0x70] sm:$0xff]
  %v102 = vld [vmem:[%s1 + $0x78] sm:$0xff]
  %v103 = vld [vmem:[%s1 + $0x80] sm:$0xff]
  %v104 = vld [vmem:[%s1 + $0x88] sm:$0xff]
  %v105 = vld [vmem:[%s1 + $0x90] sm:$0xff]
  %v106 = vld [vmem:[%s1 + $0x98] sm:$0xff]
  %v107 = vld [vmem:[%s1 + $0xa0] sm:$0xff]
  %v108 = vld [vmem:[%s1 + $0xa8] sm:$0xff]
  %v109 = vld [vmem:[%s1 + $0xb0] sm:$0xff]
  %v110 = vld [vmem:[%s1 + $0xb8] sm:$0xff]
  %v111 = vld [vmem:[%s1 + $0xc0] sm:$0xff]
  %v112 = vld [vmem:[%s1 + $0xc8] sm:$0xff]
  %v113 = vld [vmem:[%s1 + $0xd0] sm:$0xff]
  %v114 = vld [vmem:[%s1 + $0xd8] sm:$0xff]
  %v115 = vld [vmem:[%s1 + $0xe0] sm:$0xff]
  %v116 = vld [vmem:[%s1 + $0xe8] sm:$0xff]
  %v117 = vld [vmem:[%s1 + $0xf0] sm:$0xff]
  %v118 = vld [vmem:[%s1 + $0xf8] sm:$0xff]
  %v119 = vld [vmem:[%s1 + $0x100] sm:$0xff]
  %v120 = vld [vmem:[%s1 + $0x108] sm:$0xff]
  %v121 = vld [vmem:[%s1 + $0x110] sm:$0xff]
  %v122 = vld [vmem:[%s1 + $0x118] sm:$0xff]
  %v123 = vld [vmem:[%s1 + $0x120] sm:$0xff]
  %v124 = vld [vmem:[%s1 + $0x128] sm:$0xff]
  %v125 = vld [vmem:[%s1 + $0x130] sm:$0xff]
  %v126 = vld [vmem:[%s1 + $0x138] sm:$0xff]
  %v127 = vld [vmem:[%s1 + $0x140] sm:$0xff]
  %v128 = vld [vmem:[%s1 + $0x148] sm:$0xff]
  %v129 = vld [vmem:[%s1 + $0x150] sm:$0xff]
  %v130 = vld [vmem:[%s1 + $0x158] sm:$0xff]
  %v131 = vld [vmem:[%s1 + $0x160] sm:$0xff]
  %v132 = vld [vmem:[%s1 + $0x168] sm:$0xff]
  %v133 = vld [vmem:[%s1 + $0x170] sm:$0xff]
  %v134 = vld [vmem:[%s1 + $0x178] sm:$0xff]
  %v135 = vld [vmem:[%s1 + $0x180] sm:$0xff]
  %v136 = vld [vmem:[%s1 + $0x188] sm:$0xff]
  %v137 = vld [vmem:[%s1 + $0x190] sm:$0xff]
  %v138 = vld [vmem:[%s1 + $0x198] sm:$0xff]
  %v139 = vld [vmem:[%s1 + $0x1a0] sm:$0xff]
  %v140 = vld [vmem:[%s1 + $0x1a8] sm:$0xff]
  %v141 = vld [vmem:[%s1 + $0x1b0] sm:$0xff]
  %v142 = vld [vmem:[%s1 + $0x1b8] sm:$0xff]
  %v143 = vld [vmem:[%s1 + $0x1c0] sm:$0xff]
  %v144 = vld [vmem:[%s1 + $0x1c8] sm:$0xff]
  %v145 = vld [vmem:[%s1 + $0x1d0] sm:$0xff]
  %v146 = vld [vmem:[%s1 + $0x1d8] sm:$0xff]
  %v147 = vld [vmem:[%s1 + $0x1e0] sm:$0xff]
  %v148 = vld [vmem:[%s1 + $0x1e8] sm:$0xff]
  %v149 = vld [vmem:[%s1 + $0x1f0] sm:$0xff]
  %v150 = vld [vmem:[%s1 + $0x1f8] sm:$0xff]
  %v151 = vld [vmem:[%s1 + $0x200] sm:$0xff]
  %v152 = vld [vmem:[%s1 + $0x208] sm:$0xff]
  %v153 = vld [vmem:[%s1 + $0x210] sm:$0xff]
  %v154 = vld [vmem:[%s1 + $0x218] sm:$0xff]
  %v155 = vld [vmem:[%s1 + $0x220] sm:$0xff]
  %v156 = vld [vmem:[%s1 + $0x228] sm:$0xff]
  %v157 = vld [vmem:[%s1 + $0x230] sm:$0xff]
  %v158 = vld [vmem:[%s1 + $0x238] sm:$0xff]
  %v159 = vld [vmem:[%s1 + $0x240] sm:$0xff]
  %v160 = vld [vmem:[%s1 + $0x248] sm:$0xff]
  %v161 = vld [vmem:[%s1 + $0x250] sm:$0xff]
  %v162 = vld [vmem:[%s1 + $0x258] sm:$0xff]
  %v163 = vld [vmem:[%s1 + $0x260] sm:$0xff]
  %v164 = vld [vmem:[%s1 + $0x268] sm:$0xff]
  %v165 = vld [vmem:[%s1 + $0x270] sm:$0xff]
  %v166 = vld [vmem:[%s1 + $0x278] sm:$0xff]
  %v167 = vld [vmem:[%s1 + $0x280] sm:$0xff]
  %v168 = vld [vmem:[%s1 + $0x288] sm:$0xff]
  %v169 = vld [vmem:[%s1 + $0x290] sm:$0xff]
  %v170 = vld [vmem:[%s1 + $0x298] sm:$0xff]
  %v171 = vld [vmem:[%s1 + $0x2a0] sm:$0xff]
  %v172 = vld [vmem:[%s1 + $0x2a8] sm:$0xff]
  %v173 = vld [vmem:[%s1 + $0x2b0] sm:$0xff]
  %v174 = vld [vmem:[%s1 + $0x2b8] sm:$0xff]
  %v175 = vld [vmem:[%s1 + $0x2c0] sm:$0xff]
  %v176 = vld [vmem:[%s1 + $0x2c8] sm:$0xff]
  %v177 = vld [vmem:[%s1 + $0x2d0] sm:$0xff]
  %v178 = vld [vmem:[%s1 + $0x2d8] sm:$0xff]
  %v179 = vld [vmem:[%s1 + $0x2e0] sm:$0xff]
  %v180 = vld [vmem:[%s1 + $0x2e8] sm:$0xff]
  %v181 = vld [vmem:[%s1 + $0x2f0] sm:$0xff]
  %v182 = vld [vmem:[%s1 + $0x2f8] sm:$0xff]
  %v183 = vld [vmem:[%s1 + $0x300] sm:$0xff]
  %v184 = vld [vmem:[%s1 + $0x308] sm:$0xff]
  %v185 = vld [vmem:[%s1 + $0x310] sm:$0xff]
  %v186 = vld [vmem:[%s1 + $0x318] sm:$0xff]
  %v187 = vld [vmem:[%s1 + $0x320] sm:$0xff]
  %v188 = vld [vmem:[%s1 + $0x328] sm:$0xff]
  %v189 = vld [vmem:[%s1 + $0x330] sm:$0xff]
  %v190 = vld [vmem:[%s1 + $0x338] sm:$0xff]
  %v191 = vld [vmem:[%s1 + $0x340] sm:$0xff]
  %v192 = vld [vmem:[%s1 + $0x348] sm:$0xff]
  %v193 = vld [vmem:[%s1 + $0x350] sm:$0xff]
  %v194 = vld [vmem:[%s1 + $0x358] sm:$0xff]
  %v195 = vld [vmem:[%s1 + $0x360] sm:$0xff]
  %v196 = vld [vmem:[%s1 + $0x368] sm:$0xff]
  %v197 = vld [vmem:[%s1 + $0x370] sm:$0xff]
  %v198 = vld [vmem:[%s1 + $0x378] sm:$0xff]
  %v199 = vld [vmem:[%s1 + $0x380] sm:$0xff]
  %v200 = vld [vmem:[%s1 + $0x388] sm:$0xff]
  %v201 = vld [vmem:[%s1 + $0x390] sm:$0xff]
  %v202 = vld [vmem:[%s1 + $0x398] sm:$0xff]
  %v203 = vld [vmem:[%s1 + $0x3a0] sm:$0xff]
  %v204 = vld [vmem:[%s1 + $0x3a8] sm:$0xff]
  %v205 = vld [vmem:[%s1 + $0x3b0] sm:$0xff]
  %v206 = vld [vmem:[%s1 + $0x3b8] sm:$0xff]
  %v207 = vld [vmem:[%s1 + $0x3c0] sm:$0xff]
  %v208 = vld [vmem:[%s1 + $0x3c8] sm:$0xff]
  %v209 = vld [vmem:[%s1 + $0x3d0] sm:$0xff]
  %v210 = vld [vmem:[%s1 + $0x3d8] sm:$0xff]
  %v211 = vld [vmem:[%s1 + $0x3e0] sm:$0xff]
  %v212 = vld [vmem:[%s1 + $0x3e8] sm:$0xff]
  %v213 = vld [vmem:[%s1 + $0x3f0] sm:$0xff]
  %v214 = vld [vmem:[%s1 + $0x3f8] sm:$0xff]
  %v215 = vld [vmem:[%s1 + $0x400] sm:$0xff]
  %v216 = vld [vmem:[%s1 + $0x408] sm:$0xff]
  %v217 = vld [vmem:[%s1 + $0x410] sm:$0xff]
  %v218 = vld [vmem:[%s1 + $0x418] sm:$0xff]
  %v219 = vld [vmem:[%s1 + $0x420] sm:$0xff]
  %v220 = vld [vmem:[%s1 + $0x428] sm:$0xff]
  %v221 = vld [vmem:[%s1 + $0x430] sm:$0xff]
  %v222 = vld [vmem:[%s1 + $0x438] sm:$0xff]
  %v223 = vld [vmem:[%s1 + $0x440] sm:$0xff]
  %v224 = vld [vmem:[%s1 + $0x448] sm:$0xff]
  %v225 = vld [vmem:[%s1 + $0x450] sm:$0xff]
  %v226 = vld [vmem:[%s1 + $0x458] sm:$0xff]
  %v227 = vld [vmem:[%s1 + $0x460] sm:$0xff]
  %v228 = vld [vmem:[%s1 + $0x468] sm:$0xff]
  %v229 = vld [vmem:[%s1 + $0x470] sm:$0xff]
  %v230 = vld [vmem:[%s1 + $0x478] sm:$0xff]
  %v231 = vld [vmem:[%s1 + $0x480] sm:$0xff]
  %v232 = vld [vmem:[%s1 + $0x488] sm:$0xff]
  %v233 = vld [vmem:[%s1 + $0x490] sm:$0xff]
  %v234 = vld [vmem:[%s1 + $0x498] sm:$0xff]
  %v235 = vld [vmem:[%s1 + $0x4a0] sm:$0xff]
  %v236 = vld [vmem:[%s1 + $0x4a8] sm:$0xff]
  %v237 = vld [vmem:[%s1 + $0x4b0] sm:$0xff]
  %v238 = vld [vmem:[%s1 + $0x4b8] sm:$0xff]
  %v239 = vld [vmem:[%s1 + $0x4c0] sm:$0xff]
  %v240 = vld [vmem:[%s1 + $0x4c8] sm:$0xff]
  %v241 = vld [vmem:[%s1 + $0x4d0] sm:$0xff]
  %v242 = vld [vmem:[%s1 + $0x4d8] sm:$0xff]
  %v243 = vld [vmem:[%s1 + $0x4e0] sm:$0xff]
  %v244 = vld [vmem:[%s1 + $0x4e8] sm:$0xff]
  %v245 = vld [vmem:[%s1 + $0x4f0] sm:$0xff]
  %v246 = vld [vmem:[%s1 + $0x4f8] sm:$0xff]
  %v247 = vld [vmem:[%s1 + $0x500] sm:$0xff]
  %v248 = vld [vmem:[%s1 + $0x508] sm:$0xff]
  %v249 = vld [vmem:[%s1 + $0x510] sm:$0xff]
  %v250 = vld [vmem:[%s1 + $0x518] sm:$0xff]
  %v251 = vld [vmem:[%s1 + $0x520] sm:$0xff]
  %v252 = vld [vmem:[%s1 + $0x528] sm:$0xff]
  %v253 = vld [vmem:[%s1 + $0x530] sm:$0xff]
  %v254 = vld [vmem:[%s1 + $0x538] sm:$0xff]
  %v255 = vld [vmem:[%s1 + $0x540] sm:$0xff]
  %v256 = vld [vmem:[%s1 + $0x548] sm:$0xff]
  %v257 = vld [vmem:[%s1 + $0x550] sm:$0xff]
  %v258 = vld [vmem:[%s1 + $0x558] sm:$0xff]
  %v259 = vld [vmem:[%s1 + $0x560] sm:$0xff]
  %v260 = vld [vmem:[%s1 + $0x568] sm:$0xff]
  %v261 = vld [vmem:[%s1 + $0x570] sm:$0xff]
  %v262 = vld [vmem:[%s1 + $0x578] sm:$0xff]
  %v263 = vld [vmem:[%s1 + $0x580] sm:$0xff]
  %v264 = vld [vmem:[%s1 + $0x588] sm:$0xff]
  %v265 = vld [vmem:[%s1 + $0x590] sm:$0xff]
  %v266 = vld [vmem:[%s1 + $0x598] sm:$0xff]
  %v267 = vld [vmem:[%s1 + $0x5a0] sm:$0xff]
  %v268 = vld [vmem:[%s1 + $0x5a8] sm:$0xff]
  %v269 = vld [vmem:[%s1 + $0x5b0] sm:$0xff]
  %v270 = vld [vmem:[%s1 + $0x5b8] sm:$0xff]
  %v271 = vld [vmem:[%s1 + $0x5c0] sm:$0xff]
  %v272 = vld [vmem:[%s1 + $0x5c8] sm:$0xff]
  %v273 = vld [vmem:[%s1 + $0x5d0] sm:$0xff]
  %v274 = vld [vmem:[%s1 + $0x5d8] sm:$0xff]
  %v275 = vld [vmem:[%s1 + $0x5e0] sm:$0xff]
  %v276 = vld [vmem:[%s1 + $0x5e8] sm:$0xff]
  %v277 = vld [vmem:[%s1 + $0x5f0] sm:$0xff]
  %v278 = vld [vmem:[%s1 + $0x5f8] sm:$0xff]
  %v279 = vld [vmem:[%s1 + $0x600] sm:$0xff]
  %v280 = vld [vmem:[%s1 + $0x608] sm:$0xff]
  %v281 = vld [vmem:[%s1 + $0x610] sm:$0xff]
  %v282 = vld [vmem:[%s1 + $0x618] sm:$0xff]
  %v283 = vld [vmem:[%s1 + $0x620] sm:$0xff]
  %v284 = vld [vmem:[%s1 + $0x628] sm:$0xff]
  %v285 = vld [vmem:[%s1 + $0x630] sm:$0xff]
  %v286 = vld [vmem:[%s1 + $0x638] sm:$0xff]
  %v287 = vld [vmem:[%s1 + $0x640] sm:$0xff]
  %v288 = vld [vmem:[%s1 + $0x648] sm:$0xff]
  %v289 = vld [vmem:[%s1 + $0x650] sm:$0xff]
  %v290 = vld [vmem:[%s1 + $0x658] sm:$0xff]
  %v291 = vld [vmem:[%s1 + $0x660] sm:$0xff]
  %v292 = vld [vmem:[%s1 + $0x668] sm:$0xff]
  %v293 = vld [vmem:[%s1 + $0x670] sm:$0xff]
  %v294 = vld [vmem:[%s1 + $0x678] sm:$0xff]
  %v295 = vld [vmem:[%s1 + $0x680] sm:$0xff]
  %v296 = vld [vmem:[%s1 + $0x688] sm:$0xff]
  %v297 = vld [vmem:[%s1 + $0x690] sm:$0xff]
  %v298 = vld [vmem:[%s1 + $0x698] sm:$0xff]
  %v299 = vld [vmem:[%s1 + $0x6a0] sm:$0xff]
  %v300 = vld [vmem:[%s1 + $0x6a8] sm:$0xff]
  %v301 = vld [vmem:[%s1 + $0x6b0] sm:$0xff]
  %v302 = vld [vmem:[%s1 + $0x6b8] sm:$0xff]
  %v303 = vld [vmem:[%s1 + $0x6c0] sm:$0xff]
  %v304 = vld [vmem:[%s1 + $0x6c8] sm:$0xff]
  %v305 = vld [vmem:[%s1 + $0x6d0] sm:$0xff]
  %v306 = vld [vmem:[%s1 + $0x6d8] sm:$0xff]
  %v307 = vld [vmem:[%s1 + $0x6e0] sm:$0xff]
  %v308 = vld [vmem:[%s1 + $0x6e8] sm:$0xff]
  %v309 = vld [vmem:[%s1 + $0x6f0] sm:$0xff]
  %v310 = vld [vmem:[%s1 + $0x6f8] sm:$0xff]
  %v311 = vld [vmem:[%s1 + $0x700] sm:$0xff]
  %v312 = vld [vmem:[%s1 + $0x708] sm:$0xff]
  %v313 = vld [vmem:[%s1 + $0x710] sm:$0xff]
  %v314 = vld [vmem:[%s1 + $0x718] sm:$0xff]
  %v315 = vld [vmem:[%s1 + $0x720] sm:$0xff]
  %v316 = vld [vmem:[%s1 + $0x728] sm:$0xff]
  %v317 = vld [vmem:[%s1 + $0x730] sm:$0xff]
  %v318 = vld [vmem:[%s1 + $0x738] sm:$0xff]
  %v319 = vld [vmem:[%s1 + $0x740] sm:$0xff]
  %v320 = vld [vmem:[%s1 + $0x748] sm:$0xff]
  %v321 = vld [vmem:[%s1 + $0x750] sm:$0xff]
  %v322 = vld [vmem:[%s1 + $0x758] sm:$0xff]
  %v323 = vld [vmem:[%s1 + $0x760] sm:$0xff]
  %v324 = vld [vmem:[%s1 + $0x768] sm:$0xff]
  %v325 = vld [vmem:[%s1 + $0x770] sm:$0xff]
  %v326 = vld [vmem:[%s1 + $0x778] sm:$0xff]
  %v327 = vld [vmem:[%s1 + $0x780] sm:$0xff]
  %v328 = vld [vmem:[%s1 + $0x788] sm:$0xff]
  %v329 = vld [vmem:[%s1 + $0x790] sm:$0xff]
  %v330 = vld [vmem:[%s1 + $0x798] sm:$0xff]
  %v331 = vld [vmem:[%s1 + $0x7a0] sm:$0xff]
  %v332 = vld [vmem:[%s1 + $0x7a8] sm:$0xff]
  %v333 = vld [vmem:[%s1 + $0x7b0] sm:$0xff]
  %v334 = vld [vmem:[%s1 + $0x7b8] sm:$0xff]
  %v335 = vld [vmem:[%s1 + $0x7c0] sm:$0xff]
  %v336 = vld [vmem:[%s1 + $0x7c8] sm:$0xff]
  %v337 = vld [vmem:[%s1 + $0x7d0] sm:$0xff]
  %v338 = vld [vmem:[%s1 + $0x7d8] sm:$0xff]
  %v339 = vld [vmem:[%s1 + $0x7e0] sm:$0xff]
  %v340 = vld [vmem:[%s1 + $0x7e8] sm:$0xff]
  %v341 = vld [vmem:[%s1 + $0x7f0] sm:$0xff]
  %v342 = vld [vmem:[%s1 + $0x7f8] sm:$0xff]
  %v343 = vld [vmem:[%s1 + $0x800] sm:$0xff]
  %v344 = vld [vmem:[%s1 + $0x808] sm:$0xff]
  %v345 = vld [vmem:[%s1 + $0x810] sm:$0xff]
  %v346 = vld [vmem:[%s1 + $0x818] sm:$0xff]
  %v347 = vld [vmem:[%s1 + $0x820] sm:$0xff]
  %v348 = vld [vmem:[%s1 + $0x828] sm:$0xff]
  %v349 = vld [vmem:[%s1 + $0x830] sm:$0xff]
  %v350 = vld [vmem:[%s1 + $0x838] sm:$0xff]
  %v351 = vld [vmem:[%s1 + $0x840] sm:$0xff]
  %v352 = vld [vmem:[%s1 + $0x848] sm:$0xff]
  %v353 = vld [vmem:[%s1 + $0x850] sm:$0xff]
  %v354 = vld [vmem:[%s1 + $0x858] sm:$0xff]
  %v355 = vld [vmem:[%s1 + $0x860] sm:$0xff]
  %v356 = vld [vmem:[%s1 + $0x868] sm:$0xff]
  %v357 = vld [vmem:[%s1 + $0x870] sm:$0xff]
  %v358 = vld [vmem:[%s1 + $0x878] sm:$0xff]
  %v359 = vld [vmem:[%s1 + $0x880] sm:$0xff]
  %v360 = vld [vmem:[%s1 + $0x888] sm:$0xff]
  %v361 = vld [vmem:[%s1 + $0x890] sm:$0xff]
  %v362 = vld [vmem:[%s1 + $0x898] sm:$0xff]
  %v363 = vld [vmem:[%s1 + $0x8a0] sm:$0xff]
  %v364 = vld [vmem:[%s1 + $0x8a8] sm:$0xff]
  %v365 = vld [vmem:[%s1 + $0x8b0] sm:$0xff]
  %v366 = vld [vmem:[%s1 + $0x8b8] sm:$0xff]
  %v367 = vld [vmem:[%s1 + $0x8c0] sm:$0xff]
  %v368 = vld [vmem:[%s1 + $0x8c8] sm:$0xff]
  %v369 = vld [vmem:[%s1 + $0x8d0] sm:$0xff]
  %v370 = vld [vmem:[%s1 + $0x8d8] sm:$0xff]
  %v371 = vld [vmem:[%s1 + $0x8e0] sm:$0xff]
  %v372 = vld [vmem:[%s1 + $0x8e8] sm:$0xff]
  %v373 = vld [vmem:[%s1 + $0x8f0] sm:$0xff]
  %v374 = vld [vmem:[%s1 + $0x8f8] sm:$0xff]
  %v375 = vld [vmem:[%s1 + $0x900] sm:$0xff]
  %v376 = vld [vmem:[%s1 + $0x908] sm:$0xff]
  %v377 = vld [vmem:[%s1 + $0x910] sm:$0xff]
  %v378 = vld [vmem:[%s1 + $0x918] sm:$0xff]
  %v379 = vld [vmem:[%s1 + $0x920] sm:$0xff]
  %v380 = vld [vmem:[%s1 + $0x928] sm:$0xff]
  %v381 = vld [vmem:[%s1 + $0x930] sm:$0xff]
  %v382 = vld [vmem:[%s1 + $0x938] sm:$0xff]
  %v383 = vld [vmem:[%s1 + $0x940] sm:$0xff]
  %v384 = vld [vmem:[%s1 + $0x948] sm:$0xff]
  %v385 = vld [vmem:[%s1 + $0x950] sm:$0xff]
  %v386 = vld [vmem:[%s1 + $0x958] sm:$0xff]
  %v387 = vld [vmem:[%s1 + $0x960] sm:$0xff]
  %v388 = vld [vmem:[%s1 + $0x968] sm:$0xff]
  %v389 = vld [vmem:[%s1 + $0x970] sm:$0xff]
  %v390 = vld [vmem:[%s1 + $0x978] sm:$0xff]
  %v391 = vld [vmem:[%s1 + $0x980] sm:$0xff]
  %v392 = vld [vmem:[%s1 + $0x988] sm:$0xff]
  %v393 = vld [vmem:[%s1 + $0x990] sm:$0xff]
  %v394 = vld [vmem:[%s1 + $0x998] sm:$0xff]
  %v395 = vld [vmem:[%s1 + $0x9a0] sm:$0xff]
  %v396 = vld [vmem:[%s1 + $0x9a8] sm:$0xff]
  %v397 = vld [vmem:[%s1 + $0x9b0] sm:$0xff]
  %v398 = vld [vmem:[%s1 + $0x9b8] sm:$0xff]
  %v399 = vld [vmem:[%s1 + $0x9c0] sm:$0xff]
  %v400 = vld [vmem:[%s1 + $0x9c8] sm:$0xff]
  %v401 = vld [vmem:[%s1 + $0x9d0] sm:$0xff]
  %v402 = vld [vmem:[%s1 + $0x9d8] sm:$0xff]
  %v403 = vld [vmem:[%s1 + $0x9e0] sm:$0xff]
  %v404 = vld [vmem:[%s1 + $0x9e8] sm:$0xff]
  %v405 = vld [vmem:[%s1 + $0x9f0] sm:$0xff]
  %v406 = vld [vmem:[%s1 + $0x9f8] sm:$0xff]
  %v407 = vld [vmem:[%s1 + $0xa00] sm:$0xff]
  %v408 = vld [vmem:[%s1 + $0xa08] sm:$0xff]
  %v409 = vld [vmem:[%s1 + $0xa10] sm:$0xff]
  %v410 = vld [vmem:[%s1 + $0xa18] sm:$0xff]
  %v411 = vld [vmem:[%s1 + $0xa20] sm:$0xff]
  %v412 = vld [vmem:[%s1 + $0xa28] sm:$0xff]
  %v413 = vld [vmem:[%s1 + $0xa30] sm:$0xff]
  %v414 = vld [vmem:[%s1 + $0xa38] sm:$0xff]
  %v415 = vld [vmem:[%s1 + $0xa40] sm:$0xff]
  %v416 = vld [vmem:[%s1 + $0xa48] sm:$0xff]
  %v417 = vld [vmem:[%s1 + $0xa50] sm:$0xff]
  %v418 = vld [vmem:[%s1 + $0xa58] sm:$0xff]
  %v419 = vld [vmem:[%s1 + $0xa60] sm:$0xff]
  %v420 = vld [vmem:[%s1 + $0xa68] sm:$0xff]
  %v421 = vld [vmem:[%s1 + $0xa70] sm:$0xff]
  %v422 = vld [vmem:[%s1 + $0xa78] sm:$0xff]
  %v423 = vld [vmem:[%s1 + $0xa80] sm:$0xff]
  %v424 = vld [vmem:[%s1 + $0xa88] sm:$0xff]
  %v425 = vld [vmem:[%s1 + $0xa90] sm:$0xff]
  %v426 = vld [vmem:[%s1 + $0xa98] sm:$0xff]
  %v427 = vld [vmem:[%s1 + $0xaa0] sm:$0xff]
  %v428 = vld [vmem:[%s1 + $0xaa8] sm:$0xff]
  %v429 = vld [vmem:[%s1 + $0xab0] sm:$0xff]
  %v430 = vld [vmem:[%s1 + $0xab8] sm:$0xff]
  %v431 = vld [vmem:[%s1 + $0xac0] sm:$0xff]
  %v432 = vld [vmem:[%s1 + $0xac8] sm:$0xff]
  %v433 = vld [vmem:[%s1 + $0xad0] sm:$0xff]
  %v434 = vld [vmem:[%s1 + $0xad8] sm:$0xff]
  %v435 = vld [vmem:[%s1 + $0xae0] sm:$0xff]
  %v436 = vld [vmem:[%s1 + $0xae8] sm:$0xff]
  %v437 = vld [vmem:[%s1 + $0xaf0] sm:$0xff]
  %v438 = vld [vmem:[%s1 + $0xaf8] sm:$0xff]
  %v439 = vld [vmem:[%s1 + $0xb00] sm:$0xff]
  %v440 = vld [vmem:[%s1 + $0xb08] sm:$0xff]
  %v441 = vld [vmem:[%s1 + $0xb10] sm:$0xff]
  %v442 = vld [vmem:[%s1 + $0xb18] sm:$0xff]
  %v443 = vld [vmem:[%s1 + $0xb20] sm:$0xff]
  %v444 = vld [vmem:[%s1 + $0xb28] sm:$0xff]
  %v445 = vld [vmem:[%s1 + $0xb30] sm:$0xff]
  %v446 = vld [vmem:[%s1 + $0xb38] sm:$0xff]
  %v447 = vld [vmem:[%s1 + $0xb40] sm:$0xff]
  %v448 = vld [vmem:[%s1 + $0xb48] sm:$0xff]
  %v449 = vld [vmem:[%s1 + $0xb50] sm:$0xff]
  %v450 = vld [vmem:[%s1 + $0xb58] sm:$0xff]
  %v451 = vld [vmem:[%s1 + $0xb60] sm:$0xff]
  %v452 = vld [vmem:[%s1 + $0xb68] sm:$0xff]
  %v453 = vld [vmem:[%s1 + $0xb70] sm:$0xff]
  %v454 = vld [vmem:[%s1 + $0xb78] sm:$0xff]
  %v455 = vld [vmem:[%s1 + $0xb80] sm:$0xff]
  %v456 = vld [vmem:[%s1 + $0xb88] sm:$0xff]
  %v457 = vld [vmem:[%s1 + $0xb90] sm:$0xff]
  %v458 = vld [vmem:[%s1 + $0xb98] sm:$0xff]
  %v459 = vld [vmem:[%s1 + $0xba0] sm:$0xff]
  %v460 = vld [vmem:[%s1 + $0xba8] sm:$0xff]
  %v461 = vld [vmem:[%s1 + $0xbb0] sm:$0xff]
  %v462 = vld [vmem:[%s1 + $0xbb8] sm:$0xff]
  %v463 = vld [vmem:[%s1 + $0xbc0] sm:$0xff]
  %v464 = vld [vmem:[%s1 + $0xbc8] sm:$0xff]
  %v465 = vld [vmem:[%s1 + $0xbd0] sm:$0xff]
  %v466 = vld [vmem:[%s1 + $0xbd8] sm:$0xff]
  %v467 = vld [vmem:[%s1 + $0xbe0] sm:$0xff]
  %v468 = vld [vmem:[%s1 + $0xbe8] sm:$0xff]
  %v469 = vld [vmem:[%s1 + $0xbf0] sm:$0xff]
  %v470 = vld [vmem:[%s1 + $0xbf8] sm:$0xff]
  %v471 = vpack.c.bf16 %v88, %v87
  %v472 = vpack.c.bf16 %v90, %v89
  %v473 = vpack.c.bf16 %v92, %v91
  %v474 = vpack.c.bf16 %v94, %v93
  %v475 = vpack.c.bf16 %v96, %v95
  %v476 = vpack.c.bf16 %v98, %v97
  %v477 = vpack.c.bf16 %v100, %v99
  %v478 = vpack.c.bf16 %v102, %v101
  %v479 = vpack.c.bf16 %v104, %v103
  %v480 = vpack.c.bf16 %v106, %v105
  %v481 = vpack.c.bf16 %v108, %v107
  %v482 = vpack.c.bf16 %v110, %v109
  %v483 = vpack.c.bf16 %v112, %v111
  %v484 = vpack.c.bf16 %v114, %v113
  %v485 = vpack.c.bf16 %v116, %v115
  %v486 = vpack.c.bf16 %v118, %v117
  %v487 = vpack.c.bf16 %v120, %v119
  %v488 = vpack.c.bf16 %v122, %v121
  %v489 = vpack.c.bf16 %v124, %v123
  %v490 = vpack.c.bf16 %v126, %v125
  %v491 = vpack.c.bf16 %v128, %v127
  %v492 = vpack.c.bf16 %v130, %v129
  %v493 = vpack.c.bf16 %v132, %v131
  %v494 = vpack.c.bf16 %v134, %v133
  %v495 = vpack.c.bf16 %v136, %v135
  %v496 = vpack.c.bf16 %v138, %v137
  %v497 = vpack.c.bf16 %v140, %v139
  %v498 = vpack.c.bf16 %v142, %v141
  %v499 = vpack.c.bf16 %v144, %v143
  %v500 = vpack.c.bf16 %v146, %v145
  %v501 = vpack.c.bf16 %v148, %v147
  %v502 = vpack.c.bf16 %v150, %v149
  %v503 = vpack.c.bf16 %v152, %v151
  %v504 = vpack.c.bf16 %v154, %v153
  %v505 = vpack.c.bf16 %v156, %v155
  %v506 = vpack.c.bf16 %v158, %v157
  %v507 = vpack.c.bf16 %v160, %v159
  %v508 = vpack.c.bf16 %v162, %v161
  %v509 = vpack.c.bf16 %v164, %v163
  %v510 = vpack.c.bf16 %v166, %v165
  %v511 = vpack.c.bf16 %v168, %v167
  %v512 = vpack.c.bf16 %v170, %v169
  %v513 = vpack.c.bf16 %v172, %v171
  %v514 = vpack.c.bf16 %v174, %v173
  %v515 = vpack.c.bf16 %v176, %v175
  %v516 = vpack.c.bf16 %v178, %v177
  %v517 = vpack.c.bf16 %v180, %v179
  %v518 = vpack.c.bf16 %v182, %v181
  %v519 = vpack.c.bf16 %v184, %v183
  %v520 = vpack.c.bf16 %v186, %v185
  %v521 = vpack.c.bf16 %v188, %v187
  %v522 = vpack.c.bf16 %v190, %v189
  %v523 = vpack.c.bf16 %v192, %v191
  %v524 = vpack.c.bf16 %v194, %v193
  %v525 = vpack.c.bf16 %v196, %v195
  %v526 = vpack.c.bf16 %v198, %v197
  %v527 = vpack.c.bf16 %v200, %v199
  %v528 = vpack.c.bf16 %v202, %v201
  %v529 = vpack.c.bf16 %v204, %v203
  %v530 = vpack.c.bf16 %v206, %v205
  %v531 = vpack.c.bf16 %v208, %v207
  %v532 = vpack.c.bf16 %v210, %v209
  %v533 = vpack.c.bf16 %v212, %v211
  %v534 = vpack.c.bf16 %v214, %v213
  %v535 = vpack.c.bf16 %v216, %v215
  %v536 = vpack.c.bf16 %v218, %v217
  %v537 = vpack.c.bf16 %v220, %v219
  %v538 = vpack.c.bf16 %v222, %v221
  %v539 = vpack.c.bf16 %v224, %v223
  %v540 = vpack.c.bf16 %v226, %v225
  %v541 = vpack.c.bf16 %v228, %v227
  %v542 = vpack.c.bf16 %v230, %v229
  %v543 = vpack.c.bf16 %v232, %v231
  %v544 = vpack.c.bf16 %v234, %v233
  %v545 = vpack.c.bf16 %v236, %v235
  %v546 = vpack.c.bf16 %v238, %v237
  %v547 = vpack.c.bf16 %v240, %v239
  %v548 = vpack.c.bf16 %v242, %v241
  %v549 = vpack.c.bf16 %v244, %v243
  %v550 = vpack.c.bf16 %v246, %v245
  %v551 = vpack.c.bf16 %v248, %v247
  %v552 = vpack.c.bf16 %v250, %v249
  %v553 = vpack.c.bf16 %v252, %v251
  %v554 = vpack.c.bf16 %v254, %v253
  %v555 = vpack.c.bf16 %v256, %v255
  %v556 = vpack.c.bf16 %v258, %v257
  %v557 = vpack.c.bf16 %v260, %v259
  %v558 = vpack.c.bf16 %v262, %v261
  %v559 = vpack.c.bf16 %v264, %v263
  %v560 = vpack.c.bf16 %v266, %v265
  %v561 = vpack.c.bf16 %v268, %v267
  %v562 = vpack.c.bf16 %v270, %v269
  %v563 = vpack.c.bf16 %v272, %v271
  %v564 = vpack.c.bf16 %v274, %v273
  %v565 = vpack.c.bf16 %v276, %v275
  %v566 = vpack.c.bf16 %v278, %v277
  %v567 = vpack.c.bf16 %v280, %v279
  %v568 = vpack.c.bf16 %v282, %v281
  %v569 = vpack.c.bf16 %v284, %v283
  %v570 = vpack.c.bf16 %v286, %v285
  %v571 = vpack.c.bf16 %v288, %v287
  %v572 = vpack.c.bf16 %v290, %v289
  %v573 = vpack.c.bf16 %v292, %v291
  %v574 = vpack.c.bf16 %v294, %v293
  %v575 = vpack.c.bf16 %v296, %v295
  %v576 = vpack.c.bf16 %v298, %v297
  %v577 = vpack.c.bf16 %v300, %v299
  %v578 = vpack.c.bf16 %v302, %v301
  %v579 = vpack.c.bf16 %v304, %v303
  %v580 = vpack.c.bf16 %v306, %v305
  %v581 = vpack.c.bf16 %v308, %v307
  %v582 = vpack.c.bf16 %v310, %v309
  %v583 = vpack.c.bf16 %v312, %v311
  %v584 = vpack.c.bf16 %v314, %v313
  %v585 = vpack.c.bf16 %v316, %v315
  %v586 = vpack.c.bf16 %v318, %v317
  %v587 = vpack.c.bf16 %v320, %v319
  %v588 = vpack.c.bf16 %v322, %v321
  %v589 = vpack.c.bf16 %v324, %v323
  %v590 = vpack.c.bf16 %v326, %v325
  %v591 = vpack.c.bf16 %v328, %v327
  %v592 = vpack.c.bf16 %v330, %v329
  %v593 = vpack.c.bf16 %v332, %v331
  %v594 = vpack.c.bf16 %v334, %v333
  %v595 = vpack.c.bf16 %v336, %v335
  %v596 = vpack.c.bf16 %v338, %v337
  %v597 = vpack.c.bf16 %v340, %v339
  %v598 = vpack.c.bf16 %v342, %v341
  %v599 = vpack.c.bf16 %v344, %v343
  %v600 = vpack.c.bf16 %v346, %v345
  %v601 = vpack.c.bf16 %v348, %v347
  %v602 = vpack.c.bf16 %v350, %v349
  %v603 = vpack.c.bf16 %v352, %v351
  %v604 = vpack.c.bf16 %v354, %v353
  %v605 = vpack.c.bf16 %v356, %v355
  %v606 = vpack.c.bf16 %v358, %v357
  %v607 = vpack.c.bf16 %v360, %v359
  %v608 = vpack.c.bf16 %v362, %v361
  %v609 = vpack.c.bf16 %v364, %v363
  %v610 = vpack.c.bf16 %v366, %v365
  %v611 = vpack.c.bf16 %v368, %v367
  %v612 = vpack.c.bf16 %v370, %v369
  %v613 = vpack.c.bf16 %v372, %v371
  %v614 = vpack.c.bf16 %v374, %v373
  %v615 = vpack.c.bf16 %v376, %v375
  %v616 = vpack.c.bf16 %v378, %v377
  %v617 = vpack.c.bf16 %v380, %v379
  %v618 = vpack.c.bf16 %v382, %v381
  %v619 = vpack.c.bf16 %v384, %v383
  %v620 = vpack.c.bf16 %v386, %v385
  %v621 = vpack.c.bf16 %v388, %v387
  %v622 = vpack.c.bf16 %v390, %v389
  %v623 = vpack.c.bf16 %v392, %v391
  %v624 = vpack.c.bf16 %v394, %v393
  %v625 = vpack.c.bf16 %v396, %v395
  %v626 = vpack.c.bf16 %v398, %v397
  %v627 = vpack.c.bf16 %v400, %v399
  %v628 = vpack.c.bf16 %v402, %v401
  %v629 = vpack.c.bf16 %v404, %v403
  %v630 = vpack.c.bf16 %v406, %v405
  %v631 = vpack.c.bf16 %v408, %v407
  %v632 = vpack.c.bf16 %v410, %v409
  %v633 = vpack.c.bf16 %v412, %v411
  %v634 = vpack.c.bf16 %v414, %v413
  %v635 = vpack.c.bf16 %v416, %v415
  %v636 = vpack.c.bf16 %v418, %v417
  %v637 = vpack.c.bf16 %v420, %v419
  %v638 = vpack.c.bf16 %v422, %v421
  %v639 = vpack.c.bf16 %v424, %v423
  %v640 = vpack.c.bf16 %v426, %v425
  %v641 = vpack.c.bf16 %v428, %v427
  %v642 = vpack.c.bf16 %v430, %v429
  %v643 = vpack.c.bf16 %v432, %v431
  %v644 = vpack.c.bf16 %v434, %v433
  %v645 = vpack.c.bf16 %v436, %v435
  %v646 = vpack.c.bf16 %v438, %v437
  %v647 = vpack.c.bf16 %v440, %v439
  %v648 = vpack.c.bf16 %v442, %v441
  %v649 = vpack.c.bf16 %v444, %v443
  %v650 = vpack.c.bf16 %v446, %v445
  %v651 = vpack.c.bf16 %v448, %v447
  %v652 = vpack.c.bf16 %v450, %v449
  %v653 = vpack.c.bf16 %v452, %v451
  %v654 = vpack.c.bf16 %v454, %v453
  %v655 = vpack.c.bf16 %v456, %v455
  %v656 = vpack.c.bf16 %v458, %v457
  %v657 = vpack.c.bf16 %v460, %v459
  %v658 = vpack.c.bf16 %v462, %v461
  %v659 = vpack.c.bf16 %v464, %v463
  %v660 = vpack.c.bf16 %v466, %v465
  %v661 = vpack.c.bf16 %v468, %v467
  %v662 = vpack.c.bf16 %v470, %v469
  %v663 = vld [vmem:[%s2] sm:$0x1]
  %v665 = vlaneseq
  %v666 = vshrl.u32 %v665, 7
  %v667 = vsub.s32 0, %v666
  %v668 = vrot.slane %v663, %v667
  %670 = vmatprep.subr.bf16.mxu0 0
  %671 = vmatpush1.bf16.msra.mxu0 %v471
  %672 = vmatprep.subr.bf16.mxu0 0
  %673 = vmatpush1.bf16.msra.mxu0 %v472
  %674 = vmatprep.subr.bf16.mxu0 0
  %675 = vmatpush1.bf16.msra.mxu0 %v473
  %676 = vmatprep.subr.bf16.mxu0 0
  %677 = vmatpush1.bf16.msra.mxu0 %v474
  %678 = vmatprep.subr.bf16.mxu0 0
  %679 = vmatpush1.bf16.msra.mxu0 %v475
  %680 = vmatprep.subr.bf16.mxu0 0
  %681 = vmatpush1.bf16.msra.mxu0 %v476
  %682 = vmatprep.subr.bf16.mxu0 0
  %683 = vmatpush1.bf16.msra.mxu0 %v477
  %684 = vmatprep.subr.bf16.mxu0 0
  %685 = vmatpush1.bf16.msra.mxu0 %v478
  %686 = vmatprep.subr.bf16.mxu0 0
  %687 = vmatpush1.bf16.msra.mxu0 %v479
  %688 = vmatprep.subr.bf16.mxu0 0
  %689 = vmatpush1.bf16.msra.mxu0 %v480
  %690 = vmatprep.subr.bf16.mxu0 0
  %691 = vmatpush1.bf16.msra.mxu0 %v481
  %692 = vmatprep.subr.bf16.mxu0 0
  %693 = vmatpush1.bf16.msra.mxu0 %v482
  %694 = vmatprep.subr.bf16.mxu0 0
  %695 = vmatpush1.bf16.msra.mxu0 %v483
  %696 = vmatprep.subr.bf16.mxu0 0
  %697 = vmatpush1.bf16.msra.mxu0 %v484
  %698 = vmatprep.subr.bf16.mxu0 0
  %699 = vmatpush1.bf16.msra.mxu0 %v485
  %700 = vmatprep.subr.bf16.mxu0 0
  %701 = vmatpush1.bf16.msra.mxu0 %v486
  %702 = vmatprep.mubr.bf16.mxu0 %v64
  %703 = vmatmul.mubr.bf16.gmra.mrb[0].mxu0 %v63
  %v704 = vpop.f32.mrb[0].mxu0
  %v705 = vadd.f32 %v668, %v704
  %v706 = vpop.f32.mrb[0].mxu0
  %v707 = vpop.f32.mrb[0].mxu0
  %v708 = vadd.f32 %v668, %v707
  %v709 = vpop.f32.mrb[0].mxu0
  %710 = vdwg.mxu0
  %711 = vmatprep.subr.bf16.mxu0 0
  %712 = vmatpush1.bf16.msra.mxu0 %v487
  %713 = vmatprep.subr.bf16.mxu0 0
  %714 = vmatpush1.bf16.msra.mxu0 %v488
  %715 = vmatprep.subr.bf16.mxu0 0
  %716 = vmatpush1.bf16.msra.mxu0 %v489
  %717 = vmatprep.subr.bf16.mxu0 0
  %718 = vmatpush1.bf16.msra.mxu0 %v490
  %719 = vmatprep.subr.bf16.mxu0 0
  %720 = vmatpush1.bf16.msra.mxu0 %v491
  %721 = vmatprep.subr.bf16.mxu0 0
  %722 = vmatpush1.bf16.msra.mxu0 %v492
  %723 = vmatprep.subr.bf16.mxu0 0
  %724 = vmatpush1.bf16.msra.mxu0 %v493
  %725 = vmatprep.subr.bf16.mxu0 0
  %726 = vmatpush1.bf16.msra.mxu0 %v494
  %727 = vmatprep.subr.bf16.mxu0 0
  %728 = vmatpush1.bf16.msra.mxu0 %v495
  %729 = vmatprep.subr.bf16.mxu0 0
  %730 = vmatpush1.bf16.msra.mxu0 %v496
  %731 = vmatprep.subr.bf16.mxu0 0
  %732 = vmatpush1.bf16.msra.mxu0 %v497
  %733 = vmatprep.subr.bf16.mxu0 0
  %734 = vmatpush1.bf16.msra.mxu0 %v498
  %735 = vmatprep.subr.bf16.mxu0 0
  %736 = vmatpush1.bf16.msra.mxu0 %v499
  %737 = vmatprep.subr.bf16.mxu0 0
  %738 = vmatpush1.bf16.msra.mxu0 %v500
  %739 = vmatprep.subr.bf16.mxu0 0
  %740 = vmatpush1.bf16.msra.mxu0 %v501
  %741 = vmatprep.subr.bf16.mxu0 0
  %742 = vmatpush1.bf16.msra.mxu0 %v502
  %743 = vmatprep.mubr.bf16.mxu0 %v66
  %744 = vmatmul.mubr.bf16.gmra.mrb[0].mxu0 %v65
  %v745 = vpop.f32.mrb[0].mxu0
  %v746 = vadd.f32 %v705, %v745
  %v747 = vpop.f32.mrb[0].mxu0
  %v748 = vpop.f32.mrb[0].mxu0
  %v749 = vadd.f32 %v708, %v748
  %v750 = vpop.f32.mrb[0].mxu0
  %751 = vdwg.mxu0
  %752 = vmatprep.subr.bf16.mxu0 0
  %753 = vmatpush1.bf16.msra.mxu0 %v503
  %754 = vmatprep.subr.bf16.mxu0 0
  %755 = vmatpush1.bf16.msra.mxu0 %v504
  %756 = vmatprep.subr.bf16.mxu0 0
  %757 = vmatpush1.bf16.msra.mxu0 %v505
  %758 = vmatprep.subr.bf16.mxu0 0
  %759 = vmatpush1.bf16.msra.mxu0 %v506
  %760 = vmatprep.subr.bf16.mxu0 0
  %761 = vmatpush1.bf16.msra.mxu0 %v507
  %762 = vmatprep.subr.bf16.mxu0 0
  %763 = vmatpush1.bf16.msra.mxu0 %v508
  %764 = vmatprep.subr.bf16.mxu0 0
  %765 = vmatpush1.bf16.msra.mxu0 %v509
  %766 = vmatprep.subr.bf16.mxu0 0
  %767 = vmatpush1.bf16.msra.mxu0 %v510
  %768 = vmatprep.subr.bf16.mxu0 0
  %769 = vmatpush1.bf16.msra.mxu0 %v511
  %770 = vmatprep.subr.bf16.mxu0 0
  %771 = vmatpush1.bf16.msra.mxu0 %v512
  %772 = vmatprep.subr.bf16.mxu0 0
  %773 = vmatpush1.bf16.msra.mxu0 %v513
  %774 = vmatprep.subr.bf16.mxu0 0
  %775 = vmatpush1.bf16.msra.mxu0 %v514
  %776 = vmatprep.subr.bf16.mxu0 0
  %777 = vmatpush1.bf16.msra.mxu0 %v515
  %778 = vmatprep.subr.bf16.mxu0 0
  %779 = vmatpush1.bf16.msra.mxu0 %v516
  %780 = vmatprep.subr.bf16.mxu0 0
  %781 = vmatpush1.bf16.msra.mxu0 %v517
  %782 = vmatprep.subr.bf16.mxu0 0
  %783 = vmatpush1.bf16.msra.mxu0 %v518
  %784 = vmatprep.mubr.bf16.mxu0 %v68
  %785 = vmatmul.mubr.bf16.gmra.mrb[0].mxu0 %v67
  %v786 = vpop.f32.mrb[0].mxu0
  %v787 = vadd.f32 %v746, %v786
  %v788 = vpop.f32.mrb[0].mxu0
  %v789 = vpop.f32.mrb[0].mxu0
  %v790 = vadd.f32 %v749, %v789
  %v791 = vpop.f32.mrb[0].mxu0
  %792 = vdwg.mxu0
  %793 = vmatprep.subr.bf16.mxu0 0
  %794 = vmatpush1.bf16.msra.mxu0 %v519
  %795 = vmatprep.subr.bf16.mxu0 0
  %796 = vmatpush1.bf16.msra.mxu0 %v520
  %797 = vmatprep.subr.bf16.mxu0 0
  %798 = vmatpush1.bf16.msra.mxu0 %v521
  %799 = vmatprep.subr.bf16.mxu0 0
  %800 = vmatpush1.bf16.msra.mxu0 %v522
  %801 = vmatprep.subr.bf16.mxu0 0
  %802 = vmatpush1.bf16.msra.mxu0 %v523
  %803 = vmatprep.subr.bf16.mxu0 0
  %804 = vmatpush1.bf16.msra.mxu0 %v524
  %805 = vmatprep.subr.bf16.mxu0 0
  %806 = vmatpush1.bf16.msra.mxu0 %v525
  %807 = vmatprep.subr.bf16.mxu0 0
  %808 = vmatpush1.bf16.msra.mxu0 %v526
  %809 = vmatprep.subr.bf16.mxu0 0
  %810 = vmatpush1.bf16.msra.mxu0 %v527
  %811 = vmatprep.subr.bf16.mxu0 0
  %812 = vmatpush1.bf16.msra.mxu0 %v528
  %813 = vmatprep.subr.bf16.mxu0 0
  %814 = vmatpush1.bf16.msra.mxu0 %v529
  %815 = vmatprep.subr.bf16.mxu0 0
  %816 = vmatpush1.bf16.msra.mxu0 %v530
  %817 = vmatprep.subr.bf16.mxu0 0
  %818 = vmatpush1.bf16.msra.mxu0 %v531
  %819 = vmatprep.subr.bf16.mxu0 0
  %820 = vmatpush1.bf16.msra.mxu0 %v532
  %821 = vmatprep.subr.bf16.mxu0 0
  %822 = vmatpush1.bf16.msra.mxu0 %v533
  %823 = vmatprep.subr.bf16.mxu0 0
  %824 = vmatpush1.bf16.msra.mxu0 %v534
  %825 = vmatprep.mubr.bf16.mxu0 %v70
  %826 = vmatmul.mubr.bf16.gmra.mrb[0].mxu0 %v69
  %v827 = vpop.f32.mrb[0].mxu0
  %v828 = vadd.f32 %v787, %v827
  %v829 = vpop.f32.mrb[0].mxu0
  %v830 = vpop.f32.mrb[0].mxu0
  %v831 = vadd.f32 %v790, %v830
  %v832 = vpop.f32.mrb[0].mxu0
  %833 = vdwg.mxu0
  %834 = vmatprep.subr.bf16.mxu0 0
  %835 = vmatpush1.bf16.msra.mxu0 %v535
  %836 = vmatprep.subr.bf16.mxu0 0
  %837 = vmatpush1.bf16.msra.mxu0 %v536
  %838 = vmatprep.subr.bf16.mxu0 0
  %839 = vmatpush1.bf16.msra.mxu0 %v537
  %840 = vmatprep.subr.bf16.mxu0 0
  %841 = vmatpush1.bf16.msra.mxu0 %v538
  %842 = vmatprep.subr.bf16.mxu0 0
  %843 = vmatpush1.bf16.msra.mxu0 %v539
  %844 = vmatprep.subr.bf16.mxu0 0
  %845 = vmatpush1.bf16.msra.mxu0 %v540
  %846 = vmatprep.subr.bf16.mxu0 0
  %847 = vmatpush1.bf16.msra.mxu0 %v541
  %848 = vmatprep.subr.bf16.mxu0 0
  %849 = vmatpush1.bf16.msra.mxu0 %v542
  %850 = vmatprep.subr.bf16.mxu0 0
  %851 = vmatpush1.bf16.msra.mxu0 %v543
  %852 = vmatprep.subr.bf16.mxu0 0
  %853 = vmatpush1.bf16.msra.mxu0 %v544
  %854 = vmatprep.subr.bf16.mxu0 0
  %855 = vmatpush1.bf16.msra.mxu0 %v545
  %856 = vmatprep.subr.bf16.mxu0 0
  %857 = vmatpush1.bf16.msra.mxu0 %v546
  %858 = vmatprep.subr.bf16.mxu0 0
  %859 = vmatpush1.bf16.msra.mxu0 %v547
  %860 = vmatprep.subr.bf16.mxu0 0
  %861 = vmatpush1.bf16.msra.mxu0 %v548
  %862 = vmatprep.subr.bf16.mxu0 0
  %863 = vmatpush1.bf16.msra.mxu0 %v549
  %864 = vmatprep.subr.bf16.mxu0 0
  %865 = vmatpush1.bf16.msra.mxu0 %v550
  %866 = vmatprep.mubr.bf16.mxu0 %v72
  %867 = vmatmul.mubr.bf16.gmra.mrb[0].mxu0 %v71
  %v868 = vpop.f32.mrb[0].mxu0
  %v869 = vadd.f32 %v828, %v868
  %v870 = vpop.f32.mrb[0].mxu0
  %v871 = vpop.f32.mrb[0].mxu0
  %v872 = vadd.f32 %v831, %v871
  %v873 = vpop.f32.mrb[0].mxu0
  %874 = vdwg.mxu0
  %875 = vmatprep.subr.bf16.mxu0 0
  %876 = vmatpush1.bf16.msra.mxu0 %v551
  %877 = vmatprep.subr.bf16.mxu0 0
  %878 = vmatpush1.bf16.msra.mxu0 %v552
  %879 = vmatprep.subr.bf16.mxu0 0
  %880 = vmatpush1.bf16.msra.mxu0 %v553
  %881 = vmatprep.subr.bf16.mxu0 0
  %882 = vmatpush1.bf16.msra.mxu0 %v554
  %883 = vmatprep.subr.bf16.mxu0 0
  %884 = vmatpush1.bf16.msra.mxu0 %v555
  %885 = vmatprep.subr.bf16.mxu0 0
  %886 = vmatpush1.bf16.msra.mxu0 %v556
  %887 = vmatprep.subr.bf16.mxu0 0
  %888 = vmatpush1.bf16.msra.mxu0 %v557
  %889 = vmatprep.subr.bf16.mxu0 0
  %890 = vmatpush1.bf16.msra.mxu0 %v558
  %891 = vmatprep.subr.bf16.mxu0 0
  %892 = vmatpush1.bf16.msra.mxu0 %v559
  %893 = vmatprep.subr.bf16.mxu0 0
  %894 = vmatpush1.bf16.msra.mxu0 %v560
  %895 = vmatprep.subr.bf16.mxu0 0
  %896 = vmatpush1.bf16.msra.mxu0 %v561
  %897 = vmatprep.subr.bf16.mxu0 0
  %898 = vmatpush1.bf16.msra.mxu0 %v562
  %899 = vmatprep.subr.bf16.mxu0 0
  %900 = vmatpush1.bf16.msra.mxu0 %v563
  %901 = vmatprep.subr.bf16.mxu0 0
  %902 = vmatpush1.bf16.msra.mxu0 %v564
  %903 = vmatprep.subr.bf16.mxu0 0
  %904 = vmatpush1.bf16.msra.mxu0 %v565
  %905 = vmatprep.subr.bf16.mxu0 0
  %906 = vmatpush1.bf16.msra.mxu0 %v566
  %907 = vmatprep.mubr.bf16.mxu0 %v74
  %908 = vmatmul.mubr.bf16.gmra.mrb[0].mxu0 %v73
  %v909 = vpop.f32.mrb[0].mxu0
  %v910 = vadd.f32 %v869, %v909
  %v911 = vpop.f32.mrb[0].mxu0
  %v912 = vpop.f32.mrb[0].mxu0
  %v913 = vadd.f32 %v872, %v912
  %v914 = vpop.f32.mrb[0].mxu0
  %915 = vdwg.mxu0
  %916 = vmatprep.subr.bf16.mxu0 0
  %917 = vmatpush1.bf16.msra.mxu0 %v567
  %918 = vmatprep.subr.bf16.mxu0 0
  %919 = vmatpush1.bf16.msra.mxu0 %v568
  %920 = vmatprep.subr.bf16.mxu0 0
  %921 = vmatpush1.bf16.msra.mxu0 %v569
  %922 = vmatprep.subr.bf16.mxu0 0
  %923 = vmatpush1.bf16.msra.mxu0 %v570
  %924 = vmatprep.subr.bf16.mxu0 0
  %925 = vmatpush1.bf16.msra.mxu0 %v571
  %926 = vmatprep.subr.bf16.mxu0 0
  %927 = vmatpush1.bf16.msra.mxu0 %v572
  %928 = vmatprep.subr.bf16.mxu0 0
  %929 = vmatpush1.bf16.msra.mxu0 %v573
  %930 = vmatprep.subr.bf16.mxu0 0
  %931 = vmatpush1.bf16.msra.mxu0 %v574
  %932 = vmatprep.subr.bf16.mxu0 0
  %933 = vmatpush1.bf16.msra.mxu0 %v575
  %934 = vmatprep.subr.bf16.mxu0 0
  %935 = vmatpush1.bf16.msra.mxu0 %v576
  %936 = vmatprep.subr.bf16.mxu0 0
  %937 = vmatpush1.bf16.msra.mxu0 %v577
  %938 = vmatprep.subr.bf16.mxu0 0
  %939 = vmatpush1.bf16.msra.mxu0 %v578
  %940 = vmatprep.subr.bf16.mxu0 0
  %941 = vmatpush1.bf16.msra.mxu0 %v579
  %942 = vmatprep.subr.bf16.mxu0 0
  %943 = vmatpush1.bf16.msra.mxu0 %v580
  %944 = vmatprep.subr.bf16.mxu0 0
  %945 = vmatpush1.bf16.msra.mxu0 %v581
  %946 = vmatprep.subr.bf16.mxu0 0
  %947 = vmatpush1.bf16.msra.mxu0 %v582
  %948 = vmatprep.mubr.bf16.mxu0 %v76
  %949 = vmatmul.mubr.bf16.gmra.mrb[0].mxu0 %v75
  %v950 = vpop.f32.mrb[0].mxu0
  %v951 = vadd.f32 %v910, %v950
  %v952 = vpop.f32.mrb[0].mxu0
  %v953 = vpop.f32.mrb[0].mxu0
  %v954 = vadd.f32 %v913, %v953
  %v955 = vpop.f32.mrb[0].mxu0
  %956 = vdwg.mxu0
  %957 = vmatprep.subr.bf16.mxu0 0
  %958 = vmatpush1.bf16.msra.mxu0 %v583
  %959 = vmatprep.subr.bf16.mxu0 0
  %960 = vmatpush1.bf16.msra.mxu0 %v584
  %961 = vmatprep.subr.bf16.mxu0 0
  %962 = vmatpush1.bf16.msra.mxu0 %v585
  %963 = vmatprep.subr.bf16.mxu0 0
  %964 = vmatpush1.bf16.msra.mxu0 %v586
  %965 = vmatprep.subr.bf16.mxu0 0
  %966 = vmatpush1.bf16.msra.mxu0 %v587
  %967 = vmatprep.subr.bf16.mxu0 0
  %968 = vmatpush1.bf16.msra.mxu0 %v588
  %969 = vmatprep.subr.bf16.mxu0 0
  %970 = vmatpush1.bf16.msra.mxu0 %v589
  %971 = vmatprep.subr.bf16.mxu0 0
  %972 = vmatpush1.bf16.msra.mxu0 %v590
  %973 = vmatprep.subr.bf16.mxu0 0
  %974 = vmatpush1.bf16.msra.mxu0 %v591
  %975 = vmatprep.subr.bf16.mxu0 0
  %976 = vmatpush1.bf16.msra.mxu0 %v592
  %977 = vmatprep.subr.bf16.mxu0 0
  %978 = vmatpush1.bf16.msra.mxu0 %v593
  %979 = vmatprep.subr.bf16.mxu0 0
  %980 = vmatpush1.bf16.msra.mxu0 %v594
  %981 = vmatprep.subr.bf16.mxu0 0
  %982 = vmatpush1.bf16.msra.mxu0 %v595
  %983 = vmatprep.subr.bf16.mxu0 0
  %984 = vmatpush1.bf16.msra.mxu0 %v596
  %985 = vmatprep.subr.bf16.mxu0 0
  %986 = vmatpush1.bf16.msra.mxu0 %v597
  %987 = vmatprep.subr.bf16.mxu0 0
  %988 = vmatpush1.bf16.msra.mxu0 %v598
  %989 = vmatprep.mubr.bf16.mxu0 %v78
  %990 = vmatmul.mubr.bf16.gmra.mrb[0].mxu0 %v77
  %v991 = vpop.f32.mrb[0].mxu0
  %v992 = vadd.f32 %v951, %v991
  %v993 = vpop.f32.mrb[0].mxu0
  %v994 = vpop.f32.mrb[0].mxu0
  %v995 = vadd.f32 %v954, %v994
  %v996 = vpop.f32.mrb[0].mxu0
  %997 = vdwg.mxu0
  %998 = vmatprep.subr.bf16.mxu0 0
  %999 = vmatpush1.bf16.msra.mxu0 %v599
  %1000 = vmatprep.subr.bf16.mxu0 0
  %1001 = vmatpush1.bf16.msra.mxu0 %v600
  %1002 = vmatprep.subr.bf16.mxu0 0
  %1003 = vmatpush1.bf16.msra.mxu0 %v601
  %1004 = vmatprep.subr.bf16.mxu0 0
  %1005 = vmatpush1.bf16.msra.mxu0 %v602
  %1006 = vmatprep.subr.bf16.mxu0 0
  %1007 = vmatpush1.bf16.msra.mxu0 %v603
  %1008 = vmatprep.subr.bf16.mxu0 0
  %1009 = vmatpush1.bf16.msra.mxu0 %v604
  %1010 = vmatprep.subr.bf16.mxu0 0
  %1011 = vmatpush1.bf16.msra.mxu0 %v605
  %1012 = vmatprep.subr.bf16.mxu0 0
  %1013 = vmatpush1.bf16.msra.mxu0 %v606
  %1014 = vmatprep.subr.bf16.mxu0 0
  %1015 = vmatpush1.bf16.msra.mxu0 %v607
  %1016 = vmatprep.subr.bf16.mxu0 0
  %1017 = vmatpush1.bf16.msra.mxu0 %v608
  %1018 = vmatprep.subr.bf16.mxu0 0
  %1019 = vmatpush1.bf16.msra.mxu0 %v609
  %1020 = vmatprep.subr.bf16.mxu0 0
  %1021 = vmatpush1.bf16.msra.mxu0 %v610
  %1022 = vmatprep.subr.bf16.mxu0 0
  %1023 = vmatpush1.bf16.msra.mxu0 %v611
  %1024 = vmatprep.subr.bf16.mxu0 0
  %1025 = vmatpush1.bf16.msra.mxu0 %v612
  %1026 = vmatprep.subr.bf16.mxu0 0
  %1027 = vmatpush1.bf16.msra.mxu0 %v613
  %1028 = vmatprep.subr.bf16.mxu0 0
  %1029 = vmatpush1.bf16.msra.mxu0 %v614
  %1030 = vmatprep.mubr.bf16.mxu0 %v80
  %1031 = vmatmul.mubr.bf16.gmra.mrb[0].mxu0 %v79
  %v1032 = vpop.f32.mrb[0].mxu0
  %v1033 = vadd.f32 %v992, %v1032
  %v1034 = vpop.f32.mrb[0].mxu0
  %v1035 = vpop.f32.mrb[0].mxu0
  %v1036 = vadd.f32 %v995, %v1035
  %v1037 = vpop.f32.mrb[0].mxu0
  %1038 = vdwg.mxu0
  %1039 = vmatprep.subr.bf16.mxu0 0
  %1040 = vmatpush1.bf16.msra.mxu0 %v615
  %1041 = vmatprep.subr.bf16.mxu0 0
  %1042 = vmatpush1.bf16.msra.mxu0 %v616
  %1043 = vmatprep.subr.bf16.mxu0 0
  %1044 = vmatpush1.bf16.msra.mxu0 %v617
  %1045 = vmatprep.subr.bf16.mxu0 0
  %1046 = vmatpush1.bf16.msra.mxu0 %v618
  %1047 = vmatprep.subr.bf16.mxu0 0
  %1048 = vmatpush1.bf16.msra.mxu0 %v619
  %1049 = vmatprep.subr.bf16.mxu0 0
  %1050 = vmatpush1.bf16.msra.mxu0 %v620
  %1051 = vmatprep.subr.bf16.mxu0 0
  %1052 = vmatpush1.bf16.msra.mxu0 %v621
  %1053 = vmatprep.subr.bf16.mxu0 0
  %1054 = vmatpush1.bf16.msra.mxu0 %v622
  %1055 = vmatprep.subr.bf16.mxu0 0
  %1056 = vmatpush1.bf16.msra.mxu0 %v623
  %1057 = vmatprep.subr.bf16.mxu0 0
  %1058 = vmatpush1.bf16.msra.mxu0 %v624
  %1059 = vmatprep.subr.bf16.mxu0 0
  %1060 = vmatpush1.bf16.msra.mxu0 %v625
  %1061 = vmatprep.subr.bf16.mxu0 0
  %1062 = vmatpush1.bf16.msra.mxu0 %v626
  %1063 = vmatprep.subr.bf16.mxu0 0
  %1064 = vmatpush1.bf16.msra.mxu0 %v627
  %1065 = vmatprep.subr.bf16.mxu0 0
  %1066 = vmatpush1.bf16.msra.mxu0 %v628
  %1067 = vmatprep.subr.bf16.mxu0 0
  %1068 = vmatpush1.bf16.msra.mxu0 %v629
  %1069 = vmatprep.subr.bf16.mxu0 0
  %1070 = vmatpush1.bf16.msra.mxu0 %v630
  %1071 = vmatprep.mubr.bf16.mxu0 %v82
  %1072 = vmatmul.mubr.bf16.gmra.mrb[0].mxu0 %v81
  %v1073 = vpop.f32.mrb[0].mxu0
  %v1074 = vadd.f32 %v1033, %v1073
  %v1075 = vpop.f32.mrb[0].mxu0
  %v1076 = vpop.f32.mrb[0].mxu0
  %v1077 = vadd.f32 %v1036, %v1076
  %v1078 = vpop.f32.mrb[0].mxu0
  %1079 = vdwg.mxu0
  %1080 = vmatprep.subr.bf16.mxu0 0
  %1081 = vmatpush1.bf16.msra.mxu0 %v631
  %1082 = vmatprep.subr.bf16.mxu0 0
  %1083 = vmatpush1.bf16.msra.mxu0 %v632
  %1084 = vmatprep.subr.bf16.mxu0 0
  %1085 = vmatpush1.bf16.msra.mxu0 %v633
  %1086 = vmatprep.subr.bf16.mxu0 0
  %1087 = vmatpush1.bf16.msra.mxu0 %v634
  %1088 = vmatprep.subr.bf16.mxu0 0
  %1089 = vmatpush1.bf16.msra.mxu0 %v635
  %1090 = vmatprep.subr.bf16.mxu0 0
  %1091 = vmatpush1.bf16.msra.mxu0 %v636
  %1092 = vmatprep.subr.bf16.mxu0 0
  %1093 = vmatpush1.bf16.msra.mxu0 %v637
  %1094 = vmatprep.subr.bf16.mxu0 0
  %1095 = vmatpush1.bf16.msra.mxu0 %v638
  %1096 = vmatprep.subr.bf16.mxu0 0
  %1097 = vmatpush1.bf16.msra.mxu0 %v639
  %1098 = vmatprep.subr.bf16.mxu0 0
  %1099 = vmatpush1.bf16.msra.mxu0 %v640
  %1100 = vmatprep.subr.bf16.mxu0 0
  %1101 = vmatpush1.bf16.msra.mxu0 %v641
  %1102 = vmatprep.subr.bf16.mxu0 0
  %1103 = vmatpush1.bf16.msra.mxu0 %v642
  %1104 = vmatprep.subr.bf16.mxu0 0
  %1105 = vmatpush1.bf16.msra.mxu0 %v643
  %1106 = vmatprep.subr.bf16.mxu0 0
  %1107 = vmatpush1.bf16.msra.mxu0 %v644
  %1108 = vmatprep.subr.bf16.mxu0 0
  %1109 = vmatpush1.bf16.msra.mxu0 %v645
  %1110 = vmatprep.subr.bf16.mxu0 0
  %1111 = vmatpush1.bf16.msra.mxu0 %v646
  %1112 = vmatprep.mubr.bf16.mxu0 %v84
  %1113 = vmatmul.mubr.bf16.gmra.mrb[0].mxu0 %v83
  %v1114 = vpop.f32.mrb[0].mxu0
  %v1115 = vadd.f32 %v1074, %v1114
  %v1116 = vpop.f32.mrb[0].mxu0
  %v1117 = vpop.f32.mrb[0].mxu0
  %v1118 = vadd.f32 %v1077, %v1117
  %v1119 = vpop.f32.mrb[0].mxu0
  %1120 = vdwg.mxu0
  %1121 = vmatprep.subr.bf16.mxu0 0
  %1122 = vmatpush1.bf16.msra.mxu0 %v647
  %1123 = vmatprep.subr.bf16.mxu0 0
  %1124 = vmatpush1.bf16.msra.mxu0 %v648
  %1125 = vmatprep.subr.bf16.mxu0 0
  %1126 = vmatpush1.bf16.msra.mxu0 %v649
  %1127 = vmatprep.subr.bf16.mxu0 0
  %1128 = vmatpush1.bf16.msra.mxu0 %v650
  %1129 = vmatprep.subr.bf16.mxu0 0
  %1130 = vmatpush1.bf16.msra.mxu0 %v651
  %1131 = vmatprep.subr.bf16.mxu0 0
  %1132 = vmatpush1.bf16.msra.mxu0 %v652
  %1133 = vmatprep.subr.bf16.mxu0 0
  %1134 = vmatpush1.bf16.msra.mxu0 %v653
  %1135 = vmatprep.subr.bf16.mxu0 0
  %1136 = vmatpush1.bf16.msra.mxu0 %v654
  %1137 = vmatprep.subr.bf16.mxu0 0
  %1138 = vmatpush1.bf16.msra.mxu0 %v655
  %1139 = vmatprep.subr.bf16.mxu0 0
  %1140 = vmatpush1.bf16.msra.mxu0 %v656
  %1141 = vmatprep.subr.bf16.mxu0 0
  %1142 = vmatpush1.bf16.msra.mxu0 %v657
  %1143 = vmatprep.subr.bf16.mxu0 0
  %1144 = vmatpush1.bf16.msra.mxu0 %v658
  %1145 = vmatprep.subr.bf16.mxu0 0
  %1146 = vmatpush1.bf16.msra.mxu0 %v659
  %1147 = vmatprep.subr.bf16.mxu0 0
  %1148 = vmatpush1.bf16.msra.mxu0 %v660
  %1149 = vmatprep.subr.bf16.mxu0 0
  %1150 = vmatpush1.bf16.msra.mxu0 %v661
  %1151 = vmatprep.subr.bf16.mxu0 0
  %1152 = vmatpush1.bf16.msra.mxu0 %v662
  %1153 = vmatprep.mubr.bf16.mxu0 %v86
  %1154 = vmatmul.mubr.bf16.gmra.mrb[0].mxu0 %v85
  %v1155 = vpop.f32.mrb[0].mxu0
  %v1156 = vadd.f32 %v1115, %v1155
  %v1157 = vpop.f32.mrb[0].mxu0
  %v1158 = vpop.f32.mrb[0].mxu0
  %v1159 = vadd.f32 %v1118, %v1158
  %v1160 = vpop.f32.mrb[0].mxu0
  %1161 = vdwg.mxu0
  %1162 = vst [vmem:[%s3] sm:$0xff] %v1156
  %1163 = vst [vmem:[%s3 + $0x8] sm:$0xff] %v1159
  // Predicated region
  $region14: #{vision_transformer_forward.19} parent=0 // pred_check
    _
  $region15: #{vision_transformer_forward.19} parent=0 // pred_check_branch
    %1165 = sbr.rel (0) target = $region17
  $region16: #{vision_transformer_forward.19} parent=0 // pred_region
    _
  $region17: #{vision_transformer_forward.19} parent=0 // pred_fallthru
    _
  // Predicated region
  $region18: #{vision_transformer_forward.19} parent=0 // pred_check
    _
  $region19: #{vision_transformer_forward.19} parent=0 // pred_check_branch
    %1167 = sbr.rel (0) target = $region21
  $region20: #{vision_transformer_forward.19} parent=0 // pred_region
    _
  $region21: #{vision_transformer_forward.19} parent=0 // pred_fallthru
    _

// kernel: vision_transformer_forward.21
$region0: #{vision_transformer_forward.21}
  #allocation0 [shape = 'u32[]', space=smem, size = 0x4, offset = 0x4, fixed_abs, tag = 'smem constant byte address 0x4 - core index']
  #allocation1 [shape = 'u32[144,128]{1,0:T(1,128)}', space=vmem, size = 0x12000, scoped, tag = 'internal scratch']
  %s0 = inlined_call_operand.vmem [shape: f32[24,128], index: 0, kind: input, shape index: {}]
  %s1 = inlined_call_operand.vmem [shape: f32[1,128], index: 1, kind: input, shape index: {}]
  %s2 = inlined_call_operand.vmem [shape: f32[1,128], index: 2, kind: input, shape index: {}]
  %s3 = inlined_call_operand.vmem [shape: f32[128,384], index: 3, kind: input, shape index: {}]
  %s4 = inlined_call_operand.vmem [shape: f32[1,384], index: 4, kind: input, shape index: {}]
  %s5 = inlined_call_operand.vmem [shape: f32[24,384], index: 5, kind: output, shape index: {}]
  %s6 = sld [smem:[#allocation0]]
  $region30: #{vision_transformer_forward.21} parent=0
    _
  %s8 = ssub.s32 1, %s6
  %s9 = scalar_select 0, %s8, %s6
  // Predicated region
  $region2: #{vision_transformer_forward.21} parent=0 // pred_check
    _
  $region3: #{vision_transformer_forward.21} parent=0 // pred_check_branch
    %11 = sbr.rel (0) target = $region5
  $region4: #{vision_transformer_forward.21} parent=0 // pred_region
    _
  $region5: #{vision_transformer_forward.21} parent=0 // pred_fallthru
    _
  // Predicated region
  $region6: #{vision_transformer_forward.21} parent=0 // pred_check
    _
  $region7: #{vision_transformer_forward.21} parent=0 // pred_check_branch
    %13 = sbr.rel (0) target = $region9
  $region8: #{vision_transformer_forward.21} parent=0 // pred_region
    _
  $region9: #{vision_transformer_forward.21} parent=0 // pred_fallthru
    _
  // Predicated region
  $region10: #{vision_transformer_forward.21} parent=0 // pred_check
    _
  $region11: #{vision_transformer_forward.21} parent=0 // pred_check_branch
    %15 = sbr.rel (0) target = $region13
  $region12: #{vision_transformer_forward.21} parent=0 // pred_region
    _
  $region13: #{vision_transformer_forward.21} parent=0 // pred_fallthru
    _
  // Predicated region
  $region14: #{vision_transformer_forward.21} parent=0 // pred_check
    _
  $region15: #{vision_transformer_forward.21} parent=0 // pred_check_branch
    %17 = sbr.rel (0) target = $region17
  $region16: #{vision_transformer_forward.21} parent=0 // pred_region
    _
  $region17: #{vision_transformer_forward.21} parent=0 // pred_fallthru
    _
  // Predicated region
  $region18: #{vision_transformer_forward.21} parent=0 // pred_check
    _
  $region19: #{vision_transformer_forward.21} parent=0 // pred_check_branch
    %19 = sbr.rel (0) target = $region21
  $region20: #{vision_transformer_forward.21} parent=0 // pred_region
    _
  $region21: #{vision_transformer_forward.21} parent=0 // pred_fallthru
    _
  %v21 = vld [vmem:[%s0] sm:$0xff]
  %v22 = vld [vmem:[%s0 + $0x8] sm:$0xff]
  %v23 = vld [vmem:[%s0 + $0x10] sm:$0xff]
  %v24 = vld [vmem:[%s1] sm:$0x1]
  %v25 = vld [vmem:[%s2] sm:$0x1]
  %26 = vadd.xlane.f32.xlu0 %v21
  %v27 = vpop.xlane.xlu0 %26
  %28 = vadd.xlane.f32.xlu0 %v22
  %v29 = vpop.xlane.xlu0 %28
  %30 = vadd.xlane.f32.xlu0 %v23
  %v31 = vpop.xlane.xlu0 %30
  %v32 = vrcp.pop 128.0
  %v33 = vmul.f32 %v27, %v32
  %v34 = vmul.f32 %v29, %v32
  %v35 = vmul.f32 %v31, %v32
  %v36 = vsub.f32 %v21, %v33
  %v37 = vsub.f32 %v22, %v34
  %v38 = vsub.f32 %v23, %v35
  %v39 = vmul.f32 %v36, %v36
  %v40 = vmul.f32 %v37, %v37
  %v41 = vmul.f32 %v38, %v38
  %42 = vadd.xlane.f32.xlu0 %v39
  %v43 = vpop.xlane.xlu0 %42
  %44 = vadd.xlane.f32.xlu0 %v40
  %v45 = vpop.xlane.xlu0 %44
  %46 = vadd.xlane.f32.xlu0 %v41
  %v47 = vpop.xlane.xlu0 %46
  %v48 = vmul.f32 %v43, %v32
  %v49 = vmul.f32 %v45, %v32
  %v50 = vmul.f32 %v47, %v32
  %v51 = vadd.f32 %v48, 1e-05
  %v52 = vadd.f32 %v49, 1e-05
  %v53 = vadd.f32 %v50, 1e-05
  %v54 = vrsqrt.pop %v51
  %v55 = vrsqrt.pop %v52
  %v56 = vrsqrt.pop %v53
  %v57 = vmul.f32 %v36, %v54
  %v58 = vmul.f32 %v37, %v55
  %v59 = vmul.f32 %v38, %v56
  %v61 = vlaneseq
  %v62 = vshrl.u32 %v61, 7
  %v63 = vsub.s32 0, %v62
  %v64 = vrot.slane %v24, %v63
  %v66 = vmul.f32 %v57, %v64
  %v67 = vmul.f32 %v58, %v64
  %v68 = vmul.f32 %v59, %v64
  %v70 = vlaneseq
  %v71 = vshrl.u32 %v70, 7
  %v72 = vsub.s32 0, %v71
  %v73 = vrot.slane %v25, %v72
  %v75 = vadd.f32 %v66, %v73
  %v76 = vadd.f32 %v67, %v73
  %v77 = vadd.f32 %v68, %v73
  %v78 = vpack.c.bf16 %v76, %v75
  %v79 = vpack.c.bf16 %v77, %v77
  %v80 = vld [vmem:[%s3] sm:$0xff]
  %v81 = vld [vmem:[%s3 + $0x8] sm:$0xff]
  %v82 = vld [vmem:[%s3 + $0x10] sm:$0xff]
  %v83 = vld [vmem:[%s3 + $0x18] sm:$0xff]
  %v84 = vld [vmem:[%s3 + $0x20] sm:$0xff]
  %v85 = vld [vmem:[%s3 + $0x28] sm:$0xff]
  %v86 = vld [vmem:[%s3 + $0x30] sm:$0xff]
  %v87 = vld [vmem:[%s3 + $0x38] sm:$0xff]
  %v88 = vld [vmem:[%s3 + $0x40] sm:$0xff]
  %v89 = vld [vmem:[%s3 + $0x48] sm:$0xff]
  %v90 = vld [vmem:[%s3 + $0x50] sm:$0xff]
  %v91 = vld [vmem:[%s3 + $0x58] sm:$0xff]
  %v92 = vld [vmem:[%s3 + $0x60] sm:$0xff]
  %v93 = vld [vmem:[%s3 + $0x68] sm:$0xff]
  %v94 = vld [vmem:[%s3 + $0x70] sm:$0xff]
  %v95 = vld [vmem:[%s3 + $0x78] sm:$0xff]
  %v96 = vld [vmem:[%s3 + $0x80] sm:$0xff]
  %v97 = vld [vmem:[%s3 + $0x88] sm:$0xff]
  %v98 = vld [vmem:[%s3 + $0x90] sm:$0xff]
  %v99 = vld [vmem:[%s3 + $0x98] sm:$0xff]
  %v100 = vld [vmem:[%s3 + $0xa0] sm:$0xff]
  %v101 = vld [vmem:[%s3 + $0xa8] sm:$0xff]
  %v102 = vld [vmem:[%s3 + $0xb0] sm:$0xff]
  %v103 = vld [vmem:[%s3 + $0xb8] sm:$0xff]
  %v104 = vld [vmem:[%s3 + $0xc0] sm:$0xff]
  %v105 = vld [vmem:[%s3 + $0xc8] sm:$0xff]
  %v106 = vld [vmem:[%s3 + $0xd0] sm:$0xff]
  %v107 = vld [vmem:[%s3 + $0xd8] sm:$0xff]
  %v108 = vld [vmem:[%s3 + $0xe0] sm:$0xff]
  %v109 = vld [vmem:[%s3 + $0xe8] sm:$0xff]
  %v110 = vld [vmem:[%s3 + $0xf0] sm:$0xff]
  %v111 = vld [vmem:[%s3 + $0xf8] sm:$0xff]
  %v112 = vld [vmem:[%s3 + $0x100] sm:$0xff]
  %v113 = vld [vmem:[%s3 + $0x108] sm:$0xff]
  %v114 = vld [vmem:[%s3 + $0x110] sm:$0xff]
  %v115 = vld [vmem:[%s3 + $0x118] sm:$0xff]
  %v116 = vld [vmem:[%s3 + $0x120] sm:$0xff]
  %v117 = vld [vmem:[%s3 + $0x128] sm:$0xff]
  %v118 = vld [vmem:[%s3 + $0x130] sm:$0xff]
  %v119 = vld [vmem:[%s3 + $0x138] sm:$0xff]
  %v120 = vld [vmem:[%s3 + $0x140] sm:$0xff]
  %v121 = vld [vmem:[%s3 + $0x148] sm:$0xff]
  %v122 = vld [vmem:[%s3 + $0x150] sm:$0xff]
  %v123 = vld [vmem:[%s3 + $0x158] sm:$0xff]
  %v124 = vld [vmem:[%s3 + $0x160] sm:$0xff]
  %v125 = vld [vmem:[%s3 + $0x168] sm:$0xff]
  %v126 = vld [vmem:[%s3 + $0x170] sm:$0xff]
  %v127 = vld [vmem:[%s3 + $0x178] sm:$0xff]
  %v128 = vpack.c.bf16 %v83, %v80
  %v129 = vpack.c.bf16 %v84, %v81
  %v130 = vpack.c.bf16 %v85, %v82
  %v131 = vpack.c.bf16 %v89, %v86
  %v132 = vpack.c.bf16 %v90, %v87
  %v133 = vpack.c.bf16 %v91, %v88
  %v134 = vpack.c.bf16 %v95, %v92
  %v135 = vpack.c.bf16 %v96, %v93
  %v136 = vpack.c.bf16 %v97, %v94
  %v137 = vpack.c.bf16 %v101, %v98
  %v138 = vpack.c.bf16 %v102, %v99
  %v139 = vpack.c.bf16 %v103, %v100
  %v140 = vpack.c.bf16 %v107, %v104
  %v141 = vpack.c.bf16 %v108, %v105
  %v142 = vpack.c.bf16 %v109, %v106
  %v143 = vpack.c.bf16 %v113, %v110
  %v144 = vpack.c.bf16 %v114, %v111
  %v145 = vpack.c.bf16 %v115, %v112
  %v146 = vpack.c.bf16 %v119, %v116
  %v147 = vpack.c.bf16 %v120, %v117
  %v148 = vpack.c.bf16 %v121, %v118
  %v149 = vpack.c.bf16 %v125, %v122
  %v150 = vpack.c.bf16 %v126, %v123
  %v151 = vpack.c.bf16 %v127, %v124
  %v152 = vld [vmem:[%s4] sm:$0x7]
  %v154 = vlaneseq
  %v155 = vshrl.u32 %v154, 7
  %v156 = vsub.s32 0, %v155
  %v157 = vrot.slane %v152, %v156
  %v158 = vlaneseq
  %v159 = vshrl.u32 %v158, 7
  %v160 = vsub.s32 1, %v159
  %v161 = vrot.slane %v152, %v160
  %v162 = vlaneseq
  %v163 = vshrl.u32 %v162, 7
  %v164 = vsub.s32 2, %v163
  %v165 = vrot.slane %v152, %v164
  %169 = vmatprep.subr.bf16.mxu0 %v129
  %170 = vmatpush1.bf16.msra.mxu0 %v128
  %171 = vmatprep.subr.bf16.mxu0 %v132
  %172 = vmatpush1.bf16.msra.mxu0 %v131
  %173 = vmatprep.subr.bf16.mxu0 %v135
  %174 = vmatpush1.bf16.msra.mxu0 %v134
  %175 = vmatprep.subr.bf16.mxu0 %v138
  %176 = vmatpush1.bf16.msra.mxu0 %v137
  %177 = vmatprep.subr.bf16.mxu0 %v141
  %178 = vmatpush1.bf16.msra.mxu0 %v140
  %179 = vmatprep.subr.bf16.mxu0 %v144
  %180 = vmatpush1.bf16.msra.mxu0 %v143
  %181 = vmatprep.subr.bf16.mxu0 %v147
  %182 = vmatpush1.bf16.msra.mxu0 %v146
  %183 = vmatprep.subr.bf16.mxu0 %v150
  %184 = vmatpush1.bf16.msra.mxu0 %v149
  %185 = vmatprep.subr.bf16.mxu0 0
  %186 = vmatpush1.bf16.msra.mxu0 0
  %187 = vmatprep.subr.bf16.mxu0 0
  %188 = vmatpush1.bf16.msra.mxu0 0
  %189 = vmatprep.subr.bf16.mxu0 0
  %190 = vmatpush1.bf16.msra.mxu0 0
  %191 = vmatprep.subr.bf16.mxu0 0
  %192 = vmatpush1.bf16.msra.mxu0 0
  %193 = vmatprep.subr.bf16.mxu0 0
  %194 = vmatpush1.bf16.msra.mxu0 0
  %195 = vmatprep.subr.bf16.mxu0 0
  %196 = vmatpush1.bf16.msra.mxu0 0
  %197 = vmatprep.subr.bf16.mxu0 0
  %198 = vmatpush1.bf16.msra.mxu0 0
  %199 = vmatprep.subr.bf16.mxu0 0
  %200 = vmatpush1.bf16.msra.mxu0 0
  %201 = vmatprep.mubr.bf16.mxu0 0
  %202 = vmatmul.mubr.bf16.gmra.mrb[0].mxu0 %v78
  %v203 = vpop.f32.mrb[0].mxu0
  %v204 = vadd.f32 %v157, %v203
  %v205 = vpop.f32.mrb[0].mxu0
  %v206 = vadd.f32 %v161, %v205
  %v207 = vpop.f32.mrb[0].mxu0
  %v208 = vadd.f32 %v157, %v207
  %v209 = vpop.f32.mrb[0].mxu0
  %v210 = vadd.f32 %v161, %v209
  %211 = vmatprep.mubr.bf16.mxu0 0
  %212 = vmatmul.mubr.bf16.gmra.mrb[0].mxu0 %v79
  %v213 = vpop.f32.mrb[0].mxu0
  %v214 = vadd.f32 %v157, %v213
  %v215 = vpop.f32.mrb[0].mxu0
  %v216 = vadd.f32 %v161, %v215
  %v217 = vpop.f32.mrb[0].mxu0
  %v218 = vpop.f32.mrb[0].mxu0
  %219 = vdwg.mxu0
  %220 = vmatprep.subr.bf16.mxu0 0
  %221 = vmatpush1.bf16.msra.mxu0 %v130
  %222 = vmatprep.subr.bf16.mxu0 0
  %223 = vmatpush1.bf16.msra.mxu0 %v133
  %224 = vmatprep.subr.bf16.mxu0 0
  %225 = vmatpush1.bf16.msra.mxu0 %v136
  %226 = vmatprep.subr.bf16.mxu0 0
  %227 = vmatpush1.bf16.msra.mxu0 %v139
  %228 = vmatprep.subr.bf16.mxu0 0
  %229 = vmatpush1.bf16.msra.mxu0 %v142
  %230 = vmatprep.subr.bf16.mxu0 0
  %231 = vmatpush1.bf16.msra.mxu0 %v145
  %232 = vmatprep.subr.bf16.mxu0 0
  %233 = vmatpush1.bf16.msra.mxu0 %v148
  %234 = vmatprep.subr.bf16.mxu0 0
  %235 = vmatpush1.bf16.msra.mxu0 %v151
  %236 = vmatprep.subr.bf16.mxu0 0
  %237 = vmatpush1.bf16.msra.mxu0 0
  %238 = vmatprep.subr.bf16.mxu0 0
  %239 = vmatpush1.bf16.msra.mxu0 0
  %240 = vmatprep.subr.bf16.mxu0 0
  %241 = vmatpush1.bf16.msra.mxu0 0
  %242 = vmatprep.subr.bf16.mxu0 0
  %243 = vmatpush1.bf16.msra.mxu0 0
  %244 = vmatprep.subr.bf16.mxu0 0
  %245 = vmatpush1.bf16.msra.mxu0 0
  %246 = vmatprep.subr.bf16.mxu0 0
  %247 = vmatpush1.bf16.msra.mxu0 0
  %248 = vmatprep.subr.bf16.mxu0 0
  %249 = vmatpush1.bf16.msra.mxu0 0
  %250 = vmatprep.subr.bf16.mxu0 0
  %251 = vmatpush1.bf16.msra.mxu0 0
  %252 = vmatprep.mubr.bf16.mxu0 0
  %253 = vmatmul.mubr.bf16.gmra.mrb[0].mxu0 %v78
  %v254 = vpop.f32.mrb[0].mxu0
  %v255 = vadd.f32 %v165, %v254
  %v256 = vpop.f32.mrb[0].mxu0
  %v257 = vpop.f32.mrb[0].mxu0
  %v258 = vadd.f32 %v165, %v257
  %v259 = vpop.f32.mrb[0].mxu0
  %260 = vmatprep.mubr.bf16.mxu0 0
  %261 = vmatmul.mubr.bf16.gmra.mrb[0].mxu0 %v79
  %v262 = vpop.f32.mrb[0].mxu0
  %v263 = vadd.f32 %v165, %v262
  %v264 = vpop.f32.mrb[0].mxu0
  %v265 = vpop.f32.mrb[0].mxu0
  %v266 = vpop.f32.mrb[0].mxu0
  %267 = vdwg.mxu0
  %268 = vst [vmem:[%s5] sm:$0xff] %v204
  %269 = vst [vmem:[%s5 + $0x8] sm:$0xff] %v206
  %270 = vst [vmem:[%s5 + $0x10] sm:$0xff] %v255
  %271 = vst [vmem:[%s5 + $0x18] sm:$0xff] %v208
  %272 = vst [vmem:[%s5 + $0x20] sm:$0xff] %v210
  %273 = vst [vmem:[%s5 + $0x28] sm:$0xff] %v258
  %274 = vst [vmem:[%s5 + $0x30] sm:$0xff] %v214
  %275 = vst [vmem:[%s5 + $0x38] sm:$0xff] %v216
  %276 = vst [vmem:[%s5 + $0x40] sm:$0xff] %v263
  // Predicated region
  $region22: #{vision_transformer_forward.21} parent=0 // pred_check
    _
  $region23: #{vision_transformer_forward.21} parent=0 // pred_check_branch
    %278 = sbr.rel (0) target = $region25
  $region24: #{vision_transformer_forward.21} parent=0 // pred_region
    _
  $region25: #{vision_transformer_forward.21} parent=0 // pred_fallthru
    _
  // Predicated region
  $region26: #{vision_transformer_forward.21} parent=0 // pred_check
    _
  $region27: #{vision_transformer_forward.21} parent=0 // pred_check_branch
    %280 = sbr.rel (0) target = $region29
  $region28: #{vision_transformer_forward.21} parent=0 // pred_region
    _
  $region29: #{vision_transformer_forward.21} parent=0 // pred_fallthru
    _

// kernel: vision_transformer_forward.22
$region0: #{vision_transformer_forward.22}
  #allocation0 [shape = 'u32[]', space=smem, size = 0x4, offset = 0x4, fixed_abs, tag = 'smem constant byte address 0x4 - core index']
  #allocation1 [shape = 'u32[144,128]{1,0:T(1,128)}', space=vmem, size = 0x12000, scoped, tag = 'internal scratch']
  %s0 = inlined_call_operand.vmem [shape: f32[2,9,384], index: 0, kind: input, shape index: {}]
  %s1 = inlined_call_operand.vmem [shape: f32[2,9,128], index: 1, kind: input, shape index: {}]
  %s2 = inlined_call_operand.vmem [shape: f32[128,128], index: 2, kind: input, shape index: {}]
  %s3 = inlined_call_operand.vmem [shape: f32[1,128], index: 3, kind: input, shape index: {}]
  %s4 = inlined_call_operand.vmem [shape: f32[2,9,128], index: 4, kind: output, shape index: {}]
  %s5 = sld [smem:[#allocation0]]
  $region49: #{vision_transformer_forward.22} parent=0
    _
  %s7 = ssub.s32 1, %s5
  %s8 = scalar_select 0, %s7, %s5
  loop: start=0, step=1, limit=4
  $region2: #{vision_transformer_forward.22} parent=0 // loop_pre_header
    _
  $region3: #{vision_transformer_forward.22} parent=0 // loop_header
    %s10 = sphi 0, %s14
    %p11 = scmp.ge.s32.totalorder %s10, 4
    %s20 = sphi 0, %s22
    %s23 = sphi 0, %s20
    %s24 = sphi 0, %s23
    %s40 = sphi 0, %s24
    %s46 = sphi 0, %s48
    %s49 = sphi 0, %s46
    %s50 = sphi 0, %s49
    %s66 = sphi 0, %s50
    %s70 = sphi 0, %s70
    %s72 = sphi 0, %s70
    %s73 = sphi 0, %s72
    %s87 = sphi 0, %s73
    %s91 = sphi 0, %s91
    %s93 = sphi 0, %s91
    %s94 = sphi 0, %s93
    %s108 = sphi 0, %s94
    %s114 = sphi 0, %s116
    %s117 = sphi 0, %s114
    %s118 = sphi 0, %s117
    %s134 = sphi 0, %s118
  $region4: #{vision_transformer_forward.22} parent=0 // loop_header_branch
    %13 = sbr.rel (%p11) target = $region8
  $region5: #{vision_transformer_forward.22} parent=0 // loop_body
    %s15 = ssub.s32 %s10, 1
    %s16 = ssub.s32 %s10, 2
    %s17 = sadd.s32 %s10, 1
    %s18 = ssub.s32 %s10, %s17
    %p19 = scmp.eq.s32.totalorder %s18, 0
    %s21 = sadd.s32 %s20, 1
    %s22 = scalar_select %p19, %s20, %s21
    %p25 = pneg %p19
    %p26 = scmp.eq.s32.totalorder %s10, 1
    %p27 = por %p25, %p26
    %p28 = scmp.ne.s32.totalorder %s20, %s23
    %p29 = scmp.eq.s32.totalorder %s10, 0
    %p30 = por %p28, %p29
    %p31 = scmp.ne.s32.totalorder %s20, %s23
    %p32 = scmp.eq.s32.totalorder %s15, 1
    %p33 = por %p31, %p32
    %p34 = scmp.ne.s32.totalorder %s23, %s24
    %p35 = scmp.eq.s32.totalorder %s15, 0
    %p36 = por %p34, %p35
    %p37 = scmp.ne.s32.totalorder %s23, %s24
    %p38 = scmp.eq.s32.totalorder %s16, 1
    %p39 = por %p37, %p38
    %p41 = scmp.ne.s32.totalorder %s24, %s40
    %p42 = scmp.eq.s32.totalorder %s16, 0
    %p43 = por %p41, %p42
    %s44 = ssub.s32 %s10, %s17
    %p45 = scmp.eq.s32.totalorder %s44, 0
    %s47 = sadd.s32 %s46, 1
    %s48 = scalar_select %p45, %s46, %s47
    %p51 = pneg %p45
    %p52 = scmp.eq.s32.totalorder %s10, 1
    %p53 = por %p51, %p52
    %p54 = scmp.ne.s32.totalorder %s46, %s49
    %p55 = scmp.eq.s32.totalorder %s10, 0
    %p56 = por %p54, %p55
    %p57 = scmp.ne.s32.totalorder %s46, %s49
    %p58 = scmp.eq.s32.totalorder %s15, 1
    %p59 = por %p57, %p58
    %p60 = scmp.ne.s32.totalorder %s49, %s50
    %p61 = scmp.eq.s32.totalorder %s15, 0
    %p62 = por %p60, %p61
    %p63 = scmp.ne.s32.totalorder %s49, %s50
    %p64 = scmp.eq.s32.totalorder %s16, 1
    %p65 = por %p63, %p64
    %p67 = scmp.ne.s32.totalorder %s50, %s66
    %p68 = scmp.eq.s32.totalorder %s16, 0
    %p69 = por %p67, %p68
    %s71 = sadd.s32 %s70, 1
    %p74 = scmp.eq.s32.totalorder %s10, 1
    %p75 = scmp.ne.s32.totalorder %s70, %s72
    %p76 = scmp.eq.s32.totalorder %s10, 0
    %p77 = por %p75, %p76
    %p78 = scmp.ne.s32.totalorder %s70, %s72
    %p79 = scmp.eq.s32.totalorder %s15, 1
    %p80 = por %p78, %p79
    %p81 = scmp.ne.s32.totalorder %s72, %s73
    %p82 = scmp.eq.s32.totalorder %s15, 0
    %p83 = por %p81, %p82
    %p84 = scmp.ne.s32.totalorder %s72, %s73
    %p85 = scmp.eq.s32.totalorder %s16, 1
    %p86 = por %p84, %p85
    %p88 = scmp.ne.s32.totalorder %s73, %s87
    %p89 = scmp.eq.s32.totalorder %s16, 0
    %p90 = por %p88, %p89
    %s92 = sadd.s32 %s91, 1
    %p95 = scmp.eq.s32.totalorder %s10, 1
    %p96 = scmp.ne.s32.totalorder %s91, %s93
    %p97 = scmp.eq.s32.totalorder %s10, 0
    %p98 = por %p96, %p97
    %p99 = scmp.ne.s32.totalorder %s91, %s93
    %p100 = scmp.eq.s32.totalorder %s15, 1
    %p101 = por %p99, %p100
    %p102 = scmp.ne.s32.totalorder %s93, %s94
    %p103 = scmp.eq.s32.totalorder %s15, 0
    %p104 = por %p102, %p103
    %p105 = scmp.ne.s32.totalorder %s93, %s94
    %p106 = scmp.eq.s32.totalorder %s16, 1
    %p107 = por %p105, %p106
    %p109 = scmp.ne.s32.totalorder %s94, %s108
    %p110 = scmp.eq.s32.totalorder %s16, 0
    %p111 = por %p109, %p110
    %s112 = ssub.s32 %s10, %s17
    %p113 = scmp.eq.s32.totalorder %s112, 0
    %s115 = sadd.s32 %s114, 1
    %s116 = scalar_select %p113, %s114, %s115
    %p119 = pneg %p113
    %p120 = scmp.eq.s32.totalorder %s10, 1
    %p121 = por %p119, %p120
    %p122 = scmp.ne.s32.totalorder %s114, %s117
    %p123 = scmp.eq.s32.totalorder %s10, 0
    %p124 = por %p122, %p123
    %p125 = scmp.ne.s32.totalorder %s114, %s117
    %p126 = scmp.eq.s32.totalorder %s15, 1
    %p127 = por %p125, %p126
    %p128 = scmp.ne.s32.totalorder %s117, %s118
    %p129 = scmp.eq.s32.totalorder %s15, 0
    %p130 = por %p128, %p129
    %p131 = scmp.ne.s32.totalorder %s117, %s118
    %p132 = scmp.eq.s32.totalorder %s16, 1
    %p133 = por %p131, %p132
    %p135 = scmp.ne.s32.totalorder %s118, %s134
    %p136 = scmp.eq.s32.totalorder %s16, 0
    %p137 = por %p135, %p136
    %p138 = scmp.le.s32.totalorder 1, %s10
    %p139 = scmp.lt.s32.totalorder %s10, 3
    %p140 = pnand %p138, %p139
    %p141 = pneg %p140
    // Predicated region
    $region9: #{vision_transformer_forward.22} parent=5 // pred_check
      _
    $region10: #{vision_transformer_forward.22} parent=5 // pred_check_branch
      %143 = sbr.rel (%p140) target = $region12
    $region11: #{vision_transformer_forward.22} parent=5 // pred_region
      %s144 = ssub.s32 %s10, 1
      // Predicated region
      $region13: #{vision_transformer_forward.22} parent=11 // pred_check
        %p145 = pneg %p83
      $region14: #{vision_transformer_forward.22} parent=11 // pred_check_branch
        %147 = sbr.rel (%p145) target = $region16
      $region15: #{vision_transformer_forward.22} parent=11 // pred_region
        _
      $region16: #{vision_transformer_forward.22} parent=11 // pred_fallthru
        _
      // Predicated region
      $region17: #{vision_transformer_forward.22} parent=11 // pred_check
        %p148 = pneg %p104
      $region18: #{vision_transformer_forward.22} parent=11 // pred_check_branch
        %150 = sbr.rel (%p148) target = $region20
      $region19: #{vision_transformer_forward.22} parent=11 // pred_region
        _
      $region20: #{vision_transformer_forward.22} parent=11 // pred_fallthru
        _
    $region12: #{vision_transformer_forward.22} parent=5 // pred_fallthru
      _
    %p151 = scmp.lt.s32.totalorder %s10, 2
    // Predicated region
    $region21: #{vision_transformer_forward.22} parent=5 // pred_check
      %p152 = pneg %p151
    $region22: #{vision_transformer_forward.22} parent=5 // pred_check_branch
      %154 = sbr.rel (%p152) target = $region24
    $region23: #{vision_transformer_forward.22} parent=5 // pred_region
      // Predicated region
      $region25: #{vision_transformer_forward.22} parent=23 // pred_check
        %p155 = pneg %p30
      $region26: #{vision_transformer_forward.22} parent=23 // pred_check_branch
        %157 = sbr.rel (%p155) target = $region28
      $region27: #{vision_transformer_forward.22} parent=23 // pred_region
        %p158 = scmp.lt.s32.totalorder %s10, 1
        %s159 = scalar_select %p158, %s10, 1
        %s160 = smul.addr %s159, 6
        %s161 = smul.addr %s160, 8
        %s162 = scalar_lea.vmem %s0, %s161
      $region28: #{vision_transformer_forward.22} parent=23 // pred_fallthru
        _
      // Predicated region
      $region29: #{vision_transformer_forward.22} parent=23 // pred_check
        %p163 = pneg %p56
      $region30: #{vision_transformer_forward.22} parent=23 // pred_check_branch
        %165 = sbr.rel (%p163) target = $region32
      $region31: #{vision_transformer_forward.22} parent=23 // pred_region
        %p166 = scmp.lt.s32.totalorder %s10, 1
        %s167 = scalar_select %p166, %s10, 1
        %s168 = smul.addr %s167, 2
        %s169 = smul.addr %s168, 8
        %s170 = scalar_lea.vmem %s1, %s169
      $region32: #{vision_transformer_forward.22} parent=23 // pred_fallthru
        _
    $region24: #{vision_transformer_forward.22} parent=5 // pred_fallthru
      _
    %p171 = scmp.le.s32.totalorder 1, %s10
    %p172 = scmp.lt.s32.totalorder %s10, 3
    %p173 = pnand %p171, %p172
    %p174 = pneg %p173
    // Predicated region
    $region33: #{vision_transformer_forward.22} parent=5 // pred_check
      _
    $region34: #{vision_transformer_forward.22} parent=5 // pred_check_branch
      %176 = sbr.rel (%p173) target = $region36
    $region35: #{vision_transformer_forward.22} parent=5 // pred_region
      %s177 = ssub.s32 %s10, 1
      %p178 = scmp.lt.s32.totalorder %s15, 1
      %s179 = scalar_select %p178, %s15, 1
      %s180 = smul.addr %s179, 6
      %s181 = smul.addr %s180, 8
      %s182 = scalar_lea.vmem %s0, %s181
      %p183 = pneg %p36
      %p184 = pneg %p33
      %p185 = scmp.lt.s32.totalorder %s15, 1
      %s186 = scalar_select %p185, %s15, 1
      %s187 = smul.addr %s186, 2
      %s188 = smul.addr %s187, 8
      %s189 = scalar_lea.vmem %s1, %s188
      %p190 = pneg %p62
      %p191 = pneg %p59
      %p192 = pneg %p83
      %p193 = pneg %p80
      %p194 = pneg %p104
      %p195 = pneg %p101
      %p196 = pneg %p130
      %p197 = pneg %p127
      %p198 = scmp.lt.s32.totalorder %s15, 1
      %s199 = scalar_select %p198, %s15, 1
      %s200 = smul.addr %s199, 2
      %s201 = smul.addr %s200, 8
      %s202 = scalar_lea.vmem %s4, %s201
      %p203 = scmp.lt.s32.totalorder %s15, 1
      %s204 = scalar_select %p203, %s15, 1
      %s205 = smul.addr %s204, 6
      %s206 = smul.addr %s205, 8
      %s207 = scalar_lea.vmem %s0, %s206
      %p208 = scmp.lt.s32.totalorder %s15, 1
      %s209 = scalar_select %p208, %s15, 1
      %s210 = smul.addr %s209, 2
      %s211 = smul.addr %s210, 8
      %s212 = scalar_lea.vmem %s1, %s211
      %p213 = scmp.lt.s32.totalorder %s15, 1
      %s214 = scalar_select %p213, %s15, 1
      %s215 = smul.addr %s214, 2
      %s216 = smul.addr %s215, 8
      %s217 = scalar_lea.vmem %s4, %s216
      %v219 = vld [vmem:[%s207] sm:$0xff]
      %v220 = vld [vmem:[%s207 + $0x8] sm:$0xff]
      %v221 = vld [vmem:[%s207 + $0x10] sm:$0xff]
      %v222 = vld [vmem:[%s207 + $0x18] sm:$0x1]
      %v223 = vld [vmem:[%s207 + $0x20] sm:$0x1]
      %v224 = vld [vmem:[%s207 + $0x28] sm:$0x1]
      %v225 = vpack.c.bf16 %v222, %v219
      %v226 = vpack.c.bf16 %v223, %v220
      %v227 = vpack.c.bf16 %v224, %v221
      %vm228 = vcmask 261120
      %v230 = vsel %vm228, %v225, 0
      %v233 = vsel %vm228, %v226, 0
      %235 = vmatprep.subr.bf16.mxu0 0
      %236 = vmatpush1.bf16.xpose.msra.mxu0 %v233
      %237 = vmatprep.subr.bf16.mxu0 0
      %238 = vmatpush1.bf16.xpose.msra.mxu0 0
      %239 = vmatprep.subr.bf16.mxu0 0
      %240 = vmatpush1.bf16.xpose.msra.mxu0 0
      %241 = vmatprep.subr.bf16.mxu0 0
      %242 = vmatpush1.bf16.xpose.msra.mxu0 0
      %243 = vmatprep.subr.bf16.mxu0 0
      %244 = vmatpush1.bf16.xpose.msra.mxu0 0
      %245 = vmatprep.subr.bf16.mxu0 0
      %246 = vmatpush1.bf16.xpose.msra.mxu0 0
      %247 = vmatprep.subr.bf16.mxu0 0
      %248 = vmatpush1.bf16.xpose.msra.mxu0 0
      %249 = vmatprep.subr.bf16.mxu0 0
      %250 = vmatpush1.bf16.xpose.msra.mxu0 0
      %251 = vmatprep.subr.bf16.mxu0 0
      %252 = vmatpush1.bf16.xpose.msra.mxu0 0
      %253 = vmatprep.subr.bf16.mxu0 0
      %254 = vmatpush1.bf16.xpose.msra.mxu0 0
      %255 = vmatprep.subr.bf16.mxu0 0
      %256 = vmatpush1.bf16.xpose.msra.mxu0 0
      %257 = vmatprep.subr.bf16.mxu0 0
      %258 = vmatpush1.bf16.xpose.msra.mxu0 0
      %259 = vmatprep.subr.bf16.mxu0 0
      %260 = vmatpush1.bf16.xpose.msra.mxu0 0
      %261 = vmatprep.subr.bf16.mxu0 0
      %262 = vmatpush1.bf16.xpose.msra.mxu0 0
      %263 = vmatprep.subr.bf16.mxu0 0
      %264 = vmatpush1.bf16.xpose.msra.mxu0 0
      %265 = vmatprep.subr.bf16.mxu0 0
      %266 = vmatpush1.bf16.xpose.msra.mxu0 0
      %267 = vmatprep.mubr.bf16.mxu0 0
      %268 = vmatmul.mubr.bf16.gmra.mrb[0].mxu0 %v230
      %v269 = vpop.f32.mrb[0].mxu0
      %v270 = vadd.f32 0.0, %v269
      %v271 = vpop.f32.mrb[0].mxu0
      %v272 = vpop.f32.mrb[0].mxu0
      %v273 = vadd.f32 0.0, %v272
      %v274 = vpop.f32.mrb[0].mxu0
      %275 = vdwg.mxu0
      %v276 = vmul.f32 %v270, 0.17677669
      %v277 = vmul.f32 %v273, 0.17677669
      %vm278 = vcmask 72704
      %v279 = vsel %vm278, %v276, -inf
      %280 = vmax.xlane.f32.xlu0 %v279
      %v281 = vpop.xlane.xlu0 %280
      %vm282 = vcmask 65536
      %v283 = vsel %vm282, %v277, -inf
      %284 = vmax.xlane.f32.xlu0 %v283
      %v285 = vpop.xlane.xlu0 %284
      %v286 = vsub.f32 %v276, %v281
      %v287 = vsub.f32 %v277, %v285
      %v288 = vmul.f32 %v286, 1.442695
      %v289 = vpow.pop %v288
      %v290 = vmul.f32 %v287, 1.442695
      %v291 = vpow.pop %v290
      %v292 = vsel %vm278, %v289, 0.0
      %293 = vadd.xlane.f32.xlu0 %v292
      %v294 = vpop.xlane.xlu0 %293
      %v295 = vsel %vm282, %v291, 0.0
      %296 = vadd.xlane.f32.xlu0 %v295
      %v297 = vpop.xlane.xlu0 %296
      %v298 = vrcp.pop %v294
      %v299 = vrcp.pop %v297
      %v300 = vmul.f32 %v289, %v298
      %v301 = vmul.f32 %v291, %v299
      %v302 = vpack.c.bf16 %v301, %v300
      %v304 = vsel %vm278, %v302, 0
      %vm306 = vcmask 1043456
      %vm307 = vcmask 1044480
      %v308 = vsel %vm306, 4294967295, 65535
      %v309 = vsel %vm307, %v308, 0
      %v311 = vand.u32 %v227, %v309
      %313 = vmatprep.subr.bf16.mxu0 0
      %314 = vmatpush1.bf16.msra.mxu0 %v311
      %315 = vmatprep.subr.bf16.mxu0 0
      %316 = vmatpush1.bf16.msra.mxu0 0
      %317 = vmatprep.subr.bf16.mxu0 0
      %318 = vmatpush1.bf16.msra.mxu0 0
      %319 = vmatprep.subr.bf16.mxu0 0
      %320 = vmatpush1.bf16.msra.mxu0 0
      %321 = vmatprep.subr.bf16.mxu0 0
      %322 = vmatpush1.bf16.msra.mxu0 0
      %323 = vmatprep.subr.bf16.mxu0 0
      %324 = vmatpush1.bf16.msra.mxu0 0
      %325 = vmatprep.subr.bf16.mxu0 0
      %326 = vmatpush1.bf16.msra.mxu0 0
      %327 = vmatprep.subr.bf16.mxu0 0
      %328 = vmatpush1.bf16.msra.mxu0 0
      %329 = vmatprep.subr.bf16.mxu0 0
      %330 = vmatpush1.bf16.msra.mxu0 0
      %331 = vmatprep.subr.bf16.mxu0 0
      %332 = vmatpush1.bf16.msra.mxu0 0
      %333 = vmatprep.subr.bf16.mxu0 0
      %334 = vmatpush1.bf16.msra.mxu0 0
      %335 = vmatprep.subr.bf16.mxu0 0
      %336 = vmatpush1.bf16.msra.mxu0 0
      %337 = vmatprep.subr.bf16.mxu0 0
      %338 = vmatpush1.bf16.msra.mxu0 0
      %339 = vmatprep.subr.bf16.mxu0 0
      %340 = vmatpush1.bf16.msra.mxu0 0
      %341 = vmatprep.subr.bf16.mxu0 0
      %342 = vmatpush1.bf16.msra.mxu0 0
      %343 = vmatprep.subr.bf16.mxu0 0
      %344 = vmatpush1.bf16.msra.mxu0 0
      %345 = vmatprep.mubr.bf16.mxu0 0
      %346 = vmatmul.mubr.bf16.gmra.mrb[0].mxu0 %v304
      %v347 = vpop.f32.mrb[0].mxu0
      %v348 = vadd.f32 0.0, %v347
      %v349 = vpop.f32.mrb[0].mxu0
      %v350 = vpop.f32.mrb[0].mxu0
      %v351 = vadd.f32 0.0, %v350
      %v352 = vpop.f32.mrb[0].mxu0
      %353 = vdwg.mxu0
      %355 = vrot.lane.b32.xlu0 %v225, 96
      %v356 = vpop.permute.xlu0 %355
      %358 = vrot.lane.b32.xlu0 %v226, 96
      %v359 = vpop.permute.xlu0 %358
      %v361 = vsel %vm228, %v356, 0
      %v364 = vsel %vm228, %v359, 0
      %366 = vmatprep.subr.bf16.mxu0 0
      %367 = vmatpush1.bf16.xpose.msra.mxu0 %v364
      %368 = vmatprep.subr.bf16.mxu0 0
      %369 = vmatpush1.bf16.xpose.msra.mxu0 0
      %370 = vmatprep.subr.bf16.mxu0 0
      %371 = vmatpush1.bf16.xpose.msra.mxu0 0
      %372 = vmatprep.subr.bf16.mxu0 0
      %373 = vmatpush1.bf16.xpose.msra.mxu0 0
      %374 = vmatprep.subr.bf16.mxu0 0
      %375 = vmatpush1.bf16.xpose.msra.mxu0 0
      %376 = vmatprep.subr.bf16.mxu0 0
      %377 = vmatpush1.bf16.xpose.msra.mxu0 0
      %378 = vmatprep.subr.bf16.mxu0 0
      %379 = vmatpush1.bf16.xpose.msra.mxu0 0
      %380 = vmatprep.subr.bf16.mxu0 0
      %381 = vmatpush1.bf16.xpose.msra.mxu0 0
      %382 = vmatprep.subr.bf16.mxu0 0
      %383 = vmatpush1.bf16.xpose.msra.mxu0 0
      %384 = vmatprep.subr.bf16.mxu0 0
      %385 = vmatpush1.bf16.xpose.msra.mxu0 0
      %386 = vmatprep.subr.bf16.mxu0 0
      %387 = vmatpush1.bf16.xpose.msra.mxu0 0
      %388 = vmatprep.subr.bf16.mxu0 0
      %389 = vmatpush1.bf16.xpose.msra.mxu0 0
      %390 = vmatprep.subr.bf16.mxu0 0
      %391 = vmatpush1.bf16.xpose.msra.mxu0 0
      %392 = vmatprep.subr.bf16.mxu0 0
      %393 = vmatpush1.bf16.xpose.msra.mxu0 0
      %394 = vmatprep.subr.bf16.mxu0 0
      %395 = vmatpush1.bf16.xpose.msra.mxu0 0
      %396 = vmatprep.subr.bf16.mxu0 0
      %397 = vmatpush1.bf16.xpose.msra.mxu0 0
      %398 = vmatprep.mubr.bf16.mxu0 0
      %399 = vmatmul.mubr.bf16.gmra.mrb[0].mxu0 %v361
      %v400 = vpop.f32.mrb[0].mxu0
      %v401 = vadd.f32 0.0, %v400
      %v402 = vpop.f32.mrb[0].mxu0
      %v403 = vpop.f32.mrb[0].mxu0
      %v404 = vadd.f32 0.0, %v403
      %v405 = vpop.f32.mrb[0].mxu0
      %406 = vdwg.mxu0
      %v407 = vmul.f32 %v401, 0.17677669
      %v408 = vmul.f32 %v404, 0.17677669
      %v409 = vsel %vm278, %v407, -inf
      %410 = vmax.xlane.f32.xlu0 %v409
      %v411 = vpop.xlane.xlu0 %410
      %v412 = vsel %vm282, %v408, -inf
      %413 = vmax.xlane.f32.xlu0 %v412
      %v414 = vpop.xlane.xlu0 %413
      %v415 = vsub.f32 %v407, %v411
      %v416 = vsub.f32 %v408, %v414
      %v417 = vmul.f32 %v415, 1.442695
      %v418 = vpow.pop %v417
      %v419 = vmul.f32 %v416, 1.442695
      %v420 = vpow.pop %v419
      %v421 = vsel %vm278, %v418, 0.0
      %422 = vadd.xlane.f32.xlu0 %v421
      %v423 = vpop.xlane.xlu0 %422
      %v424 = vsel %vm282, %v420, 0.0
      %425 = vadd.xlane.f32.xlu0 %v424
      %v426 = vpop.xlane.xlu0 %425
      %v427 = vrcp.pop %v423
      %v428 = vrcp.pop %v426
      %v429 = vmul.f32 %v418, %v427
      %v430 = vmul.f32 %v420, %v428
      %v431 = vpack.c.bf16 %v430, %v429
      %433 = vrot.lane.b32.xlu0 %v227, 96
      %v434 = vpop.permute.xlu0 %433
      %v436 = vsel %vm278, %v431, 0
      %v439 = vand.u32 %v434, %v309
      %441 = vmatprep.subr.bf16.mxu0 0
      %442 = vmatpush1.bf16.msra.mxu0 %v439
      %443 = vmatprep.subr.bf16.mxu0 0
      %444 = vmatpush1.bf16.msra.mxu0 0
      %445 = vmatprep.subr.bf16.mxu0 0
      %446 = vmatpush1.bf16.msra.mxu0 0
      %447 = vmatprep.subr.bf16.mxu0 0
      %448 = vmatpush1.bf16.msra.mxu0 0
      %449 = vmatprep.subr.bf16.mxu0 0
      %450 = vmatpush1.bf16.msra.mxu0 0
      %451 = vmatprep.subr.bf16.mxu0 0
      %452 = vmatpush1.bf16.msra.mxu0 0
      %453 = vmatprep.subr.bf16.mxu0 0
      %454 = vmatpush1.bf16.msra.mxu0 0
      %455 = vmatprep.subr.bf16.mxu0 0
      %456 = vmatpush1.bf16.msra.mxu0 0
      %457 = vmatprep.subr.bf16.mxu0 0
      %458 = vmatpush1.bf16.msra.mxu0 0
      %459 = vmatprep.subr.bf16.mxu0 0
      %460 = vmatpush1.bf16.msra.mxu0 0
      %461 = vmatprep.subr.bf16.mxu0 0
      %462 = vmatpush1.bf16.msra.mxu0 0
      %463 = vmatprep.subr.bf16.mxu0 0
      %464 = vmatpush1.bf16.msra.mxu0 0
      %465 = vmatprep.subr.bf16.mxu0 0
      %466 = vmatpush1.bf16.msra.mxu0 0
      %467 = vmatprep.subr.bf16.mxu0 0
      %468 = vmatpush1.bf16.msra.mxu0 0
      %469 = vmatprep.subr.bf16.mxu0 0
      %470 = vmatpush1.bf16.msra.mxu0 0
      %471 = vmatprep.subr.bf16.mxu0 0
      %472 = vmatpush1.bf16.msra.mxu0 0
      %473 = vmatprep.mubr.bf16.mxu0 0
      %474 = vmatmul.mubr.bf16.gmra.mrb[0].mxu0 %v436
      %v475 = vpop.f32.mrb[0].mxu0
      %v476 = vadd.f32 0.0, %v475
      %v477 = vpop.f32.mrb[0].mxu0
      %v478 = vpop.f32.mrb[0].mxu0
      %v479 = vadd.f32 0.0, %v478
      %v480 = vpop.f32.mrb[0].mxu0
      %481 = vdwg.mxu0
      %482 = vrot.lane.b32.xlu0 %v225, 64
      %v483 = vpop.permute.xlu0 %482
      %484 = vrot.lane.b32.xlu0 %v226, 64
      %v485 = vpop.permute.xlu0 %484
      %v487 = vsel %vm228, %v483, 0
      %v490 = vsel %vm228, %v485, 0
      %492 = vmatprep.subr.bf16.mxu0 0
      %493 = vmatpush1.bf16.xpose.msra.mxu0 %v490
      %494 = vmatprep.subr.bf16.mxu0 0
      %495 = vmatpush1.bf16.xpose.msra.mxu0 0
      %496 = vmatprep.subr.bf16.mxu0 0
      %497 = vmatpush1.bf16.xpose.msra.mxu0 0
      %498 = vmatprep.subr.bf16.mxu0 0
      %499 = vmatpush1.bf16.xpose.msra.mxu0 0
      %500 = vmatprep.subr.bf16.mxu0 0
      %501 = vmatpush1.bf16.xpose.msra.mxu0 0
      %502 = vmatprep.subr.bf16.mxu0 0
      %503 = vmatpush1.bf16.xpose.msra.mxu0 0
      %504 = vmatprep.subr.bf16.mxu0 0
      %505 = vmatpush1.bf16.xpose.msra.mxu0 0
      %506 = vmatprep.subr.bf16.mxu0 0
      %507 = vmatpush1.bf16.xpose.msra.mxu0 0
      %508 = vmatprep.subr.bf16.mxu0 0
      %509 = vmatpush1.bf16.xpose.msra.mxu0 0
      %510 = vmatprep.subr.bf16.mxu0 0
      %511 = vmatpush1.bf16.xpose.msra.mxu0 0
      %512 = vmatprep.subr.bf16.mxu0 0
      %513 = vmatpush1.bf16.xpose.msra.mxu0 0
      %514 = vmatprep.subr.bf16.mxu0 0
      %515 = vmatpush1.bf16.xpose.msra.mxu0 0
      %516 = vmatprep.subr.bf16.mxu0 0
      %517 = vmatpush1.bf16.xpose.msra.mxu0 0
      %518 = vmatprep.subr.bf16.mxu0 0
      %519 = vmatpush1.bf16.xpose.msra.mxu0 0
      %520 = vmatprep.subr.bf16.mxu0 0
      %521 = vmatpush1.bf16.xpose.msra.mxu0 0
      %522 = vmatprep.subr.bf16.mxu0 0
      %523 = vmatpush1.bf16.xpose.msra.mxu0 0
      %524 = vmatprep.mubr.bf16.mxu0 0
      %525 = vmatmul.mubr.bf16.gmra.mrb[0].mxu0 %v487
      %v526 = vpop.f32.mrb[0].mxu0
      %v527 = vadd.f32 0.0, %v526
      %v528 = vpop.f32.mrb[0].mxu0
      %v529 = vpop.f32.mrb[0].mxu0
      %v530 = vadd.f32 0.0, %v529
      %v531 = vpop.f32.mrb[0].mxu0
      %532 = vdwg.mxu0
      %v533 = vmul.f32 %v527, 0.17677669
      %v534 = vmul.f32 %v530, 0.17677669
      %v535 = vsel %vm278, %v533, -inf
      %536 = vmax.xlane.f32.xlu0 %v535
      %v537 = vpop.xlane.xlu0 %536
      %v538 = vsel %vm282, %v534, -inf
      %539 = vmax.xlane.f32.xlu0 %v538
      %v540 = vpop.xlane.xlu0 %539
      %v541 = vsub.f32 %v533, %v537
      %v542 = vsub.f32 %v534, %v540
      %v543 = vmul.f32 %v541, 1.442695
      %v544 = vpow.pop %v543
      %v545 = vmul.f32 %v542, 1.442695
      %v546 = vpow.pop %v545
      %v547 = vsel %vm278, %v544, 0.0
      %548 = vadd.xlane.f32.xlu0 %v547
      %v549 = vpop.xlane.xlu0 %548
      %v550 = vsel %vm282, %v546, 0.0
      %551 = vadd.xlane.f32.xlu0 %v550
      %v552 = vpop.xlane.xlu0 %551
      %v553 = vrcp.pop %v549
      %v554 = vrcp.pop %v552
      %v555 = vmul.f32 %v544, %v553
      %v556 = vmul.f32 %v546, %v554
      %v557 = vpack.c.bf16 %v556, %v555
      %558 = vrot.lane.b32.xlu0 %v227, 64
      %v559 = vpop.permute.xlu0 %558
      %v561 = vsel %vm278, %v557, 0
      %v564 = vand.u32 %v559, %v309
      %566 = vmatprep.subr.bf16.mxu0 0
      %567 = vmatpush1.bf16.msra.mxu0 %v564
      %568 = vmatprep.subr.bf16.mxu0 0
      %569 = vmatpush1.bf16.msra.mxu0 0
      %570 = vmatprep.subr.bf16.mxu0 0
      %571 = vmatpush1.bf16.msra.mxu0 0
      %572 = vmatprep.subr.bf16.mxu0 0
      %573 = vmatpush1.bf16.msra.mxu0 0
      %574 = vmatprep.subr.bf16.mxu0 0
      %575 = vmatpush1.bf16.msra.mxu0 0
      %576 = vmatprep.subr.bf16.mxu0 0
      %577 = vmatpush1.bf16.msra.mxu0 0
      %578 = vmatprep.subr.bf16.mxu0 0
      %579 = vmatpush1.bf16.msra.mxu0 0
      %580 = vmatprep.subr.bf16.mxu0 0
      %581 = vmatpush1.bf16.msra.mxu0 0
      %582 = vmatprep.subr.bf16.mxu0 0
      %583 = vmatpush1.bf16.msra.mxu0 0
      %584 = vmatprep.subr.bf16.mxu0 0
      %585 = vmatpush1.bf16.msra.mxu0 0
      %586 = vmatprep.subr.bf16.mxu0 0
      %587 = vmatpush1.bf16.msra.mxu0 0
      %588 = vmatprep.subr.bf16.mxu0 0
      %589 = vmatpush1.bf16.msra.mxu0 0
      %590 = vmatprep.subr.bf16.mxu0 0
      %591 = vmatpush1.bf16.msra.mxu0 0
      %592 = vmatprep.subr.bf16.mxu0 0
      %593 = vmatpush1.bf16.msra.mxu0 0
      %594 = vmatprep.subr.bf16.mxu0 0
      %595 = vmatpush1.bf16.msra.mxu0 0
      %596 = vmatprep.subr.bf16.mxu0 0
      %597 = vmatpush1.bf16.msra.mxu0 0
      %598 = vmatprep.mubr.bf16.mxu0 0
      %599 = vmatmul.mubr.bf16.gmra.mrb[0].mxu0 %v561
      %v600 = vpop.f32.mrb[0].mxu0
      %v601 = vadd.f32 0.0, %v600
      %v602 = vpop.f32.mrb[0].mxu0
      %v603 = vpop.f32.mrb[0].mxu0
      %v604 = vadd.f32 0.0, %v603
      %v605 = vpop.f32.mrb[0].mxu0
      %606 = vdwg.mxu0
      %607 = vrot.lane.b32.xlu0 %v225, 32
      %v608 = vpop.permute.xlu0 %607
      %609 = vrot.lane.b32.xlu0 %v226, 32
      %v610 = vpop.permute.xlu0 %609
      %v612 = vsel %vm228, %v608, 0
      %v615 = vsel %vm228, %v610, 0
      %617 = vmatprep.subr.bf16.mxu0 0
      %618 = vmatpush1.bf16.xpose.msra.mxu0 %v615
      %619 = vmatprep.subr.bf16.mxu0 0
      %620 = vmatpush1.bf16.xpose.msra.mxu0 0
      %621 = vmatprep.subr.bf16.mxu0 0
      %622 = vmatpush1.bf16.xpose.msra.mxu0 0
      %623 = vmatprep.subr.bf16.mxu0 0
      %624 = vmatpush1.bf16.xpose.msra.mxu0 0
      %625 = vmatprep.subr.bf16.mxu0 0
      %626 = vmatpush1.bf16.xpose.msra.mxu0 0
      %627 = vmatprep.subr.bf16.mxu0 0
      %628 = vmatpush1.bf16.xpose.msra.mxu0 0
      %629 = vmatprep.subr.bf16.mxu0 0
      %630 = vmatpush1.bf16.xpose.msra.mxu0 0
      %631 = vmatprep.subr.bf16.mxu0 0
      %632 = vmatpush1.bf16.xpose.msra.mxu0 0
      %633 = vmatprep.subr.bf16.mxu0 0
      %634 = vmatpush1.bf16.xpose.msra.mxu0 0
      %635 = vmatprep.subr.bf16.mxu0 0
      %636 = vmatpush1.bf16.xpose.msra.mxu0 0
      %637 = vmatprep.subr.bf16.mxu0 0
      %638 = vmatpush1.bf16.xpose.msra.mxu0 0
      %639 = vmatprep.subr.bf16.mxu0 0
      %640 = vmatpush1.bf16.xpose.msra.mxu0 0
      %641 = vmatprep.subr.bf16.mxu0 0
      %642 = vmatpush1.bf16.xpose.msra.mxu0 0
      %643 = vmatprep.subr.bf16.mxu0 0
      %644 = vmatpush1.bf16.xpose.msra.mxu0 0
      %645 = vmatprep.subr.bf16.mxu0 0
      %646 = vmatpush1.bf16.xpose.msra.mxu0 0
      %647 = vmatprep.subr.bf16.mxu0 0
      %648 = vmatpush1.bf16.xpose.msra.mxu0 0
      %649 = vmatprep.mubr.bf16.mxu0 0
      %650 = vmatmul.mubr.bf16.gmra.mrb[0].mxu0 %v612
      %v651 = vpop.f32.mrb[0].mxu0
      %v652 = vadd.f32 0.0, %v651
      %v653 = vpop.f32.mrb[0].mxu0
      %v654 = vpop.f32.mrb[0].mxu0
      %v655 = vadd.f32 0.0, %v654
      %v656 = vpop.f32.mrb[0].mxu0
      %657 = vdwg.mxu0
      %v658 = vmul.f32 %v652, 0.17677669
      %v659 = vmul.f32 %v655, 0.17677669
      %v660 = vsel %vm278, %v658, -inf
      %661 = vmax.xlane.f32.xlu0 %v660
      %v662 = vpop.xlane.xlu0 %661
      %v663 = vsel %vm282, %v659, -inf
      %664 = vmax.xlane.f32.xlu0 %v663
      %v665 = vpop.xlane.xlu0 %664
      %v666 = vsub.f32 %v658, %v662
      %v667 = vsub.f32 %v659, %v665
      %v668 = vmul.f32 %v666, 1.442695
      %v669 = vpow.pop %v668
      %v670 = vmul.f32 %v667, 1.442695
      %v671 = vpow.pop %v670
      %v672 = vsel %vm278, %v669, 0.0
      %673 = vadd.xlane.f32.xlu0 %v672
      %v674 = vpop.xlane.xlu0 %673
      %v675 = vsel %vm282, %v671, 0.0
      %676 = vadd.xlane.f32.xlu0 %v675
      %v677 = vpop.xlane.xlu0 %676
      %v678 = vrcp.pop %v674
      %v679 = vrcp.pop %v677
      %v680 = vmul.f32 %v669, %v678
      %v681 = vmul.f32 %v671, %v679
      %v682 = vpack.c.bf16 %v681, %v680
      %683 = vrot.lane.b32.xlu0 %v227, 32
      %v684 = vpop.permute.xlu0 %683
      %v686 = vsel %vm278, %v682, 0
      %v689 = vand.u32 %v684, %v309
      %691 = vmatprep.subr.bf16.mxu0 0
      %692 = vmatpush1.bf16.msra.mxu0 %v689
      %693 = vmatprep.subr.bf16.mxu0 0
      %694 = vmatpush1.bf16.msra.mxu0 0
      %695 = vmatprep.subr.bf16.mxu0 0
      %696 = vmatpush1.bf16.msra.mxu0 0
      %697 = vmatprep.subr.bf16.mxu0 0
      %698 = vmatpush1.bf16.msra.mxu0 0
      %699 = vmatprep.subr.bf16.mxu0 0
      %700 = vmatpush1.bf16.msra.mxu0 0
      %701 = vmatprep.subr.bf16.mxu0 0
      %702 = vmatpush1.bf16.msra.mxu0 0
      %703 = vmatprep.subr.bf16.mxu0 0
      %704 = vmatpush1.bf16.msra.mxu0 0
      %705 = vmatprep.subr.bf16.mxu0 0
      %706 = vmatpush1.bf16.msra.mxu0 0
      %707 = vmatprep.subr.bf16.mxu0 0
      %708 = vmatpush1.bf16.msra.mxu0 0
      %709 = vmatprep.subr.bf16.mxu0 0
      %710 = vmatpush1.bf16.msra.mxu0 0
      %711 = vmatprep.subr.bf16.mxu0 0
      %712 = vmatpush1.bf16.msra.mxu0 0
      %713 = vmatprep.subr.bf16.mxu0 0
      %714 = vmatpush1.bf16.msra.mxu0 0
      %715 = vmatprep.subr.bf16.mxu0 0
      %716 = vmatpush1.bf16.msra.mxu0 0
      %717 = vmatprep.subr.bf16.mxu0 0
      %718 = vmatpush1.bf16.msra.mxu0 0
      %719 = vmatprep.subr.bf16.mxu0 0
      %720 = vmatpush1.bf16.msra.mxu0 0
      %721 = vmatprep.subr.bf16.mxu0 0
      %722 = vmatpush1.bf16.msra.mxu0 0
      %723 = vmatprep.mubr.bf16.mxu0 0
      %724 = vmatmul.mubr.bf16.gmra.mrb[0].mxu0 %v686
      %v725 = vpop.f32.mrb[0].mxu0
      %v726 = vadd.f32 0.0, %v725
      %v727 = vpop.f32.mrb[0].mxu0
      %v728 = vpop.f32.mrb[0].mxu0
      %v729 = vadd.f32 0.0, %v728
      %v730 = vpop.f32.mrb[0].mxu0
      %731 = vdwg.mxu0
      %734 = vrot.lane.b32.xlu0 %v476, 32
      %v735 = vpop.permute.xlu0 %734
      %736 = vrot.lane.b32.xlu0 %v479, 32
      %v737 = vpop.permute.xlu0 %736
      %742 = vrot.lane.b32.xlu0 %v601, 64
      %v743 = vpop.permute.xlu0 %742
      %744 = vrot.lane.b32.xlu0 %v604, 64
      %v745 = vpop.permute.xlu0 %744
      %750 = vrot.lane.b32.xlu0 %v726, 96
      %v751 = vpop.permute.xlu0 %750
      %752 = vrot.lane.b32.xlu0 %v729, 96
      %v753 = vpop.permute.xlu0 %752
      %v756 = vsel %vm228, %v348, %v735
      %v757 = vsel %vm228, %v351, %v737
      %vm758 = vcmask 523264
      %v759 = vsel %vm758, %v756, %v743
      %v760 = vsel %vm758, %v757, %v745
      %vm761 = vcmask 785408
      %v762 = vsel %vm761, %v759, %v751
      %v763 = vsel %vm761, %v760, %v753
      %v764 = vpack.c.bf16 %v763, %v762
      %v765 = vld [vmem:[%s2] sm:$0xff]
      %v766 = vld [vmem:[%s2 + $0x8] sm:$0xff]
      %v767 = vld [vmem:[%s2 + $0x10] sm:$0xff]
      %v768 = vld [vmem:[%s2 + $0x18] sm:$0xff]
      %v769 = vld [vmem:[%s2 + $0x20] sm:$0xff]
      %v770 = vld [vmem:[%s2 + $0x28] sm:$0xff]
      %v771 = vld [vmem:[%s2 + $0x30] sm:$0xff]
      %v772 = vld [vmem:[%s2 + $0x38] sm:$0xff]
      %v773 = vld [vmem:[%s2 + $0x40] sm:$0xff]
      %v774 = vld [vmem:[%s2 + $0x48] sm:$0xff]
      %v775 = vld [vmem:[%s2 + $0x50] sm:$0xff]
      %v776 = vld [vmem:[%s2 + $0x58] sm:$0xff]
      %v777 = vld [vmem:[%s2 + $0x60] sm:$0xff]
      %v778 = vld [vmem:[%s2 + $0x68] sm:$0xff]
      %v779 = vld [vmem:[%s2 + $0x70] sm:$0xff]
      %v780 = vld [vmem:[%s2 + $0x78] sm:$0xff]
      %v781 = vpack.c.bf16 %v766, %v765
      %v782 = vpack.c.bf16 %v768, %v767
      %v783 = vpack.c.bf16 %v770, %v769
      %v784 = vpack.c.bf16 %v772, %v771
      %v785 = vpack.c.bf16 %v774, %v773
      %v786 = vpack.c.bf16 %v776, %v775
      %v787 = vpack.c.bf16 %v778, %v777
      %v788 = vpack.c.bf16 %v780, %v779
      %v789 = vld [vmem:[%s3] sm:$0x1]
      %v791 = vlaneseq
      %v792 = vshrl.u32 %v791, 7
      %v793 = vsub.s32 0, %v792
      %v794 = vrot.slane %v789, %v793
      %796 = vmatprep.subr.bf16.mxu0 0
      %797 = vmatpush1.bf16.msra.mxu0 %v781
      %798 = vmatprep.subr.bf16.mxu0 0
      %799 = vmatpush1.bf16.msra.mxu0 %v782
      %800 = vmatprep.subr.bf16.mxu0 0
      %801 = vmatpush1.bf16.msra.mxu0 %v783
      %802 = vmatprep.subr.bf16.mxu0 0
      %803 = vmatpush1.bf16.msra.mxu0 %v784
      %804 = vmatprep.subr.bf16.mxu0 0
      %805 = vmatpush1.bf16.msra.mxu0 %v785
      %806 = vmatprep.subr.bf16.mxu0 0
      %807 = vmatpush1.bf16.msra.mxu0 %v786
      %808 = vmatprep.subr.bf16.mxu0 0
      %809 = vmatpush1.bf16.msra.mxu0 %v787
      %810 = vmatprep.subr.bf16.mxu0 0
      %811 = vmatpush1.bf16.msra.mxu0 %v788
      %812 = vmatprep.subr.bf16.mxu0 0
      %813 = vmatpush1.bf16.msra.mxu0 0
      %814 = vmatprep.subr.bf16.mxu0 0
      %815 = vmatpush1.bf16.msra.mxu0 0
      %816 = vmatprep.subr.bf16.mxu0 0
      %817 = vmatpush1.bf16.msra.mxu0 0
      %818 = vmatprep.subr.bf16.mxu0 0
      %819 = vmatpush1.bf16.msra.mxu0 0
      %820 = vmatprep.subr.bf16.mxu0 0
      %821 = vmatpush1.bf16.msra.mxu0 0
      %822 = vmatprep.subr.bf16.mxu0 0
      %823 = vmatpush1.bf16.msra.mxu0 0
      %824 = vmatprep.subr.bf16.mxu0 0
      %825 = vmatpush1.bf16.msra.mxu0 0
      %826 = vmatprep.subr.bf16.mxu0 0
      %827 = vmatpush1.bf16.msra.mxu0 0
      %828 = vmatprep.mubr.bf16.mxu0 0
      %829 = vmatmul.mubr.bf16.gmra.mrb[0].mxu0 %v764
      %v830 = vpop.f32.mrb[0].mxu0
      %v831 = vadd.f32 %v794, %v830
      %v832 = vpop.f32.mrb[0].mxu0
      %v833 = vpop.f32.mrb[0].mxu0
      %v834 = vadd.f32 %v794, %v833
      %v835 = vpop.f32.mrb[0].mxu0
      %836 = vdwg.mxu0
      %v837 = vld [vmem:[%s212] sm:$0xff]
      %v838 = vld [vmem:[%s212 + $0x8] sm:$0x1]
      %v839 = vadd.f32 %v831, %v837
      %v840 = vadd.f32 %v834, %v838
      %841 = vst [vmem:[%s217] sm:$0xff] %v839
      %842 = vst [vmem:[%s217 + $0x8] sm:$0x1] %v840
      %p843 = scmp.lt.s32.totalorder %s15, 1
      %s844 = scalar_select %p843, %s15, 1
      %s845 = smul.addr %s844, 2
      %s846 = smul.addr %s845, 8
      %s847 = scalar_lea.vmem %s4, %s846
      // Predicated region
      $region37: #{vision_transformer_forward.22} parent=35 // pred_check
        %p848 = pneg %p127
      $region38: #{vision_transformer_forward.22} parent=35 // pred_check_branch
        %850 = sbr.rel (%p848) target = $region40
      $region39: #{vision_transformer_forward.22} parent=35 // pred_region
        _
      $region40: #{vision_transformer_forward.22} parent=35 // pred_fallthru
        _
    $region36: #{vision_transformer_forward.22} parent=5 // pred_fallthru
      _
    %p851 = scmp.le.s32.totalorder 2, %s10
    // Predicated region
    $region41: #{vision_transformer_forward.22} parent=5 // pred_check
      %p852 = pneg %p851
    $region42: #{vision_transformer_forward.22} parent=5 // pred_check_branch
      %854 = sbr.rel (%p852) target = $region44
    $region43: #{vision_transformer_forward.22} parent=5 // pred_region
      %s855 = ssub.s32 %s10, 2
      // Predicated region
      $region45: #{vision_transformer_forward.22} parent=43 // pred_check
        %p856 = pneg %p133
      $region46: #{vision_transformer_forward.22} parent=43 // pred_check_branch
        %858 = sbr.rel (%p856) target = $region48
      $region47: #{vision_transformer_forward.22} parent=43 // pred_region
        %p859 = scmp.lt.s32.totalorder %s16, 1
        %s860 = scalar_select %p859, %s16, 1
        %s861 = smul.addr %s860, 2
        %s862 = smul.addr %s861, 8
        %s863 = scalar_lea.vmem %s4, %s862
      $region48: #{vision_transformer_forward.22} parent=43 // pred_fallthru
        _
    $region44: #{vision_transformer_forward.22} parent=5 // pred_fallthru
      _
  $region6: #{vision_transformer_forward.22} parent=0 // loop_footer
    %s14 = sadd.s32 1, %s10
  $region7: #{vision_transformer_forward.22} parent=0 // loop_footer_branch
    %9 = sbr.rel target = $region3
  $region8: #{vision_transformer_forward.22} parent=0 // loop_exit
    _

// kernel: vision_transformer_forward.23
$region0: #{vision_transformer_forward.23}
  #allocation0 [shape = 'u32[]', space=smem, size = 0x4, offset = 0x4, fixed_abs, tag = 'smem constant byte address 0x4 - core index']
  #allocation1 [shape = 'u32[144,128]{1,0:T(1,128)}', space=vmem, size = 0x12000, scoped, tag = 'internal scratch']
  %s0 = inlined_call_operand.vmem [shape: f32[24,128], index: 0, kind: input, shape index: {}]
  %s1 = inlined_call_operand.vmem [shape: f32[1,128], index: 1, kind: input, shape index: {}]
  %s2 = inlined_call_operand.vmem [shape: f32[1,128], index: 2, kind: input, shape index: {}]
  %s3 = inlined_call_operand.vmem [shape: f32[128,256], index: 3, kind: input, shape index: {}]
  %s4 = inlined_call_operand.vmem [shape: f32[1,256], index: 4, kind: input, shape index: {}]
  %s5 = inlined_call_operand.vmem [shape: f32[256,128], index: 5, kind: input, shape index: {}]
  %s6 = inlined_call_operand.vmem [shape: f32[1,128], index: 6, kind: input, shape index: {}]
  %s7 = inlined_call_operand.vmem [shape: f32[24,128], index: 7, kind: output, shape index: {}]
  %s8 = sld [smem:[#allocation0]]
  $region38: #{vision_transformer_forward.23} parent=0
    _
  %s10 = ssub.s32 1, %s8
  %s11 = scalar_select 0, %s10, %s8
  // Predicated region
  $region2: #{vision_transformer_forward.23} parent=0 // pred_check
    _
  $region3: #{vision_transformer_forward.23} parent=0 // pred_check_branch
    %13 = sbr.rel (0) target = $region5
  $region4: #{vision_transformer_forward.23} parent=0 // pred_region
    _
  $region5: #{vision_transformer_forward.23} parent=0 // pred_fallthru
    _
  // Predicated region
  $region6: #{vision_transformer_forward.23} parent=0 // pred_check
    _
  $region7: #{vision_transformer_forward.23} parent=0 // pred_check_branch
    %15 = sbr.rel (0) target = $region9
  $region8: #{vision_transformer_forward.23} parent=0 // pred_region
    _
  $region9: #{vision_transformer_forward.23} parent=0 // pred_fallthru
    _
  // Predicated region
  $region10: #{vision_transformer_forward.23} parent=0 // pred_check
    _
  $region11: #{vision_transformer_forward.23} parent=0 // pred_check_branch
    %17 = sbr.rel (0) target = $region13
  $region12: #{vision_transformer_forward.23} parent=0 // pred_region
    _
  $region13: #{vision_transformer_forward.23} parent=0 // pred_fallthru
    _
  // Predicated region
  $region14: #{vision_transformer_forward.23} parent=0 // pred_check
    _
  $region15: #{vision_transformer_forward.23} parent=0 // pred_check_branch
    %19 = sbr.rel (0) target = $region17
  $region16: #{vision_transformer_forward.23} parent=0 // pred_region
    _
  $region17: #{vision_transformer_forward.23} parent=0 // pred_fallthru
    _
  // Predicated region
  $region18: #{vision_transformer_forward.23} parent=0 // pred_check
    _
  $region19: #{vision_transformer_forward.23} parent=0 // pred_check_branch
    %21 = sbr.rel (0) target = $region21
  $region20: #{vision_transformer_forward.23} parent=0 // pred_region
    _
  $region21: #{vision_transformer_forward.23} parent=0 // pred_fallthru
    _
  // Predicated region
  $region22: #{vision_transformer_forward.23} parent=0 // pred_check
    _
  $region23: #{vision_transformer_forward.23} parent=0 // pred_check_branch
    %23 = sbr.rel (0) target = $region25
  $region24: #{vision_transformer_forward.23} parent=0 // pred_region
    _
  $region25: #{vision_transformer_forward.23} parent=0 // pred_fallthru
    _
  // Predicated region
  $region26: #{vision_transformer_forward.23} parent=0 // pred_check
    _
  $region27: #{vision_transformer_forward.23} parent=0 // pred_check_branch
    %25 = sbr.rel (0) target = $region29
  $region28: #{vision_transformer_forward.23} parent=0 // pred_region
    _
  $region29: #{vision_transformer_forward.23} parent=0 // pred_fallthru
    _
  %v27 = vld [vmem:[%s0] sm:$0xff]
  %v28 = vld [vmem:[%s0 + $0x8] sm:$0xff]
  %v29 = vld [vmem:[%s0 + $0x10] sm:$0xff]
  %v30 = vld [vmem:[%s1] sm:$0x1]
  %v31 = vld [vmem:[%s2] sm:$0x1]
  %32 = vadd.xlane.f32.xlu0 %v27
  %v33 = vpop.xlane.xlu0 %32
  %34 = vadd.xlane.f32.xlu0 %v28
  %v35 = vpop.xlane.xlu0 %34
  %36 = vadd.xlane.f32.xlu0 %v29
  %v37 = vpop.xlane.xlu0 %36
  %v38 = vrcp.pop 128.0
  %v39 = vmul.f32 %v33, %v38
  %v40 = vmul.f32 %v35, %v38
  %v41 = vmul.f32 %v37, %v38
  %v42 = vsub.f32 %v27, %v39
  %v43 = vsub.f32 %v28, %v40
  %v44 = vsub.f32 %v29, %v41
  %v45 = vmul.f32 %v42, %v42
  %v46 = vmul.f32 %v43, %v43
  %v47 = vmul.f32 %v44, %v44
  %48 = vadd.xlane.f32.xlu0 %v45
  %v49 = vpop.xlane.xlu0 %48
  %50 = vadd.xlane.f32.xlu0 %v46
  %v51 = vpop.xlane.xlu0 %50
  %52 = vadd.xlane.f32.xlu0 %v47
  %v53 = vpop.xlane.xlu0 %52
  %v54 = vmul.f32 %v49, %v38
  %v55 = vmul.f32 %v51, %v38
  %v56 = vmul.f32 %v53, %v38
  %v57 = vadd.f32 %v54, 1e-05
  %v58 = vadd.f32 %v55, 1e-05
  %v59 = vadd.f32 %v56, 1e-05
  %v60 = vrsqrt.pop %v57
  %v61 = vrsqrt.pop %v58
  %v62 = vrsqrt.pop %v59
  %v63 = vmul.f32 %v42, %v60
  %v64 = vmul.f32 %v43, %v61
  %v65 = vmul.f32 %v44, %v62
  %v67 = vlaneseq
  %v68 = vshrl.u32 %v67, 7
  %v69 = vsub.s32 0, %v68
  %v70 = vrot.slane %v30, %v69
  %v72 = vmul.f32 %v63, %v70
  %v73 = vmul.f32 %v64, %v70
  %v74 = vmul.f32 %v65, %v70
  %v76 = vlaneseq
  %v77 = vshrl.u32 %v76, 7
  %v78 = vsub.s32 0, %v77
  %v79 = vrot.slane %v31, %v78
  %v81 = vadd.f32 %v72, %v79
  %v82 = vadd.f32 %v73, %v79
  %v83 = vadd.f32 %v74, %v79
  %v84 = vpack.c.bf16 %v82, %v81
  %v85 = vpack.c.bf16 %v83, %v83
  %v86 = vld [vmem:[%s3] sm:$0xff]
  %v87 = vld [vmem:[%s3 + $0x8] sm:$0xff]
  %v88 = vld [vmem:[%s3 + $0x10] sm:$0xff]
  %v89 = vld [vmem:[%s3 + $0x18] sm:$0xff]
  %v90 = vld [vmem:[%s3 + $0x20] sm:$0xff]
  %v91 = vld [vmem:[%s3 + $0x28] sm:$0xff]
  %v92 = vld [vmem:[%s3 + $0x30] sm:$0xff]
  %v93 = vld [vmem:[%s3 + $0x38] sm:$0xff]
  %v94 = vld [vmem:[%s3 + $0x40] sm:$0xff]
  %v95 = vld [vmem:[%s3 + $0x48] sm:$0xff]
  %v96 = vld [vmem:[%s3 + $0x50] sm:$0xff]
  %v97 = vld [vmem:[%s3 + $0x58] sm:$0xff]
  %v98 = vld [vmem:[%s3 + $0x60] sm:$0xff]
  %v99 = vld [vmem:[%s3 + $0x68] sm:$0xff]
  %v100 = vld [vmem:[%s3 + $0x70] sm:$0xff]
  %v101 = vld [vmem:[%s3 + $0x78] sm:$0xff]
  %v102 = vld [vmem:[%s3 + $0x80] sm:$0xff]
  %v103 = vld [vmem:[%s3 + $0x88] sm:$0xff]
  %v104 = vld [vmem:[%s3 + $0x90] sm:$0xff]
  %v105 = vld [vmem:[%s3 + $0x98] sm:$0xff]
  %v106 = vld [vmem:[%s3 + $0xa0] sm:$0xff]
  %v107 = vld [vmem:[%s3 + $0xa8] sm:$0xff]
  %v108 = vld [vmem:[%s3 + $0xb0] sm:$0xff]
  %v109 = vld [vmem:[%s3 + $0xb8] sm:$0xff]
  %v110 = vld [vmem:[%s3 + $0xc0] sm:$0xff]
  %v111 = vld [vmem:[%s3 + $0xc8] sm:$0xff]
  %v112 = vld [vmem:[%s3 + $0xd0] sm:$0xff]
  %v113 = vld [vmem:[%s3 + $0xd8] sm:$0xff]
  %v114 = vld [vmem:[%s3 + $0xe0] sm:$0xff]
  %v115 = vld [vmem:[%s3 + $0xe8] sm:$0xff]
  %v116 = vld [vmem:[%s3 + $0xf0] sm:$0xff]
  %v117 = vld [vmem:[%s3 + $0xf8] sm:$0xff]
  %v118 = vpack.c.bf16 %v88, %v86
  %v119 = vpack.c.bf16 %v89, %v87
  %v120 = vpack.c.bf16 %v92, %v90
  %v121 = vpack.c.bf16 %v93, %v91
  %v122 = vpack.c.bf16 %v96, %v94
  %v123 = vpack.c.bf16 %v97, %v95
  %v124 = vpack.c.bf16 %v100, %v98
  %v125 = vpack.c.bf16 %v101, %v99
  %v126 = vpack.c.bf16 %v104, %v102
  %v127 = vpack.c.bf16 %v105, %v103
  %v128 = vpack.c.bf16 %v108, %v106
  %v129 = vpack.c.bf16 %v109, %v107
  %v130 = vpack.c.bf16 %v112, %v110
  %v131 = vpack.c.bf16 %v113, %v111
  %v132 = vpack.c.bf16 %v116, %v114
  %v133 = vpack.c.bf16 %v117, %v115
  %v134 = vld [vmem:[%s4] sm:$0x3]
  %v136 = vlaneseq
  %v137 = vshrl.u32 %v136, 7
  %v138 = vsub.s32 0, %v137
  %v139 = vrot.slane %v134, %v138
  %v140 = vlaneseq
  %v141 = vshrl.u32 %v140, 7
  %v142 = vsub.s32 1, %v141
  %v143 = vrot.slane %v134, %v142
  %146 = vmatprep.subr.bf16.mxu0 %v119
  %147 = vmatpush1.bf16.msra.mxu0 %v118
  %148 = vmatprep.subr.bf16.mxu0 %v121
  %149 = vmatpush1.bf16.msra.mxu0 %v120
  %150 = vmatprep.subr.bf16.mxu0 %v123
  %151 = vmatpush1.bf16.msra.mxu0 %v122
  %152 = vmatprep.subr.bf16.mxu0 %v125
  %153 = vmatpush1.bf16.msra.mxu0 %v124
  %154 = vmatprep.subr.bf16.mxu0 %v127
  %155 = vmatpush1.bf16.msra.mxu0 %v126
  %156 = vmatprep.subr.bf16.mxu0 %v129
  %157 = vmatpush1.bf16.msra.mxu0 %v128
  %158 = vmatprep.subr.bf16.mxu0 %v131
  %159 = vmatpush1.bf16.msra.mxu0 %v130
  %160 = vmatprep.subr.bf16.mxu0 %v133
  %161 = vmatpush1.bf16.msra.mxu0 %v132
  %162 = vmatprep.subr.bf16.mxu0 0
  %163 = vmatpush1.bf16.msra.mxu0 0
  %164 = vmatprep.subr.bf16.mxu0 0
  %165 = vmatpush1.bf16.msra.mxu0 0
  %166 = vmatprep.subr.bf16.mxu0 0
  %167 = vmatpush1.bf16.msra.mxu0 0
  %168 = vmatprep.subr.bf16.mxu0 0
  %169 = vmatpush1.bf16.msra.mxu0 0
  %170 = vmatprep.subr.bf16.mxu0 0
  %171 = vmatpush1.bf16.msra.mxu0 0
  %172 = vmatprep.subr.bf16.mxu0 0
  %173 = vmatpush1.bf16.msra.mxu0 0
  %174 = vmatprep.subr.bf16.mxu0 0
  %175 = vmatpush1.bf16.msra.mxu0 0
  %176 = vmatprep.subr.bf16.mxu0 0
  %177 = vmatpush1.bf16.msra.mxu0 0
  %178 = vmatprep.mubr.bf16.mxu0 0
  %179 = vmatmul.mubr.bf16.gmra.mrb[0].mxu0 %v84
  %v180 = vpop.f32.mrb[0].mxu0
  %v181 = vadd.f32 %v139, %v180
  %v182 = vpop.f32.mrb[0].mxu0
  %v183 = vadd.f32 %v143, %v182
  %v184 = vpop.f32.mrb[0].mxu0
  %v185 = vadd.f32 %v139, %v184
  %v186 = vpop.f32.mrb[0].mxu0
  %v187 = vadd.f32 %v143, %v186
  %188 = vmatprep.mubr.bf16.mxu0 0
  %189 = vmatmul.mubr.bf16.gmra.mrb[0].mxu0 %v85
  %v190 = vpop.f32.mrb[0].mxu0
  %v191 = vadd.f32 %v139, %v190
  %v192 = vpop.f32.mrb[0].mxu0
  %v193 = vadd.f32 %v143, %v192
  %v194 = vpop.f32.mrb[0].mxu0
  %v195 = vpop.f32.mrb[0].mxu0
  %196 = vdwg.mxu0
  %v197 = vmul.f32 %v181, 0.5
  %v198 = vmul.f32 %v183, 0.5
  %v199 = vmul.f32 %v185, 0.5
  %v200 = vmul.f32 %v187, 0.5
  %v201 = vmul.f32 %v191, 0.5
  %v202 = vmul.f32 %v193, 0.5
  %v203 = vmul.f32 %v181, 0.044715
  %v204 = vmul.f32 %v183, 0.044715
  %v205 = vmul.f32 %v185, 0.044715
  %v206 = vmul.f32 %v187, 0.044715
  %v207 = vmul.f32 %v191, 0.044715
  %v208 = vmul.f32 %v193, 0.044715
  %v209 = vmul.f32 %v203, %v181
  %v210 = vmul.f32 %v204, %v183
  %v211 = vmul.f32 %v205, %v185
  %v212 = vmul.f32 %v206, %v187
  %v213 = vmul.f32 %v207, %v191
  %v214 = vmul.f32 %v208, %v193
  %v215 = vmul.f32 %v209, %v181
  %v216 = vmul.f32 %v210, %v183
  %v217 = vmul.f32 %v211, %v185
  %v218 = vmul.f32 %v212, %v187
  %v219 = vmul.f32 %v213, %v191
  %v220 = vmul.f32 %v214, %v193
  %v221 = vadd.f32 %v181, %v215
  %v222 = vadd.f32 %v183, %v216
  %v223 = vadd.f32 %v185, %v217
  %v224 = vadd.f32 %v187, %v218
  %v225 = vadd.f32 %v191, %v219
  %v226 = vadd.f32 %v193, %v220
  %v227 = vmul.f32 %v221, 0.7978846
  %v228 = vmul.f32 %v222, 0.7978846
  %v229 = vmul.f32 %v223, 0.7978846
  %v230 = vmul.f32 %v224, 0.7978846
  %v231 = vmul.f32 %v225, 0.7978846
  %v232 = vmul.f32 %v226, 0.7978846
  %v233 = vtanh.pop %v227
  %v234 = vtanh.pop %v228
  %v235 = vtanh.pop %v229
  %v236 = vtanh.pop %v230
  %v237 = vtanh.pop %v231
  %v238 = vtanh.pop %v232
  %v239 = vadd.f32 %v233, 1.0
  %v240 = vadd.f32 %v234, 1.0
  %v241 = vadd.f32 %v235, 1.0
  %v242 = vadd.f32 %v236, 1.0
  %v243 = vadd.f32 %v237, 1.0
  %v244 = vadd.f32 %v238, 1.0
  %v245 = vmul.f32 %v197, %v239
  %v246 = vmul.f32 %v198, %v240
  %v247 = vmul.f32 %v199, %v241
  %v248 = vmul.f32 %v200, %v242
  %v249 = vmul.f32 %v201, %v243
  %v250 = vmul.f32 %v202, %v244
  %v251 = vpack.c.bf16 %v247, %v245
  %v252 = vpack.c.bf16 %v248, %v246
  %v253 = vpack.c.bf16 %v249, %v249
  %v254 = vpack.c.bf16 %v250, %v250
  %v255 = vld [vmem:[%s5] sm:$0xff]
  %v256 = vld [vmem:[%s5 + $0x8] sm:$0xff]
  %v257 = vld [vmem:[%s5 + $0x10] sm:$0xff]
  %v258 = vld [vmem:[%s5 + $0x18] sm:$0xff]
  %v259 = vld [vmem:[%s5 + $0x20] sm:$0xff]
  %v260 = vld [vmem:[%s5 + $0x28] sm:$0xff]
  %v261 = vld [vmem:[%s5 + $0x30] sm:$0xff]
  %v262 = vld [vmem:[%s5 + $0x38] sm:$0xff]
  %v263 = vld [vmem:[%s5 + $0x40] sm:$0xff]
  %v264 = vld [vmem:[%s5 + $0x48] sm:$0xff]
  %v265 = vld [vmem:[%s5 + $0x50] sm:$0xff]
  %v266 = vld [vmem:[%s5 + $0x58] sm:$0xff]
  %v267 = vld [vmem:[%s5 + $0x60] sm:$0xff]
  %v268 = vld [vmem:[%s5 + $0x68] sm:$0xff]
  %v269 = vld [vmem:[%s5 + $0x70] sm:$0xff]
  %v270 = vld [vmem:[%s5 + $0x78] sm:$0xff]
  %v271 = vld [vmem:[%s5 + $0x80] sm:$0xff]
  %v272 = vld [vmem:[%s5 + $0x88] sm:$0xff]
  %v273 = vld [vmem:[%s5 + $0x90] sm:$0xff]
  %v274 = vld [vmem:[%s5 + $0x98] sm:$0xff]
  %v275 = vld [vmem:[%s5 + $0xa0] sm:$0xff]
  %v276 = vld [vmem:[%s5 + $0xa8] sm:$0xff]
  %v277 = vld [vmem:[%s5 + $0xb0] sm:$0xff]
  %v278 = vld [vmem:[%s5 + $0xb8] sm:$0xff]
  %v279 = vld [vmem:[%s5 + $0xc0] sm:$0xff]
  %v280 = vld [vmem:[%s5 + $0xc8] sm:$0xff]
  %v281 = vld [vmem:[%s5 + $0xd0] sm:$0xff]
  %v282 = vld [vmem:[%s5 + $0xd8] sm:$0xff]
  %v283 = vld [vmem:[%s5 + $0xe0] sm:$0xff]
  %v284 = vld [vmem:[%s5 + $0xe8] sm:$0xff]
  %v285 = vld [vmem:[%s5 + $0xf0] sm:$0xff]
  %v286 = vld [vmem:[%s5 + $0xf8] sm:$0xff]
  %v287 = vpack.c.bf16 %v256, %v255
  %v288 = vpack.c.bf16 %v258, %v257
  %v289 = vpack.c.bf16 %v260, %v259
  %v290 = vpack.c.bf16 %v262, %v261
  %v291 = vpack.c.bf16 %v264, %v263
  %v292 = vpack.c.bf16 %v266, %v265
  %v293 = vpack.c.bf16 %v268, %v267
  %v294 = vpack.c.bf16 %v270, %v269
  %v295 = vpack.c.bf16 %v272, %v271
  %v296 = vpack.c.bf16 %v274, %v273
  %v297 = vpack.c.bf16 %v276, %v275
  %v298 = vpack.c.bf16 %v278, %v277
  %v299 = vpack.c.bf16 %v280, %v279
  %v300 = vpack.c.bf16 %v282, %v281
  %v301 = vpack.c.bf16 %v284, %v283
  %v302 = vpack.c.bf16 %v286, %v285
  %v303 = vld [vmem:[%s6] sm:$0x1]
  %v305 = vlaneseq
  %v306 = vshrl.u32 %v305, 7
  %v307 = vsub.s32 0, %v306
  %v308 = vrot.slane %v303, %v307
  %310 = vmatprep.subr.bf16.mxu0 0
  %311 = vmatpush1.bf16.msra.mxu0 %v287
  %312 = vmatprep.subr.bf16.mxu0 0
  %313 = vmatpush1.bf16.msra.mxu0 %v288
  %314 = vmatprep.subr.bf16.mxu0 0
  %315 = vmatpush1.bf16.msra.mxu0 %v289
  %316 = vmatprep.subr.bf16.mxu0 0
  %317 = vmatpush1.bf16.msra.mxu0 %v290
  %318 = vmatprep.subr.bf16.mxu0 0
  %319 = vmatpush1.bf16.msra.mxu0 %v291
  %320 = vmatprep.subr.bf16.mxu0 0
  %321 = vmatpush1.bf16.msra.mxu0 %v292
  %322 = vmatprep.subr.bf16.mxu0 0
  %323 = vmatpush1.bf16.msra.mxu0 %v293
  %324 = vmatprep.subr.bf16.mxu0 0
  %325 = vmatpush1.bf16.msra.mxu0 %v294
  %326 = vmatprep.subr.bf16.mxu0 0
  %327 = vmatpush1.bf16.msra.mxu0 %v295
  %328 = vmatprep.subr.bf16.mxu0 0
  %329 = vmatpush1.bf16.msra.mxu0 %v296
  %330 = vmatprep.subr.bf16.mxu0 0
  %331 = vmatpush1.bf16.msra.mxu0 %v297
  %332 = vmatprep.subr.bf16.mxu0 0
  %333 = vmatpush1.bf16.msra.mxu0 %v298
  %334 = vmatprep.subr.bf16.mxu0 0
  %335 = vmatpush1.bf16.msra.mxu0 %v299
  %336 = vmatprep.subr.bf16.mxu0 0
  %337 = vmatpush1.bf16.msra.mxu0 %v300
  %338 = vmatprep.subr.bf16.mxu0 0
  %339 = vmatpush1.bf16.msra.mxu0 %v301
  %340 = vmatprep.subr.bf16.mxu0 0
  %341 = vmatpush1.bf16.msra.mxu0 %v302
  %342 = vmatprep.mubr.bf16.mxu0 %v252
  %343 = vmatmul.mubr.bf16.gmra.mrb[0].mxu0 %v251
  %v344 = vpop.f32.mrb[0].mxu0
  %v345 = vadd.f32 %v308, %v344
  %v346 = vpop.f32.mrb[0].mxu0
  %v347 = vpop.f32.mrb[0].mxu0
  %v348 = vadd.f32 %v308, %v347
  %v349 = vpop.f32.mrb[0].mxu0
  %350 = vmatprep.mubr.bf16.mxu0 %v254
  %351 = vmatmul.mubr.bf16.gmra.mrb[0].mxu0 %v253
  %v352 = vpop.f32.mrb[0].mxu0
  %v353 = vadd.f32 %v308, %v352
  %v354 = vpop.f32.mrb[0].mxu0
  %v355 = vpop.f32.mrb[0].mxu0
  %v356 = vpop.f32.mrb[0].mxu0
  %357 = vdwg.mxu0
  %v358 = vadd.f32 %v345, %v27
  %v359 = vadd.f32 %v348, %v28
  %v360 = vadd.f32 %v353, %v29
  %361 = vst [vmem:[%s7] sm:$0xff] %v358
  %362 = vst [vmem:[%s7 + $0x8] sm:$0xff] %v359
  %363 = vst [vmem:[%s7 + $0x10] sm:$0xff] %v360
  // Predicated region
  $region30: #{vision_transformer_forward.23} parent=0 // pred_check
    _
  $region31: #{vision_transformer_forward.23} parent=0 // pred_check_branch
    %365 = sbr.rel (0) target = $region33
  $region32: #{vision_transformer_forward.23} parent=0 // pred_region
    _
  $region33: #{vision_transformer_forward.23} parent=0 // pred_fallthru
    _
  // Predicated region
  $region34: #{vision_transformer_forward.23} parent=0 // pred_check
    _
  $region35: #{vision_transformer_forward.23} parent=0 // pred_check_branch
    %367 = sbr.rel (0) target = $region37
  $region36: #{vision_transformer_forward.23} parent=0 // pred_region
    _
  $region37: #{vision_transformer_forward.23} parent=0 // pred_fallthru
    _

// kernel: vision_transformer_forward.27
$region0: #{vision_transformer_forward.27}
  #allocation0 [shape = 'u32[]', space=smem, size = 0x4, offset = 0x4, fixed_abs, tag = 'smem constant byte address 0x4 - core index']
  #allocation1 [shape = 'u32[144,128]{1,0:T(1,128)}', space=vmem, size = 0x12000, scoped, tag = 'internal scratch']
  %s0 = inlined_call_operand.vmem [shape: f32[8,128], index: 0, kind: input, shape index: {}]
  %s1 = inlined_call_operand.vmem [shape: f32[1,128], index: 1, kind: input, shape index: {}]
  %s2 = inlined_call_operand.vmem [shape: f32[1,128], index: 2, kind: input, shape index: {}]
  %s3 = inlined_call_operand.vmem [shape: f32[128,512], index: 3, kind: input, shape index: {}]
  %s4 = inlined_call_operand.vmem [shape: f32[1,512], index: 4, kind: input, shape index: {}]
  %s5 = inlined_call_operand.vmem [shape: f32[8,512], index: 5, kind: output, shape index: {}]
  %s6 = sld [smem:[#allocation0]]
  $region30: #{vision_transformer_forward.27} parent=0
    _
  %s8 = ssub.s32 1, %s6
  %s9 = scalar_select 0, %s8, %s6
  // Predicated region
  $region2: #{vision_transformer_forward.27} parent=0 // pred_check
    _
  $region3: #{vision_transformer_forward.27} parent=0 // pred_check_branch
    %11 = sbr.rel (0) target = $region5
  $region4: #{vision_transformer_forward.27} parent=0 // pred_region
    _
  $region5: #{vision_transformer_forward.27} parent=0 // pred_fallthru
    _
  // Predicated region
  $region6: #{vision_transformer_forward.27} parent=0 // pred_check
    _
  $region7: #{vision_transformer_forward.27} parent=0 // pred_check_branch
    %13 = sbr.rel (0) target = $region9
  $region8: #{vision_transformer_forward.27} parent=0 // pred_region
    _
  $region9: #{vision_transformer_forward.27} parent=0 // pred_fallthru
    _
  // Predicated region
  $region10: #{vision_transformer_forward.27} parent=0 // pred_check
    _
  $region11: #{vision_transformer_forward.27} parent=0 // pred_check_branch
    %15 = sbr.rel (0) target = $region13
  $region12: #{vision_transformer_forward.27} parent=0 // pred_region
    _
  $region13: #{vision_transformer_forward.27} parent=0 // pred_fallthru
    _
  // Predicated region
  $region14: #{vision_transformer_forward.27} parent=0 // pred_check
    _
  $region15: #{vision_transformer_forward.27} parent=0 // pred_check_branch
    %17 = sbr.rel (0) target = $region17
  $region16: #{vision_transformer_forward.27} parent=0 // pred_region
    _
  $region17: #{vision_transformer_forward.27} parent=0 // pred_fallthru
    _
  // Predicated region
  $region18: #{vision_transformer_forward.27} parent=0 // pred_check
    _
  $region19: #{vision_transformer_forward.27} parent=0 // pred_check_branch
    %19 = sbr.rel (0) target = $region21
  $region20: #{vision_transformer_forward.27} parent=0 // pred_region
    _
  $region21: #{vision_transformer_forward.27} parent=0 // pred_fallthru
    _
  %v21 = vld [vmem:[%s0] sm:$0xff]
  %v22 = vld [vmem:[%s1] sm:$0x1]
  %v23 = vld [vmem:[%s2] sm:$0x1]
  %24 = vadd.xlane.f32.xlu0 %v21
  %v25 = vpop.xlane.xlu0 %24
  %v26 = vrcp.pop 128.0
  %v27 = vmul.f32 %v25, %v26
  %v28 = vsub.f32 %v21, %v27
  %v29 = vmul.f32 %v28, %v28
  %30 = vadd.xlane.f32.xlu0 %v29
  %v31 = vpop.xlane.xlu0 %30
  %v32 = vmul.f32 %v31, %v26
  %v33 = vadd.f32 %v32, 1e-05
  %v34 = vrsqrt.pop %v33
  %v35 = vmul.f32 %v28, %v34
  %v37 = vlaneseq
  %v38 = vshrl.u32 %v37, 7
  %v39 = vsub.s32 0, %v38
  %v40 = vrot.slane %v22, %v39
  %v42 = vmul.f32 %v35, %v40
  %v44 = vlaneseq
  %v45 = vshrl.u32 %v44, 7
  %v46 = vsub.s32 0, %v45
  %v47 = vrot.slane %v23, %v46
  %v49 = vadd.f32 %v42, %v47
  %v50 = vpack.c.bf16 %v49, %v49
  %v51 = vld [vmem:[%s3] sm:$0xff]
  %v52 = vld [vmem:[%s3 + $0x8] sm:$0xff]
  %v53 = vld [vmem:[%s3 + $0x10] sm:$0xff]
  %v54 = vld [vmem:[%s3 + $0x18] sm:$0xff]
  %v55 = vld [vmem:[%s3 + $0x20] sm:$0xff]
  %v56 = vld [vmem:[%s3 + $0x28] sm:$0xff]
  %v57 = vld [vmem:[%s3 + $0x30] sm:$0xff]
  %v58 = vld [vmem:[%s3 + $0x38] sm:$0xff]
  %v59 = vld [vmem:[%s3 + $0x40] sm:$0xff]
  %v60 = vld [vmem:[%s3 + $0x48] sm:$0xff]
  %v61 = vld [vmem:[%s3 + $0x50] sm:$0xff]
  %v62 = vld [vmem:[%s3 + $0x58] sm:$0xff]
  %v63 = vld [vmem:[%s3 + $0x60] sm:$0xff]
  %v64 = vld [vmem:[%s3 + $0x68] sm:$0xff]
  %v65 = vld [vmem:[%s3 + $0x70] sm:$0xff]
  %v66 = vld [vmem:[%s3 + $0x78] sm:$0xff]
  %v67 = vld [vmem:[%s3 + $0x80] sm:$0xff]
  %v68 = vld [vmem:[%s3 + $0x88] sm:$0xff]
  %v69 = vld [vmem:[%s3 + $0x90] sm:$0xff]
  %v70 = vld [vmem:[%s3 + $0x98] sm:$0xff]
  %v71 = vld [vmem:[%s3 + $0xa0] sm:$0xff]
  %v72 = vld [vmem:[%s3 + $0xa8] sm:$0xff]
  %v73 = vld [vmem:[%s3 + $0xb0] sm:$0xff]
  %v74 = vld [vmem:[%s3 + $0xb8] sm:$0xff]
  %v75 = vld [vmem:[%s3 + $0xc0] sm:$0xff]
  %v76 = vld [vmem:[%s3 + $0xc8] sm:$0xff]
  %v77 = vld [vmem:[%s3 + $0xd0] sm:$0xff]
  %v78 = vld [vmem:[%s3 + $0xd8] sm:$0xff]
  %v79 = vld [vmem:[%s3 + $0xe0] sm:$0xff]
  %v80 = vld [vmem:[%s3 + $0xe8] sm:$0xff]
  %v81 = vld [vmem:[%s3 + $0xf0] sm:$0xff]
  %v82 = vld [vmem:[%s3 + $0xf8] sm:$0xff]
  %v83 = vld [vmem:[%s3 + $0x100] sm:$0xff]
  %v84 = vld [vmem:[%s3 + $0x108] sm:$0xff]
  %v85 = vld [vmem:[%s3 + $0x110] sm:$0xff]
  %v86 = vld [vmem:[%s3 + $0x118] sm:$0xff]
  %v87 = vld [vmem:[%s3 + $0x120] sm:$0xff]
  %v88 = vld [vmem:[%s3 + $0x128] sm:$0xff]
  %v89 = vld [vmem:[%s3 + $0x130] sm:$0xff]
  %v90 = vld [vmem:[%s3 + $0x138] sm:$0xff]
  %v91 = vld [vmem:[%s3 + $0x140] sm:$0xff]
  %v92 = vld [vmem:[%s3 + $0x148] sm:$0xff]
  %v93 = vld [vmem:[%s3 + $0x150] sm:$0xff]
  %v94 = vld [vmem:[%s3 + $0x158] sm:$0xff]
  %v95 = vld [vmem:[%s3 + $0x160] sm:$0xff]
  %v96 = vld [vmem:[%s3 + $0x168] sm:$0xff]
  %v97 = vld [vmem:[%s3 + $0x170] sm:$0xff]
  %v98 = vld [vmem:[%s3 + $0x178] sm:$0xff]
  %v99 = vld [vmem:[%s3 + $0x180] sm:$0xff]
  %v100 = vld [vmem:[%s3 + $0x188] sm:$0xff]
  %v101 = vld [vmem:[%s3 + $0x190] sm:$0xff]
  %v102 = vld [vmem:[%s3 + $0x198] sm:$0xff]
  %v103 = vld [vmem:[%s3 + $0x1a0] sm:$0xff]
  %v104 = vld [vmem:[%s3 + $0x1a8] sm:$0xff]
  %v105 = vld [vmem:[%s3 + $0x1b0] sm:$0xff]
  %v106 = vld [vmem:[%s3 + $0x1b8] sm:$0xff]
  %v107 = vld [vmem:[%s3 + $0x1c0] sm:$0xff]
  %v108 = vld [vmem:[%s3 + $0x1c8] sm:$0xff]
  %v109 = vld [vmem:[%s3 + $0x1d0] sm:$0xff]
  %v110 = vld [vmem:[%s3 + $0x1d8] sm:$0xff]
  %v111 = vld [vmem:[%s3 + $0x1e0] sm:$0xff]
  %v112 = vld [vmem:[%s3 + $0x1e8] sm:$0xff]
  %v113 = vld [vmem:[%s3 + $0x1f0] sm:$0xff]
  %v114 = vld [vmem:[%s3 + $0x1f8] sm:$0xff]
  %v115 = vpack.c.bf16 %v55, %v51
  %v116 = vpack.c.bf16 %v56, %v52
  %v117 = vpack.c.bf16 %v57, %v53
  %v118 = vpack.c.bf16 %v58, %v54
  %v119 = vpack.c.bf16 %v63, %v59
  %v120 = vpack.c.bf16 %v64, %v60
  %v121 = vpack.c.bf16 %v65, %v61
  %v122 = vpack.c.bf16 %v66, %v62
  %v123 = vpack.c.bf16 %v71, %v67
  %v124 = vpack.c.bf16 %v72, %v68
  %v125 = vpack.c.bf16 %v73, %v69
  %v126 = vpack.c.bf16 %v74, %v70
  %v127 = vpack.c.bf16 %v79, %v75
  %v128 = vpack.c.bf16 %v80, %v76
  %v129 = vpack.c.bf16 %v81, %v77
  %v130 = vpack.c.bf16 %v82, %v78
  %v131 = vpack.c.bf16 %v87, %v83
  %v132 = vpack.c.bf16 %v88, %v84
  %v133 = vpack.c.bf16 %v89, %v85
  %v134 = vpack.c.bf16 %v90, %v86
  %v135 = vpack.c.bf16 %v95, %v91
  %v136 = vpack.c.bf16 %v96, %v92
  %v137 = vpack.c.bf16 %v97, %v93
  %v138 = vpack.c.bf16 %v98, %v94
  %v139 = vpack.c.bf16 %v103, %v99
  %v140 = vpack.c.bf16 %v104, %v100
  %v141 = vpack.c.bf16 %v105, %v101
  %v142 = vpack.c.bf16 %v106, %v102
  %v143 = vpack.c.bf16 %v111, %v107
  %v144 = vpack.c.bf16 %v112, %v108
  %v145 = vpack.c.bf16 %v113, %v109
  %v146 = vpack.c.bf16 %v114, %v110
  %v147 = vld [vmem:[%s4] sm:$0xf]
  %v149 = vlaneseq
  %v150 = vshrl.u32 %v149, 7
  %v151 = vsub.s32 0, %v150
  %v152 = vrot.slane %v147, %v151
  %v153 = vlaneseq
  %v154 = vshrl.u32 %v153, 7
  %v155 = vsub.s32 1, %v154
  %v156 = vrot.slane %v147, %v155
  %v157 = vlaneseq
  %v158 = vshrl.u32 %v157, 7
  %v159 = vsub.s32 2, %v158
  %v160 = vrot.slane %v147, %v159
  %v161 = vlaneseq
  %v162 = vshrl.u32 %v161, 7
  %v163 = vsub.s32 3, %v162
  %v164 = vrot.slane %v147, %v163
  %169 = vmatprep.subr.bf16.mxu0 %v116
  %170 = vmatpush1.bf16.msra.mxu0 %v115
  %171 = vmatprep.subr.bf16.mxu0 %v120
  %172 = vmatpush1.bf16.msra.mxu0 %v119
  %173 = vmatprep.subr.bf16.mxu0 %v124
  %174 = vmatpush1.bf16.msra.mxu0 %v123
  %175 = vmatprep.subr.bf16.mxu0 %v128
  %176 = vmatpush1.bf16.msra.mxu0 %v127
  %177 = vmatprep.subr.bf16.mxu0 %v132
  %178 = vmatpush1.bf16.msra.mxu0 %v131
  %179 = vmatprep.subr.bf16.mxu0 %v136
  %180 = vmatpush1.bf16.msra.mxu0 %v135
  %181 = vmatprep.subr.bf16.mxu0 %v140
  %182 = vmatpush1.bf16.msra.mxu0 %v139
  %183 = vmatprep.subr.bf16.mxu0 %v144
  %184 = vmatpush1.bf16.msra.mxu0 %v143
  %185 = vmatprep.subr.bf16.mxu0 0
  %186 = vmatpush1.bf16.msra.mxu0 0
  %187 = vmatprep.subr.bf16.mxu0 0
  %188 = vmatpush1.bf16.msra.mxu0 0
  %189 = vmatprep.subr.bf16.mxu0 0
  %190 = vmatpush1.bf16.msra.mxu0 0
  %191 = vmatprep.subr.bf16.mxu0 0
  %192 = vmatpush1.bf16.msra.mxu0 0
  %193 = vmatprep.subr.bf16.mxu0 0
  %194 = vmatpush1.bf16.msra.mxu0 0
  %195 = vmatprep.subr.bf16.mxu0 0
  %196 = vmatpush1.bf16.msra.mxu0 0
  %197 = vmatprep.subr.bf16.mxu0 0
  %198 = vmatpush1.bf16.msra.mxu0 0
  %199 = vmatprep.subr.bf16.mxu0 0
  %200 = vmatpush1.bf16.msra.mxu0 0
  %201 = vmatprep.mubr.bf16.mxu0 0
  %202 = vmatmul.mubr.bf16.gmra.mrb[0].mxu0 %v50
  %v203 = vpop.f32.mrb[0].mxu0
  %v204 = vadd.f32 %v152, %v203
  %v205 = vpop.f32.mrb[0].mxu0
  %v206 = vadd.f32 %v156, %v205
  %v207 = vpop.f32.mrb[0].mxu0
  %v208 = vpop.f32.mrb[0].mxu0
  %209 = vdwg.mxu0
  %210 = vmatprep.subr.bf16.mxu0 %v118
  %211 = vmatpush1.bf16.msra.mxu0 %v117
  %212 = vmatprep.subr.bf16.mxu0 %v122
  %213 = vmatpush1.bf16.msra.mxu0 %v121
  %214 = vmatprep.subr.bf16.mxu0 %v126
  %215 = vmatpush1.bf16.msra.mxu0 %v125
  %216 = vmatprep.subr.bf16.mxu0 %v130
  %217 = vmatpush1.bf16.msra.mxu0 %v129
  %218 = vmatprep.subr.bf16.mxu0 %v134
  %219 = vmatpush1.bf16.msra.mxu0 %v133
  %220 = vmatprep.subr.bf16.mxu0 %v138
  %221 = vmatpush1.bf16.msra.mxu0 %v137
  %222 = vmatprep.subr.bf16.mxu0 %v142
  %223 = vmatpush1.bf16.msra.mxu0 %v141
  %224 = vmatprep.subr.bf16.mxu0 %v146
  %225 = vmatpush1.bf16.msra.mxu0 %v145
  %226 = vmatprep.subr.bf16.mxu0 0
  %227 = vmatpush1.bf16.msra.mxu0 0
  %228 = vmatprep.subr.bf16.mxu0 0
  %229 = vmatpush1.bf16.msra.mxu0 0
  %230 = vmatprep.subr.bf16.mxu0 0
  %231 = vmatpush1.bf16.msra.mxu0 0
  %232 = vmatprep.subr.bf16.mxu0 0
  %233 = vmatpush1.bf16.msra.mxu0 0
  %234 = vmatprep.subr.bf16.mxu0 0
  %235 = vmatpush1.bf16.msra.mxu0 0
  %236 = vmatprep.subr.bf16.mxu0 0
  %237 = vmatpush1.bf16.msra.mxu0 0
  %238 = vmatprep.subr.bf16.mxu0 0
  %239 = vmatpush1.bf16.msra.mxu0 0
  %240 = vmatprep.subr.bf16.mxu0 0
  %241 = vmatpush1.bf16.msra.mxu0 0
  %242 = vmatprep.mubr.bf16.mxu0 0
  %243 = vmatmul.mubr.bf16.gmra.mrb[0].mxu0 %v50
  %v244 = vpop.f32.mrb[0].mxu0
  %v245 = vadd.f32 %v160, %v244
  %v246 = vpop.f32.mrb[0].mxu0
  %v247 = vadd.f32 %v164, %v246
  %v248 = vpop.f32.mrb[0].mxu0
  %v249 = vpop.f32.mrb[0].mxu0
  %250 = vdwg.mxu0
  %vm251 = vcmp.gt.f32.partialorder %v204, 0.0
  %vm252 = vcmp.gt.f32.partialorder %v206, 0.0
  %vm253 = vcmp.gt.f32.partialorder %v245, 0.0
  %vm254 = vcmp.gt.f32.partialorder %v247, 0.0
  %v255 = vmin.f32 %v204, 0.0
  %v256 = vmin.f32 %v206, 0.0
  %v257 = vmin.f32 %v245, 0.0
  %v258 = vmin.f32 %v247, 0.0
  %v259 = vmul.f32 %v255, 1.442695
  %v260 = vpow.pop %v259
  %v261 = vmul.f32 %v256, 1.442695
  %v262 = vpow.pop %v261
  %v263 = vmul.f32 %v257, 1.442695
  %v264 = vpow.pop %v263
  %v265 = vmul.f32 %v258, 1.442695
  %v266 = vpow.pop %v265
  %v267 = vsub.f32 %v260, 1.0
  %v268 = vsub.f32 %v262, 1.0
  %v269 = vsub.f32 %v264, 1.0
  %v270 = vsub.f32 %v266, 1.0
  %v271 = vsel %vm251, %v204, %v267
  %v272 = vsel %vm252, %v206, %v268
  %v273 = vsel %vm253, %v245, %v269
  %v274 = vsel %vm254, %v247, %v270
  %275 = vst [vmem:[%s5] sm:$0xff] %v271
  %276 = vst [vmem:[%s5 + $0x8] sm:$0xff] %v272
  %277 = vst [vmem:[%s5 + $0x10] sm:$0xff] %v273
  %278 = vst [vmem:[%s5 + $0x18] sm:$0xff] %v274
  // Predicated region
  $region22: #{vision_transformer_forward.27} parent=0 // pred_check
    _
  $region23: #{vision_transformer_forward.27} parent=0 // pred_check_branch
    %280 = sbr.rel (0) target = $region25
  $region24: #{vision_transformer_forward.27} parent=0 // pred_region
    _
  $region25: #{vision_transformer_forward.27} parent=0 // pred_fallthru
    _
  // Predicated region
  $region26: #{vision_transformer_forward.27} parent=0 // pred_check
    _
  $region27: #{vision_transformer_forward.27} parent=0 // pred_check_branch
    %282 = sbr.rel (0) target = $region29
  $region28: #{vision_transformer_forward.27} parent=0 // pred_region
    _
  $region29: #{vision_transformer_forward.27} parent=0 // pred_fallthru
    _

// kernel: vision_transformer_forward.28
$region0: #{vision_transformer_forward.28}
  #allocation0 [shape = 'u32[]', space=smem, size = 0x4, offset = 0x4, fixed_abs, tag = 'smem constant byte address 0x4 - core index']
  #allocation1 [shape = 'u32[144,128]{1,0:T(1,128)}', space=vmem, size = 0x12000, scoped, tag = 'internal scratch']
  %s0 = inlined_call_operand.vmem [shape: f32[32,384], index: 0, kind: input, shape index: {}]
  %s1 = inlined_call_operand.vmem [shape: f32[384,128], index: 1, kind: input, shape index: {}]
  %s2 = inlined_call_operand.vmem [shape: f32[1,128], index: 2, kind: input, shape index: {}]
  %s3 = inlined_call_operand.vmem [shape: f32[32,128], index: 3, kind: output, shape index: {}]
  %s4 = sld [smem:[#allocation0]]
  $region22: #{vision_transformer_forward.28} parent=0
    _
  %s6 = ssub.s32 1, %s4
  %s7 = scalar_select 0, %s6, %s4
  // Predicated region
  $region2: #{vision_transformer_forward.28} parent=0 // pred_check
    _
  $region3: #{vision_transformer_forward.28} parent=0 // pred_check_branch
    %9 = sbr.rel (0) target = $region5
  $region4: #{vision_transformer_forward.28} parent=0 // pred_region
    _
  $region5: #{vision_transformer_forward.28} parent=0 // pred_fallthru
    _
  // Predicated region
  $region6: #{vision_transformer_forward.28} parent=0 // pred_check
    _
  $region7: #{vision_transformer_forward.28} parent=0 // pred_check_branch
    %11 = sbr.rel (0) target = $region9
  $region8: #{vision_transformer_forward.28} parent=0 // pred_region
    _
  $region9: #{vision_transformer_forward.28} parent=0 // pred_fallthru
    _
  // Predicated region
  $region10: #{vision_transformer_forward.28} parent=0 // pred_check
    _
  $region11: #{vision_transformer_forward.28} parent=0 // pred_check_branch
    %13 = sbr.rel (0) target = $region13
  $region12: #{vision_transformer_forward.28} parent=0 // pred_region
    _
  $region13: #{vision_transformer_forward.28} parent=0 // pred_fallthru
    _
  %v15 = vld [vmem:[%s0] sm:$0xff]
  %v16 = vld [vmem:[%s0 + $0x8] sm:$0xff]
  %v17 = vld [vmem:[%s0 + $0x10] sm:$0xff]
  %v18 = vld [vmem:[%s0 + $0x18] sm:$0xff]
  %v19 = vld [vmem:[%s0 + $0x20] sm:$0xff]
  %v20 = vld [vmem:[%s0 + $0x28] sm:$0xff]
  %v21 = vld [vmem:[%s0 + $0x30] sm:$0xff]
  %v22 = vld [vmem:[%s0 + $0x38] sm:$0xff]
  %v23 = vld [vmem:[%s0 + $0x40] sm:$0xff]
  %v24 = vld [vmem:[%s0 + $0x48] sm:$0xff]
  %v25 = vld [vmem:[%s0 + $0x50] sm:$0xff]
  %v26 = vld [vmem:[%s0 + $0x58] sm:$0xff]
  %v27 = vpack.c.bf16 %v18, %v15
  %v28 = vpack.c.bf16 %v19, %v16
  %v29 = vpack.c.bf16 %v20, %v17
  %v30 = vpack.c.bf16 %v24, %v21
  %v31 = vpack.c.bf16 %v25, %v22
  %v32 = vpack.c.bf16 %v26, %v23
  %v33 = vld [vmem:[%s1] sm:$0xff]
  %v34 = vld [vmem:[%s1 + $0x8] sm:$0xff]
  %v35 = vld [vmem:[%s1 + $0x10] sm:$0xff]
  %v36 = vld [vmem:[%s1 + $0x18] sm:$0xff]
  %v37 = vld [vmem:[%s1 + $0x20] sm:$0xff]
  %v38 = vld [vmem:[%s1 + $0x28] sm:$0xff]
  %v39 = vld [vmem:[%s1 + $0x30] sm:$0xff]
  %v40 = vld [vmem:[%s1 + $0x38] sm:$0xff]
  %v41 = vld [vmem:[%s1 + $0x40] sm:$0xff]
  %v42 = vld [vmem:[%s1 + $0x48] sm:$0xff]
  %v43 = vld [vmem:[%s1 + $0x50] sm:$0xff]
  %v44 = vld [vmem:[%s1 + $0x58] sm:$0xff]
  %v45 = vld [vmem:[%s1 + $0x60] sm:$0xff]
  %v46 = vld [vmem:[%s1 + $0x68] sm:$0xff]
  %v47 = vld [vmem:[%s1 + $0x70] sm:$0xff]
  %v48 = vld [vmem:[%s1 + $0x78] sm:$0xff]
  %v49 = vld [vmem:[%s1 + $0x80] sm:$0xff]
  %v50 = vld [vmem:[%s1 + $0x88] sm:$0xff]
  %v51 = vld [vmem:[%s1 + $0x90] sm:$0xff]
  %v52 = vld [vmem:[%s1 + $0x98] sm:$0xff]
  %v53 = vld [vmem:[%s1 + $0xa0] sm:$0xff]
  %v54 = vld [vmem:[%s1 + $0xa8] sm:$0xff]
  %v55 = vld [vmem:[%s1 + $0xb0] sm:$0xff]
  %v56 = vld [vmem:[%s1 + $0xb8] sm:$0xff]
  %v57 = vld [vmem:[%s1 + $0xc0] sm:$0xff]
  %v58 = vld [vmem:[%s1 + $0xc8] sm:$0xff]
  %v59 = vld [vmem:[%s1 + $0xd0] sm:$0xff]
  %v60 = vld [vmem:[%s1 + $0xd8] sm:$0xff]
  %v61 = vld [vmem:[%s1 + $0xe0] sm:$0xff]
  %v62 = vld [vmem:[%s1 + $0xe8] sm:$0xff]
  %v63 = vld [vmem:[%s1 + $0xf0] sm:$0xff]
  %v64 = vld [vmem:[%s1 + $0xf8] sm:$0xff]
  %v65 = vld [vmem:[%s1 + $0x100] sm:$0xff]
  %v66 = vld [vmem:[%s1 + $0x108] sm:$0xff]
  %v67 = vld [vmem:[%s1 + $0x110] sm:$0xff]
  %v68 = vld [vmem:[%s1 + $0x118] sm:$0xff]
  %v69 = vld [vmem:[%s1 + $0x120] sm:$0xff]
  %v70 = vld [vmem:[%s1 + $0x128] sm:$0xff]
  %v71 = vld [vmem:[%s1 + $0x130] sm:$0xff]
  %v72 = vld [vmem:[%s1 + $0x138] sm:$0xff]
  %v73 = vld [vmem:[%s1 + $0x140] sm:$0xff]
  %v74 = vld [vmem:[%s1 + $0x148] sm:$0xff]
  %v75 = vld [vmem:[%s1 + $0x150] sm:$0xff]
  %v76 = vld [vmem:[%s1 + $0x158] sm:$0xff]
  %v77 = vld [vmem:[%s1 + $0x160] sm:$0xff]
  %v78 = vld [vmem:[%s1 + $0x168] sm:$0xff]
  %v79 = vld [vmem:[%s1 + $0x170] sm:$0xff]
  %v80 = vld [vmem:[%s1 + $0x178] sm:$0xff]
  %v81 = vpack.c.bf16 %v34, %v33
  %v82 = vpack.c.bf16 %v36, %v35
  %v83 = vpack.c.bf16 %v38, %v37
  %v84 = vpack.c.bf16 %v40, %v39
  %v85 = vpack.c.bf16 %v42, %v41
  %v86 = vpack.c.bf16 %v44, %v43
  %v87 = vpack.c.bf16 %v46, %v45
  %v88 = vpack.c.bf16 %v48, %v47
  %v89 = vpack.c.bf16 %v50, %v49
  %v90 = vpack.c.bf16 %v52, %v51
  %v91 = vpack.c.bf16 %v54, %v53
  %v92 = vpack.c.bf16 %v56, %v55
  %v93 = vpack.c.bf16 %v58, %v57
  %v94 = vpack.c.bf16 %v60, %v59
  %v95 = vpack.c.bf16 %v62, %v61
  %v96 = vpack.c.bf16 %v64, %v63
  %v97 = vpack.c.bf16 %v66, %v65
  %v98 = vpack.c.bf16 %v68, %v67
  %v99 = vpack.c.bf16 %v70, %v69
  %v100 = vpack.c.bf16 %v72, %v71
  %v101 = vpack.c.bf16 %v74, %v73
  %v102 = vpack.c.bf16 %v76, %v75
  %v103 = vpack.c.bf16 %v78, %v77
  %v104 = vpack.c.bf16 %v80, %v79
  %v105 = vld [vmem:[%s2] sm:$0x1]
  %v107 = vlaneseq
  %v108 = vshrl.u32 %v107, 7
  %v109 = vsub.s32 0, %v108
  %v110 = vrot.slane %v105, %v109
  %112 = vmatprep.subr.bf16.mxu0 0
  %113 = vmatpush1.bf16.msra.mxu0 %v81
  %114 = vmatprep.subr.bf16.mxu0 0
  %115 = vmatpush1.bf16.msra.mxu0 %v82
  %116 = vmatprep.subr.bf16.mxu0 0
  %117 = vmatpush1.bf16.msra.mxu0 %v83
  %118 = vmatprep.subr.bf16.mxu0 0
  %119 = vmatpush1.bf16.msra.mxu0 %v84
  %120 = vmatprep.subr.bf16.mxu0 0
  %121 = vmatpush1.bf16.msra.mxu0 %v85
  %122 = vmatprep.subr.bf16.mxu0 0
  %123 = vmatpush1.bf16.msra.mxu0 %v86
  %124 = vmatprep.subr.bf16.mxu0 0
  %125 = vmatpush1.bf16.msra.mxu0 %v87
  %126 = vmatprep.subr.bf16.mxu0 0
  %127 = vmatpush1.bf16.msra.mxu0 %v88
  %128 = vmatprep.subr.bf16.mxu0 0
  %129 = vmatpush1.bf16.msra.mxu0 %v89
  %130 = vmatprep.subr.bf16.mxu0 0
  %131 = vmatpush1.bf16.msra.mxu0 %v90
  %132 = vmatprep.subr.bf16.mxu0 0
  %133 = vmatpush1.bf16.msra.mxu0 %v91
  %134 = vmatprep.subr.bf16.mxu0 0
  %135 = vmatpush1.bf16.msra.mxu0 %v92
  %136 = vmatprep.subr.bf16.mxu0 0
  %137 = vmatpush1.bf16.msra.mxu0 %v93
  %138 = vmatprep.subr.bf16.mxu0 0
  %139 = vmatpush1.bf16.msra.mxu0 %v94
  %140 = vmatprep.subr.bf16.mxu0 0
  %141 = vmatpush1.bf16.msra.mxu0 %v95
  %142 = vmatprep.subr.bf16.mxu0 0
  %143 = vmatpush1.bf16.msra.mxu0 %v96
  %144 = vmatprep.mubr.bf16.mxu0 %v28
  %145 = vmatmul.mubr.bf16.gmra.mrb[0].mxu0 %v27
  %v146 = vpop.f32.mrb[0].mxu0
  %v147 = vadd.f32 %v110, %v146
  %v148 = vpop.f32.mrb[0].mxu0
  %v149 = vpop.f32.mrb[0].mxu0
  %v150 = vadd.f32 %v110, %v149
  %v151 = vpop.f32.mrb[0].mxu0
  %152 = vmatprep.mubr.bf16.mxu0 %v31
  %153 = vmatmul.mubr.bf16.gmra.mrb[0].mxu0 %v30
  %v154 = vpop.f32.mrb[0].mxu0
  %v155 = vadd.f32 %v110, %v154
  %v156 = vpop.f32.mrb[0].mxu0
  %v157 = vpop.f32.mrb[0].mxu0
  %v158 = vadd.f32 %v110, %v157
  %v159 = vpop.f32.mrb[0].mxu0
  %160 = vdwg.mxu0
  %161 = vmatprep.subr.bf16.mxu0 0
  %162 = vmatpush1.bf16.msra.mxu0 %v97
  %163 = vmatprep.subr.bf16.mxu0 0
  %164 = vmatpush1.bf16.msra.mxu0 %v98
  %165 = vmatprep.subr.bf16.mxu0 0
  %166 = vmatpush1.bf16.msra.mxu0 %v99
  %167 = vmatprep.subr.bf16.mxu0 0
  %168 = vmatpush1.bf16.msra.mxu0 %v100
  %169 = vmatprep.subr.bf16.mxu0 0
  %170 = vmatpush1.bf16.msra.mxu0 %v101
  %171 = vmatprep.subr.bf16.mxu0 0
  %172 = vmatpush1.bf16.msra.mxu0 %v102
  %173 = vmatprep.subr.bf16.mxu0 0
  %174 = vmatpush1.bf16.msra.mxu0 %v103
  %175 = vmatprep.subr.bf16.mxu0 0
  %176 = vmatpush1.bf16.msra.mxu0 %v104
  %177 = vmatprep.subr.bf16.mxu0 0
  %178 = vmatpush1.bf16.msra.mxu0 0
  %179 = vmatprep.subr.bf16.mxu0 0
  %180 = vmatpush1.bf16.msra.mxu0 0
  %181 = vmatprep.subr.bf16.mxu0 0
  %182 = vmatpush1.bf16.msra.mxu0 0
  %183 = vmatprep.subr.bf16.mxu0 0
  %184 = vmatpush1.bf16.msra.mxu0 0
  %185 = vmatprep.subr.bf16.mxu0 0
  %186 = vmatpush1.bf16.msra.mxu0 0
  %187 = vmatprep.subr.bf16.mxu0 0
  %188 = vmatpush1.bf16.msra.mxu0 0
  %189 = vmatprep.subr.bf16.mxu0 0
  %190 = vmatpush1.bf16.msra.mxu0 0
  %191 = vmatprep.subr.bf16.mxu0 0
  %192 = vmatpush1.bf16.msra.mxu0 0
  %193 = vmatprep.mubr.bf16.mxu0 0
  %194 = vmatmul.mubr.bf16.gmra.mrb[0].mxu0 %v29
  %v195 = vpop.f32.mrb[0].mxu0
  %v196 = vadd.f32 %v147, %v195
  %v197 = vpop.f32.mrb[0].mxu0
  %v198 = vpop.f32.mrb[0].mxu0
  %v199 = vadd.f32 %v150, %v198
  %v200 = vpop.f32.mrb[0].mxu0
  %201 = vmatprep.mubr.bf16.mxu0 0
  %202 = vmatmul.mubr.bf16.gmra.mrb[0].mxu0 %v32
  %v203 = vpop.f32.mrb[0].mxu0
  %v204 = vadd.f32 %v155, %v203
  %v205 = vpop.f32.mrb[0].mxu0
  %v206 = vpop.f32.mrb[0].mxu0
  %v207 = vadd.f32 %v158, %v206
  %v208 = vpop.f32.mrb[0].mxu0
  %209 = vdwg.mxu0
  %v210 = vmax.f32 %v196, 0.0
  %v211 = vmax.f32 %v199, 0.0
  %v212 = vmax.f32 %v204, 0.0
  %v213 = vmax.f32 %v207, 0.0
  %214 = vst [vmem:[%s3] sm:$0xff] %v210
  %215 = vst [vmem:[%s3 + $0x8] sm:$0xff] %v211
  %216 = vst [vmem:[%s3 + $0x10] sm:$0xff] %v212
  %217 = vst [vmem:[%s3 + $0x18] sm:$0xff] %v213
  // Predicated region
  $region14: #{vision_transformer_forward.28} parent=0 // pred_check
    _
  $region15: #{vision_transformer_forward.28} parent=0 // pred_check_branch
    %219 = sbr.rel (0) target = $region17
  $region16: #{vision_transformer_forward.28} parent=0 // pred_region
    _
  $region17: #{vision_transformer_forward.28} parent=0 // pred_fallthru
    _
  // Predicated region
  $region18: #{vision_transformer_forward.28} parent=0 // pred_check
    _
  $region19: #{vision_transformer_forward.28} parent=0 // pred_check_branch
    %221 = sbr.rel (0) target = $region21
  $region20: #{vision_transformer_forward.28} parent=0 // pred_region
    _
  $region21: #{vision_transformer_forward.28} parent=0 // pred_fallthru
    _

// kernel: vision_transformer_forward.29
$region0: #{vision_transformer_forward.29}
  #allocation0 [shape = 'u32[]', space=smem, size = 0x4, offset = 0x4, fixed_abs, tag = 'smem constant byte address 0x4 - core index']
  #allocation1 [shape = 'u32[144,128]{1,0:T(1,128)}', space=vmem, size = 0x12000, scoped, tag = 'internal scratch']
  %s0 = inlined_call_operand.vmem [shape: f32[32,256], index: 0, kind: input, shape index: {}]
  %s1 = inlined_call_operand.vmem [shape: f32[256,128], index: 1, kind: input, shape index: {}]
  %s2 = inlined_call_operand.vmem [shape: f32[1,128], index: 2, kind: input, shape index: {}]
  %s3 = inlined_call_operand.vmem [shape: f32[32,128], index: 3, kind: output, shape index: {}]
  %s4 = sld [smem:[#allocation0]]
  $region22: #{vision_transformer_forward.29} parent=0
    _
  %s6 = ssub.s32 1, %s4
  %s7 = scalar_select 0, %s6, %s4
  // Predicated region
  $region2: #{vision_transformer_forward.29} parent=0 // pred_check
    _
  $region3: #{vision_transformer_forward.29} parent=0 // pred_check_branch
    %9 = sbr.rel (0) target = $region5
  $region4: #{vision_transformer_forward.29} parent=0 // pred_region
    _
  $region5: #{vision_transformer_forward.29} parent=0 // pred_fallthru
    _
  // Predicated region
  $region6: #{vision_transformer_forward.29} parent=0 // pred_check
    _
  $region7: #{vision_transformer_forward.29} parent=0 // pred_check_branch
    %11 = sbr.rel (0) target = $region9
  $region8: #{vision_transformer_forward.29} parent=0 // pred_region
    _
  $region9: #{vision_transformer_forward.29} parent=0 // pred_fallthru
    _
  // Predicated region
  $region10: #{vision_transformer_forward.29} parent=0 // pred_check
    _
  $region11: #{vision_transformer_forward.29} parent=0 // pred_check_branch
    %13 = sbr.rel (0) target = $region13
  $region12: #{vision_transformer_forward.29} parent=0 // pred_region
    _
  $region13: #{vision_transformer_forward.29} parent=0 // pred_fallthru
    _
  %v15 = vld [vmem:[%s0] sm:$0xff]
  %v16 = vld [vmem:[%s0 + $0x8] sm:$0xff]
  %v17 = vld [vmem:[%s0 + $0x10] sm:$0xff]
  %v18 = vld [vmem:[%s0 + $0x18] sm:$0xff]
  %v19 = vld [vmem:[%s0 + $0x20] sm:$0xff]
  %v20 = vld [vmem:[%s0 + $0x28] sm:$0xff]
  %v21 = vld [vmem:[%s0 + $0x30] sm:$0xff]
  %v22 = vld [vmem:[%s0 + $0x38] sm:$0xff]
  %v23 = vpack.c.bf16 %v17, %v15
  %v24 = vpack.c.bf16 %v18, %v16
  %v25 = vpack.c.bf16 %v21, %v19
  %v26 = vpack.c.bf16 %v22, %v20
  %v27 = vld [vmem:[%s1] sm:$0xff]
  %v28 = vld [vmem:[%s1 + $0x8] sm:$0xff]
  %v29 = vld [vmem:[%s1 + $0x10] sm:$0xff]
  %v30 = vld [vmem:[%s1 + $0x18] sm:$0xff]
  %v31 = vld [vmem:[%s1 + $0x20] sm:$0xff]
  %v32 = vld [vmem:[%s1 + $0x28] sm:$0xff]
  %v33 = vld [vmem:[%s1 + $0x30] sm:$0xff]
  %v34 = vld [vmem:[%s1 + $0x38] sm:$0xff]
  %v35 = vld [vmem:[%s1 + $0x40] sm:$0xff]
  %v36 = vld [vmem:[%s1 + $0x48] sm:$0xff]
  %v37 = vld [vmem:[%s1 + $0x50] sm:$0xff]
  %v38 = vld [vmem:[%s1 + $0x58] sm:$0xff]
  %v39 = vld [vmem:[%s1 + $0x60] sm:$0xff]
  %v40 = vld [vmem:[%s1 + $0x68] sm:$0xff]
  %v41 = vld [vmem:[%s1 + $0x70] sm:$0xff]
  %v42 = vld [vmem:[%s1 + $0x78] sm:$0xff]
  %v43 = vld [vmem:[%s1 + $0x80] sm:$0xff]
  %v44 = vld [vmem:[%s1 + $0x88] sm:$0xff]
  %v45 = vld [vmem:[%s1 + $0x90] sm:$0xff]
  %v46 = vld [vmem:[%s1 + $0x98] sm:$0xff]
  %v47 = vld [vmem:[%s1 + $0xa0] sm:$0xff]
  %v48 = vld [vmem:[%s1 + $0xa8] sm:$0xff]
  %v49 = vld [vmem:[%s1 + $0xb0] sm:$0xff]
  %v50 = vld [vmem:[%s1 + $0xb8] sm:$0xff]
  %v51 = vld [vmem:[%s1 + $0xc0] sm:$0xff]
  %v52 = vld [vmem:[%s1 + $0xc8] sm:$0xff]
  %v53 = vld [vmem:[%s1 + $0xd0] sm:$0xff]
  %v54 = vld [vmem:[%s1 + $0xd8] sm:$0xff]
  %v55 = vld [vmem:[%s1 + $0xe0] sm:$0xff]
  %v56 = vld [vmem:[%s1 + $0xe8] sm:$0xff]
  %v57 = vld [vmem:[%s1 + $0xf0] sm:$0xff]
  %v58 = vld [vmem:[%s1 + $0xf8] sm:$0xff]
  %v59 = vpack.c.bf16 %v28, %v27
  %v60 = vpack.c.bf16 %v30, %v29
  %v61 = vpack.c.bf16 %v32, %v31
  %v62 = vpack.c.bf16 %v34, %v33
  %v63 = vpack.c.bf16 %v36, %v35
  %v64 = vpack.c.bf16 %v38, %v37
  %v65 = vpack.c.bf16 %v40, %v39
  %v66 = vpack.c.bf16 %v42, %v41
  %v67 = vpack.c.bf16 %v44, %v43
  %v68 = vpack.c.bf16 %v46, %v45
  %v69 = vpack.c.bf16 %v48, %v47
  %v70 = vpack.c.bf16 %v50, %v49
  %v71 = vpack.c.bf16 %v52, %v51
  %v72 = vpack.c.bf16 %v54, %v53
  %v73 = vpack.c.bf16 %v56, %v55
  %v74 = vpack.c.bf16 %v58, %v57
  %v75 = vld [vmem:[%s2] sm:$0x1]
  %v77 = vlaneseq
  %v78 = vshrl.u32 %v77, 7
  %v79 = vsub.s32 0, %v78
  %v80 = vrot.slane %v75, %v79
  %82 = vmatprep.subr.bf16.mxu0 0
  %83 = vmatpush1.bf16.msra.mxu0 %v59
  %84 = vmatprep.subr.bf16.mxu0 0
  %85 = vmatpush1.bf16.msra.mxu0 %v60
  %86 = vmatprep.subr.bf16.mxu0 0
  %87 = vmatpush1.bf16.msra.mxu0 %v61
  %88 = vmatprep.subr.bf16.mxu0 0
  %89 = vmatpush1.bf16.msra.mxu0 %v62
  %90 = vmatprep.subr.bf16.mxu0 0
  %91 = vmatpush1.bf16.msra.mxu0 %v63
  %92 = vmatprep.subr.bf16.mxu0 0
  %93 = vmatpush1.bf16.msra.mxu0 %v64
  %94 = vmatprep.subr.bf16.mxu0 0
  %95 = vmatpush1.bf16.msra.mxu0 %v65
  %96 = vmatprep.subr.bf16.mxu0 0
  %97 = vmatpush1.bf16.msra.mxu0 %v66
  %98 = vmatprep.subr.bf16.mxu0 0
  %99 = vmatpush1.bf16.msra.mxu0 %v67
  %100 = vmatprep.subr.bf16.mxu0 0
  %101 = vmatpush1.bf16.msra.mxu0 %v68
  %102 = vmatprep.subr.bf16.mxu0 0
  %103 = vmatpush1.bf16.msra.mxu0 %v69
  %104 = vmatprep.subr.bf16.mxu0 0
  %105 = vmatpush1.bf16.msra.mxu0 %v70
  %106 = vmatprep.subr.bf16.mxu0 0
  %107 = vmatpush1.bf16.msra.mxu0 %v71
  %108 = vmatprep.subr.bf16.mxu0 0
  %109 = vmatpush1.bf16.msra.mxu0 %v72
  %110 = vmatprep.subr.bf16.mxu0 0
  %111 = vmatpush1.bf16.msra.mxu0 %v73
  %112 = vmatprep.subr.bf16.mxu0 0
  %113 = vmatpush1.bf16.msra.mxu0 %v74
  %114 = vmatprep.mubr.bf16.mxu0 %v24
  %115 = vmatmul.mubr.bf16.gmra.mrb[0].mxu0 %v23
  %v116 = vpop.f32.mrb[0].mxu0
  %v117 = vadd.f32 %v80, %v116
  %v118 = vpop.f32.mrb[0].mxu0
  %v119 = vpop.f32.mrb[0].mxu0
  %v120 = vadd.f32 %v80, %v119
  %v121 = vpop.f32.mrb[0].mxu0
  %122 = vmatprep.mubr.bf16.mxu0 %v26
  %123 = vmatmul.mubr.bf16.gmra.mrb[0].mxu0 %v25
  %v124 = vpop.f32.mrb[0].mxu0
  %v125 = vadd.f32 %v80, %v124
  %v126 = vpop.f32.mrb[0].mxu0
  %v127 = vpop.f32.mrb[0].mxu0
  %v128 = vadd.f32 %v80, %v127
  %v129 = vpop.f32.mrb[0].mxu0
  %130 = vdwg.mxu0
  %v131 = vmax.f32 %v117, 0.0
  %v132 = vmax.f32 %v120, 0.0
  %v133 = vmax.f32 %v125, 0.0
  %v134 = vmax.f32 %v128, 0.0
  %135 = vst [vmem:[%s3] sm:$0xff] %v131
  %136 = vst [vmem:[%s3 + $0x8] sm:$0xff] %v132
  %137 = vst [vmem:[%s3 + $0x10] sm:$0xff] %v133
  %138 = vst [vmem:[%s3 + $0x18] sm:$0xff] %v134
  // Predicated region
  $region14: #{vision_transformer_forward.29} parent=0 // pred_check
    _
  $region15: #{vision_transformer_forward.29} parent=0 // pred_check_branch
    %140 = sbr.rel (0) target = $region17
  $region16: #{vision_transformer_forward.29} parent=0 // pred_region
    _
  $region17: #{vision_transformer_forward.29} parent=0 // pred_fallthru
    _
  // Predicated region
  $region18: #{vision_transformer_forward.29} parent=0 // pred_check
    _
  $region19: #{vision_transformer_forward.29} parent=0 // pred_check_branch
    %142 = sbr.rel (0) target = $region21
  $region20: #{vision_transformer_forward.29} parent=0 // pred_region
    _
  $region21: #{vision_transformer_forward.29} parent=0 // pred_fallthru
    _

// kernel: vision_transformer_forward.30
$region0: #{vision_transformer_forward.30}
  #allocation0 [shape = 'u32[]', space=smem, size = 0x4, offset = 0x4, fixed_abs, tag = 'smem constant byte address 0x4 - core index']
  #allocation1 [shape = 'u32[144,128]{1,0:T(1,128)}', space=vmem, size = 0x12000, scoped, tag = 'internal scratch']
  %s0 = inlined_call_operand.vmem [shape: f32[128,256], index: 0, kind: input, shape index: {}]
  %s1 = inlined_call_operand.vmem [shape: f32[256,128], index: 1, kind: input, shape index: {}]
  %s2 = inlined_call_operand.vmem [shape: f32[1,128], index: 2, kind: input, shape index: {}]
  %s3 = inlined_call_operand.vmem [shape: f32[128,128], index: 3, kind: output, shape index: {}]
  %s4 = sld [smem:[#allocation0]]
  $region22: #{vision_transformer_forward.30} parent=0
    _
  %s6 = ssub.s32 1, %s4
  %s7 = scalar_select 0, %s6, %s4
  // Predicated region
  $region2: #{vision_transformer_forward.30} parent=0 // pred_check
    _
  $region3: #{vision_transformer_forward.30} parent=0 // pred_check_branch
    %9 = sbr.rel (0) target = $region5
  $region4: #{vision_transformer_forward.30} parent=0 // pred_region
    _
  $region5: #{vision_transformer_forward.30} parent=0 // pred_fallthru
    _
  // Predicated region
  $region6: #{vision_transformer_forward.30} parent=0 // pred_check
    _
  $region7: #{vision_transformer_forward.30} parent=0 // pred_check_branch
    %11 = sbr.rel (0) target = $region9
  $region8: #{vision_transformer_forward.30} parent=0 // pred_region
    _
  $region9: #{vision_transformer_forward.30} parent=0 // pred_fallthru
    _
  // Predicated region
  $region10: #{vision_transformer_forward.30} parent=0 // pred_check
    _
  $region11: #{vision_transformer_forward.30} parent=0 // pred_check_branch
    %13 = sbr.rel (0) target = $region13
  $region12: #{vision_transformer_forward.30} parent=0 // pred_region
    _
  $region13: #{vision_transformer_forward.30} parent=0 // pred_fallthru
    _
  %v15 = vld [vmem:[%s0] sm:$0xff]
  %v16 = vld [vmem:[%s0 + $0x8] sm:$0xff]
  %v17 = vld [vmem:[%s0 + $0x10] sm:$0xff]
  %v18 = vld [vmem:[%s0 + $0x18] sm:$0xff]
  %v19 = vld [vmem:[%s0 + $0x20] sm:$0xff]
  %v20 = vld [vmem:[%s0 + $0x28] sm:$0xff]
  %v21 = vld [vmem:[%s0 + $0x30] sm:$0xff]
  %v22 = vld [vmem:[%s0 + $0x38] sm:$0xff]
  %v23 = vld [vmem:[%s0 + $0x40] sm:$0xff]
  %v24 = vld [vmem:[%s0 + $0x48] sm:$0xff]
  %v25 = vld [vmem:[%s0 + $0x50] sm:$0xff]
  %v26 = vld [vmem:[%s0 + $0x58] sm:$0xff]
  %v27 = vld [vmem:[%s0 + $0x60] sm:$0xff]
  %v28 = vld [vmem:[%s0 + $0x68] sm:$0xff]
  %v29 = vld [vmem:[%s0 + $0x70] sm:$0xff]
  %v30 = vld [vmem:[%s0 + $0x78] sm:$0xff]
  %v31 = vld [vmem:[%s0 + $0x80] sm:$0xff]
  %v32 = vld [vmem:[%s0 + $0x88] sm:$0xff]
  %v33 = vld [vmem:[%s0 + $0x90] sm:$0xff]
  %v34 = vld [vmem:[%s0 + $0x98] sm:$0xff]
  %v35 = vld [vmem:[%s0 + $0xa0] sm:$0xff]
  %v36 = vld [vmem:[%s0 + $0xa8] sm:$0xff]
  %v37 = vld [vmem:[%s0 + $0xb0] sm:$0xff]
  %v38 = vld [vmem:[%s0 + $0xb8] sm:$0xff]
  %v39 = vld [vmem:[%s0 + $0xc0] sm:$0xff]
  %v40 = vld [vmem:[%s0 + $0xc8] sm:$0xff]
  %v41 = vld [vmem:[%s0 + $0xd0] sm:$0xff]
  %v42 = vld [vmem:[%s0 + $0xd8] sm:$0xff]
  %v43 = vld [vmem:[%s0 + $0xe0] sm:$0xff]
  %v44 = vld [vmem:[%s0 + $0xe8] sm:$0xff]
  %v45 = vld [vmem:[%s0 + $0xf0] sm:$0xff]
  %v46 = vld [vmem:[%s0 + $0xf8] sm:$0xff]
  %v47 = vpack.c.bf16 %v17, %v15
  %v48 = vpack.c.bf16 %v18, %v16
  %v49 = vpack.c.bf16 %v21, %v19
  %v50 = vpack.c.bf16 %v22, %v20
  %v51 = vpack.c.bf16 %v25, %v23
  %v52 = vpack.c.bf16 %v26, %v24
  %v53 = vpack.c.bf16 %v29, %v27
  %v54 = vpack.c.bf16 %v30, %v28
  %v55 = vpack.c.bf16 %v33, %v31
  %v56 = vpack.c.bf16 %v34, %v32
  %v57 = vpack.c.bf16 %v37, %v35
  %v58 = vpack.c.bf16 %v38, %v36
  %v59 = vpack.c.bf16 %v41, %v39
  %v60 = vpack.c.bf16 %v42, %v40
  %v61 = vpack.c.bf16 %v45, %v43
  %v62 = vpack.c.bf16 %v46, %v44
  %v63 = vld [vmem:[%s1] sm:$0xff]
  %v64 = vld [vmem:[%s1 + $0x8] sm:$0xff]
  %v65 = vld [vmem:[%s1 + $0x10] sm:$0xff]
  %v66 = vld [vmem:[%s1 + $0x18] sm:$0xff]
  %v67 = vld [vmem:[%s1 + $0x20] sm:$0xff]
  %v68 = vld [vmem:[%s1 + $0x28] sm:$0xff]
  %v69 = vld [vmem:[%s1 + $0x30] sm:$0xff]
  %v70 = vld [vmem:[%s1 + $0x38] sm:$0xff]
  %v71 = vld [vmem:[%s1 + $0x40] sm:$0xff]
  %v72 = vld [vmem:[%s1 + $0x48] sm:$0xff]
  %v73 = vld [vmem:[%s1 + $0x50] sm:$0xff]
  %v74 = vld [vmem:[%s1 + $0x58] sm:$0xff]
  %v75 = vld [vmem:[%s1 + $0x60] sm:$0xff]
  %v76 = vld [vmem:[%s1 + $0x68] sm:$0xff]
  %v77 = vld [vmem:[%s1 + $0x70] sm:$0xff]
  %v78 = vld [vmem:[%s1 + $0x78] sm:$0xff]
  %v79 = vld [vmem:[%s1 + $0x80] sm:$0xff]
  %v80 = vld [vmem:[%s1 + $0x88] sm:$0xff]
  %v81 = vld [vmem:[%s1 + $0x90] sm:$0xff]
  %v82 = vld [vmem:[%s1 + $0x98] sm:$0xff]
  %v83 = vld [vmem:[%s1 + $0xa0] sm:$0xff]
  %v84 = vld [vmem:[%s1 + $0xa8] sm:$0xff]
  %v85 = vld [vmem:[%s1 + $0xb0] sm:$0xff]
  %v86 = vld [vmem:[%s1 + $0xb8] sm:$0xff]
  %v87 = vld [vmem:[%s1 + $0xc0] sm:$0xff]
  %v88 = vld [vmem:[%s1 + $0xc8] sm:$0xff]
  %v89 = vld [vmem:[%s1 + $0xd0] sm:$0xff]
  %v90 = vld [vmem:[%s1 + $0xd8] sm:$0xff]
  %v91 = vld [vmem:[%s1 + $0xe0] sm:$0xff]
  %v92 = vld [vmem:[%s1 + $0xe8] sm:$0xff]
  %v93 = vld [vmem:[%s1 + $0xf0] sm:$0xff]
  %v94 = vld [vmem:[%s1 + $0xf8] sm:$0xff]
  %v95 = vpack.c.bf16 %v64, %v63
  %v96 = vpack.c.bf16 %v66, %v65
  %v97 = vpack.c.bf16 %v68, %v67
  %v98 = vpack.c.bf16 %v70, %v69
  %v99 = vpack.c.bf16 %v72, %v71
  %v100 = vpack.c.bf16 %v74, %v73
  %v101 = vpack.c.bf16 %v76, %v75
  %v102 = vpack.c.bf16 %v78, %v77
  %v103 = vpack.c.bf16 %v80, %v79
  %v104 = vpack.c.bf16 %v82, %v81
  %v105 = vpack.c.bf16 %v84, %v83
  %v106 = vpack.c.bf16 %v86, %v85
  %v107 = vpack.c.bf16 %v88, %v87
  %v108 = vpack.c.bf16 %v90, %v89
  %v109 = vpack.c.bf16 %v92, %v91
  %v110 = vpack.c.bf16 %v94, %v93
  %v111 = vld [vmem:[%s2] sm:$0x1]
  %v113 = vlaneseq
  %v114 = vshrl.u32 %v113, 7
  %v115 = vsub.s32 0, %v114
  %v116 = vrot.slane %v111, %v115
  %118 = vmatprep.subr.bf16.mxu0 0
  %119 = vmatpush1.bf16.msra.mxu0 %v95
  %120 = vmatprep.subr.bf16.mxu0 0
  %121 = vmatpush1.bf16.msra.mxu0 %v96
  %122 = vmatprep.subr.bf16.mxu0 0
  %123 = vmatpush1.bf16.msra.mxu0 %v97
  %124 = vmatprep.subr.bf16.mxu0 0
  %125 = vmatpush1.bf16.msra.mxu0 %v98
  %126 = vmatprep.subr.bf16.mxu0 0
  %127 = vmatpush1.bf16.msra.mxu0 %v99
  %128 = vmatprep.subr.bf16.mxu0 0
  %129 = vmatpush1.bf16.msra.mxu0 %v100
  %130 = vmatprep.subr.bf16.mxu0 0
  %131 = vmatpush1.bf16.msra.mxu0 %v101
  %132 = vmatprep.subr.bf16.mxu0 0
  %133 = vmatpush1.bf16.msra.mxu0 %v102
  %134 = vmatprep.subr.bf16.mxu0 0
  %135 = vmatpush1.bf16.msra.mxu0 %v103
  %136 = vmatprep.subr.bf16.mxu0 0
  %137 = vmatpush1.bf16.msra.mxu0 %v104
  %138 = vmatprep.subr.bf16.mxu0 0
  %139 = vmatpush1.bf16.msra.mxu0 %v105
  %140 = vmatprep.subr.bf16.mxu0 0
  %141 = vmatpush1.bf16.msra.mxu0 %v106
  %142 = vmatprep.subr.bf16.mxu0 0
  %143 = vmatpush1.bf16.msra.mxu0 %v107
  %144 = vmatprep.subr.bf16.mxu0 0
  %145 = vmatpush1.bf16.msra.mxu0 %v108
  %146 = vmatprep.subr.bf16.mxu0 0
  %147 = vmatpush1.bf16.msra.mxu0 %v109
  %148 = vmatprep.subr.bf16.mxu0 0
  %149 = vmatpush1.bf16.msra.mxu0 %v110
  %150 = vmatprep.mubr.bf16.mxu0 %v48
  %151 = vmatmul.mubr.bf16.gmra.mrb[0].mxu0 %v47
  %v152 = vpop.f32.mrb[0].mxu0
  %v153 = vadd.f32 %v116, %v152
  %v154 = vpop.f32.mrb[0].mxu0
  %v155 = vpop.f32.mrb[0].mxu0
  %v156 = vadd.f32 %v116, %v155
  %v157 = vpop.f32.mrb[0].mxu0
  %158 = vmatprep.mubr.bf16.mxu0 %v50
  %159 = vmatmul.mubr.bf16.gmra.mrb[0].mxu0 %v49
  %v160 = vpop.f32.mrb[0].mxu0
  %v161 = vadd.f32 %v116, %v160
  %v162 = vpop.f32.mrb[0].mxu0
  %v163 = vpop.f32.mrb[0].mxu0
  %v164 = vadd.f32 %v116, %v163
  %v165 = vpop.f32.mrb[0].mxu0
  %166 = vmatprep.mubr.bf16.mxu0 %v52
  %167 = vmatmul.mubr.bf16.gmra.mrb[0].mxu0 %v51
  %v168 = vpop.f32.mrb[0].mxu0
  %v169 = vadd.f32 %v116, %v168
  %v170 = vpop.f32.mrb[0].mxu0
  %v171 = vpop.f32.mrb[0].mxu0
  %v172 = vadd.f32 %v116, %v171
  %v173 = vpop.f32.mrb[0].mxu0
  %174 = vmatprep.mubr.bf16.mxu0 %v54
  %175 = vmatmul.mubr.bf16.gmra.mrb[0].mxu0 %v53
  %v176 = vpop.f32.mrb[0].mxu0
  %v177 = vadd.f32 %v116, %v176
  %v178 = vpop.f32.mrb[0].mxu0
  %v179 = vpop.f32.mrb[0].mxu0
  %v180 = vadd.f32 %v116, %v179
  %v181 = vpop.f32.mrb[0].mxu0
  %182 = vmatprep.mubr.bf16.mxu0 %v56
  %183 = vmatmul.mubr.bf16.gmra.mrb[0].mxu0 %v55
  %v184 = vpop.f32.mrb[0].mxu0
  %v185 = vadd.f32 %v116, %v184
  %v186 = vpop.f32.mrb[0].mxu0
  %v187 = vpop.f32.mrb[0].mxu0
  %v188 = vadd.f32 %v116, %v187
  %v189 = vpop.f32.mrb[0].mxu0
  %190 = vmatprep.mubr.bf16.mxu0 %v58
  %191 = vmatmul.mubr.bf16.gmra.mrb[0].mxu0 %v57
  %v192 = vpop.f32.mrb[0].mxu0
  %v193 = vadd.f32 %v116, %v192
  %v194 = vpop.f32.mrb[0].mxu0
  %v195 = vpop.f32.mrb[0].mxu0
  %v196 = vadd.f32 %v116, %v195
  %v197 = vpop.f32.mrb[0].mxu0
  %198 = vmatprep.mubr.bf16.mxu0 %v60
  %199 = vmatmul.mubr.bf16.gmra.mrb[0].mxu0 %v59
  %v200 = vpop.f32.mrb[0].mxu0
  %v201 = vadd.f32 %v116, %v200
  %v202 = vpop.f32.mrb[0].mxu0
  %v203 = vpop.f32.mrb[0].mxu0
  %v204 = vadd.f32 %v116, %v203
  %v205 = vpop.f32.mrb[0].mxu0
  %206 = vmatprep.mubr.bf16.mxu0 %v62
  %207 = vmatmul.mubr.bf16.gmra.mrb[0].mxu0 %v61
  %v208 = vpop.f32.mrb[0].mxu0
  %v209 = vadd.f32 %v116, %v208
  %v210 = vpop.f32.mrb[0].mxu0
  %v211 = vpop.f32.mrb[0].mxu0
  %v212 = vadd.f32 %v116, %v211
  %v213 = vpop.f32.mrb[0].mxu0
  %214 = vdwg.mxu0
  %v215 = vmax.f32 %v153, 0.0
  %v216 = vmax.f32 %v156, 0.0
  %v217 = vmax.f32 %v161, 0.0
  %v218 = vmax.f32 %v164, 0.0
  %v219 = vmax.f32 %v169, 0.0
  %v220 = vmax.f32 %v172, 0.0
  %v221 = vmax.f32 %v177, 0.0
  %v222 = vmax.f32 %v180, 0.0
  %v223 = vmax.f32 %v185, 0.0
  %v224 = vmax.f32 %v188, 0.0
  %v225 = vmax.f32 %v193, 0.0
  %v226 = vmax.f32 %v196, 0.0
  %v227 = vmax.f32 %v201, 0.0
  %v228 = vmax.f32 %v204, 0.0
  %v229 = vmax.f32 %v209, 0.0
  %v230 = vmax.f32 %v212, 0.0
  %231 = vst [vmem:[%s3] sm:$0xff] %v215
  %232 = vst [vmem:[%s3 + $0x8] sm:$0xff] %v216
  %233 = vst [vmem:[%s3 + $0x10] sm:$0xff] %v217
  %234 = vst [vmem:[%s3 + $0x18] sm:$0xff] %v218
  %235 = vst [vmem:[%s3 + $0x20] sm:$0xff] %v219
  %236 = vst [vmem:[%s3 + $0x28] sm:$0xff] %v220
  %237 = vst [vmem:[%s3 + $0x30] sm:$0xff] %v221
  %238 = vst [vmem:[%s3 + $0x38] sm:$0xff] %v222
  %239 = vst [vmem:[%s3 + $0x40] sm:$0xff] %v223
  %240 = vst [vmem:[%s3 + $0x48] sm:$0xff] %v224
  %241 = vst [vmem:[%s3 + $0x50] sm:$0xff] %v225
  %242 = vst [vmem:[%s3 + $0x58] sm:$0xff] %v226
  %243 = vst [vmem:[%s3 + $0x60] sm:$0xff] %v227
  %244 = vst [vmem:[%s3 + $0x68] sm:$0xff] %v228
  %245 = vst [vmem:[%s3 + $0x70] sm:$0xff] %v229
  %246 = vst [vmem:[%s3 + $0x78] sm:$0xff] %v230
  // Predicated region
  $region14: #{vision_transformer_forward.30} parent=0 // pred_check
    _
  $region15: #{vision_transformer_forward.30} parent=0 // pred_check_branch
    %248 = sbr.rel (0) target = $region17
  $region16: #{vision_transformer_forward.30} parent=0 // pred_region
    _
  $region17: #{vision_transformer_forward.30} parent=0 // pred_fallthru
    _
  // Predicated region
  $region18: #{vision_transformer_forward.30} parent=0 // pred_check
    _
  $region19: #{vision_transformer_forward.30} parent=0 // pred_check_branch
    %250 = sbr.rel (0) target = $region21
  $region20: #{vision_transformer_forward.30} parent=0 // pred_region
    _
  $region21: #{vision_transformer_forward.30} parent=0 // pred_fallthru
    _

// kernel: vision_transformer_forward.32
$region0: #{vision_transformer_forward.32}
  #allocation0 [shape = 'u32[]', space=smem, size = 0x4, offset = 0x4, fixed_abs, tag = 'smem constant byte address 0x4 - core index']
  #allocation1 [shape = 'u32[144,128]{1,0:T(1,128)}', space=vmem, size = 0x12000, scoped, tag = 'internal scratch']
  %s0 = inlined_call_operand.vmem [shape: f32[128,128], index: 0, kind: input, shape index: {}]
  %s1 = inlined_call_operand.vmem [shape: f32[128,128], index: 1, kind: input, shape index: {}]
  %s2 = inlined_call_operand.vmem [shape: f32[1,128], index: 2, kind: input, shape index: {}]
  %s3 = inlined_call_operand.vmem [shape: f32[128,128], index: 3, kind: output, shape index: {}]
  %s4 = sld [smem:[#allocation0]]
  $region22: #{vision_transformer_forward.32} parent=0
    _
  %s6 = ssub.s32 1, %s4
  %s7 = scalar_select 0, %s6, %s4
  // Predicated region
  $region2: #{vision_transformer_forward.32} parent=0 // pred_check
    _
  $region3: #{vision_transformer_forward.32} parent=0 // pred_check_branch
    %9 = sbr.rel (0) target = $region5
  $region4: #{vision_transformer_forward.32} parent=0 // pred_region
    _
  $region5: #{vision_transformer_forward.32} parent=0 // pred_fallthru
    _
  // Predicated region
  $region6: #{vision_transformer_forward.32} parent=0 // pred_check
    _
  $region7: #{vision_transformer_forward.32} parent=0 // pred_check_branch
    %11 = sbr.rel (0) target = $region9
  $region8: #{vision_transformer_forward.32} parent=0 // pred_region
    _
  $region9: #{vision_transformer_forward.32} parent=0 // pred_fallthru
    _
  // Predicated region
  $region10: #{vision_transformer_forward.32} parent=0 // pred_check
    _
  $region11: #{vision_transformer_forward.32} parent=0 // pred_check_branch
    %13 = sbr.rel (0) target = $region13
  $region12: #{vision_transformer_forward.32} parent=0 // pred_region
    _
  $region13: #{vision_transformer_forward.32} parent=0 // pred_fallthru
    _
  %v15 = vld [vmem:[%s0] sm:$0xff]
  %v16 = vld [vmem:[%s0 + $0x8] sm:$0xff]
  %v17 = vld [vmem:[%s0 + $0x10] sm:$0xff]
  %v18 = vld [vmem:[%s0 + $0x18] sm:$0xff]
  %v19 = vld [vmem:[%s0 + $0x20] sm:$0xff]
  %v20 = vld [vmem:[%s0 + $0x28] sm:$0xff]
  %v21 = vld [vmem:[%s0 + $0x30] sm:$0xff]
  %v22 = vld [vmem:[%s0 + $0x38] sm:$0xff]
  %v23 = vld [vmem:[%s0 + $0x40] sm:$0xff]
  %v24 = vld [vmem:[%s0 + $0x48] sm:$0xff]
  %v25 = vld [vmem:[%s0 + $0x50] sm:$0xff]
  %v26 = vld [vmem:[%s0 + $0x58] sm:$0xff]
  %v27 = vld [vmem:[%s0 + $0x60] sm:$0xff]
  %v28 = vld [vmem:[%s0 + $0x68] sm:$0xff]
  %v29 = vld [vmem:[%s0 + $0x70] sm:$0xff]
  %v30 = vld [vmem:[%s0 + $0x78] sm:$0xff]
  %v31 = vpack.c.bf16 %v16, %v15
  %v32 = vpack.c.bf16 %v18, %v17
  %v33 = vpack.c.bf16 %v20, %v19
  %v34 = vpack.c.bf16 %v22, %v21
  %v35 = vpack.c.bf16 %v24, %v23
  %v36 = vpack.c.bf16 %v26, %v25
  %v37 = vpack.c.bf16 %v28, %v27
  %v38 = vpack.c.bf16 %v30, %v29
  %v39 = vld [vmem:[%s1] sm:$0xff]
  %v40 = vld [vmem:[%s1 + $0x8] sm:$0xff]
  %v41 = vld [vmem:[%s1 + $0x10] sm:$0xff]
  %v42 = vld [vmem:[%s1 + $0x18] sm:$0xff]
  %v43 = vld [vmem:[%s1 + $0x20] sm:$0xff]
  %v44 = vld [vmem:[%s1 + $0x28] sm:$0xff]
  %v45 = vld [vmem:[%s1 + $0x30] sm:$0xff]
  %v46 = vld [vmem:[%s1 + $0x38] sm:$0xff]
  %v47 = vld [vmem:[%s1 + $0x40] sm:$0xff]
  %v48 = vld [vmem:[%s1 + $0x48] sm:$0xff]
  %v49 = vld [vmem:[%s1 + $0x50] sm:$0xff]
  %v50 = vld [vmem:[%s1 + $0x58] sm:$0xff]
  %v51 = vld [vmem:[%s1 + $0x60] sm:$0xff]
  %v52 = vld [vmem:[%s1 + $0x68] sm:$0xff]
  %v53 = vld [vmem:[%s1 + $0x70] sm:$0xff]
  %v54 = vld [vmem:[%s1 + $0x78] sm:$0xff]
  %v55 = vpack.c.bf16 %v40, %v39
  %v56 = vpack.c.bf16 %v42, %v41
  %v57 = vpack.c.bf16 %v44, %v43
  %v58 = vpack.c.bf16 %v46, %v45
  %v59 = vpack.c.bf16 %v48, %v47
  %v60 = vpack.c.bf16 %v50, %v49
  %v61 = vpack.c.bf16 %v52, %v51
  %v62 = vpack.c.bf16 %v54, %v53
  %v63 = vld [vmem:[%s2] sm:$0x1]
  %v65 = vlaneseq
  %v66 = vshrl.u32 %v65, 7
  %v67 = vsub.s32 0, %v66
  %v68 = vrot.slane %v63, %v67
  %70 = vmatprep.subr.bf16.mxu0 0
  %71 = vmatpush1.bf16.msra.mxu0 %v55
  %72 = vmatprep.subr.bf16.mxu0 0
  %73 = vmatpush1.bf16.msra.mxu0 %v56
  %74 = vmatprep.subr.bf16.mxu0 0
  %75 = vmatpush1.bf16.msra.mxu0 %v57
  %76 = vmatprep.subr.bf16.mxu0 0
  %77 = vmatpush1.bf16.msra.mxu0 %v58
  %78 = vmatprep.subr.bf16.mxu0 0
  %79 = vmatpush1.bf16.msra.mxu0 %v59
  %80 = vmatprep.subr.bf16.mxu0 0
  %81 = vmatpush1.bf16.msra.mxu0 %v60
  %82 = vmatprep.subr.bf16.mxu0 0
  %83 = vmatpush1.bf16.msra.mxu0 %v61
  %84 = vmatprep.subr.bf16.mxu0 0
  %85 = vmatpush1.bf16.msra.mxu0 %v62
  %86 = vmatprep.subr.bf16.mxu0 0
  %87 = vmatpush1.bf16.msra.mxu0 0
  %88 = vmatprep.subr.bf16.mxu0 0
  %89 = vmatpush1.bf16.msra.mxu0 0
  %90 = vmatprep.subr.bf16.mxu0 0
  %91 = vmatpush1.bf16.msra.mxu0 0
  %92 = vmatprep.subr.bf16.mxu0 0
  %93 = vmatpush1.bf16.msra.mxu0 0
  %94 = vmatprep.subr.bf16.mxu0 0
  %95 = vmatpush1.bf16.msra.mxu0 0
  %96 = vmatprep.subr.bf16.mxu0 0
  %97 = vmatpush1.bf16.msra.mxu0 0
  %98 = vmatprep.subr.bf16.mxu0 0
  %99 = vmatpush1.bf16.msra.mxu0 0
  %100 = vmatprep.subr.bf16.mxu0 0
  %101 = vmatpush1.bf16.msra.mxu0 0
  %102 = vmatprep.mubr.bf16.mxu0 0
  %103 = vmatmul.mubr.bf16.gmra.mrb[0].mxu0 %v31
  %v104 = vpop.f32.mrb[0].mxu0
  %v105 = vadd.f32 %v68, %v104
  %v106 = vpop.f32.mrb[0].mxu0
  %v107 = vpop.f32.mrb[0].mxu0
  %v108 = vadd.f32 %v68, %v107
  %v109 = vpop.f32.mrb[0].mxu0
  %110 = vmatprep.mubr.bf16.mxu0 0
  %111 = vmatmul.mubr.bf16.gmra.mrb[0].mxu0 %v32
  %v112 = vpop.f32.mrb[0].mxu0
  %v113 = vadd.f32 %v68, %v112
  %v114 = vpop.f32.mrb[0].mxu0
  %v115 = vpop.f32.mrb[0].mxu0
  %v116 = vadd.f32 %v68, %v115
  %v117 = vpop.f32.mrb[0].mxu0
  %118 = vmatprep.mubr.bf16.mxu0 0
  %119 = vmatmul.mubr.bf16.gmra.mrb[0].mxu0 %v33
  %v120 = vpop.f32.mrb[0].mxu0
  %v121 = vadd.f32 %v68, %v120
  %v122 = vpop.f32.mrb[0].mxu0
  %v123 = vpop.f32.mrb[0].mxu0
  %v124 = vadd.f32 %v68, %v123
  %v125 = vpop.f32.mrb[0].mxu0
  %126 = vmatprep.mubr.bf16.mxu0 0
  %127 = vmatmul.mubr.bf16.gmra.mrb[0].mxu0 %v34
  %v128 = vpop.f32.mrb[0].mxu0
  %v129 = vadd.f32 %v68, %v128
  %v130 = vpop.f32.mrb[0].mxu0
  %v131 = vpop.f32.mrb[0].mxu0
  %v132 = vadd.f32 %v68, %v131
  %v133 = vpop.f32.mrb[0].mxu0
  %134 = vmatprep.mubr.bf16.mxu0 0
  %135 = vmatmul.mubr.bf16.gmra.mrb[0].mxu0 %v35
  %v136 = vpop.f32.mrb[0].mxu0
  %v137 = vadd.f32 %v68, %v136
  %v138 = vpop.f32.mrb[0].mxu0
  %v139 = vpop.f32.mrb[0].mxu0
  %v140 = vadd.f32 %v68, %v139
  %v141 = vpop.f32.mrb[0].mxu0
  %142 = vmatprep.mubr.bf16.mxu0 0
  %143 = vmatmul.mubr.bf16.gmra.mrb[0].mxu0 %v36
  %v144 = vpop.f32.mrb[0].mxu0
  %v145 = vadd.f32 %v68, %v144
  %v146 = vpop.f32.mrb[0].mxu0
  %v147 = vpop.f32.mrb[0].mxu0
  %v148 = vadd.f32 %v68, %v147
  %v149 = vpop.f32.mrb[0].mxu0
  %150 = vmatprep.mubr.bf16.mxu0 0
  %151 = vmatmul.mubr.bf16.gmra.mrb[0].mxu0 %v37
  %v152 = vpop.f32.mrb[0].mxu0
  %v153 = vadd.f32 %v68, %v152
  %v154 = vpop.f32.mrb[0].mxu0
  %v155 = vpop.f32.mrb[0].mxu0
  %v156 = vadd.f32 %v68, %v155
  %v157 = vpop.f32.mrb[0].mxu0
  %158 = vmatprep.mubr.bf16.mxu0 0
  %159 = vmatmul.mubr.bf16.gmra.mrb[0].mxu0 %v38
  %v160 = vpop.f32.mrb[0].mxu0
  %v161 = vadd.f32 %v68, %v160
  %v162 = vpop.f32.mrb[0].mxu0
  %v163 = vpop.f32.mrb[0].mxu0
  %v164 = vadd.f32 %v68, %v163
  %v165 = vpop.f32.mrb[0].mxu0
  %166 = vdwg.mxu0
  %v167 = vmax.f32 %v105, 0.0
  %v168 = vmax.f32 %v108, 0.0
  %v169 = vmax.f32 %v113, 0.0
  %v170 = vmax.f32 %v116, 0.0
  %v171 = vmax.f32 %v121, 0.0
  %v172 = vmax.f32 %v124, 0.0
  %v173 = vmax.f32 %v129, 0.0
  %v174 = vmax.f32 %v132, 0.0
  %v175 = vmax.f32 %v137, 0.0
  %v176 = vmax.f32 %v140, 0.0
  %v177 = vmax.f32 %v145, 0.0
  %v178 = vmax.f32 %v148, 0.0
  %v179 = vmax.f32 %v153, 0.0
  %v180 = vmax.f32 %v156, 0.0
  %v181 = vmax.f32 %v161, 0.0
  %v182 = vmax.f32 %v164, 0.0
  %183 = vst [vmem:[%s3] sm:$0xff] %v167
  %184 = vst [vmem:[%s3 + $0x8] sm:$0xff] %v168
  %185 = vst [vmem:[%s3 + $0x10] sm:$0xff] %v169
  %186 = vst [vmem:[%s3 + $0x18] sm:$0xff] %v170
  %187 = vst [vmem:[%s3 + $0x20] sm:$0xff] %v171
  %188 = vst [vmem:[%s3 + $0x28] sm:$0xff] %v172
  %189 = vst [vmem:[%s3 + $0x30] sm:$0xff] %v173
  %190 = vst [vmem:[%s3 + $0x38] sm:$0xff] %v174
  %191 = vst [vmem:[%s3 + $0x40] sm:$0xff] %v175
  %192 = vst [vmem:[%s3 + $0x48] sm:$0xff] %v176
  %193 = vst [vmem:[%s3 + $0x50] sm:$0xff] %v177
  %194 = vst [vmem:[%s3 + $0x58] sm:$0xff] %v178
  %195 = vst [vmem:[%s3 + $0x60] sm:$0xff] %v179
  %196 = vst [vmem:[%s3 + $0x68] sm:$0xff] %v180
  %197 = vst [vmem:[%s3 + $0x70] sm:$0xff] %v181
  %198 = vst [vmem:[%s3 + $0x78] sm:$0xff] %v182
  // Predicated region
  $region14: #{vision_transformer_forward.32} parent=0 // pred_check
    _
  $region15: #{vision_transformer_forward.32} parent=0 // pred_check_branch
    %200 = sbr.rel (0) target = $region17
  $region16: #{vision_transformer_forward.32} parent=0 // pred_region
    _
  $region17: #{vision_transformer_forward.32} parent=0 // pred_fallthru
    _
  // Predicated region
  $region18: #{vision_transformer_forward.32} parent=0 // pred_check
    _
  $region19: #{vision_transformer_forward.32} parent=0 // pred_check_branch
    %202 = sbr.rel (0) target = $region21
  $region20: #{vision_transformer_forward.32} parent=0 // pred_region
    _
  $region21: #{vision_transformer_forward.32} parent=0 // pred_fallthru
    _

// kernel: vision_transformer_forward.33
$region0: #{vision_transformer_forward.33}
  #allocation0 [shape = 'u32[]', space=smem, size = 0x4, offset = 0x4, fixed_abs, tag = 'smem constant byte address 0x4 - core index']
  #allocation1 [shape = 'u32[144,128]{1,0:T(1,128)}', space=vmem, size = 0x12000, scoped, tag = 'internal scratch']
  %s0 = inlined_call_operand.vmem [shape: f32[512,128], index: 0, kind: input, shape index: {}]
  %s1 = inlined_call_operand.vmem [shape: f32[128,128], index: 1, kind: input, shape index: {}]
  %s2 = inlined_call_operand.vmem [shape: f32[1,128], index: 2, kind: input, shape index: {}]
  %s3 = inlined_call_operand.vmem [shape: f32[512,128], index: 3, kind: output, shape index: {}]
  %s4 = sld [smem:[#allocation0]]
  $region22: #{vision_transformer_forward.33} parent=0
    _
  %s6 = ssub.s32 1, %s4
  %s7 = scalar_select 0, %s6, %s4
  // Predicated region
  $region2: #{vision_transformer_forward.33} parent=0 // pred_check
    _
  $region3: #{vision_transformer_forward.33} parent=0 // pred_check_branch
    %9 = sbr.rel (0) target = $region5
  $region4: #{vision_transformer_forward.33} parent=0 // pred_region
    _
  $region5: #{vision_transformer_forward.33} parent=0 // pred_fallthru
    _
  // Predicated region
  $region6: #{vision_transformer_forward.33} parent=0 // pred_check
    _
  $region7: #{vision_transformer_forward.33} parent=0 // pred_check_branch
    %11 = sbr.rel (0) target = $region9
  $region8: #{vision_transformer_forward.33} parent=0 // pred_region
    _
  $region9: #{vision_transformer_forward.33} parent=0 // pred_fallthru
    _
  // Predicated region
  $region10: #{vision_transformer_forward.33} parent=0 // pred_check
    _
  $region11: #{vision_transformer_forward.33} parent=0 // pred_check_branch
    %13 = sbr.rel (0) target = $region13
  $region12: #{vision_transformer_forward.33} parent=0 // pred_region
    _
  $region13: #{vision_transformer_forward.33} parent=0 // pred_fallthru
    _
  %v15 = vld [vmem:[%s0] sm:$0xff]
  %v16 = vld [vmem:[%s0 + $0x8] sm:$0xff]
  %v17 = vld [vmem:[%s0 + $0x10] sm:$0xff]
  %v18 = vld [vmem:[%s0 + $0x18] sm:$0xff]
  %v19 = vld [vmem:[%s0 + $0x20] sm:$0xff]
  %v20 = vld [vmem:[%s0 + $0x28] sm:$0xff]
  %v21 = vld [vmem:[%s0 + $0x30] sm:$0xff]
  %v22 = vld [vmem:[%s0 + $0x38] sm:$0xff]
  %v23 = vld [vmem:[%s0 + $0x40] sm:$0xff]
  %v24 = vld [vmem:[%s0 + $0x48] sm:$0xff]
  %v25 = vld [vmem:[%s0 + $0x50] sm:$0xff]
  %v26 = vld [vmem:[%s0 + $0x58] sm:$0xff]
  %v27 = vld [vmem:[%s0 + $0x60] sm:$0xff]
  %v28 = vld [vmem:[%s0 + $0x68] sm:$0xff]
  %v29 = vld [vmem:[%s0 + $0x70] sm:$0xff]
  %v30 = vld [vmem:[%s0 + $0x78] sm:$0xff]
  %v31 = vld [vmem:[%s0 + $0x80] sm:$0xff]
  %v32 = vld [vmem:[%s0 + $0x88] sm:$0xff]
  %v33 = vld [vmem:[%s0 + $0x90] sm:$0xff]
  %v34 = vld [vmem:[%s0 + $0x98] sm:$0xff]
  %v35 = vld [vmem:[%s0 + $0xa0] sm:$0xff]
  %v36 = vld [vmem:[%s0 + $0xa8] sm:$0xff]
  %v37 = vld [vmem:[%s0 + $0xb0] sm:$0xff]
  %v38 = vld [vmem:[%s0 + $0xb8] sm:$0xff]
  %v39 = vld [vmem:[%s0 + $0xc0] sm:$0xff]
  %v40 = vld [vmem:[%s0 + $0xc8] sm:$0xff]
  %v41 = vld [vmem:[%s0 + $0xd0] sm:$0xff]
  %v42 = vld [vmem:[%s0 + $0xd8] sm:$0xff]
  %v43 = vld [vmem:[%s0 + $0xe0] sm:$0xff]
  %v44 = vld [vmem:[%s0 + $0xe8] sm:$0xff]
  %v45 = vld [vmem:[%s0 + $0xf0] sm:$0xff]
  %v46 = vld [vmem:[%s0 + $0xf8] sm:$0xff]
  %v47 = vld [vmem:[%s0 + $0x100] sm:$0xff]
  %v48 = vld [vmem:[%s0 + $0x108] sm:$0xff]
  %v49 = vld [vmem:[%s0 + $0x110] sm:$0xff]
  %v50 = vld [vmem:[%s0 + $0x118] sm:$0xff]
  %v51 = vld [vmem:[%s0 + $0x120] sm:$0xff]
  %v52 = vld [vmem:[%s0 + $0x128] sm:$0xff]
  %v53 = vld [vmem:[%s0 + $0x130] sm:$0xff]
  %v54 = vld [vmem:[%s0 + $0x138] sm:$0xff]
  %v55 = vld [vmem:[%s0 + $0x140] sm:$0xff]
  %v56 = vld [vmem:[%s0 + $0x148] sm:$0xff]
  %v57 = vld [vmem:[%s0 + $0x150] sm:$0xff]
  %v58 = vld [vmem:[%s0 + $0x158] sm:$0xff]
  %v59 = vld [vmem:[%s0 + $0x160] sm:$0xff]
  %v60 = vld [vmem:[%s0 + $0x168] sm:$0xff]
  %v61 = vld [vmem:[%s0 + $0x170] sm:$0xff]
  %v62 = vld [vmem:[%s0 + $0x178] sm:$0xff]
  %v63 = vld [vmem:[%s0 + $0x180] sm:$0xff]
  %v64 = vld [vmem:[%s0 + $0x188] sm:$0xff]
  %v65 = vld [vmem:[%s0 + $0x190] sm:$0xff]
  %v66 = vld [vmem:[%s0 + $0x198] sm:$0xff]
  %v67 = vld [vmem:[%s0 + $0x1a0] sm:$0xff]
  %v68 = vld [vmem:[%s0 + $0x1a8] sm:$0xff]
  %v69 = vld [vmem:[%s0 + $0x1b0] sm:$0xff]
  %v70 = vld [vmem:[%s0 + $0x1b8] sm:$0xff]
  %v71 = vld [vmem:[%s0 + $0x1c0] sm:$0xff]
  %v72 = vld [vmem:[%s0 + $0x1c8] sm:$0xff]
  %v73 = vld [vmem:[%s0 + $0x1d0] sm:$0xff]
  %v74 = vld [vmem:[%s0 + $0x1d8] sm:$0xff]
  %v75 = vld [vmem:[%s0 + $0x1e0] sm:$0xff]
  %v76 = vld [vmem:[%s0 + $0x1e8] sm:$0xff]
  %v77 = vld [vmem:[%s0 + $0x1f0] sm:$0xff]
  %v78 = vld [vmem:[%s0 + $0x1f8] sm:$0xff]
  %v79 = vpack.c.bf16 %v16, %v15
  %v80 = vpack.c.bf16 %v18, %v17
  %v81 = vpack.c.bf16 %v20, %v19
  %v82 = vpack.c.bf16 %v22, %v21
  %v83 = vpack.c.bf16 %v24, %v23
  %v84 = vpack.c.bf16 %v26, %v25
  %v85 = vpack.c.bf16 %v28, %v27
  %v86 = vpack.c.bf16 %v30, %v29
  %v87 = vpack.c.bf16 %v32, %v31
  %v88 = vpack.c.bf16 %v34, %v33
  %v89 = vpack.c.bf16 %v36, %v35
  %v90 = vpack.c.bf16 %v38, %v37
  %v91 = vpack.c.bf16 %v40, %v39
  %v92 = vpack.c.bf16 %v42, %v41
  %v93 = vpack.c.bf16 %v44, %v43
  %v94 = vpack.c.bf16 %v46, %v45
  %v95 = vpack.c.bf16 %v48, %v47
  %v96 = vpack.c.bf16 %v50, %v49
  %v97 = vpack.c.bf16 %v52, %v51
  %v98 = vpack.c.bf16 %v54, %v53
  %v99 = vpack.c.bf16 %v56, %v55
  %v100 = vpack.c.bf16 %v58, %v57
  %v101 = vpack.c.bf16 %v60, %v59
  %v102 = vpack.c.bf16 %v62, %v61
  %v103 = vpack.c.bf16 %v64, %v63
  %v104 = vpack.c.bf16 %v66, %v65
  %v105 = vpack.c.bf16 %v68, %v67
  %v106 = vpack.c.bf16 %v70, %v69
  %v107 = vpack.c.bf16 %v72, %v71
  %v108 = vpack.c.bf16 %v74, %v73
  %v109 = vpack.c.bf16 %v76, %v75
  %v110 = vpack.c.bf16 %v78, %v77
  %v111 = vld [vmem:[%s1] sm:$0xff]
  %v112 = vld [vmem:[%s1 + $0x8] sm:$0xff]
  %v113 = vld [vmem:[%s1 + $0x10] sm:$0xff]
  %v114 = vld [vmem:[%s1 + $0x18] sm:$0xff]
  %v115 = vld [vmem:[%s1 + $0x20] sm:$0xff]
  %v116 = vld [vmem:[%s1 + $0x28] sm:$0xff]
  %v117 = vld [vmem:[%s1 + $0x30] sm:$0xff]
  %v118 = vld [vmem:[%s1 + $0x38] sm:$0xff]
  %v119 = vld [vmem:[%s1 + $0x40] sm:$0xff]
  %v120 = vld [vmem:[%s1 + $0x48] sm:$0xff]
  %v121 = vld [vmem:[%s1 + $0x50] sm:$0xff]
  %v122 = vld [vmem:[%s1 + $0x58] sm:$0xff]
  %v123 = vld [vmem:[%s1 + $0x60] sm:$0xff]
  %v124 = vld [vmem:[%s1 + $0x68] sm:$0xff]
  %v125 = vld [vmem:[%s1 + $0x70] sm:$0xff]
  %v126 = vld [vmem:[%s1 + $0x78] sm:$0xff]
  %v127 = vpack.c.bf16 %v112, %v111
  %v128 = vpack.c.bf16 %v114, %v113
  %v129 = vpack.c.bf16 %v116, %v115
  %v130 = vpack.c.bf16 %v118, %v117
  %v131 = vpack.c.bf16 %v120, %v119
  %v132 = vpack.c.bf16 %v122, %v121
  %v133 = vpack.c.bf16 %v124, %v123
  %v134 = vpack.c.bf16 %v126, %v125
  %v135 = vld [vmem:[%s2] sm:$0x1]
  %v137 = vlaneseq
  %v138 = vshrl.u32 %v137, 7
  %v139 = vsub.s32 0, %v138
  %v140 = vrot.slane %v135, %v139
  %142 = vmatprep.subr.bf16.mxu0 0
  %143 = vmatpush1.bf16.msra.mxu0 %v127
  %144 = vmatprep.subr.bf16.mxu0 0
  %145 = vmatpush1.bf16.msra.mxu0 %v128
  %146 = vmatprep.subr.bf16.mxu0 0
  %147 = vmatpush1.bf16.msra.mxu0 %v129
  %148 = vmatprep.subr.bf16.mxu0 0
  %149 = vmatpush1.bf16.msra.mxu0 %v130
  %150 = vmatprep.subr.bf16.mxu0 0
  %151 = vmatpush1.bf16.msra.mxu0 %v131
  %152 = vmatprep.subr.bf16.mxu0 0
  %153 = vmatpush1.bf16.msra.mxu0 %v132
  %154 = vmatprep.subr.bf16.mxu0 0
  %155 = vmatpush1.bf16.msra.mxu0 %v133
  %156 = vmatprep.subr.bf16.mxu0 0
  %157 = vmatpush1.bf16.msra.mxu0 %v134
  %158 = vmatprep.subr.bf16.mxu0 0
  %159 = vmatpush1.bf16.msra.mxu0 0
  %160 = vmatprep.subr.bf16.mxu0 0
  %161 = vmatpush1.bf16.msra.mxu0 0
  %162 = vmatprep.subr.bf16.mxu0 0
  %163 = vmatpush1.bf16.msra.mxu0 0
  %164 = vmatprep.subr.bf16.mxu0 0
  %165 = vmatpush1.bf16.msra.mxu0 0
  %166 = vmatprep.subr.bf16.mxu0 0
  %167 = vmatpush1.bf16.msra.mxu0 0
  %168 = vmatprep.subr.bf16.mxu0 0
  %169 = vmatpush1.bf16.msra.mxu0 0
  %170 = vmatprep.subr.bf16.mxu0 0
  %171 = vmatpush1.bf16.msra.mxu0 0
  %172 = vmatprep.subr.bf16.mxu0 0
  %173 = vmatpush1.bf16.msra.mxu0 0
  %174 = vmatprep.mubr.bf16.mxu0 0
  %175 = vmatmul.mubr.bf16.gmra.mrb[0].mxu0 %v79
  %v176 = vpop.f32.mrb[0].mxu0
  %v177 = vadd.f32 %v140, %v176
  %v178 = vpop.f32.mrb[0].mxu0
  %v179 = vpop.f32.mrb[0].mxu0
  %v180 = vadd.f32 %v140, %v179
  %v181 = vpop.f32.mrb[0].mxu0
  %182 = vmatprep.mubr.bf16.mxu0 0
  %183 = vmatmul.mubr.bf16.gmra.mrb[0].mxu0 %v80
  %v184 = vpop.f32.mrb[0].mxu0
  %v185 = vadd.f32 %v140, %v184
  %v186 = vpop.f32.mrb[0].mxu0
  %v187 = vpop.f32.mrb[0].mxu0
  %v188 = vadd.f32 %v140, %v187
  %v189 = vpop.f32.mrb[0].mxu0
  %190 = vmatprep.mubr.bf16.mxu0 0
  %191 = vmatmul.mubr.bf16.gmra.mrb[0].mxu0 %v81
  %v192 = vpop.f32.mrb[0].mxu0
  %v193 = vadd.f32 %v140, %v192
  %v194 = vpop.f32.mrb[0].mxu0
  %v195 = vpop.f32.mrb[0].mxu0
  %v196 = vadd.f32 %v140, %v195
  %v197 = vpop.f32.mrb[0].mxu0
  %198 = vmatprep.mubr.bf16.mxu0 0
  %199 = vmatmul.mubr.bf16.gmra.mrb[0].mxu0 %v82
  %v200 = vpop.f32.mrb[0].mxu0
  %v201 = vadd.f32 %v140, %v200
  %v202 = vpop.f32.mrb[0].mxu0
  %v203 = vpop.f32.mrb[0].mxu0
  %v204 = vadd.f32 %v140, %v203
  %v205 = vpop.f32.mrb[0].mxu0
  %206 = vmatprep.mubr.bf16.mxu0 0
  %207 = vmatmul.mubr.bf16.gmra.mrb[0].mxu0 %v83
  %v208 = vpop.f32.mrb[0].mxu0
  %v209 = vadd.f32 %v140, %v208
  %v210 = vpop.f32.mrb[0].mxu0
  %v211 = vpop.f32.mrb[0].mxu0
  %v212 = vadd.f32 %v140, %v211
  %v213 = vpop.f32.mrb[0].mxu0
  %214 = vmatprep.mubr.bf16.mxu0 0
  %215 = vmatmul.mubr.bf16.gmra.mrb[0].mxu0 %v84
  %v216 = vpop.f32.mrb[0].mxu0
  %v217 = vadd.f32 %v140, %v216
  %v218 = vpop.f32.mrb[0].mxu0
  %v219 = vpop.f32.mrb[0].mxu0
  %v220 = vadd.f32 %v140, %v219
  %v221 = vpop.f32.mrb[0].mxu0
  %222 = vmatprep.mubr.bf16.mxu0 0
  %223 = vmatmul.mubr.bf16.gmra.mrb[0].mxu0 %v85
  %v224 = vpop.f32.mrb[0].mxu0
  %v225 = vadd.f32 %v140, %v224
  %v226 = vpop.f32.mrb[0].mxu0
  %v227 = vpop.f32.mrb[0].mxu0
  %v228 = vadd.f32 %v140, %v227
  %v229 = vpop.f32.mrb[0].mxu0
  %230 = vmatprep.mubr.bf16.mxu0 0
  %231 = vmatmul.mubr.bf16.gmra.mrb[0].mxu0 %v86
  %v232 = vpop.f32.mrb[0].mxu0
  %v233 = vadd.f32 %v140, %v232
  %v234 = vpop.f32.mrb[0].mxu0
  %v235 = vpop.f32.mrb[0].mxu0
  %v236 = vadd.f32 %v140, %v235
  %v237 = vpop.f32.mrb[0].mxu0
  %238 = vmatprep.mubr.bf16.mxu0 0
  %239 = vmatmul.mubr.bf16.gmra.mrb[0].mxu0 %v87
  %v240 = vpop.f32.mrb[0].mxu0
  %v241 = vadd.f32 %v140, %v240
  %v242 = vpop.f32.mrb[0].mxu0
  %v243 = vpop.f32.mrb[0].mxu0
  %v244 = vadd.f32 %v140, %v243
  %v245 = vpop.f32.mrb[0].mxu0
  %246 = vmatprep.mubr.bf16.mxu0 0
  %247 = vmatmul.mubr.bf16.gmra.mrb[0].mxu0 %v88
  %v248 = vpop.f32.mrb[0].mxu0
  %v249 = vadd.f32 %v140, %v248
  %v250 = vpop.f32.mrb[0].mxu0
  %v251 = vpop.f32.mrb[0].mxu0
  %v252 = vadd.f32 %v140, %v251
  %v253 = vpop.f32.mrb[0].mxu0
  %254 = vmatprep.mubr.bf16.mxu0 0
  %255 = vmatmul.mubr.bf16.gmra.mrb[0].mxu0 %v89
  %v256 = vpop.f32.mrb[0].mxu0
  %v257 = vadd.f32 %v140, %v256
  %v258 = vpop.f32.mrb[0].mxu0
  %v259 = vpop.f32.mrb[0].mxu0
  %v260 = vadd.f32 %v140, %v259
  %v261 = vpop.f32.mrb[0].mxu0
  %262 = vmatprep.mubr.bf16.mxu0 0
  %263 = vmatmul.mubr.bf16.gmra.mrb[0].mxu0 %v90
  %v264 = vpop.f32.mrb[0].mxu0
  %v265 = vadd.f32 %v140, %v264
  %v266 = vpop.f32.mrb[0].mxu0
  %v267 = vpop.f32.mrb[0].mxu0
  %v268 = vadd.f32 %v140, %v267
  %v269 = vpop.f32.mrb[0].mxu0
  %270 = vmatprep.mubr.bf16.mxu0 0
  %271 = vmatmul.mubr.bf16.gmra.mrb[0].mxu0 %v91
  %v272 = vpop.f32.mrb[0].mxu0
  %v273 = vadd.f32 %v140, %v272
  %v274 = vpop.f32.mrb[0].mxu0
  %v275 = vpop.f32.mrb[0].mxu0
  %v276 = vadd.f32 %v140, %v275
  %v277 = vpop.f32.mrb[0].mxu0
  %278 = vmatprep.mubr.bf16.mxu0 0
  %279 = vmatmul.mubr.bf16.gmra.mrb[0].mxu0 %v92
  %v280 = vpop.f32.mrb[0].mxu0
  %v281 = vadd.f32 %v140, %v280
  %v282 = vpop.f32.mrb[0].mxu0
  %v283 = vpop.f32.mrb[0].mxu0
  %v284 = vadd.f32 %v140, %v283
  %v285 = vpop.f32.mrb[0].mxu0
  %286 = vmatprep.mubr.bf16.mxu0 0
  %287 = vmatmul.mubr.bf16.gmra.mrb[0].mxu0 %v93
  %v288 = vpop.f32.mrb[0].mxu0
  %v289 = vadd.f32 %v140, %v288
  %v290 = vpop.f32.mrb[0].mxu0
  %v291 = vpop.f32.mrb[0].mxu0
  %v292 = vadd.f32 %v140, %v291
  %v293 = vpop.f32.mrb[0].mxu0
  %294 = vmatprep.mubr.bf16.mxu0 0
  %295 = vmatmul.mubr.bf16.gmra.mrb[0].mxu0 %v94
  %v296 = vpop.f32.mrb[0].mxu0
  %v297 = vadd.f32 %v140, %v296
  %v298 = vpop.f32.mrb[0].mxu0
  %v299 = vpop.f32.mrb[0].mxu0
  %v300 = vadd.f32 %v140, %v299
  %v301 = vpop.f32.mrb[0].mxu0
  %302 = vmatprep.mubr.bf16.mxu0 0
  %303 = vmatmul.mubr.bf16.gmra.mrb[0].mxu0 %v95
  %v304 = vpop.f32.mrb[0].mxu0
  %v305 = vadd.f32 %v140, %v304
  %v306 = vpop.f32.mrb[0].mxu0
  %v307 = vpop.f32.mrb[0].mxu0
  %v308 = vadd.f32 %v140, %v307
  %v309 = vpop.f32.mrb[0].mxu0
  %310 = vmatprep.mubr.bf16.mxu0 0
  %311 = vmatmul.mubr.bf16.gmra.mrb[0].mxu0 %v96
  %v312 = vpop.f32.mrb[0].mxu0
  %v313 = vadd.f32 %v140, %v312
  %v314 = vpop.f32.mrb[0].mxu0
  %v315 = vpop.f32.mrb[0].mxu0
  %v316 = vadd.f32 %v140, %v315
  %v317 = vpop.f32.mrb[0].mxu0
  %318 = vmatprep.mubr.bf16.mxu0 0
  %319 = vmatmul.mubr.bf16.gmra.mrb[0].mxu0 %v97
  %v320 = vpop.f32.mrb[0].mxu0
  %v321 = vadd.f32 %v140, %v320
  %v322 = vpop.f32.mrb[0].mxu0
  %v323 = vpop.f32.mrb[0].mxu0
  %v324 = vadd.f32 %v140, %v323
  %v325 = vpop.f32.mrb[0].mxu0
  %326 = vmatprep.mubr.bf16.mxu0 0
  %327 = vmatmul.mubr.bf16.gmra.mrb[0].mxu0 %v98
  %v328 = vpop.f32.mrb[0].mxu0
  %v329 = vadd.f32 %v140, %v328
  %v330 = vpop.f32.mrb[0].mxu0
  %v331 = vpop.f32.mrb[0].mxu0
  %v332 = vadd.f32 %v140, %v331
  %v333 = vpop.f32.mrb[0].mxu0
  %334 = vmatprep.mubr.bf16.mxu0 0
  %335 = vmatmul.mubr.bf16.gmra.mrb[0].mxu0 %v99
  %v336 = vpop.f32.mrb[0].mxu0
  %v337 = vadd.f32 %v140, %v336
  %v338 = vpop.f32.mrb[0].mxu0
  %v339 = vpop.f32.mrb[0].mxu0
  %v340 = vadd.f32 %v140, %v339
  %v341 = vpop.f32.mrb[0].mxu0
  %342 = vmatprep.mubr.bf16.mxu0 0
  %343 = vmatmul.mubr.bf16.gmra.mrb[0].mxu0 %v100
  %v344 = vpop.f32.mrb[0].mxu0
  %v345 = vadd.f32 %v140, %v344
  %v346 = vpop.f32.mrb[0].mxu0
  %v347 = vpop.f32.mrb[0].mxu0
  %v348 = vadd.f32 %v140, %v347
  %v349 = vpop.f32.mrb[0].mxu0
  %350 = vmatprep.mubr.bf16.mxu0 0
  %351 = vmatmul.mubr.bf16.gmra.mrb[0].mxu0 %v101
  %v352 = vpop.f32.mrb[0].mxu0
  %v353 = vadd.f32 %v140, %v352
  %v354 = vpop.f32.mrb[0].mxu0
  %v355 = vpop.f32.mrb[0].mxu0
  %v356 = vadd.f32 %v140, %v355
  %v357 = vpop.f32.mrb[0].mxu0
  %358 = vmatprep.mubr.bf16.mxu0 0
  %359 = vmatmul.mubr.bf16.gmra.mrb[0].mxu0 %v102
  %v360 = vpop.f32.mrb[0].mxu0
  %v361 = vadd.f32 %v140, %v360
  %v362 = vpop.f32.mrb[0].mxu0
  %v363 = vpop.f32.mrb[0].mxu0
  %v364 = vadd.f32 %v140, %v363
  %v365 = vpop.f32.mrb[0].mxu0
  %366 = vmatprep.mubr.bf16.mxu0 0
  %367 = vmatmul.mubr.bf16.gmra.mrb[0].mxu0 %v103
  %v368 = vpop.f32.mrb[0].mxu0
  %v369 = vadd.f32 %v140, %v368
  %v370 = vpop.f32.mrb[0].mxu0
  %v371 = vpop.f32.mrb[0].mxu0
  %v372 = vadd.f32 %v140, %v371
  %v373 = vpop.f32.mrb[0].mxu0
  %374 = vmatprep.mubr.bf16.mxu0 0
  %375 = vmatmul.mubr.bf16.gmra.mrb[0].mxu0 %v104
  %v376 = vpop.f32.mrb[0].mxu0
  %v377 = vadd.f32 %v140, %v376
  %v378 = vpop.f32.mrb[0].mxu0
  %v379 = vpop.f32.mrb[0].mxu0
  %v380 = vadd.f32 %v140, %v379
  %v381 = vpop.f32.mrb[0].mxu0
  %382 = vmatprep.mubr.bf16.mxu0 0
  %383 = vmatmul.mubr.bf16.gmra.mrb[0].mxu0 %v105
  %v384 = vpop.f32.mrb[0].mxu0
  %v385 = vadd.f32 %v140, %v384
  %v386 = vpop.f32.mrb[0].mxu0
  %v387 = vpop.f32.mrb[0].mxu0
  %v388 = vadd.f32 %v140, %v387
  %v389 = vpop.f32.mrb[0].mxu0
  %390 = vmatprep.mubr.bf16.mxu0 0
  %391 = vmatmul.mubr.bf16.gmra.mrb[0].mxu0 %v106
  %v392 = vpop.f32.mrb[0].mxu0
  %v393 = vadd.f32 %v140, %v392
  %v394 = vpop.f32.mrb[0].mxu0
  %v395 = vpop.f32.mrb[0].mxu0
  %v396 = vadd.f32 %v140, %v395
  %v397 = vpop.f32.mrb[0].mxu0
  %398 = vmatprep.mubr.bf16.mxu0 0
  %399 = vmatmul.mubr.bf16.gmra.mrb[0].mxu0 %v107
  %v400 = vpop.f32.mrb[0].mxu0
  %v401 = vadd.f32 %v140, %v400
  %v402 = vpop.f32.mrb[0].mxu0
  %v403 = vpop.f32.mrb[0].mxu0
  %v404 = vadd.f32 %v140, %v403
  %v405 = vpop.f32.mrb[0].mxu0
  %406 = vmatprep.mubr.bf16.mxu0 0
  %407 = vmatmul.mubr.bf16.gmra.mrb[0].mxu0 %v108
  %v408 = vpop.f32.mrb[0].mxu0
  %v409 = vadd.f32 %v140, %v408
  %v410 = vpop.f32.mrb[0].mxu0
  %v411 = vpop.f32.mrb[0].mxu0
  %v412 = vadd.f32 %v140, %v411
  %v413 = vpop.f32.mrb[0].mxu0
  %414 = vmatprep.mubr.bf16.mxu0 0
  %415 = vmatmul.mubr.bf16.gmra.mrb[0].mxu0 %v109
  %v416 = vpop.f32.mrb[0].mxu0
  %v417 = vadd.f32 %v140, %v416
  %v418 = vpop.f32.mrb[0].mxu0
  %v419 = vpop.f32.mrb[0].mxu0
  %v420 = vadd.f32 %v140, %v419
  %v421 = vpop.f32.mrb[0].mxu0
  %422 = vmatprep.mubr.bf16.mxu0 0
  %423 = vmatmul.mubr.bf16.gmra.mrb[0].mxu0 %v110
  %v424 = vpop.f32.mrb[0].mxu0
  %v425 = vadd.f32 %v140, %v424
  %v426 = vpop.f32.mrb[0].mxu0
  %v427 = vpop.f32.mrb[0].mxu0
  %v428 = vadd.f32 %v140, %v427
  %v429 = vpop.f32.mrb[0].mxu0
  %430 = vdwg.mxu0
  %v431 = vmax.f32 %v177, 0.0
  %v432 = vmax.f32 %v180, 0.0
  %v433 = vmax.f32 %v185, 0.0
  %v434 = vmax.f32 %v188, 0.0
  %v435 = vmax.f32 %v193, 0.0
  %v436 = vmax.f32 %v196, 0.0
  %v437 = vmax.f32 %v201, 0.0
  %v438 = vmax.f32 %v204, 0.0
  %v439 = vmax.f32 %v209, 0.0
  %v440 = vmax.f32 %v212, 0.0
  %v441 = vmax.f32 %v217, 0.0
  %v442 = vmax.f32 %v220, 0.0
  %v443 = vmax.f32 %v225, 0.0
  %v444 = vmax.f32 %v228, 0.0
  %v445 = vmax.f32 %v233, 0.0
  %v446 = vmax.f32 %v236, 0.0
  %v447 = vmax.f32 %v241, 0.0
  %v448 = vmax.f32 %v244, 0.0
  %v449 = vmax.f32 %v249, 0.0
  %v450 = vmax.f32 %v252, 0.0
  %v451 = vmax.f32 %v257, 0.0
  %v452 = vmax.f32 %v260, 0.0
  %v453 = vmax.f32 %v265, 0.0
  %v454 = vmax.f32 %v268, 0.0
  %v455 = vmax.f32 %v273, 0.0
  %v456 = vmax.f32 %v276, 0.0
  %v457 = vmax.f32 %v281, 0.0
  %v458 = vmax.f32 %v284, 0.0
  %v459 = vmax.f32 %v289, 0.0
  %v460 = vmax.f32 %v292, 0.0
  %v461 = vmax.f32 %v297, 0.0
  %v462 = vmax.f32 %v300, 0.0
  %v463 = vmax.f32 %v305, 0.0
  %v464 = vmax.f32 %v308, 0.0
  %v465 = vmax.f32 %v313, 0.0
  %v466 = vmax.f32 %v316, 0.0
  %v467 = vmax.f32 %v321, 0.0
  %v468 = vmax.f32 %v324, 0.0
  %v469 = vmax.f32 %v329, 0.0
  %v470 = vmax.f32 %v332, 0.0
  %v471 = vmax.f32 %v337, 0.0
  %v472 = vmax.f32 %v340, 0.0
  %v473 = vmax.f32 %v345, 0.0
  %v474 = vmax.f32 %v348, 0.0
  %v475 = vmax.f32 %v353, 0.0
  %v476 = vmax.f32 %v356, 0.0
  %v477 = vmax.f32 %v361, 0.0
  %v478 = vmax.f32 %v364, 0.0
  %v479 = vmax.f32 %v369, 0.0
  %v480 = vmax.f32 %v372, 0.0
  %v481 = vmax.f32 %v377, 0.0
  %v482 = vmax.f32 %v380, 0.0
  %v483 = vmax.f32 %v385, 0.0
  %v484 = vmax.f32 %v388, 0.0
  %v485 = vmax.f32 %v393, 0.0
  %v486 = vmax.f32 %v396, 0.0
  %v487 = vmax.f32 %v401, 0.0
  %v488 = vmax.f32 %v404, 0.0
  %v489 = vmax.f32 %v409, 0.0
  %v490 = vmax.f32 %v412, 0.0
  %v491 = vmax.f32 %v417, 0.0
  %v492 = vmax.f32 %v420, 0.0
  %v493 = vmax.f32 %v425, 0.0
  %v494 = vmax.f32 %v428, 0.0
  %495 = vst [vmem:[%s3] sm:$0xff] %v431
  %496 = vst [vmem:[%s3 + $0x8] sm:$0xff] %v432
  %497 = vst [vmem:[%s3 + $0x10] sm:$0xff] %v433
  %498 = vst [vmem:[%s3 + $0x18] sm:$0xff] %v434
  %499 = vst [vmem:[%s3 + $0x20] sm:$0xff] %v435
  %500 = vst [vmem:[%s3 + $0x28] sm:$0xff] %v436
  %501 = vst [vmem:[%s3 + $0x30] sm:$0xff] %v437
  %502 = vst [vmem:[%s3 + $0x38] sm:$0xff] %v438
  %503 = vst [vmem:[%s3 + $0x40] sm:$0xff] %v439
  %504 = vst [vmem:[%s3 + $0x48] sm:$0xff] %v440
  %505 = vst [vmem:[%s3 + $0x50] sm:$0xff] %v441
  %506 = vst [vmem:[%s3 + $0x58] sm:$0xff] %v442
  %507 = vst [vmem:[%s3 + $0x60] sm:$0xff] %v443
  %508 = vst [vmem:[%s3 + $0x68] sm:$0xff] %v444
  %509 = vst [vmem:[%s3 + $0x70] sm:$0xff] %v445
  %510 = vst [vmem:[%s3 + $0x78] sm:$0xff] %v446
  %511 = vst [vmem:[%s3 + $0x80] sm:$0xff] %v447
  %512 = vst [vmem:[%s3 + $0x88] sm:$0xff] %v448
  %513 = vst [vmem:[%s3 + $0x90] sm:$0xff] %v449
  %514 = vst [vmem:[%s3 + $0x98] sm:$0xff] %v450
  %515 = vst [vmem:[%s3 + $0xa0] sm:$0xff] %v451
  %516 = vst [vmem:[%s3 + $0xa8] sm:$0xff] %v452
  %517 = vst [vmem:[%s3 + $0xb0] sm:$0xff] %v453
  %518 = vst [vmem:[%s3 + $0xb8] sm:$0xff] %v454
  %519 = vst [vmem:[%s3 + $0xc0] sm:$0xff] %v455
  %520 = vst [vmem:[%s3 + $0xc8] sm:$0xff] %v456
  %521 = vst [vmem:[%s3 + $0xd0] sm:$0xff] %v457
  %522 = vst [vmem:[%s3 + $0xd8] sm:$0xff] %v458
  %523 = vst [vmem:[%s3 + $0xe0] sm:$0xff] %v459
  %524 = vst [vmem:[%s3 + $0xe8] sm:$0xff] %v460
  %525 = vst [vmem:[%s3 + $0xf0] sm:$0xff] %v461
  %526 = vst [vmem:[%s3 + $0xf8] sm:$0xff] %v462
  %527 = vst [vmem:[%s3 + $0x100] sm:$0xff] %v463
  %528 = vst [vmem:[%s3 + $0x108] sm:$0xff] %v464
  %529 = vst [vmem:[%s3 + $0x110] sm:$0xff] %v465
  %530 = vst [vmem:[%s3 + $0x118] sm:$0xff] %v466
  %531 = vst [vmem:[%s3 + $0x120] sm:$0xff] %v467
  %532 = vst [vmem:[%s3 + $0x128] sm:$0xff] %v468
  %533 = vst [vmem:[%s3 + $0x130] sm:$0xff] %v469
  %534 = vst [vmem:[%s3 + $0x138] sm:$0xff] %v470
  %535 = vst [vmem:[%s3 + $0x140] sm:$0xff] %v471
  %536 = vst [vmem:[%s3 + $0x148] sm:$0xff] %v472
  %537 = vst [vmem:[%s3 + $0x150] sm:$0xff] %v473
  %538 = vst [vmem:[%s3 + $0x158] sm:$0xff] %v474
  %539 = vst [vmem:[%s3 + $0x160] sm:$0xff] %v475
  %540 = vst [vmem:[%s3 + $0x168] sm:$0xff] %v476
  %541 = vst [vmem:[%s3 + $0x170] sm:$0xff] %v477
  %542 = vst [vmem:[%s3 + $0x178] sm:$0xff] %v478
  %543 = vst [vmem:[%s3 + $0x180] sm:$0xff] %v479
  %544 = vst [vmem:[%s3 + $0x188] sm:$0xff] %v480
  %545 = vst [vmem:[%s3 + $0x190] sm:$0xff] %v481
  %546 = vst [vmem:[%s3 + $0x198] sm:$0xff] %v482
  %547 = vst [vmem:[%s3 + $0x1a0] sm:$0xff] %v483
  %548 = vst [vmem:[%s3 + $0x1a8] sm:$0xff] %v484
  %549 = vst [vmem:[%s3 + $0x1b0] sm:$0xff] %v485
  %550 = vst [vmem:[%s3 + $0x1b8] sm:$0xff] %v486
  %551 = vst [vmem:[%s3 + $0x1c0] sm:$0xff] %v487
  %552 = vst [vmem:[%s3 + $0x1c8] sm:$0xff] %v488
  %553 = vst [vmem:[%s3 + $0x1d0] sm:$0xff] %v489
  %554 = vst [vmem:[%s3 + $0x1d8] sm:$0xff] %v490
  %555 = vst [vmem:[%s3 + $0x1e0] sm:$0xff] %v491
  %556 = vst [vmem:[%s3 + $0x1e8] sm:$0xff] %v492
  %557 = vst [vmem:[%s3 + $0x1f0] sm:$0xff] %v493
  %558 = vst [vmem:[%s3 + $0x1f8] sm:$0xff] %v494
  // Predicated region
  $region14: #{vision_transformer_forward.33} parent=0 // pred_check
    _
  $region15: #{vision_transformer_forward.33} parent=0 // pred_check_branch
    %560 = sbr.rel (0) target = $region17
  $region16: #{vision_transformer_forward.33} parent=0 // pred_region
    _
  $region17: #{vision_transformer_forward.33} parent=0 // pred_fallthru
    _
  // Predicated region
  $region18: #{vision_transformer_forward.33} parent=0 // pred_check
    _
  $region19: #{vision_transformer_forward.33} parent=0 // pred_check_branch
    %562 = sbr.rel (0) target = $region21
  $region20: #{vision_transformer_forward.33} parent=0 // pred_region
    _
  $region21: #{vision_transformer_forward.33} parent=0 // pred_fallthru
    _

// kernel: vision_transformer_forward.34
$region0: #{vision_transformer_forward.34}
  #allocation0 [shape = 'u32[]', space=smem, size = 0x4, offset = 0x4, fixed_abs, tag = 'smem constant byte address 0x4 - core index']
  #allocation1 [shape = 'u32[144,128]{1,0:T(1,128)}', space=vmem, size = 0x12000, scoped, tag = 'internal scratch']
  %s0 = inlined_call_operand.vmem [shape: f32[8192,128], index: 0, kind: input, shape index: {}]
  %s1 = inlined_call_operand.vmem [shape: f32[128,128], index: 1, kind: input, shape index: {}]
  %s2 = inlined_call_operand.vmem [shape: f32[1,128], index: 2, kind: input, shape index: {}]
  %s3 = inlined_call_operand.vmem [shape: f32[8192,128], index: 3, kind: output, shape index: {}]
  %s4 = sld [smem:[#allocation0]]
  $region45: #{vision_transformer_forward.34} parent=0
    _
  %s6 = ssub.s32 1, %s4
  %s7 = scalar_select 0, %s6, %s4
  loop: start=0, step=1, limit=18
  $region2: #{vision_transformer_forward.34} parent=0 // loop_pre_header
    _
  $region3: #{vision_transformer_forward.34} parent=0 // loop_header
    %s9 = sphi 0, %s13
    %p10 = scmp.ge.s32.totalorder %s9, 18
    %s19 = sphi 0, %s21
    %s22 = sphi 0, %s19
    %s23 = sphi 0, %s22
    %s39 = sphi 0, %s23
    %s43 = sphi 0, %s43
    %s45 = sphi 0, %s43
    %s46 = sphi 0, %s45
    %s60 = sphi 0, %s46
    %s64 = sphi 0, %s64
    %s66 = sphi 0, %s64
    %s67 = sphi 0, %s66
    %s81 = sphi 0, %s67
    %s87 = sphi 0, %s89
    %s90 = sphi 0, %s87
    %s91 = sphi 0, %s90
    %s107 = sphi 0, %s91
  $region4: #{vision_transformer_forward.34} parent=0 // loop_header_branch
    %12 = sbr.rel (%p10) target = $region8
  $region5: #{vision_transformer_forward.34} parent=0 // loop_body
    %s14 = ssub.s32 %s9, 1
    %s15 = ssub.s32 %s9, 2
    %s16 = sadd.s32 %s9, 1
    %s17 = ssub.s32 %s9, %s16
    %p18 = scmp.eq.s32.totalorder %s17, 0
    %s20 = sadd.s32 %s19, 1
    %s21 = scalar_select %p18, %s19, %s20
    %p24 = pneg %p18
    %p25 = scmp.eq.s32.totalorder %s9, 15
    %p26 = por %p24, %p25
    %p27 = scmp.ne.s32.totalorder %s19, %s22
    %p28 = scmp.eq.s32.totalorder %s9, 0
    %p29 = por %p27, %p28
    %p30 = scmp.ne.s32.totalorder %s19, %s22
    %p31 = scmp.eq.s32.totalorder %s14, 15
    %p32 = por %p30, %p31
    %p33 = scmp.ne.s32.totalorder %s22, %s23
    %p34 = scmp.eq.s32.totalorder %s14, 0
    %p35 = por %p33, %p34
    %p36 = scmp.ne.s32.totalorder %s22, %s23
    %p37 = scmp.eq.s32.totalorder %s15, 15
    %p38 = por %p36, %p37
    %p40 = scmp.ne.s32.totalorder %s23, %s39
    %p41 = scmp.eq.s32.totalorder %s15, 0
    %p42 = por %p40, %p41
    %s44 = sadd.s32 %s43, 1
    %p47 = scmp.eq.s32.totalorder %s9, 15
    %p48 = scmp.ne.s32.totalorder %s43, %s45
    %p49 = scmp.eq.s32.totalorder %s9, 0
    %p50 = por %p48, %p49
    %p51 = scmp.ne.s32.totalorder %s43, %s45
    %p52 = scmp.eq.s32.totalorder %s14, 15
    %p53 = por %p51, %p52
    %p54 = scmp.ne.s32.totalorder %s45, %s46
    %p55 = scmp.eq.s32.totalorder %s14, 0
    %p56 = por %p54, %p55
    %p57 = scmp.ne.s32.totalorder %s45, %s46
    %p58 = scmp.eq.s32.totalorder %s15, 15
    %p59 = por %p57, %p58
    %p61 = scmp.ne.s32.totalorder %s46, %s60
    %p62 = scmp.eq.s32.totalorder %s15, 0
    %p63 = por %p61, %p62
    %s65 = sadd.s32 %s64, 1
    %p68 = scmp.eq.s32.totalorder %s9, 15
    %p69 = scmp.ne.s32.totalorder %s64, %s66
    %p70 = scmp.eq.s32.totalorder %s9, 0
    %p71 = por %p69, %p70
    %p72 = scmp.ne.s32.totalorder %s64, %s66
    %p73 = scmp.eq.s32.totalorder %s14, 15
    %p74 = por %p72, %p73
    %p75 = scmp.ne.s32.totalorder %s66, %s67
    %p76 = scmp.eq.s32.totalorder %s14, 0
    %p77 = por %p75, %p76
    %p78 = scmp.ne.s32.totalorder %s66, %s67
    %p79 = scmp.eq.s32.totalorder %s15, 15
    %p80 = por %p78, %p79
    %p82 = scmp.ne.s32.totalorder %s67, %s81
    %p83 = scmp.eq.s32.totalorder %s15, 0
    %p84 = por %p82, %p83
    %s85 = ssub.s32 %s9, %s16
    %p86 = scmp.eq.s32.totalorder %s85, 0
    %s88 = sadd.s32 %s87, 1
    %s89 = scalar_select %p86, %s87, %s88
    %p92 = pneg %p86
    %p93 = scmp.eq.s32.totalorder %s9, 15
    %p94 = por %p92, %p93
    %p95 = scmp.ne.s32.totalorder %s87, %s90
    %p96 = scmp.eq.s32.totalorder %s9, 0
    %p97 = por %p95, %p96
    %p98 = scmp.ne.s32.totalorder %s87, %s90
    %p99 = scmp.eq.s32.totalorder %s14, 15
    %p100 = por %p98, %p99
    %p101 = scmp.ne.s32.totalorder %s90, %s91
    %p102 = scmp.eq.s32.totalorder %s14, 0
    %p103 = por %p101, %p102
    %p104 = scmp.ne.s32.totalorder %s90, %s91
    %p105 = scmp.eq.s32.totalorder %s15, 15
    %p106 = por %p104, %p105
    %p108 = scmp.ne.s32.totalorder %s91, %s107
    %p109 = scmp.eq.s32.totalorder %s15, 0
    %p110 = por %p108, %p109
    %p111 = scmp.le.s32.totalorder 1, %s9
    %p112 = scmp.lt.s32.totalorder %s9, 17
    %p113 = pnand %p111, %p112
    %p114 = pneg %p113
    // Predicated region
    $region9: #{vision_transformer_forward.34} parent=5 // pred_check
      _
    $region10: #{vision_transformer_forward.34} parent=5 // pred_check_branch
      %116 = sbr.rel (%p113) target = $region12
    $region11: #{vision_transformer_forward.34} parent=5 // pred_region
      %s117 = ssub.s32 %s9, 1
      // Predicated region
      $region13: #{vision_transformer_forward.34} parent=11 // pred_check
        %p118 = pneg %p56
      $region14: #{vision_transformer_forward.34} parent=11 // pred_check_branch
        %120 = sbr.rel (%p118) target = $region16
      $region15: #{vision_transformer_forward.34} parent=11 // pred_region
        _
      $region16: #{vision_transformer_forward.34} parent=11 // pred_fallthru
        _
      // Predicated region
      $region17: #{vision_transformer_forward.34} parent=11 // pred_check
        %p121 = pneg %p77
      $region18: #{vision_transformer_forward.34} parent=11 // pred_check_branch
        %123 = sbr.rel (%p121) target = $region20
      $region19: #{vision_transformer_forward.34} parent=11 // pred_region
        _
      $region20: #{vision_transformer_forward.34} parent=11 // pred_fallthru
        _
    $region12: #{vision_transformer_forward.34} parent=5 // pred_fallthru
      _
    %p124 = scmp.lt.s32.totalorder %s9, 16
    // Predicated region
    $region21: #{vision_transformer_forward.34} parent=5 // pred_check
      %p125 = pneg %p124
    $region22: #{vision_transformer_forward.34} parent=5 // pred_check_branch
      %127 = sbr.rel (%p125) target = $region24
    $region23: #{vision_transformer_forward.34} parent=5 // pred_region
      // Predicated region
      $region25: #{vision_transformer_forward.34} parent=23 // pred_check
        %p128 = pneg %p29
      $region26: #{vision_transformer_forward.34} parent=23 // pred_check_branch
        %130 = sbr.rel (%p128) target = $region28
      $region27: #{vision_transformer_forward.34} parent=23 // pred_region
        %s131 = smul.u32 64, %s9
        %p132 = scmp.lt.s32.totalorder %s131, 1023
        %s133 = scalar_select %p132, %s131, 1023
        %s134 = smul.addr %s133, 8
        %s135 = scalar_lea.vmem %s0, %s134
        %s136 = smul.u32 64, %s9
      $region28: #{vision_transformer_forward.34} parent=23 // pred_fallthru
        _
    $region24: #{vision_transformer_forward.34} parent=5 // pred_fallthru
      _
    %p137 = scmp.le.s32.totalorder 1, %s9
    %p138 = scmp.lt.s32.totalorder %s9, 17
    %p139 = pnand %p137, %p138
    %p140 = pneg %p139
    // Predicated region
    $region29: #{vision_transformer_forward.34} parent=5 // pred_check
      _
    $region30: #{vision_transformer_forward.34} parent=5 // pred_check_branch
      %142 = sbr.rel (%p139) target = $region32
    $region31: #{vision_transformer_forward.34} parent=5 // pred_region
      %s143 = ssub.s32 %s9, 1
      %s144 = smul.u32 64, %s14
      %p145 = scmp.lt.s32.totalorder %s144, 1023
      %s146 = scalar_select %p145, %s144, 1023
      %s147 = smul.addr %s146, 8
      %s148 = scalar_lea.vmem %s0, %s147
      %p149 = pneg %p35
      %p150 = pneg %p32
      %p151 = pneg %p56
      %p152 = pneg %p53
      %p153 = pneg %p77
      %p154 = pneg %p74
      %p155 = pneg %p103
      %p156 = pneg %p100
      %s157 = smul.u32 64, %s14
      %p158 = scmp.lt.s32.totalorder %s157, 1023
      %s159 = scalar_select %p158, %s157, 1023
      %s160 = smul.addr %s159, 8
      %s161 = scalar_lea.vmem %s3, %s160
      %s162 = smul.u32 64, %s14
      %p163 = scmp.lt.s32.totalorder %s162, 1023
      %s164 = scalar_select %p163, %s162, 1023
      %s165 = smul.addr %s164, 8
      %s166 = scalar_lea.vmem %s0, %s165
      %s167 = smul.u32 64, %s14
      %s168 = smul.u32 64, %s14
      %p169 = scmp.lt.s32.totalorder %s168, 1023
      %s170 = scalar_select %p169, %s168, 1023
      %s171 = smul.addr %s170, 8
      %s172 = scalar_lea.vmem %s3, %s171
      %s173 = smul.u32 64, %s14
      %v175 = vld [vmem:[%s166] sm:$0xff]
      %v176 = vld [vmem:[%s166 + $0x8] sm:$0xff]
      %v177 = vld [vmem:[%s166 + $0x10] sm:$0xff]
      %v178 = vld [vmem:[%s166 + $0x18] sm:$0xff]
      %v179 = vld [vmem:[%s166 + $0x20] sm:$0xff]
      %v180 = vld [vmem:[%s166 + $0x28] sm:$0xff]
      %v181 = vld [vmem:[%s166 + $0x30] sm:$0xff]
      %v182 = vld [vmem:[%s166 + $0x38] sm:$0xff]
      %v183 = vld [vmem:[%s166 + $0x40] sm:$0xff]
      %v184 = vld [vmem:[%s166 + $0x48] sm:$0xff]
      %v185 = vld [vmem:[%s166 + $0x50] sm:$0xff]
      %v186 = vld [vmem:[%s166 + $0x58] sm:$0xff]
      %v187 = vld [vmem:[%s166 + $0x60] sm:$0xff]
      %v188 = vld [vmem:[%s166 + $0x68] sm:$0xff]
      %v189 = vld [vmem:[%s166 + $0x70] sm:$0xff]
      %v190 = vld [vmem:[%s166 + $0x78] sm:$0xff]
      %v191 = vld [vmem:[%s166 + $0x80] sm:$0xff]
      %v192 = vld [vmem:[%s166 + $0x88] sm:$0xff]
      %v193 = vld [vmem:[%s166 + $0x90] sm:$0xff]
      %v194 = vld [vmem:[%s166 + $0x98] sm:$0xff]
      %v195 = vld [vmem:[%s166 + $0xa0] sm:$0xff]
      %v196 = vld [vmem:[%s166 + $0xa8] sm:$0xff]
      %v197 = vld [vmem:[%s166 + $0xb0] sm:$0xff]
      %v198 = vld [vmem:[%s166 + $0xb8] sm:$0xff]
      %v199 = vld [vmem:[%s166 + $0xc0] sm:$0xff]
      %v200 = vld [vmem:[%s166 + $0xc8] sm:$0xff]
      %v201 = vld [vmem:[%s166 + $0xd0] sm:$0xff]
      %v202 = vld [vmem:[%s166 + $0xd8] sm:$0xff]
      %v203 = vld [vmem:[%s166 + $0xe0] sm:$0xff]
      %v204 = vld [vmem:[%s166 + $0xe8] sm:$0xff]
      %v205 = vld [vmem:[%s166 + $0xf0] sm:$0xff]
      %v206 = vld [vmem:[%s166 + $0xf8] sm:$0xff]
      %v207 = vld [vmem:[%s166 + $0x100] sm:$0xff]
      %v208 = vld [vmem:[%s166 + $0x108] sm:$0xff]
      %v209 = vld [vmem:[%s166 + $0x110] sm:$0xff]
      %v210 = vld [vmem:[%s166 + $0x118] sm:$0xff]
      %v211 = vld [vmem:[%s166 + $0x120] sm:$0xff]
      %v212 = vld [vmem:[%s166 + $0x128] sm:$0xff]
      %v213 = vld [vmem:[%s166 + $0x130] sm:$0xff]
      %v214 = vld [vmem:[%s166 + $0x138] sm:$0xff]
      %v215 = vld [vmem:[%s166 + $0x140] sm:$0xff]
      %v216 = vld [vmem:[%s166 + $0x148] sm:$0xff]
      %v217 = vld [vmem:[%s166 + $0x150] sm:$0xff]
      %v218 = vld [vmem:[%s166 + $0x158] sm:$0xff]
      %v219 = vld [vmem:[%s166 + $0x160] sm:$0xff]
      %v220 = vld [vmem:[%s166 + $0x168] sm:$0xff]
      %v221 = vld [vmem:[%s166 + $0x170] sm:$0xff]
      %v222 = vld [vmem:[%s166 + $0x178] sm:$0xff]
      %v223 = vld [vmem:[%s166 + $0x180] sm:$0xff]
      %v224 = vld [vmem:[%s166 + $0x188] sm:$0xff]
      %v225 = vld [vmem:[%s166 + $0x190] sm:$0xff]
      %v226 = vld [vmem:[%s166 + $0x198] sm:$0xff]
      %v227 = vld [vmem:[%s166 + $0x1a0] sm:$0xff]
      %v228 = vld [vmem:[%s166 + $0x1a8] sm:$0xff]
      %v229 = vld [vmem:[%s166 + $0x1b0] sm:$0xff]
      %v230 = vld [vmem:[%s166 + $0x1b8] sm:$0xff]
      %v231 = vld [vmem:[%s166 + $0x1c0] sm:$0xff]
      %v232 = vld [vmem:[%s166 + $0x1c8] sm:$0xff]
      %v233 = vld [vmem:[%s166 + $0x1d0] sm:$0xff]
      %v234 = vld [vmem:[%s166 + $0x1d8] sm:$0xff]
      %v235 = vld [vmem:[%s166 + $0x1e0] sm:$0xff]
      %v236 = vld [vmem:[%s166 + $0x1e8] sm:$0xff]
      %v237 = vld [vmem:[%s166 + $0x1f0] sm:$0xff]
      %v238 = vld [vmem:[%s166 + $0x1f8] sm:$0xff]
      %v239 = vpack.c.bf16 %v176, %v175
      %v240 = vpack.c.bf16 %v178, %v177
      %v241 = vpack.c.bf16 %v180, %v179
      %v242 = vpack.c.bf16 %v182, %v181
      %v243 = vpack.c.bf16 %v184, %v183
      %v244 = vpack.c.bf16 %v186, %v185
      %v245 = vpack.c.bf16 %v188, %v187
      %v246 = vpack.c.bf16 %v190, %v189
      %v247 = vpack.c.bf16 %v192, %v191
      %v248 = vpack.c.bf16 %v194, %v193
      %v249 = vpack.c.bf16 %v196, %v195
      %v250 = vpack.c.bf16 %v198, %v197
      %v251 = vpack.c.bf16 %v200, %v199
      %v252 = vpack.c.bf16 %v202, %v201
      %v253 = vpack.c.bf16 %v204, %v203
      %v254 = vpack.c.bf16 %v206, %v205
      %v255 = vpack.c.bf16 %v208, %v207
      %v256 = vpack.c.bf16 %v210, %v209
      %v257 = vpack.c.bf16 %v212, %v211
      %v258 = vpack.c.bf16 %v214, %v213
      %v259 = vpack.c.bf16 %v216, %v215
      %v260 = vpack.c.bf16 %v218, %v217
      %v261 = vpack.c.bf16 %v220, %v219
      %v262 = vpack.c.bf16 %v222, %v221
      %v263 = vpack.c.bf16 %v224, %v223
      %v264 = vpack.c.bf16 %v226, %v225
      %v265 = vpack.c.bf16 %v228, %v227
      %v266 = vpack.c.bf16 %v230, %v229
      %v267 = vpack.c.bf16 %v232, %v231
      %v268 = vpack.c.bf16 %v234, %v233
      %v269 = vpack.c.bf16 %v236, %v235
      %v270 = vpack.c.bf16 %v238, %v237
      %v271 = vld [vmem:[%s1] sm:$0xff]
      %v272 = vld [vmem:[%s1 + $0x8] sm:$0xff]
      %v273 = vld [vmem:[%s1 + $0x10] sm:$0xff]
      %v274 = vld [vmem:[%s1 + $0x18] sm:$0xff]
      %v275 = vld [vmem:[%s1 + $0x20] sm:$0xff]
      %v276 = vld [vmem:[%s1 + $0x28] sm:$0xff]
      %v277 = vld [vmem:[%s1 + $0x30] sm:$0xff]
      %v278 = vld [vmem:[%s1 + $0x38] sm:$0xff]
      %v279 = vld [vmem:[%s1 + $0x40] sm:$0xff]
      %v280 = vld [vmem:[%s1 + $0x48] sm:$0xff]
      %v281 = vld [vmem:[%s1 + $0x50] sm:$0xff]
      %v282 = vld [vmem:[%s1 + $0x58] sm:$0xff]
      %v283 = vld [vmem:[%s1 + $0x60] sm:$0xff]
      %v284 = vld [vmem:[%s1 + $0x68] sm:$0xff]
      %v285 = vld [vmem:[%s1 + $0x70] sm:$0xff]
      %v286 = vld [vmem:[%s1 + $0x78] sm:$0xff]
      %v287 = vpack.c.bf16 %v272, %v271
      %v288 = vpack.c.bf16 %v274, %v273
      %v289 = vpack.c.bf16 %v276, %v275
      %v290 = vpack.c.bf16 %v278, %v277
      %v291 = vpack.c.bf16 %v280, %v279
      %v292 = vpack.c.bf16 %v282, %v281
      %v293 = vpack.c.bf16 %v284, %v283
      %v294 = vpack.c.bf16 %v286, %v285
      %v295 = vld [vmem:[%s2] sm:$0x1]
      %v297 = vlaneseq
      %v298 = vshrl.u32 %v297, 7
      %v299 = vsub.s32 0, %v298
      %v300 = vrot.slane %v295, %v299
      %302 = vmatprep.subr.bf16.mxu0 0
      %303 = vmatpush1.bf16.msra.mxu0 %v287
      %304 = vmatprep.subr.bf16.mxu0 0
      %305 = vmatpush1.bf16.msra.mxu0 %v288
      %306 = vmatprep.subr.bf16.mxu0 0
      %307 = vmatpush1.bf16.msra.mxu0 %v289
      %308 = vmatprep.subr.bf16.mxu0 0
      %309 = vmatpush1.bf16.msra.mxu0 %v290
      %310 = vmatprep.subr.bf16.mxu0 0
      %311 = vmatpush1.bf16.msra.mxu0 %v291
      %312 = vmatprep.subr.bf16.mxu0 0
      %313 = vmatpush1.bf16.msra.mxu0 %v292
      %314 = vmatprep.subr.bf16.mxu0 0
      %315 = vmatpush1.bf16.msra.mxu0 %v293
      %316 = vmatprep.subr.bf16.mxu0 0
      %317 = vmatpush1.bf16.msra.mxu0 %v294
      %318 = vmatprep.subr.bf16.mxu0 0
      %319 = vmatpush1.bf16.msra.mxu0 0
      %320 = vmatprep.subr.bf16.mxu0 0
      %321 = vmatpush1.bf16.msra.mxu0 0
      %322 = vmatprep.subr.bf16.mxu0 0
      %323 = vmatpush1.bf16.msra.mxu0 0
      %324 = vmatprep.subr.bf16.mxu0 0
      %325 = vmatpush1.bf16.msra.mxu0 0
      %326 = vmatprep.subr.bf16.mxu0 0
      %327 = vmatpush1.bf16.msra.mxu0 0
      %328 = vmatprep.subr.bf16.mxu0 0
      %329 = vmatpush1.bf16.msra.mxu0 0
      %330 = vmatprep.subr.bf16.mxu0 0
      %331 = vmatpush1.bf16.msra.mxu0 0
      %332 = vmatprep.subr.bf16.mxu0 0
      %333 = vmatpush1.bf16.msra.mxu0 0
      %334 = vmatprep.mubr.bf16.mxu0 0
      %335 = vmatmul.mubr.bf16.gmra.mrb[0].mxu0 %v239
      %v336 = vpop.f32.mrb[0].mxu0
      %v337 = vadd.f32 %v300, %v336
      %v338 = vpop.f32.mrb[0].mxu0
      %v339 = vpop.f32.mrb[0].mxu0
      %v340 = vadd.f32 %v300, %v339
      %v341 = vpop.f32.mrb[0].mxu0
      %342 = vmatprep.mubr.bf16.mxu0 0
      %343 = vmatmul.mubr.bf16.gmra.mrb[0].mxu0 %v240
      %v344 = vpop.f32.mrb[0].mxu0
      %v345 = vadd.f32 %v300, %v344
      %v346 = vpop.f32.mrb[0].mxu0
      %v347 = vpop.f32.mrb[0].mxu0
      %v348 = vadd.f32 %v300, %v347
      %v349 = vpop.f32.mrb[0].mxu0
      %350 = vmatprep.mubr.bf16.mxu0 0
      %351 = vmatmul.mubr.bf16.gmra.mrb[0].mxu0 %v241
      %v352 = vpop.f32.mrb[0].mxu0
      %v353 = vadd.f32 %v300, %v352
      %v354 = vpop.f32.mrb[0].mxu0
      %v355 = vpop.f32.mrb[0].mxu0
      %v356 = vadd.f32 %v300, %v355
      %v357 = vpop.f32.mrb[0].mxu0
      %358 = vmatprep.mubr.bf16.mxu0 0
      %359 = vmatmul.mubr.bf16.gmra.mrb[0].mxu0 %v242
      %v360 = vpop.f32.mrb[0].mxu0
      %v361 = vadd.f32 %v300, %v360
      %v362 = vpop.f32.mrb[0].mxu0
      %v363 = vpop.f32.mrb[0].mxu0
      %v364 = vadd.f32 %v300, %v363
      %v365 = vpop.f32.mrb[0].mxu0
      %366 = vmatprep.mubr.bf16.mxu0 0
      %367 = vmatmul.mubr.bf16.gmra.mrb[0].mxu0 %v243
      %v368 = vpop.f32.mrb[0].mxu0
      %v369 = vadd.f32 %v300, %v368
      %v370 = vpop.f32.mrb[0].mxu0
      %v371 = vpop.f32.mrb[0].mxu0
      %v372 = vadd.f32 %v300, %v371
      %v373 = vpop.f32.mrb[0].mxu0
      %374 = vmatprep.mubr.bf16.mxu0 0
      %375 = vmatmul.mubr.bf16.gmra.mrb[0].mxu0 %v244
      %v376 = vpop.f32.mrb[0].mxu0
      %v377 = vadd.f32 %v300, %v376
      %v378 = vpop.f32.mrb[0].mxu0
      %v379 = vpop.f32.mrb[0].mxu0
      %v380 = vadd.f32 %v300, %v379
      %v381 = vpop.f32.mrb[0].mxu0
      %382 = vmatprep.mubr.bf16.mxu0 0
      %383 = vmatmul.mubr.bf16.gmra.mrb[0].mxu0 %v245
      %v384 = vpop.f32.mrb[0].mxu0
      %v385 = vadd.f32 %v300, %v384
      %v386 = vpop.f32.mrb[0].mxu0
      %v387 = vpop.f32.mrb[0].mxu0
      %v388 = vadd.f32 %v300, %v387
      %v389 = vpop.f32.mrb[0].mxu0
      %390 = vmatprep.mubr.bf16.mxu0 0
      %391 = vmatmul.mubr.bf16.gmra.mrb[0].mxu0 %v246
      %v392 = vpop.f32.mrb[0].mxu0
      %v393 = vadd.f32 %v300, %v392
      %v394 = vpop.f32.mrb[0].mxu0
      %v395 = vpop.f32.mrb[0].mxu0
      %v396 = vadd.f32 %v300, %v395
      %v397 = vpop.f32.mrb[0].mxu0
      %398 = vmatprep.mubr.bf16.mxu0 0
      %399 = vmatmul.mubr.bf16.gmra.mrb[0].mxu0 %v247
      %v400 = vpop.f32.mrb[0].mxu0
      %v401 = vadd.f32 %v300, %v400
      %v402 = vpop.f32.mrb[0].mxu0
      %v403 = vpop.f32.mrb[0].mxu0
      %v404 = vadd.f32 %v300, %v403
      %v405 = vpop.f32.mrb[0].mxu0
      %406 = vmatprep.mubr.bf16.mxu0 0
      %407 = vmatmul.mubr.bf16.gmra.mrb[0].mxu0 %v248
      %v408 = vpop.f32.mrb[0].mxu0
      %v409 = vadd.f32 %v300, %v408
      %v410 = vpop.f32.mrb[0].mxu0
      %v411 = vpop.f32.mrb[0].mxu0
      %v412 = vadd.f32 %v300, %v411
      %v413 = vpop.f32.mrb[0].mxu0
      %414 = vmatprep.mubr.bf16.mxu0 0
      %415 = vmatmul.mubr.bf16.gmra.mrb[0].mxu0 %v249
      %v416 = vpop.f32.mrb[0].mxu0
      %v417 = vadd.f32 %v300, %v416
      %v418 = vpop.f32.mrb[0].mxu0
      %v419 = vpop.f32.mrb[0].mxu0
      %v420 = vadd.f32 %v300, %v419
      %v421 = vpop.f32.mrb[0].mxu0
      %422 = vmatprep.mubr.bf16.mxu0 0
      %423 = vmatmul.mubr.bf16.gmra.mrb[0].mxu0 %v250
      %v424 = vpop.f32.mrb[0].mxu0
      %v425 = vadd.f32 %v300, %v424
      %v426 = vpop.f32.mrb[0].mxu0
      %v427 = vpop.f32.mrb[0].mxu0
      %v428 = vadd.f32 %v300, %v427
      %v429 = vpop.f32.mrb[0].mxu0
      %430 = vmatprep.mubr.bf16.mxu0 0
      %431 = vmatmul.mubr.bf16.gmra.mrb[0].mxu0 %v251
      %v432 = vpop.f32.mrb[0].mxu0
      %v433 = vadd.f32 %v300, %v432
      %v434 = vpop.f32.mrb[0].mxu0
      %v435 = vpop.f32.mrb[0].mxu0
      %v436 = vadd.f32 %v300, %v435
      %v437 = vpop.f32.mrb[0].mxu0
      %438 = vmatprep.mubr.bf16.mxu0 0
      %439 = vmatmul.mubr.bf16.gmra.mrb[0].mxu0 %v252
      %v440 = vpop.f32.mrb[0].mxu0
      %v441 = vadd.f32 %v300, %v440
      %v442 = vpop.f32.mrb[0].mxu0
      %v443 = vpop.f32.mrb[0].mxu0
      %v444 = vadd.f32 %v300, %v443
      %v445 = vpop.f32.mrb[0].mxu0
      %446 = vmatprep.mubr.bf16.mxu0 0
      %447 = vmatmul.mubr.bf16.gmra.mrb[0].mxu0 %v253
      %v448 = vpop.f32.mrb[0].mxu0
      %v449 = vadd.f32 %v300, %v448
      %v450 = vpop.f32.mrb[0].mxu0
      %v451 = vpop.f32.mrb[0].mxu0
      %v452 = vadd.f32 %v300, %v451
      %v453 = vpop.f32.mrb[0].mxu0
      %454 = vmatprep.mubr.bf16.mxu0 0
      %455 = vmatmul.mubr.bf16.gmra.mrb[0].mxu0 %v254
      %v456 = vpop.f32.mrb[0].mxu0
      %v457 = vadd.f32 %v300, %v456
      %v458 = vpop.f32.mrb[0].mxu0
      %v459 = vpop.f32.mrb[0].mxu0
      %v460 = vadd.f32 %v300, %v459
      %v461 = vpop.f32.mrb[0].mxu0
      %462 = vmatprep.mubr.bf16.mxu0 0
      %463 = vmatmul.mubr.bf16.gmra.mrb[0].mxu0 %v255
      %v464 = vpop.f32.mrb[0].mxu0
      %v465 = vadd.f32 %v300, %v464
      %v466 = vpop.f32.mrb[0].mxu0
      %v467 = vpop.f32.mrb[0].mxu0
      %v468 = vadd.f32 %v300, %v467
      %v469 = vpop.f32.mrb[0].mxu0
      %470 = vmatprep.mubr.bf16.mxu0 0
      %471 = vmatmul.mubr.bf16.gmra.mrb[0].mxu0 %v256
      %v472 = vpop.f32.mrb[0].mxu0
      %v473 = vadd.f32 %v300, %v472
      %v474 = vpop.f32.mrb[0].mxu0
      %v475 = vpop.f32.mrb[0].mxu0
      %v476 = vadd.f32 %v300, %v475
      %v477 = vpop.f32.mrb[0].mxu0
      %478 = vmatprep.mubr.bf16.mxu0 0
      %479 = vmatmul.mubr.bf16.gmra.mrb[0].mxu0 %v257
      %v480 = vpop.f32.mrb[0].mxu0
      %v481 = vadd.f32 %v300, %v480
      %v482 = vpop.f32.mrb[0].mxu0
      %v483 = vpop.f32.mrb[0].mxu0
      %v484 = vadd.f32 %v300, %v483
      %v485 = vpop.f32.mrb[0].mxu0
      %486 = vmatprep.mubr.bf16.mxu0 0
      %487 = vmatmul.mubr.bf16.gmra.mrb[0].mxu0 %v258
      %v488 = vpop.f32.mrb[0].mxu0
      %v489 = vadd.f32 %v300, %v488
      %v490 = vpop.f32.mrb[0].mxu0
      %v491 = vpop.f32.mrb[0].mxu0
      %v492 = vadd.f32 %v300, %v491
      %v493 = vpop.f32.mrb[0].mxu0
      %494 = vmatprep.mubr.bf16.mxu0 0
      %495 = vmatmul.mubr.bf16.gmra.mrb[0].mxu0 %v259
      %v496 = vpop.f32.mrb[0].mxu0
      %v497 = vadd.f32 %v300, %v496
      %v498 = vpop.f32.mrb[0].mxu0
      %v499 = vpop.f32.mrb[0].mxu0
      %v500 = vadd.f32 %v300, %v499
      %v501 = vpop.f32.mrb[0].mxu0
      %502 = vmatprep.mubr.bf16.mxu0 0
      %503 = vmatmul.mubr.bf16.gmra.mrb[0].mxu0 %v260
      %v504 = vpop.f32.mrb[0].mxu0
      %v505 = vadd.f32 %v300, %v504
      %v506 = vpop.f32.mrb[0].mxu0
      %v507 = vpop.f32.mrb[0].mxu0
      %v508 = vadd.f32 %v300, %v507
      %v509 = vpop.f32.mrb[0].mxu0
      %510 = vmatprep.mubr.bf16.mxu0 0
      %511 = vmatmul.mubr.bf16.gmra.mrb[0].mxu0 %v261
      %v512 = vpop.f32.mrb[0].mxu0
      %v513 = vadd.f32 %v300, %v512
      %v514 = vpop.f32.mrb[0].mxu0
      %v515 = vpop.f32.mrb[0].mxu0
      %v516 = vadd.f32 %v300, %v515
      %v517 = vpop.f32.mrb[0].mxu0
      %518 = vmatprep.mubr.bf16.mxu0 0
      %519 = vmatmul.mubr.bf16.gmra.mrb[0].mxu0 %v262
      %v520 = vpop.f32.mrb[0].mxu0
      %v521 = vadd.f32 %v300, %v520
      %v522 = vpop.f32.mrb[0].mxu0
      %v523 = vpop.f32.mrb[0].mxu0
      %v524 = vadd.f32 %v300, %v523
      %v525 = vpop.f32.mrb[0].mxu0
      %526 = vmatprep.mubr.bf16.mxu0 0
      %527 = vmatmul.mubr.bf16.gmra.mrb[0].mxu0 %v263
      %v528 = vpop.f32.mrb[0].mxu0
      %v529 = vadd.f32 %v300, %v528
      %v530 = vpop.f32.mrb[0].mxu0
      %v531 = vpop.f32.mrb[0].mxu0
      %v532 = vadd.f32 %v300, %v531
      %v533 = vpop.f32.mrb[0].mxu0
      %534 = vmatprep.mubr.bf16.mxu0 0
      %535 = vmatmul.mubr.bf16.gmra.mrb[0].mxu0 %v264
      %v536 = vpop.f32.mrb[0].mxu0
      %v537 = vadd.f32 %v300, %v536
      %v538 = vpop.f32.mrb[0].mxu0
      %v539 = vpop.f32.mrb[0].mxu0
      %v540 = vadd.f32 %v300, %v539
      %v541 = vpop.f32.mrb[0].mxu0
      %542 = vmatprep.mubr.bf16.mxu0 0
      %543 = vmatmul.mubr.bf16.gmra.mrb[0].mxu0 %v265
      %v544 = vpop.f32.mrb[0].mxu0
      %v545 = vadd.f32 %v300, %v544
      %v546 = vpop.f32.mrb[0].mxu0
      %v547 = vpop.f32.mrb[0].mxu0
      %v548 = vadd.f32 %v300, %v547
      %v549 = vpop.f32.mrb[0].mxu0
      %550 = vmatprep.mubr.bf16.mxu0 0
      %551 = vmatmul.mubr.bf16.gmra.mrb[0].mxu0 %v266
      %v552 = vpop.f32.mrb[0].mxu0
      %v553 = vadd.f32 %v300, %v552
      %v554 = vpop.f32.mrb[0].mxu0
      %v555 = vpop.f32.mrb[0].mxu0
      %v556 = vadd.f32 %v300, %v555
      %v557 = vpop.f32.mrb[0].mxu0
      %558 = vmatprep.mubr.bf16.mxu0 0
      %559 = vmatmul.mubr.bf16.gmra.mrb[0].mxu0 %v267
      %v560 = vpop.f32.mrb[0].mxu0
      %v561 = vadd.f32 %v300, %v560
      %v562 = vpop.f32.mrb[0].mxu0
      %v563 = vpop.f32.mrb[0].mxu0
      %v564 = vadd.f32 %v300, %v563
      %v565 = vpop.f32.mrb[0].mxu0
      %566 = vmatprep.mubr.bf16.mxu0 0
      %567 = vmatmul.mubr.bf16.gmra.mrb[0].mxu0 %v268
      %v568 = vpop.f32.mrb[0].mxu0
      %v569 = vadd.f32 %v300, %v568
      %v570 = vpop.f32.mrb[0].mxu0
      %v571 = vpop.f32.mrb[0].mxu0
      %v572 = vadd.f32 %v300, %v571
      %v573 = vpop.f32.mrb[0].mxu0
      %574 = vmatprep.mubr.bf16.mxu0 0
      %575 = vmatmul.mubr.bf16.gmra.mrb[0].mxu0 %v269
      %v576 = vpop.f32.mrb[0].mxu0
      %v577 = vadd.f32 %v300, %v576
      %v578 = vpop.f32.mrb[0].mxu0
      %v579 = vpop.f32.mrb[0].mxu0
      %v580 = vadd.f32 %v300, %v579
      %v581 = vpop.f32.mrb[0].mxu0
      %582 = vmatprep.mubr.bf16.mxu0 0
      %583 = vmatmul.mubr.bf16.gmra.mrb[0].mxu0 %v270
      %v584 = vpop.f32.mrb[0].mxu0
      %v585 = vadd.f32 %v300, %v584
      %v586 = vpop.f32.mrb[0].mxu0
      %v587 = vpop.f32.mrb[0].mxu0
      %v588 = vadd.f32 %v300, %v587
      %v589 = vpop.f32.mrb[0].mxu0
      %590 = vdwg.mxu0
      %v591 = vmax.f32 %v337, 0.0
      %v592 = vmax.f32 %v340, 0.0
      %v593 = vmax.f32 %v345, 0.0
      %v594 = vmax.f32 %v348, 0.0
      %v595 = vmax.f32 %v353, 0.0
      %v596 = vmax.f32 %v356, 0.0
      %v597 = vmax.f32 %v361, 0.0
      %v598 = vmax.f32 %v364, 0.0
      %v599 = vmax.f32 %v369, 0.0
      %v600 = vmax.f32 %v372, 0.0
      %v601 = vmax.f32 %v377, 0.0
      %v602 = vmax.f32 %v380, 0.0
      %v603 = vmax.f32 %v385, 0.0
      %v604 = vmax.f32 %v388, 0.0
      %v605 = vmax.f32 %v393, 0.0
      %v606 = vmax.f32 %v396, 0.0
      %v607 = vmax.f32 %v401, 0.0
      %v608 = vmax.f32 %v404, 0.0
      %v609 = vmax.f32 %v409, 0.0
      %v610 = vmax.f32 %v412, 0.0
      %v611 = vmax.f32 %v417, 0.0
      %v612 = vmax.f32 %v420, 0.0
      %v613 = vmax.f32 %v425, 0.0
      %v614 = vmax.f32 %v428, 0.0
      %v615 = vmax.f32 %v433, 0.0
      %v616 = vmax.f32 %v436, 0.0
      %v617 = vmax.f32 %v441, 0.0
      %v618 = vmax.f32 %v444, 0.0
      %v619 = vmax.f32 %v449, 0.0
      %v620 = vmax.f32 %v452, 0.0
      %v621 = vmax.f32 %v457, 0.0
      %v622 = vmax.f32 %v460, 0.0
      %v623 = vmax.f32 %v465, 0.0
      %v624 = vmax.f32 %v468, 0.0
      %v625 = vmax.f32 %v473, 0.0
      %v626 = vmax.f32 %v476, 0.0
      %v627 = vmax.f32 %v481, 0.0
      %v628 = vmax.f32 %v484, 0.0
      %v629 = vmax.f32 %v489, 0.0
      %v630 = vmax.f32 %v492, 0.0
      %v631 = vmax.f32 %v497, 0.0
      %v632 = vmax.f32 %v500, 0.0
      %v633 = vmax.f32 %v505, 0.0
      %v634 = vmax.f32 %v508, 0.0
      %v635 = vmax.f32 %v513, 0.0
      %v636 = vmax.f32 %v516, 0.0
      %v637 = vmax.f32 %v521, 0.0
      %v638 = vmax.f32 %v524, 0.0
      %v639 = vmax.f32 %v529, 0.0
      %v640 = vmax.f32 %v532, 0.0
      %v641 = vmax.f32 %v537, 0.0
      %v642 = vmax.f32 %v540, 0.0
      %v643 = vmax.f32 %v545, 0.0
      %v644 = vmax.f32 %v548, 0.0
      %v645 = vmax.f32 %v553, 0.0
      %v646 = vmax.f32 %v556, 0.0
      %v647 = vmax.f32 %v561, 0.0
      %v648 = vmax.f32 %v564, 0.0
      %v649 = vmax.f32 %v569, 0.0
      %v650 = vmax.f32 %v572, 0.0
      %v651 = vmax.f32 %v577, 0.0
      %v652 = vmax.f32 %v580, 0.0
      %v653 = vmax.f32 %v585, 0.0
      %v654 = vmax.f32 %v588, 0.0
      %655 = vst [vmem:[%s172] sm:$0xff] %v591
      %656 = vst [vmem:[%s172 + $0x8] sm:$0xff] %v592
      %657 = vst [vmem:[%s172 + $0x10] sm:$0xff] %v593
      %658 = vst [vmem:[%s172 + $0x18] sm:$0xff] %v594
      %659 = vst [vmem:[%s172 + $0x20] sm:$0xff] %v595
      %660 = vst [vmem:[%s172 + $0x28] sm:$0xff] %v596
      %661 = vst [vmem:[%s172 + $0x30] sm:$0xff] %v597
      %662 = vst [vmem:[%s172 + $0x38] sm:$0xff] %v598
      %663 = vst [vmem:[%s172 + $0x40] sm:$0xff] %v599
      %664 = vst [vmem:[%s172 + $0x48] sm:$0xff] %v600
      %665 = vst [vmem:[%s172 + $0x50] sm:$0xff] %v601
      %666 = vst [vmem:[%s172 + $0x58] sm:$0xff] %v602
      %667 = vst [vmem:[%s172 + $0x60] sm:$0xff] %v603
      %668 = vst [vmem:[%s172 + $0x68] sm:$0xff] %v604
      %669 = vst [vmem:[%s172 + $0x70] sm:$0xff] %v605
      %670 = vst [vmem:[%s172 + $0x78] sm:$0xff] %v606
      %671 = vst [vmem:[%s172 + $0x80] sm:$0xff] %v607
      %672 = vst [vmem:[%s172 + $0x88] sm:$0xff] %v608
      %673 = vst [vmem:[%s172 + $0x90] sm:$0xff] %v609
      %674 = vst [vmem:[%s172 + $0x98] sm:$0xff] %v610
      %675 = vst [vmem:[%s172 + $0xa0] sm:$0xff] %v611
      %676 = vst [vmem:[%s172 + $0xa8] sm:$0xff] %v612
      %677 = vst [vmem:[%s172 + $0xb0] sm:$0xff] %v613
      %678 = vst [vmem:[%s172 + $0xb8] sm:$0xff] %v614
      %679 = vst [vmem:[%s172 + $0xc0] sm:$0xff] %v615
      %680 = vst [vmem:[%s172 + $0xc8] sm:$0xff] %v616
      %681 = vst [vmem:[%s172 + $0xd0] sm:$0xff] %v617
      %682 = vst [vmem:[%s172 + $0xd8] sm:$0xff] %v618
      %683 = vst [vmem:[%s172 + $0xe0] sm:$0xff] %v619
      %684 = vst [vmem:[%s172 + $0xe8] sm:$0xff] %v620
      %685 = vst [vmem:[%s172 + $0xf0] sm:$0xff] %v621
      %686 = vst [vmem:[%s172 + $0xf8] sm:$0xff] %v622
      %687 = vst [vmem:[%s172 + $0x100] sm:$0xff] %v623
      %688 = vst [vmem:[%s172 + $0x108] sm:$0xff] %v624
      %689 = vst [vmem:[%s172 + $0x110] sm:$0xff] %v625
      %690 = vst [vmem:[%s172 + $0x118] sm:$0xff] %v626
      %691 = vst [vmem:[%s172 + $0x120] sm:$0xff] %v627
      %692 = vst [vmem:[%s172 + $0x128] sm:$0xff] %v628
      %693 = vst [vmem:[%s172 + $0x130] sm:$0xff] %v629
      %694 = vst [vmem:[%s172 + $0x138] sm:$0xff] %v630
      %695 = vst [vmem:[%s172 + $0x140] sm:$0xff] %v631
      %696 = vst [vmem:[%s172 + $0x148] sm:$0xff] %v632
      %697 = vst [vmem:[%s172 + $0x150] sm:$0xff] %v633
      %698 = vst [vmem:[%s172 + $0x158] sm:$0xff] %v634
      %699 = vst [vmem:[%s172 + $0x160] sm:$0xff] %v635
      %700 = vst [vmem:[%s172 + $0x168] sm:$0xff] %v636
      %701 = vst [vmem:[%s172 + $0x170] sm:$0xff] %v637
      %702 = vst [vmem:[%s172 + $0x178] sm:$0xff] %v638
      %703 = vst [vmem:[%s172 + $0x180] sm:$0xff] %v639
      %704 = vst [vmem:[%s172 + $0x188] sm:$0xff] %v640
      %705 = vst [vmem:[%s172 + $0x190] sm:$0xff] %v641
      %706 = vst [vmem:[%s172 + $0x198] sm:$0xff] %v642
      %707 = vst [vmem:[%s172 + $0x1a0] sm:$0xff] %v643
      %708 = vst [vmem:[%s172 + $0x1a8] sm:$0xff] %v644
      %709 = vst [vmem:[%s172 + $0x1b0] sm:$0xff] %v645
      %710 = vst [vmem:[%s172 + $0x1b8] sm:$0xff] %v646
      %711 = vst [vmem:[%s172 + $0x1c0] sm:$0xff] %v647
      %712 = vst [vmem:[%s172 + $0x1c8] sm:$0xff] %v648
      %713 = vst [vmem:[%s172 + $0x1d0] sm:$0xff] %v649
      %714 = vst [vmem:[%s172 + $0x1d8] sm:$0xff] %v650
      %715 = vst [vmem:[%s172 + $0x1e0] sm:$0xff] %v651
      %716 = vst [vmem:[%s172 + $0x1e8] sm:$0xff] %v652
      %717 = vst [vmem:[%s172 + $0x1f0] sm:$0xff] %v653
      %718 = vst [vmem:[%s172 + $0x1f8] sm:$0xff] %v654
      %s719 = smul.u32 64, %s14
      %p720 = scmp.lt.s32.totalorder %s719, 1023
      %s721 = scalar_select %p720, %s719, 1023
      %s722 = smul.addr %s721, 8
      %s723 = scalar_lea.vmem %s3, %s722
      // Predicated region
      $region33: #{vision_transformer_forward.34} parent=31 // pred_check
        %p724 = pneg %p100
      $region34: #{vision_transformer_forward.34} parent=31 // pred_check_branch
        %726 = sbr.rel (%p724) target = $region36
      $region35: #{vision_transformer_forward.34} parent=31 // pred_region
        %s727 = smul.u32 64, %s14
      $region36: #{vision_transformer_forward.34} parent=31 // pred_fallthru
        _
    $region32: #{vision_transformer_forward.34} parent=5 // pred_fallthru
      _
    %p728 = scmp.le.s32.totalorder 2, %s9
    // Predicated region
    $region37: #{vision_transformer_forward.34} parent=5 // pred_check
      %p729 = pneg %p728
    $region38: #{vision_transformer_forward.34} parent=5 // pred_check_branch
      %731 = sbr.rel (%p729) target = $region40
    $region39: #{vision_transformer_forward.34} parent=5 // pred_region
      %s732 = ssub.s32 %s9, 2
      // Predicated region
      $region41: #{vision_transformer_forward.34} parent=39 // pred_check
        %p733 = pneg %p106
      $region42: #{vision_transformer_forward.34} parent=39 // pred_check_branch
        %735 = sbr.rel (%p733) target = $region44
      $region43: #{vision_transformer_forward.34} parent=39 // pred_region
        %s736 = smul.u32 64, %s15
        %p737 = scmp.lt.s32.totalorder %s736, 1023
        %s738 = scalar_select %p737, %s736, 1023
        %s739 = smul.addr %s738, 8
        %s740 = scalar_lea.vmem %s3, %s739
      $region44: #{vision_transformer_forward.34} parent=39 // pred_fallthru
        _
    $region40: #{vision_transformer_forward.34} parent=5 // pred_fallthru
      _
  $region6: #{vision_transformer_forward.34} parent=0 // loop_footer
    %s13 = sadd.s32 1, %s9
  $region7: #{vision_transformer_forward.34} parent=0 // loop_footer_branch
    %8 = sbr.rel target = $region3
  $region8: #{vision_transformer_forward.34} parent=0 // loop_exit
    _

// kernel: vision_transformer_forward.37
$region0: #{vision_transformer_forward.37}
  #allocation0 [shape = 'u32[]', space=smem, size = 0x4, offset = 0x4, fixed_abs, tag = 'smem constant byte address 0x4 - core index']
  #allocation1 [shape = 'u32[144,128]{1,0:T(1,128)}', space=vmem, size = 0x12000, scoped, tag = 'internal scratch']
  %s0 = inlined_call_operand.vmem [shape: f32[8192,128], index: 0, kind: input, shape index: {}]
  %s1 = inlined_call_operand.vmem [shape: f32[128,128], index: 1, kind: input, shape index: {}]
  %s2 = inlined_call_operand.vmem [shape: f32[1,128], index: 2, kind: input, shape index: {}]
  %s3 = inlined_call_operand.vmem [shape: f32[8192,128], index: 3, kind: output, shape index: {}]
  %s4 = sld [smem:[#allocation0]]
  $region45: #{vision_transformer_forward.37} parent=0
    _
  %s6 = ssub.s32 1, %s4
  %s7 = scalar_select 0, %s6, %s4
  loop: start=0, step=1, limit=18
  $region2: #{vision_transformer_forward.37} parent=0 // loop_pre_header
    _
  $region3: #{vision_transformer_forward.37} parent=0 // loop_header
    %s9 = sphi 0, %s13
    %p10 = scmp.ge.s32.totalorder %s9, 18
    %s19 = sphi 0, %s21
    %s22 = sphi 0, %s19
    %s23 = sphi 0, %s22
    %s39 = sphi 0, %s23
    %s43 = sphi 0, %s43
    %s45 = sphi 0, %s43
    %s46 = sphi 0, %s45
    %s60 = sphi 0, %s46
    %s64 = sphi 0, %s64
    %s66 = sphi 0, %s64
    %s67 = sphi 0, %s66
    %s81 = sphi 0, %s67
    %s87 = sphi 0, %s89
    %s90 = sphi 0, %s87
    %s91 = sphi 0, %s90
    %s107 = sphi 0, %s91
  $region4: #{vision_transformer_forward.37} parent=0 // loop_header_branch
    %12 = sbr.rel (%p10) target = $region8
  $region5: #{vision_transformer_forward.37} parent=0 // loop_body
    %s14 = ssub.s32 %s9, 1
    %s15 = ssub.s32 %s9, 2
    %s16 = sadd.s32 %s9, 1
    %s17 = ssub.s32 %s9, %s16
    %p18 = scmp.eq.s32.totalorder %s17, 0
    %s20 = sadd.s32 %s19, 1
    %s21 = scalar_select %p18, %s19, %s20
    %p24 = pneg %p18
    %p25 = scmp.eq.s32.totalorder %s9, 15
    %p26 = por %p24, %p25
    %p27 = scmp.ne.s32.totalorder %s19, %s22
    %p28 = scmp.eq.s32.totalorder %s9, 0
    %p29 = por %p27, %p28
    %p30 = scmp.ne.s32.totalorder %s19, %s22
    %p31 = scmp.eq.s32.totalorder %s14, 15
    %p32 = por %p30, %p31
    %p33 = scmp.ne.s32.totalorder %s22, %s23
    %p34 = scmp.eq.s32.totalorder %s14, 0
    %p35 = por %p33, %p34
    %p36 = scmp.ne.s32.totalorder %s22, %s23
    %p37 = scmp.eq.s32.totalorder %s15, 15
    %p38 = por %p36, %p37
    %p40 = scmp.ne.s32.totalorder %s23, %s39
    %p41 = scmp.eq.s32.totalorder %s15, 0
    %p42 = por %p40, %p41
    %s44 = sadd.s32 %s43, 1
    %p47 = scmp.eq.s32.totalorder %s9, 15
    %p48 = scmp.ne.s32.totalorder %s43, %s45
    %p49 = scmp.eq.s32.totalorder %s9, 0
    %p50 = por %p48, %p49
    %p51 = scmp.ne.s32.totalorder %s43, %s45
    %p52 = scmp.eq.s32.totalorder %s14, 15
    %p53 = por %p51, %p52
    %p54 = scmp.ne.s32.totalorder %s45, %s46
    %p55 = scmp.eq.s32.totalorder %s14, 0
    %p56 = por %p54, %p55
    %p57 = scmp.ne.s32.totalorder %s45, %s46
    %p58 = scmp.eq.s32.totalorder %s15, 15
    %p59 = por %p57, %p58
    %p61 = scmp.ne.s32.totalorder %s46, %s60
    %p62 = scmp.eq.s32.totalorder %s15, 0
    %p63 = por %p61, %p62
    %s65 = sadd.s32 %s64, 1
    %p68 = scmp.eq.s32.totalorder %s9, 15
    %p69 = scmp.ne.s32.totalorder %s64, %s66
    %p70 = scmp.eq.s32.totalorder %s9, 0
    %p71 = por %p69, %p70
    %p72 = scmp.ne.s32.totalorder %s64, %s66
    %p73 = scmp.eq.s32.totalorder %s14, 15
    %p74 = por %p72, %p73
    %p75 = scmp.ne.s32.totalorder %s66, %s67
    %p76 = scmp.eq.s32.totalorder %s14, 0
    %p77 = por %p75, %p76
    %p78 = scmp.ne.s32.totalorder %s66, %s67
    %p79 = scmp.eq.s32.totalorder %s15, 15
    %p80 = por %p78, %p79
    %p82 = scmp.ne.s32.totalorder %s67, %s81
    %p83 = scmp.eq.s32.totalorder %s15, 0
    %p84 = por %p82, %p83
    %s85 = ssub.s32 %s9, %s16
    %p86 = scmp.eq.s32.totalorder %s85, 0
    %s88 = sadd.s32 %s87, 1
    %s89 = scalar_select %p86, %s87, %s88
    %p92 = pneg %p86
    %p93 = scmp.eq.s32.totalorder %s9, 15
    %p94 = por %p92, %p93
    %p95 = scmp.ne.s32.totalorder %s87, %s90
    %p96 = scmp.eq.s32.totalorder %s9, 0
    %p97 = por %p95, %p96
    %p98 = scmp.ne.s32.totalorder %s87, %s90
    %p99 = scmp.eq.s32.totalorder %s14, 15
    %p100 = por %p98, %p99
    %p101 = scmp.ne.s32.totalorder %s90, %s91
    %p102 = scmp.eq.s32.totalorder %s14, 0
    %p103 = por %p101, %p102
    %p104 = scmp.ne.s32.totalorder %s90, %s91
    %p105 = scmp.eq.s32.totalorder %s15, 15
    %p106 = por %p104, %p105
    %p108 = scmp.ne.s32.totalorder %s91, %s107
    %p109 = scmp.eq.s32.totalorder %s15, 0
    %p110 = por %p108, %p109
    %p111 = scmp.le.s32.totalorder 1, %s9
    %p112 = scmp.lt.s32.totalorder %s9, 17
    %p113 = pnand %p111, %p112
    %p114 = pneg %p113
    // Predicated region
    $region9: #{vision_transformer_forward.37} parent=5 // pred_check
      _
    $region10: #{vision_transformer_forward.37} parent=5 // pred_check_branch
      %116 = sbr.rel (%p113) target = $region12
    $region11: #{vision_transformer_forward.37} parent=5 // pred_region
      %s117 = ssub.s32 %s9, 1
      // Predicated region
      $region13: #{vision_transformer_forward.37} parent=11 // pred_check
        %p118 = pneg %p56
      $region14: #{vision_transformer_forward.37} parent=11 // pred_check_branch
        %120 = sbr.rel (%p118) target = $region16
      $region15: #{vision_transformer_forward.37} parent=11 // pred_region
        _
      $region16: #{vision_transformer_forward.37} parent=11 // pred_fallthru
        _
      // Predicated region
      $region17: #{vision_transformer_forward.37} parent=11 // pred_check
        %p121 = pneg %p77
      $region18: #{vision_transformer_forward.37} parent=11 // pred_check_branch
        %123 = sbr.rel (%p121) target = $region20
      $region19: #{vision_transformer_forward.37} parent=11 // pred_region
        _
      $region20: #{vision_transformer_forward.37} parent=11 // pred_fallthru
        _
    $region12: #{vision_transformer_forward.37} parent=5 // pred_fallthru
      _
    %p124 = scmp.lt.s32.totalorder %s9, 16
    // Predicated region
    $region21: #{vision_transformer_forward.37} parent=5 // pred_check
      %p125 = pneg %p124
    $region22: #{vision_transformer_forward.37} parent=5 // pred_check_branch
      %127 = sbr.rel (%p125) target = $region24
    $region23: #{vision_transformer_forward.37} parent=5 // pred_region
      // Predicated region
      $region25: #{vision_transformer_forward.37} parent=23 // pred_check
        %p128 = pneg %p29
      $region26: #{vision_transformer_forward.37} parent=23 // pred_check_branch
        %130 = sbr.rel (%p128) target = $region28
      $region27: #{vision_transformer_forward.37} parent=23 // pred_region
        %s131 = smul.u32 64, %s9
        %p132 = scmp.lt.s32.totalorder %s131, 1023
        %s133 = scalar_select %p132, %s131, 1023
        %s134 = smul.addr %s133, 8
        %s135 = scalar_lea.vmem %s0, %s134
        %s136 = smul.u32 64, %s9
      $region28: #{vision_transformer_forward.37} parent=23 // pred_fallthru
        _
    $region24: #{vision_transformer_forward.37} parent=5 // pred_fallthru
      _
    %p137 = scmp.le.s32.totalorder 1, %s9
    %p138 = scmp.lt.s32.totalorder %s9, 17
    %p139 = pnand %p137, %p138
    %p140 = pneg %p139
    // Predicated region
    $region29: #{vision_transformer_forward.37} parent=5 // pred_check
      _
    $region30: #{vision_transformer_forward.37} parent=5 // pred_check_branch
      %142 = sbr.rel (%p139) target = $region32
    $region31: #{vision_transformer_forward.37} parent=5 // pred_region
      %s143 = ssub.s32 %s9, 1
      %s144 = smul.u32 64, %s14
      %p145 = scmp.lt.s32.totalorder %s144, 1023
      %s146 = scalar_select %p145, %s144, 1023
      %s147 = smul.addr %s146, 8
      %s148 = scalar_lea.vmem %s0, %s147
      %p149 = pneg %p35
      %p150 = pneg %p32
      %p151 = pneg %p56
      %p152 = pneg %p53
      %p153 = pneg %p77
      %p154 = pneg %p74
      %p155 = pneg %p103
      %p156 = pneg %p100
      %s157 = smul.u32 64, %s14
      %p158 = scmp.lt.s32.totalorder %s157, 1023
      %s159 = scalar_select %p158, %s157, 1023
      %s160 = smul.addr %s159, 8
      %s161 = scalar_lea.vmem %s3, %s160
      %s162 = smul.u32 64, %s14
      %p163 = scmp.lt.s32.totalorder %s162, 1023
      %s164 = scalar_select %p163, %s162, 1023
      %s165 = smul.addr %s164, 8
      %s166 = scalar_lea.vmem %s0, %s165
      %s167 = smul.u32 64, %s14
      %s168 = smul.u32 64, %s14
      %p169 = scmp.lt.s32.totalorder %s168, 1023
      %s170 = scalar_select %p169, %s168, 1023
      %s171 = smul.addr %s170, 8
      %s172 = scalar_lea.vmem %s3, %s171
      %s173 = smul.u32 64, %s14
      %v175 = vld [vmem:[%s166] sm:$0xff]
      %v176 = vld [vmem:[%s166 + $0x8] sm:$0xff]
      %v177 = vld [vmem:[%s166 + $0x10] sm:$0xff]
      %v178 = vld [vmem:[%s166 + $0x18] sm:$0xff]
      %v179 = vld [vmem:[%s166 + $0x20] sm:$0xff]
      %v180 = vld [vmem:[%s166 + $0x28] sm:$0xff]
      %v181 = vld [vmem:[%s166 + $0x30] sm:$0xff]
      %v182 = vld [vmem:[%s166 + $0x38] sm:$0xff]
      %v183 = vld [vmem:[%s166 + $0x40] sm:$0xff]
      %v184 = vld [vmem:[%s166 + $0x48] sm:$0xff]
      %v185 = vld [vmem:[%s166 + $0x50] sm:$0xff]
      %v186 = vld [vmem:[%s166 + $0x58] sm:$0xff]
      %v187 = vld [vmem:[%s166 + $0x60] sm:$0xff]
      %v188 = vld [vmem:[%s166 + $0x68] sm:$0xff]
      %v189 = vld [vmem:[%s166 + $0x70] sm:$0xff]
      %v190 = vld [vmem:[%s166 + $0x78] sm:$0xff]
      %v191 = vld [vmem:[%s166 + $0x80] sm:$0xff]
      %v192 = vld [vmem:[%s166 + $0x88] sm:$0xff]
      %v193 = vld [vmem:[%s166 + $0x90] sm:$0xff]
      %v194 = vld [vmem:[%s166 + $0x98] sm:$0xff]
      %v195 = vld [vmem:[%s166 + $0xa0] sm:$0xff]
      %v196 = vld [vmem:[%s166 + $0xa8] sm:$0xff]
      %v197 = vld [vmem:[%s166 + $0xb0] sm:$0xff]
      %v198 = vld [vmem:[%s166 + $0xb8] sm:$0xff]
      %v199 = vld [vmem:[%s166 + $0xc0] sm:$0xff]
      %v200 = vld [vmem:[%s166 + $0xc8] sm:$0xff]
      %v201 = vld [vmem:[%s166 + $0xd0] sm:$0xff]
      %v202 = vld [vmem:[%s166 + $0xd8] sm:$0xff]
      %v203 = vld [vmem:[%s166 + $0xe0] sm:$0xff]
      %v204 = vld [vmem:[%s166 + $0xe8] sm:$0xff]
      %v205 = vld [vmem:[%s166 + $0xf0] sm:$0xff]
      %v206 = vld [vmem:[%s166 + $0xf8] sm:$0xff]
      %v207 = vld [vmem:[%s166 + $0x100] sm:$0xff]
      %v208 = vld [vmem:[%s166 + $0x108] sm:$0xff]
      %v209 = vld [vmem:[%s166 + $0x110] sm:$0xff]
      %v210 = vld [vmem:[%s166 + $0x118] sm:$0xff]
      %v211 = vld [vmem:[%s166 + $0x120] sm:$0xff]
      %v212 = vld [vmem:[%s166 + $0x128] sm:$0xff]
      %v213 = vld [vmem:[%s166 + $0x130] sm:$0xff]
      %v214 = vld [vmem:[%s166 + $0x138] sm:$0xff]
      %v215 = vld [vmem:[%s166 + $0x140] sm:$0xff]
      %v216 = vld [vmem:[%s166 + $0x148] sm:$0xff]
      %v217 = vld [vmem:[%s166 + $0x150] sm:$0xff]
      %v218 = vld [vmem:[%s166 + $0x158] sm:$0xff]
      %v219 = vld [vmem:[%s166 + $0x160] sm:$0xff]
      %v220 = vld [vmem:[%s166 + $0x168] sm:$0xff]
      %v221 = vld [vmem:[%s166 + $0x170] sm:$0xff]
      %v222 = vld [vmem:[%s166 + $0x178] sm:$0xff]
      %v223 = vld [vmem:[%s166 + $0x180] sm:$0xff]
      %v224 = vld [vmem:[%s166 + $0x188] sm:$0xff]
      %v225 = vld [vmem:[%s166 + $0x190] sm:$0xff]
      %v226 = vld [vmem:[%s166 + $0x198] sm:$0xff]
      %v227 = vld [vmem:[%s166 + $0x1a0] sm:$0xff]
      %v228 = vld [vmem:[%s166 + $0x1a8] sm:$0xff]
      %v229 = vld [vmem:[%s166 + $0x1b0] sm:$0xff]
      %v230 = vld [vmem:[%s166 + $0x1b8] sm:$0xff]
      %v231 = vld [vmem:[%s166 + $0x1c0] sm:$0xff]
      %v232 = vld [vmem:[%s166 + $0x1c8] sm:$0xff]
      %v233 = vld [vmem:[%s166 + $0x1d0] sm:$0xff]
      %v234 = vld [vmem:[%s166 + $0x1d8] sm:$0xff]
      %v235 = vld [vmem:[%s166 + $0x1e0] sm:$0xff]
      %v236 = vld [vmem:[%s166 + $0x1e8] sm:$0xff]
      %v237 = vld [vmem:[%s166 + $0x1f0] sm:$0xff]
      %v238 = vld [vmem:[%s166 + $0x1f8] sm:$0xff]
      %v239 = vpack.c.bf16 %v176, %v175
      %v240 = vpack.c.bf16 %v178, %v177
      %v241 = vpack.c.bf16 %v180, %v179
      %v242 = vpack.c.bf16 %v182, %v181
      %v243 = vpack.c.bf16 %v184, %v183
      %v244 = vpack.c.bf16 %v186, %v185
      %v245 = vpack.c.bf16 %v188, %v187
      %v246 = vpack.c.bf16 %v190, %v189
      %v247 = vpack.c.bf16 %v192, %v191
      %v248 = vpack.c.bf16 %v194, %v193
      %v249 = vpack.c.bf16 %v196, %v195
      %v250 = vpack.c.bf16 %v198, %v197
      %v251 = vpack.c.bf16 %v200, %v199
      %v252 = vpack.c.bf16 %v202, %v201
      %v253 = vpack.c.bf16 %v204, %v203
      %v254 = vpack.c.bf16 %v206, %v205
      %v255 = vpack.c.bf16 %v208, %v207
      %v256 = vpack.c.bf16 %v210, %v209
      %v257 = vpack.c.bf16 %v212, %v211
      %v258 = vpack.c.bf16 %v214, %v213
      %v259 = vpack.c.bf16 %v216, %v215
      %v260 = vpack.c.bf16 %v218, %v217
      %v261 = vpack.c.bf16 %v220, %v219
      %v262 = vpack.c.bf16 %v222, %v221
      %v263 = vpack.c.bf16 %v224, %v223
      %v264 = vpack.c.bf16 %v226, %v225
      %v265 = vpack.c.bf16 %v228, %v227
      %v266 = vpack.c.bf16 %v230, %v229
      %v267 = vpack.c.bf16 %v232, %v231
      %v268 = vpack.c.bf16 %v234, %v233
      %v269 = vpack.c.bf16 %v236, %v235
      %v270 = vpack.c.bf16 %v238, %v237
      %v271 = vld [vmem:[%s1] sm:$0xff]
      %v272 = vld [vmem:[%s1 + $0x8] sm:$0xff]
      %v273 = vld [vmem:[%s1 + $0x10] sm:$0xff]
      %v274 = vld [vmem:[%s1 + $0x18] sm:$0xff]
      %v275 = vld [vmem:[%s1 + $0x20] sm:$0xff]
      %v276 = vld [vmem:[%s1 + $0x28] sm:$0xff]
      %v277 = vld [vmem:[%s1 + $0x30] sm:$0xff]
      %v278 = vld [vmem:[%s1 + $0x38] sm:$0xff]
      %v279 = vld [vmem:[%s1 + $0x40] sm:$0xff]
      %v280 = vld [vmem:[%s1 + $0x48] sm:$0xff]
      %v281 = vld [vmem:[%s1 + $0x50] sm:$0xff]
      %v282 = vld [vmem:[%s1 + $0x58] sm:$0xff]
      %v283 = vld [vmem:[%s1 + $0x60] sm:$0xff]
      %v284 = vld [vmem:[%s1 + $0x68] sm:$0xff]
      %v285 = vld [vmem:[%s1 + $0x70] sm:$0xff]
      %v286 = vld [vmem:[%s1 + $0x78] sm:$0xff]
      %v287 = vpack.c.bf16 %v272, %v271
      %v288 = vpack.c.bf16 %v274, %v273
      %v289 = vpack.c.bf16 %v276, %v275
      %v290 = vpack.c.bf16 %v278, %v277
      %v291 = vpack.c.bf16 %v280, %v279
      %v292 = vpack.c.bf16 %v282, %v281
      %v293 = vpack.c.bf16 %v284, %v283
      %v294 = vpack.c.bf16 %v286, %v285
      %v295 = vld [vmem:[%s2] sm:$0x1]
      %v297 = vlaneseq
      %v298 = vshrl.u32 %v297, 7
      %v299 = vsub.s32 0, %v298
      %v300 = vrot.slane %v295, %v299
      %302 = vmatprep.subr.bf16.mxu0 0
      %303 = vmatpush1.bf16.msra.mxu0 %v287
      %304 = vmatprep.subr.bf16.mxu0 0
      %305 = vmatpush1.bf16.msra.mxu0 %v288
      %306 = vmatprep.subr.bf16.mxu0 0
      %307 = vmatpush1.bf16.msra.mxu0 %v289
      %308 = vmatprep.subr.bf16.mxu0 0
      %309 = vmatpush1.bf16.msra.mxu0 %v290
      %310 = vmatprep.subr.bf16.mxu0 0
      %311 = vmatpush1.bf16.msra.mxu0 %v291
      %312 = vmatprep.subr.bf16.mxu0 0
      %313 = vmatpush1.bf16.msra.mxu0 %v292
      %314 = vmatprep.subr.bf16.mxu0 0
      %315 = vmatpush1.bf16.msra.mxu0 %v293
      %316 = vmatprep.subr.bf16.mxu0 0
      %317 = vmatpush1.bf16.msra.mxu0 %v294
      %318 = vmatprep.subr.bf16.mxu0 0
      %319 = vmatpush1.bf16.msra.mxu0 0
      %320 = vmatprep.subr.bf16.mxu0 0
      %321 = vmatpush1.bf16.msra.mxu0 0
      %322 = vmatprep.subr.bf16.mxu0 0
      %323 = vmatpush1.bf16.msra.mxu0 0
      %324 = vmatprep.subr.bf16.mxu0 0
      %325 = vmatpush1.bf16.msra.mxu0 0
      %326 = vmatprep.subr.bf16.mxu0 0
      %327 = vmatpush1.bf16.msra.mxu0 0
      %328 = vmatprep.subr.bf16.mxu0 0
      %329 = vmatpush1.bf16.msra.mxu0 0
      %330 = vmatprep.subr.bf16.mxu0 0
      %331 = vmatpush1.bf16.msra.mxu0 0
      %332 = vmatprep.subr.bf16.mxu0 0
      %333 = vmatpush1.bf16.msra.mxu0 0
      %334 = vmatprep.mubr.bf16.mxu0 0
      %335 = vmatmul.mubr.bf16.gmra.mrb[0].mxu0 %v239
      %v336 = vpop.f32.mrb[0].mxu0
      %v337 = vadd.f32 %v300, %v336
      %v338 = vpop.f32.mrb[0].mxu0
      %v339 = vpop.f32.mrb[0].mxu0
      %v340 = vadd.f32 %v300, %v339
      %v341 = vpop.f32.mrb[0].mxu0
      %342 = vmatprep.mubr.bf16.mxu0 0
      %343 = vmatmul.mubr.bf16.gmra.mrb[0].mxu0 %v240
      %v344 = vpop.f32.mrb[0].mxu0
      %v345 = vadd.f32 %v300, %v344
      %v346 = vpop.f32.mrb[0].mxu0
      %v347 = vpop.f32.mrb[0].mxu0
      %v348 = vadd.f32 %v300, %v347
      %v349 = vpop.f32.mrb[0].mxu0
      %350 = vmatprep.mubr.bf16.mxu0 0
      %351 = vmatmul.mubr.bf16.gmra.mrb[0].mxu0 %v241
      %v352 = vpop.f32.mrb[0].mxu0
      %v353 = vadd.f32 %v300, %v352
      %v354 = vpop.f32.mrb[0].mxu0
      %v355 = vpop.f32.mrb[0].mxu0
      %v356 = vadd.f32 %v300, %v355
      %v357 = vpop.f32.mrb[0].mxu0
      %358 = vmatprep.mubr.bf16.mxu0 0
      %359 = vmatmul.mubr.bf16.gmra.mrb[0].mxu0 %v242
      %v360 = vpop.f32.mrb[0].mxu0
      %v361 = vadd.f32 %v300, %v360
      %v362 = vpop.f32.mrb[0].mxu0
      %v363 = vpop.f32.mrb[0].mxu0
      %v364 = vadd.f32 %v300, %v363
      %v365 = vpop.f32.mrb[0].mxu0
      %366 = vmatprep.mubr.bf16.mxu0 0
      %367 = vmatmul.mubr.bf16.gmra.mrb[0].mxu0 %v243
      %v368 = vpop.f32.mrb[0].mxu0
      %v369 = vadd.f32 %v300, %v368
      %v370 = vpop.f32.mrb[0].mxu0
      %v371 = vpop.f32.mrb[0].mxu0
      %v372 = vadd.f32 %v300, %v371
      %v373 = vpop.f32.mrb[0].mxu0
      %374 = vmatprep.mubr.bf16.mxu0 0
      %375 = vmatmul.mubr.bf16.gmra.mrb[0].mxu0 %v244
      %v376 = vpop.f32.mrb[0].mxu0
      %v377 = vadd.f32 %v300, %v376
      %v378 = vpop.f32.mrb[0].mxu0
      %v379 = vpop.f32.mrb[0].mxu0
      %v380 = vadd.f32 %v300, %v379
      %v381 = vpop.f32.mrb[0].mxu0
      %382 = vmatprep.mubr.bf16.mxu0 0
      %383 = vmatmul.mubr.bf16.gmra.mrb[0].mxu0 %v245
      %v384 = vpop.f32.mrb[0].mxu0
      %v385 = vadd.f32 %v300, %v384
      %v386 = vpop.f32.mrb[0].mxu0
      %v387 = vpop.f32.mrb[0].mxu0
      %v388 = vadd.f32 %v300, %v387
      %v389 = vpop.f32.mrb[0].mxu0
      %390 = vmatprep.mubr.bf16.mxu0 0
      %391 = vmatmul.mubr.bf16.gmra.mrb[0].mxu0 %v246
      %v392 = vpop.f32.mrb[0].mxu0
      %v393 = vadd.f32 %v300, %v392
      %v394 = vpop.f32.mrb[0].mxu0
      %v395 = vpop.f32.mrb[0].mxu0
      %v396 = vadd.f32 %v300, %v395
      %v397 = vpop.f32.mrb[0].mxu0
      %398 = vmatprep.mubr.bf16.mxu0 0
      %399 = vmatmul.mubr.bf16.gmra.mrb[0].mxu0 %v247
      %v400 = vpop.f32.mrb[0].mxu0
      %v401 = vadd.f32 %v300, %v400
      %v402 = vpop.f32.mrb[0].mxu0
      %v403 = vpop.f32.mrb[0].mxu0
      %v404 = vadd.f32 %v300, %v403
      %v405 = vpop.f32.mrb[0].mxu0
      %406 = vmatprep.mubr.bf16.mxu0 0
      %407 = vmatmul.mubr.bf16.gmra.mrb[0].mxu0 %v248
      %v408 = vpop.f32.mrb[0].mxu0
      %v409 = vadd.f32 %v300, %v408
      %v410 = vpop.f32.mrb[0].mxu0
      %v411 = vpop.f32.mrb[0].mxu0
      %v412 = vadd.f32 %v300, %v411
      %v413 = vpop.f32.mrb[0].mxu0
      %414 = vmatprep.mubr.bf16.mxu0 0
      %415 = vmatmul.mubr.bf16.gmra.mrb[0].mxu0 %v249
      %v416 = vpop.f32.mrb[0].mxu0
      %v417 = vadd.f32 %v300, %v416
      %v418 = vpop.f32.mrb[0].mxu0
      %v419 = vpop.f32.mrb[0].mxu0
      %v420 = vadd.f32 %v300, %v419
      %v421 = vpop.f32.mrb[0].mxu0
      %422 = vmatprep.mubr.bf16.mxu0 0
      %423 = vmatmul.mubr.bf16.gmra.mrb[0].mxu0 %v250
      %v424 = vpop.f32.mrb[0].mxu0
      %v425 = vadd.f32 %v300, %v424
      %v426 = vpop.f32.mrb[0].mxu0
      %v427 = vpop.f32.mrb[0].mxu0
      %v428 = vadd.f32 %v300, %v427
      %v429 = vpop.f32.mrb[0].mxu0
      %430 = vmatprep.mubr.bf16.mxu0 0
      %431 = vmatmul.mubr.bf16.gmra.mrb[0].mxu0 %v251
      %v432 = vpop.f32.mrb[0].mxu0
      %v433 = vadd.f32 %v300, %v432
      %v434 = vpop.f32.mrb[0].mxu0
      %v435 = vpop.f32.mrb[0].mxu0
      %v436 = vadd.f32 %v300, %v435
      %v437 = vpop.f32.mrb[0].mxu0
      %438 = vmatprep.mubr.bf16.mxu0 0
      %439 = vmatmul.mubr.bf16.gmra.mrb[0].mxu0 %v252
      %v440 = vpop.f32.mrb[0].mxu0
      %v441 = vadd.f32 %v300, %v440
      %v442 = vpop.f32.mrb[0].mxu0
      %v443 = vpop.f32.mrb[0].mxu0
      %v444 = vadd.f32 %v300, %v443
      %v445 = vpop.f32.mrb[0].mxu0
      %446 = vmatprep.mubr.bf16.mxu0 0
      %447 = vmatmul.mubr.bf16.gmra.mrb[0].mxu0 %v253
      %v448 = vpop.f32.mrb[0].mxu0
      %v449 = vadd.f32 %v300, %v448
      %v450 = vpop.f32.mrb[0].mxu0
      %v451 = vpop.f32.mrb[0].mxu0
      %v452 = vadd.f32 %v300, %v451
      %v453 = vpop.f32.mrb[0].mxu0
      %454 = vmatprep.mubr.bf16.mxu0 0
      %455 = vmatmul.mubr.bf16.gmra.mrb[0].mxu0 %v254
      %v456 = vpop.f32.mrb[0].mxu0
      %v457 = vadd.f32 %v300, %v456
      %v458 = vpop.f32.mrb[0].mxu0
      %v459 = vpop.f32.mrb[0].mxu0
      %v460 = vadd.f32 %v300, %v459
      %v461 = vpop.f32.mrb[0].mxu0
      %462 = vmatprep.mubr.bf16.mxu0 0
      %463 = vmatmul.mubr.bf16.gmra.mrb[0].mxu0 %v255
      %v464 = vpop.f32.mrb[0].mxu0
      %v465 = vadd.f32 %v300, %v464
      %v466 = vpop.f32.mrb[0].mxu0
      %v467 = vpop.f32.mrb[0].mxu0
      %v468 = vadd.f32 %v300, %v467
      %v469 = vpop.f32.mrb[0].mxu0
      %470 = vmatprep.mubr.bf16.mxu0 0
      %471 = vmatmul.mubr.bf16.gmra.mrb[0].mxu0 %v256
      %v472 = vpop.f32.mrb[0].mxu0
      %v473 = vadd.f32 %v300, %v472
      %v474 = vpop.f32.mrb[0].mxu0
      %v475 = vpop.f32.mrb[0].mxu0
      %v476 = vadd.f32 %v300, %v475
      %v477 = vpop.f32.mrb[0].mxu0
      %478 = vmatprep.mubr.bf16.mxu0 0
      %479 = vmatmul.mubr.bf16.gmra.mrb[0].mxu0 %v257
      %v480 = vpop.f32.mrb[0].mxu0
      %v481 = vadd.f32 %v300, %v480
      %v482 = vpop.f32.mrb[0].mxu0
      %v483 = vpop.f32.mrb[0].mxu0
      %v484 = vadd.f32 %v300, %v483
      %v485 = vpop.f32.mrb[0].mxu0
      %486 = vmatprep.mubr.bf16.mxu0 0
      %487 = vmatmul.mubr.bf16.gmra.mrb[0].mxu0 %v258
      %v488 = vpop.f32.mrb[0].mxu0
      %v489 = vadd.f32 %v300, %v488
      %v490 = vpop.f32.mrb[0].mxu0
      %v491 = vpop.f32.mrb[0].mxu0
      %v492 = vadd.f32 %v300, %v491
      %v493 = vpop.f32.mrb[0].mxu0
      %494 = vmatprep.mubr.bf16.mxu0 0
      %495 = vmatmul.mubr.bf16.gmra.mrb[0].mxu0 %v259
      %v496 = vpop.f32.mrb[0].mxu0
      %v497 = vadd.f32 %v300, %v496
      %v498 = vpop.f32.mrb[0].mxu0
      %v499 = vpop.f32.mrb[0].mxu0
      %v500 = vadd.f32 %v300, %v499
      %v501 = vpop.f32.mrb[0].mxu0
      %502 = vmatprep.mubr.bf16.mxu0 0
      %503 = vmatmul.mubr.bf16.gmra.mrb[0].mxu0 %v260
      %v504 = vpop.f32.mrb[0].mxu0
      %v505 = vadd.f32 %v300, %v504
      %v506 = vpop.f32.mrb[0].mxu0
      %v507 = vpop.f32.mrb[0].mxu0
      %v508 = vadd.f32 %v300, %v507
      %v509 = vpop.f32.mrb[0].mxu0
      %510 = vmatprep.mubr.bf16.mxu0 0
      %511 = vmatmul.mubr.bf16.gmra.mrb[0].mxu0 %v261
      %v512 = vpop.f32.mrb[0].mxu0
      %v513 = vadd.f32 %v300, %v512
      %v514 = vpop.f32.mrb[0].mxu0
      %v515 = vpop.f32.mrb[0].mxu0
      %v516 = vadd.f32 %v300, %v515
      %v517 = vpop.f32.mrb[0].mxu0
      %518 = vmatprep.mubr.bf16.mxu0 0
      %519 = vmatmul.mubr.bf16.gmra.mrb[0].mxu0 %v262
      %v520 = vpop.f32.mrb[0].mxu0
      %v521 = vadd.f32 %v300, %v520
      %v522 = vpop.f32.mrb[0].mxu0
      %v523 = vpop.f32.mrb[0].mxu0
      %v524 = vadd.f32 %v300, %v523
      %v525 = vpop.f32.mrb[0].mxu0
      %526 = vmatprep.mubr.bf16.mxu0 0
      %527 = vmatmul.mubr.bf16.gmra.mrb[0].mxu0 %v263
      %v528 = vpop.f32.mrb[0].mxu0
      %v529 = vadd.f32 %v300, %v528
      %v530 = vpop.f32.mrb[0].mxu0
      %v531 = vpop.f32.mrb[0].mxu0
      %v532 = vadd.f32 %v300, %v531
      %v533 = vpop.f32.mrb[0].mxu0
      %534 = vmatprep.mubr.bf16.mxu0 0
      %535 = vmatmul.mubr.bf16.gmra.mrb[0].mxu0 %v264
      %v536 = vpop.f32.mrb[0].mxu0
      %v537 = vadd.f32 %v300, %v536
      %v538 = vpop.f32.mrb[0].mxu0
      %v539 = vpop.f32.mrb[0].mxu0
      %v540 = vadd.f32 %v300, %v539
      %v541 = vpop.f32.mrb[0].mxu0
      %542 = vmatprep.mubr.bf16.mxu0 0
      %543 = vmatmul.mubr.bf16.gmra.mrb[0].mxu0 %v265
      %v544 = vpop.f32.mrb[0].mxu0
      %v545 = vadd.f32 %v300, %v544
      %v546 = vpop.f32.mrb[0].mxu0
      %v547 = vpop.f32.mrb[0].mxu0
      %v548 = vadd.f32 %v300, %v547
      %v549 = vpop.f32.mrb[0].mxu0
      %550 = vmatprep.mubr.bf16.mxu0 0
      %551 = vmatmul.mubr.bf16.gmra.mrb[0].mxu0 %v266
      %v552 = vpop.f32.mrb[0].mxu0
      %v553 = vadd.f32 %v300, %v552
      %v554 = vpop.f32.mrb[0].mxu0
      %v555 = vpop.f32.mrb[0].mxu0
      %v556 = vadd.f32 %v300, %v555
      %v557 = vpop.f32.mrb[0].mxu0
      %558 = vmatprep.mubr.bf16.mxu0 0
      %559 = vmatmul.mubr.bf16.gmra.mrb[0].mxu0 %v267
      %v560 = vpop.f32.mrb[0].mxu0
      %v561 = vadd.f32 %v300, %v560
      %v562 = vpop.f32.mrb[0].mxu0
      %v563 = vpop.f32.mrb[0].mxu0
      %v564 = vadd.f32 %v300, %v563
      %v565 = vpop.f32.mrb[0].mxu0
      %566 = vmatprep.mubr.bf16.mxu0 0
      %567 = vmatmul.mubr.bf16.gmra.mrb[0].mxu0 %v268
      %v568 = vpop.f32.mrb[0].mxu0
      %v569 = vadd.f32 %v300, %v568
      %v570 = vpop.f32.mrb[0].mxu0
      %v571 = vpop.f32.mrb[0].mxu0
      %v572 = vadd.f32 %v300, %v571
      %v573 = vpop.f32.mrb[0].mxu0
      %574 = vmatprep.mubr.bf16.mxu0 0
      %575 = vmatmul.mubr.bf16.gmra.mrb[0].mxu0 %v269
      %v576 = vpop.f32.mrb[0].mxu0
      %v577 = vadd.f32 %v300, %v576
      %v578 = vpop.f32.mrb[0].mxu0
      %v579 = vpop.f32.mrb[0].mxu0
      %v580 = vadd.f32 %v300, %v579
      %v581 = vpop.f32.mrb[0].mxu0
      %582 = vmatprep.mubr.bf16.mxu0 0
      %583 = vmatmul.mubr.bf16.gmra.mrb[0].mxu0 %v270
      %v584 = vpop.f32.mrb[0].mxu0
      %v585 = vadd.f32 %v300, %v584
      %v586 = vpop.f32.mrb[0].mxu0
      %v587 = vpop.f32.mrb[0].mxu0
      %v588 = vadd.f32 %v300, %v587
      %v589 = vpop.f32.mrb[0].mxu0
      %590 = vdwg.mxu0
      %v591 = vtanh.pop %v337
      %v592 = vtanh.pop %v340
      %v593 = vtanh.pop %v345
      %v594 = vtanh.pop %v348
      %v595 = vtanh.pop %v353
      %v596 = vtanh.pop %v356
      %v597 = vtanh.pop %v361
      %v598 = vtanh.pop %v364
      %v599 = vtanh.pop %v369
      %v600 = vtanh.pop %v372
      %v601 = vtanh.pop %v377
      %v602 = vtanh.pop %v380
      %v603 = vtanh.pop %v385
      %v604 = vtanh.pop %v388
      %v605 = vtanh.pop %v393
      %v606 = vtanh.pop %v396
      %v607 = vtanh.pop %v401
      %v608 = vtanh.pop %v404
      %v609 = vtanh.pop %v409
      %v610 = vtanh.pop %v412
      %v611 = vtanh.pop %v417
      %v612 = vtanh.pop %v420
      %v613 = vtanh.pop %v425
      %v614 = vtanh.pop %v428
      %v615 = vtanh.pop %v433
      %v616 = vtanh.pop %v436
      %v617 = vtanh.pop %v441
      %v618 = vtanh.pop %v444
      %v619 = vtanh.pop %v449
      %v620 = vtanh.pop %v452
      %v621 = vtanh.pop %v457
      %v622 = vtanh.pop %v460
      %v623 = vtanh.pop %v465
      %v624 = vtanh.pop %v468
      %v625 = vtanh.pop %v473
      %v626 = vtanh.pop %v476
      %v627 = vtanh.pop %v481
      %v628 = vtanh.pop %v484
      %v629 = vtanh.pop %v489
      %v630 = vtanh.pop %v492
      %v631 = vtanh.pop %v497
      %v632 = vtanh.pop %v500
      %v633 = vtanh.pop %v505
      %v634 = vtanh.pop %v508
      %v635 = vtanh.pop %v513
      %v636 = vtanh.pop %v516
      %v637 = vtanh.pop %v521
      %v638 = vtanh.pop %v524
      %v639 = vtanh.pop %v529
      %v640 = vtanh.pop %v532
      %v641 = vtanh.pop %v537
      %v642 = vtanh.pop %v540
      %v643 = vtanh.pop %v545
      %v644 = vtanh.pop %v548
      %v645 = vtanh.pop %v553
      %v646 = vtanh.pop %v556
      %v647 = vtanh.pop %v561
      %v648 = vtanh.pop %v564
      %v649 = vtanh.pop %v569
      %v650 = vtanh.pop %v572
      %v651 = vtanh.pop %v577
      %v652 = vtanh.pop %v580
      %v653 = vtanh.pop %v585
      %v654 = vtanh.pop %v588
      %655 = vst [vmem:[%s172] sm:$0xff] %v591
      %656 = vst [vmem:[%s172 + $0x8] sm:$0xff] %v592
      %657 = vst [vmem:[%s172 + $0x10] sm:$0xff] %v593
      %658 = vst [vmem:[%s172 + $0x18] sm:$0xff] %v594
      %659 = vst [vmem:[%s172 + $0x20] sm:$0xff] %v595
      %660 = vst [vmem:[%s172 + $0x28] sm:$0xff] %v596
      %661 = vst [vmem:[%s172 + $0x30] sm:$0xff] %v597
      %662 = vst [vmem:[%s172 + $0x38] sm:$0xff] %v598
      %663 = vst [vmem:[%s172 + $0x40] sm:$0xff] %v599
      %664 = vst [vmem:[%s172 + $0x48] sm:$0xff] %v600
      %665 = vst [vmem:[%s172 + $0x50] sm:$0xff] %v601
      %666 = vst [vmem:[%s172 + $0x58] sm:$0xff] %v602
      %667 = vst [vmem:[%s172 + $0x60] sm:$0xff] %v603
      %668 = vst [vmem:[%s172 + $0x68] sm:$0xff] %v604
      %669 = vst [vmem:[%s172 + $0x70] sm:$0xff] %v605
      %670 = vst [vmem:[%s172 + $0x78] sm:$0xff] %v606
      %671 = vst [vmem:[%s172 + $0x80] sm:$0xff] %v607
      %672 = vst [vmem:[%s172 + $0x88] sm:$0xff] %v608
      %673 = vst [vmem:[%s172 + $0x90] sm:$0xff] %v609
      %674 = vst [vmem:[%s172 + $0x98] sm:$0xff] %v610
      %675 = vst [vmem:[%s172 + $0xa0] sm:$0xff] %v611
      %676 = vst [vmem:[%s172 + $0xa8] sm:$0xff] %v612
      %677 = vst [vmem:[%s172 + $0xb0] sm:$0xff] %v613
      %678 = vst [vmem:[%s172 + $0xb8] sm:$0xff] %v614
      %679 = vst [vmem:[%s172 + $0xc0] sm:$0xff] %v615
      %680 = vst [vmem:[%s172 + $0xc8] sm:$0xff] %v616
      %681 = vst [vmem:[%s172 + $0xd0] sm:$0xff] %v617
      %682 = vst [vmem:[%s172 + $0xd8] sm:$0xff] %v618
      %683 = vst [vmem:[%s172 + $0xe0] sm:$0xff] %v619
      %684 = vst [vmem:[%s172 + $0xe8] sm:$0xff] %v620
      %685 = vst [vmem:[%s172 + $0xf0] sm:$0xff] %v621
      %686 = vst [vmem:[%s172 + $0xf8] sm:$0xff] %v622
      %687 = vst [vmem:[%s172 + $0x100] sm:$0xff] %v623
      %688 = vst [vmem:[%s172 + $0x108] sm:$0xff] %v624
      %689 = vst [vmem:[%s172 + $0x110] sm:$0xff] %v625
      %690 = vst [vmem:[%s172 + $0x118] sm:$0xff] %v626
      %691 = vst [vmem:[%s172 + $0x120] sm:$0xff] %v627
      %692 = vst [vmem:[%s172 + $0x128] sm:$0xff] %v628
      %693 = vst [vmem:[%s172 + $0x130] sm:$0xff] %v629
      %694 = vst [vmem:[%s172 + $0x138] sm:$0xff] %v630
      %695 = vst [vmem:[%s172 + $0x140] sm:$0xff] %v631
      %696 = vst [vmem:[%s172 + $0x148] sm:$0xff] %v632
      %697 = vst [vmem:[%s172 + $0x150] sm:$0xff] %v633
      %698 = vst [vmem:[%s172 + $0x158] sm:$0xff] %v634
      %699 = vst [vmem:[%s172 + $0x160] sm:$0xff] %v635
      %700 = vst [vmem:[%s172 + $0x168] sm:$0xff] %v636
      %701 = vst [vmem:[%s172 + $0x170] sm:$0xff] %v637
      %702 = vst [vmem:[%s172 + $0x178] sm:$0xff] %v638
      %703 = vst [vmem:[%s172 + $0x180] sm:$0xff] %v639
      %704 = vst [vmem:[%s172 + $0x188] sm:$0xff] %v640
      %705 = vst [vmem:[%s172 + $0x190] sm:$0xff] %v641
      %706 = vst [vmem:[%s172 + $0x198] sm:$0xff] %v642
      %707 = vst [vmem:[%s172 + $0x1a0] sm:$0xff] %v643
      %708 = vst [vmem:[%s172 + $0x1a8] sm:$0xff] %v644
      %709 = vst [vmem:[%s172 + $0x1b0] sm:$0xff] %v645
      %710 = vst [vmem:[%s172 + $0x1b8] sm:$0xff] %v646
      %711 = vst [vmem:[%s172 + $0x1c0] sm:$0xff] %v647
      %712 = vst [vmem:[%s172 + $0x1c8] sm:$0xff] %v648
      %713 = vst [vmem:[%s172 + $0x1d0] sm:$0xff] %v649
      %714 = vst [vmem:[%s172 + $0x1d8] sm:$0xff] %v650
      %715 = vst [vmem:[%s172 + $0x1e0] sm:$0xff] %v651
      %716 = vst [vmem:[%s172 + $0x1e8] sm:$0xff] %v652
      %717 = vst [vmem:[%s172 + $0x1f0] sm:$0xff] %v653
      %718 = vst [vmem:[%s172 + $0x1f8] sm:$0xff] %v654
      %s719 = smul.u32 64, %s14
      %p720 = scmp.lt.s32.totalorder %s719, 1023
      %s721 = scalar_select %p720, %s719, 1023
      %s722 = smul.addr %s721, 8
      %s723 = scalar_lea.vmem %s3, %s722
      // Predicated region
      $region33: #{vision_transformer_forward.37} parent=31 // pred_check
        %p724 = pneg %p100
      $region34: #{vision_transformer_forward.37} parent=31 // pred_check_branch
        %726 = sbr.rel (%p724) target = $region36
      $region35: #{vision_transformer_forward.37} parent=31 // pred_region
        %s727 = smul.u32 64, %s14
      $region36: #{vision_transformer_forward.37} parent=31 // pred_fallthru
        _
    $region32: #{vision_transformer_forward.37} parent=5 // pred_fallthru
      _
    %p728 = scmp.le.s32.totalorder 2, %s9
    // Predicated region
    $region37: #{vision_transformer_forward.37} parent=5 // pred_check
      %p729 = pneg %p728
    $region38: #{vision_transformer_forward.37} parent=5 // pred_check_branch
      %731 = sbr.rel (%p729) target = $region40
    $region39: #{vision_transformer_forward.37} parent=5 // pred_region
      %s732 = ssub.s32 %s9, 2
      // Predicated region
      $region41: #{vision_transformer_forward.37} parent=39 // pred_check
        %p733 = pneg %p106
      $region42: #{vision_transformer_forward.37} parent=39 // pred_check_branch
        %735 = sbr.rel (%p733) target = $region44
      $region43: #{vision_transformer_forward.37} parent=39 // pred_region
        %s736 = smul.u32 64, %s15
        %p737 = scmp.lt.s32.totalorder %s736, 1023
        %s738 = scalar_select %p737, %s736, 1023
        %s739 = smul.addr %s738, 8
        %s740 = scalar_lea.vmem %s3, %s739
      $region44: #{vision_transformer_forward.37} parent=39 // pred_fallthru
        _
    $region40: #{vision_transformer_forward.37} parent=5 // pred_fallthru
      _
  $region6: #{vision_transformer_forward.37} parent=0 // loop_footer
    %s13 = sadd.s32 1, %s9
  $region7: #{vision_transformer_forward.37} parent=0 // loop_footer_branch
    %8 = sbr.rel target = $region3
  $region8: #{vision_transformer_forward.37} parent=0 // loop_exit
    _

</llo_original>
